<compile_context>
chip_gen: v6e
topology: v6e:2x2x1
jax: 0.10.0
libtpu: 0.0.40
codegen_flags: <defaults>
</compile_context>

<pallas_src>
import jax
import jax.numpy as jnp
from jax.experimental import pallas as pl
from jax.experimental.pallas import tpu as pltpu


_VMEM_LIMIT = 48 * 1024 * 1024   # below v7x's 64 MiB physical; generous on v5e/v6e.


def _round_up(x, m):
    return (x + m - 1) // m * m


def _m_tile(M, tm_max=1024):
    """Pick the M (row) tile for a 1-D 'parallel' grid.

    * Small problems (<=512 rows): one full-extent tile (no padding, no per-step
      overhead; full-extent dims are exempt from the (8,128) divisibility rule).
    * Larger problems: 128-aligned tiles <= tm_max with at least 2 near-equal tiles,
      so v7x's two TensorCores both get work and the last tile isn't mostly padding.
    """
    if M <= 512:
        return M
    ntiles = max(pl.cdiv(M, tm_max), 2)
    return min(_round_up(pl.cdiv(M, ntiles), 128), tm_max)


# ------------------------- Pallas kernels -------------------------

def _matmul_bias_relu_kernel(x_ref, w_ref, b_ref, o_ref):
    """One MXU matmul over the full K, fused bias + ReLU.
    bf16 operands, f32 accumulate / bias / ReLU, bf16 store."""
    acc = jnp.dot(x_ref[...], w_ref[...], preferred_element_type=jnp.float32)
    o_ref[...] = jnp.maximum(acc + b_ref[...], 0.0).astype(o_ref.dtype)


def matmul_bias_relu(x, w, b):
    """relu(x @ w + b).  x: [M, K] bf16, w: [K, N] bf16, b: [1, N] f32 -> [M, N] bf16."""
    M, K = x.shape
    K2, N = w.shape
    assert K == K2 and b.shape == (1, N)

    tm = _m_tile(M)
    grid = (pl.cdiv(M, tm),)

    return pl.pallas_call(
        _matmul_bias_relu_kernel,
        out_shape=jax.ShapeDtypeStruct((M, N), jnp.bfloat16),
        grid_spec=pltpu.PrefetchScalarGridSpec(
            num_scalar_prefetch=0,
            grid=grid,
            in_specs=[
                pl.BlockSpec((tm, K), lambda i: (i, 0)),   # patches tile
                pl.BlockSpec((K, N), lambda i: (0, 0)),    # weights, resident across grid
                pl.BlockSpec((1, N), lambda i: (0, 0)),    # bias (f32)
            ],
            out_specs=pl.BlockSpec((tm, N), lambda i: (i, 0)),
        ),
        compiler_params=pltpu.CompilerParams(
            dimension_semantics=("parallel",),
            vmem_limit_bytes=_VMEM_LIMIT),
    )(x, w, b)


def _maxpool_kernel(r0_ref, r1_ref, r2_ref, o_ref):
    # Three vertical taps (horizontal taps already folded in the wrapper).
    o_ref[...] = jnp.maximum(jnp.maximum(r0_ref[...], r1_ref[...]), r2_ref[...])


def maxpool3x3_s2(x_nhwc):
    """MaxPool2d(kernel_size=3, stride=2), no padding (PyTorch default).  bf16 in/out."""
    N, H, W, C = x_nhwc.shape
    Ho = (H - 3) // 2 + 1
    Wo = (W - 3) // 2 + 1
    M = N * Ho * Wo

    # Fold the 3 horizontal taps with elementwise max in JAX (XLA fuses the strided
    # slices + maximum into the producers of the three row arrays).  The three arrays
    # feed the kernel as separate inputs — no stacked [3, M, C] HBM round trip.
    rows = []
    for dy in range(3):
        r = x_nhwc[:, dy:dy + 2 * Ho - 1:2, :, :]                      # (N, Ho, W, C)
        h = jnp.maximum(
            jnp.maximum(r[:, :, 0:2 * Wo - 1:2, :], r[:, :, 1:2 * Wo:2, :]),
            r[:, :, 2:2 * Wo + 1:2, :])                                # (N, Ho, Wo, C)
        rows.append(h.reshape(M, C))                                   # contiguous reshape

    tm = _m_tile(M)
    row_spec = pl.BlockSpec((tm, C), lambda i: (i, 0))
    out = pl.pallas_call(
        _maxpool_kernel,
        out_shape=jax.ShapeDtypeStruct((M, C), x_nhwc.dtype),
        grid_spec=pltpu.PrefetchScalarGridSpec(
            num_scalar_prefetch=0,
            grid=(pl.cdiv(M, tm),),
            in_specs=[row_spec, row_spec, row_spec],
            out_specs=pl.BlockSpec((tm, C), lambda i: (i, 0)),
        ),
        compiler_params=pltpu.CompilerParams(
            dimension_semantics=("parallel",),
            vmem_limit_bytes=_VMEM_LIMIT),
    )(*rows)
    return out.reshape(N, Ho, Wo, C)


# ------------------------- conv via im2col + Pallas matmul -------------------------

def conv2d_relu(x_nhwc, wmat, b, kh, kw, stride, padding):
    """wmat: [kh*kw*cin, cout] bf16 (pre-packed at init), b: [1, cout] f32.
    x_nhwc: bf16 NHWC.  Returns relu(conv(x, w) + b) in NHWC, bf16."""
    N, H, W, C = x_nhwc.shape
    xpad = jnp.pad(x_nhwc,
                   ((0, 0), (padding, padding), (padding, padding), (0, 0)))
    Hp, Wp = H + 2 * padding, W + 2 * padding
    Ho = (Hp - kh) // stride + 1
    Wo = (Wp - kw) // stride + 1

    taps = []
    for ky in range(kh):
        for kx in range(kw):
            taps.append(xpad[:, ky:ky + stride * (Ho - 1) + 1:stride,
                             kx:kx + stride * (Wo - 1) + 1:stride, :])
    # [N, Ho, Wo, kh*kw, C] -> [N*Ho*Wo, kh*kw*C]   (flatten order: ky, kx, c)
    patches = jnp.stack(taps, axis=3).reshape(N * Ho * Wo, kh * kw * C)

    out = matmul_bias_relu(patches, wmat, b)          # bf16 [M, cout]
    return out.reshape(N, Ho, Wo, -1)


# ------------------------- AlexNet features -------------------------

_CONV_CFG = [
    # (kh, kw, cin, cout, stride, padding)
    (11, 11,   3,  64, 4, 2),   # features[0]
    ( 5,  5,  64, 192, 1, 2),   # features[3]
    ( 3,  3, 192, 384, 1, 1),   # features[6]
    ( 3,  3, 384, 256, 1, 1),   # features[8]
    ( 3,  3, 256, 256, 1, 1),   # features[10]
]


def init_params(key):
    """Weights pre-reshaped to [kh*kw*cin, cout] and pre-cast to bf16 (hoisted out of
    the per-call jit); biases kept f32 as [1, cout]."""
    params = {}
    for i, (kh, kw, cin, cout, _, _) in enumerate(_CONV_CFG):
        key, kw_key, kb_key = jax.random.split(key, 3)
        fan_in = kh * kw * cin
        w = (jax.random.normal(kw_key, (kh, kw, cin, cout), jnp.float32)
             * (2.0 / fan_in) ** 0.5)
        b = jax.random.normal(kb_key, (cout,), jnp.float32) * 0.01
        params[f"w{i}"] = w.reshape(kh * kw * cin, cout).astype(jnp.bfloat16)
        params[f"b{i}"] = b.reshape(1, cout)
    return params


@jax.jit
def alexnet_forward(x_nchw, params):
    # NCHW -> NHWC; activations stay bf16 through the whole feature extractor
    # (f32 accumulation happens inside the MXU matmul kernel).
    x = jnp.transpose(x_nchw, (0, 2, 3, 1)).astype(jnp.bfloat16)

    def conv(i, inp):
        kh, kw, _, _, stride, pad = _CONV_CFG[i]
        return conv2d_relu(inp, params[f"w{i}"], params[f"b{i}"],
                           kh, kw, stride, pad)

    # features0 = Conv(3->64, k11, s4, p2) + ReLU + MaxPool(3, 2)
    xf0 = maxpool3x3_s2(conv(0, x))
    # features1 = Conv(64->192, k5, p2) + ReLU + MaxPool(3, 2)
    xf1 = maxpool3x3_s2(conv(1, xf0))
    # features2 = Conv(192->384, k3, p1) + ReLU
    xf2 = conv(2, xf1)
    # features3 = Conv(384->256, k3, p1) + ReLU
    xf3 = conv(3, xf2)
    # features4 = Conv(256->256, k3, p1) + ReLU + MaxPool(3, 2)
    xf4 = maxpool3x3_s2(conv(4, xf3))

    # Return NCHW / f32 to match the PyTorch module's output convention.
    to_nchw = lambda t: jnp.transpose(t, (0, 3, 1, 2)).astype(jnp.float32)
    return tuple(to_nchw(t) for t in (xf0, xf1, xf2, xf3, xf4))


if __name__ == "__main__":
    key = jax.random.PRNGKey(0)
    key, pkey, xkey = jax.random.split(key, 3)
    params = init_params(pkey)

    # Small input (64x64 is the smallest that keeps all 5 stages non-degenerate).
    x = jax.random.normal(xkey, (2, 3, 64, 64), jnp.float32)   # NCHW

    outs = alexnet_forward(x, params)
    outs = jax.block_until_ready(outs)

    expected = [(2, 64, 7, 7), (2, 192, 3, 3), (2, 384, 3, 3),
                (2, 256, 3, 3), (2, 256, 1, 1)]
    assert [tuple(o.shape) for o in outs] == expected, \
        [tuple(o.shape) for o in outs]
    assert all(o.dtype == jnp.float32 for o in outs)
    assert all(bool(jnp.all(jnp.isfinite(o))) for o in outs)
    print("KERNEL_OK")
</pallas_src>

<mosaic_0001>
module attributes {stable_mosaic.version = 11 : i64} {
  func.func @_matmul_bias_relu_kernel(%arg0: i32, %arg1: memref<450x363xbf16, #tpu.memory_space<vmem>>, %arg2: memref<363x64xbf16, #tpu.memory_space<vmem>>, %arg3: memref<1x64xf32, #tpu.memory_space<vmem>>, %arg4: memref<450x64xbf16, #tpu.memory_space<vmem>>) attributes {dimension_semantics = [#tpu.dimension_semantics<parallel>], iteration_bounds = array<i64: 1>, scalar_prefetch = 0 : i64, scratch_operands = 0 : i64, tpu.core_type = #tpu.core_type<tc>, window_params = [{transform_indices = @transform_0, window_bounds = array<i64: 450, 363>}, {pipeline_mode = #tpu.pipeline_mode<synchronous>, transform_indices = @transform_1, window_bounds = array<i64: 363, 64>}, {pipeline_mode = #tpu.pipeline_mode<synchronous>, transform_indices = @transform_2, window_bounds = array<i64: 1, 64>}, {transform_indices = @transform_3, window_bounds = array<i64: 450, 64>}]} {
    %c0 = arith.constant 0 : index
    %c0_0 = arith.constant 0 : index
    %0 = vector.load %arg1[%c0, %c0_0] : memref<450x363xbf16, #tpu.memory_space<vmem>>, vector<450x363xbf16>
    %c0_1 = arith.constant 0 : index
    %c0_2 = arith.constant 0 : index
    %1 = vector.load %arg2[%c0_1, %c0_2] : memref<363x64xbf16, #tpu.memory_space<vmem>>, vector<363x64xbf16>
    %cst = arith.constant dense<0.000000e+00> : vector<450x64xf32>
    %2 = tpu.matmul %0, %1, %cst {dimension_numbers = #tpu.dot_dimension_numbers<[1], [0], [0], [1], [0, 0, 1, 1], [], []>} : vector<450x363xbf16>, vector<363x64xbf16>, vector<450x64xf32> -> vector<450x64xf32>
    %c0_3 = arith.constant 0 : index
    %c0_4 = arith.constant 0 : index
    %3 = vector.load %arg3[%c0_3, %c0_4] : memref<1x64xf32, #tpu.memory_space<vmem>>, vector<1x64xf32>
    %4 = vector.broadcast %3 : vector<1x64xf32> to vector<450x64xf32>
    %5 = arith.addf %2, %4 : vector<450x64xf32>
    %cst_5 = arith.constant 0.000000e+00 : f32
    %6 = vector.broadcast %cst_5 : f32 to vector<450x64xf32>
    %7 = arith.maximumf %5, %6 : vector<450x64xf32>
    %8 = arith.truncf %7 : vector<450x64xf32> to vector<450x64xbf16>
    %c0_6 = arith.constant 0 : index
    %c0_7 = arith.constant 0 : index
    %9 = vector.load %arg4[%c0_6, %c0_7] : memref<450x64xbf16, #tpu.memory_space<vmem>>, vector<450x64xbf16>
    tpu.vector_store %arg4[%c0_6, %c0_7], %8 {strides = array<i32>} : memref<450x64xbf16, #tpu.memory_space<vmem>>, vector<450x64xbf16>,
    return
  }
  func.func @transform_0(%arg0: i32) -> (i32, i32) {
    %c0_i32 = arith.constant 0 : i32
    %c0_i32_0 = arith.constant 0 : i32
    return %arg0, %c0_i32 : i32, i32
  }
  func.func @transform_1(%arg0: i32) -> (i32, i32) {
    %c0_i32 = arith.constant 0 : i32
    %c0_i32_0 = arith.constant 0 : i32
    %c0_i32_1 = arith.constant 0 : i32
    return %c0_i32, %c0_i32_0 : i32, i32
  }
  func.func @transform_2(%arg0: i32) -> (i32, i32) {
    %c0_i32 = arith.constant 0 : i32
    %c0_i32_0 = arith.constant 0 : i32
    %c0_i32_1 = arith.constant 0 : i32
    return %c0_i32, %c0_i32_0 : i32, i32
  }
  func.func @transform_3(%arg0: i32) -> (i32, i32) {
    %c0_i32 = arith.constant 0 : i32
    %c0_i32_0 = arith.constant 0 : i32
    return %arg0, %c0_i32 : i32, i32
  }
}

module attributes {stable_mosaic.version = 11 : i64} {
  func.func @_maxpool_kernel(%arg0: i32, %arg1: memref<98x64xbf16, #tpu.memory_space<vmem>>, %arg2: memref<98x64xbf16, #tpu.memory_space<vmem>>, %arg3: memref<98x64xbf16, #tpu.memory_space<vmem>>, %arg4: memref<98x64xbf16, #tpu.memory_space<vmem>>) attributes {dimension_semantics = [#tpu.dimension_semantics<parallel>], iteration_bounds = array<i64: 1>, scalar_prefetch = 0 : i64, scratch_operands = 0 : i64, tpu.core_type = #tpu.core_type<tc>, window_params = [{transform_indices = @transform_0, window_bounds = array<i64: 98, 64>}, {transform_indices = @transform_1, window_bounds = array<i64: 98, 64>}, {transform_indices = @transform_2, window_bounds = array<i64: 98, 64>}, {transform_indices = @transform_3, window_bounds = array<i64: 98, 64>}]} {
    %c0 = arith.constant 0 : index
    %c0_0 = arith.constant 0 : index
    %0 = vector.load %arg1[%c0, %c0_0] : memref<98x64xbf16, #tpu.memory_space<vmem>>, vector<98x64xbf16>
    %c0_1 = arith.constant 0 : index
    %c0_2 = arith.constant 0 : index
    %1 = vector.load %arg2[%c0_1, %c0_2] : memref<98x64xbf16, #tpu.memory_space<vmem>>, vector<98x64xbf16>
    %2 = arith.maximumf %0, %1 : vector<98x64xbf16>
    %c0_3 = arith.constant 0 : index
    %c0_4 = arith.constant 0 : index
    %3 = vector.load %arg3[%c0_3, %c0_4] : memref<98x64xbf16, #tpu.memory_space<vmem>>, vector<98x64xbf16>
    %4 = arith.maximumf %2, %3 : vector<98x64xbf16>
    %c0_5 = arith.constant 0 : index
    %c0_6 = arith.constant 0 : index
    %5 = vector.load %arg4[%c0_5, %c0_6] : memref<98x64xbf16, #tpu.memory_space<vmem>>, vector<98x64xbf16>
    tpu.vector_store %arg4[%c0_5, %c0_6], %4 {strides = array<i32>} : memref<98x64xbf16, #tpu.memory_space<vmem>>, vector<98x64xbf16>,
    return
  }
  func.func @transform_0(%arg0: i32) -> (i32, i32) {
    %c0_i32 = arith.constant 0 : i32
    %c0_i32_0 = arith.constant 0 : i32
    return %arg0, %c0_i32 : i32, i32
  }
  func.func @transform_1(%arg0: i32) -> (i32, i32) {
    %c0_i32 = arith.constant 0 : i32
    %c0_i32_0 = arith.constant 0 : i32
    return %arg0, %c0_i32 : i32, i32
  }
  func.func @transform_2(%arg0: i32) -> (i32, i32) {
    %c0_i32 = arith.constant 0 : i32
    %c0_i32_0 = arith.constant 0 : i32
    return %arg0, %c0_i32 : i32, i32
  }
  func.func @transform_3(%arg0: i32) -> (i32, i32) {
    %c0_i32 = arith.constant 0 : i32
    %c0_i32_0 = arith.constant 0 : i32
    return %arg0, %c0_i32 : i32, i32
  }
}

module attributes {stable_mosaic.version = 11 : i64} {
  func.func @_matmul_bias_relu_kernel(%arg0: i32, %arg1: memref<98x1600xbf16, #tpu.memory_space<vmem>>, %arg2: memref<1600x192xbf16, #tpu.memory_space<vmem>>, %arg3: memref<1x192xf32, #tpu.memory_space<vmem>>, %arg4: memref<98x192xbf16, #tpu.memory_space<vmem>>) attributes {dimension_semantics = [#tpu.dimension_semantics<parallel>], iteration_bounds = array<i64: 1>, scalar_prefetch = 0 : i64, scratch_operands = 0 : i64, tpu.core_type = #tpu.core_type<tc>, window_params = [{transform_indices = @transform_0, window_bounds = array<i64: 98, 1600>}, {pipeline_mode = #tpu.pipeline_mode<synchronous>, transform_indices = @transform_1, window_bounds = array<i64: 1600, 192>}, {pipeline_mode = #tpu.pipeline_mode<synchronous>, transform_indices = @transform_2, window_bounds = array<i64: 1, 192>}, {transform_indices = @transform_3, window_bounds = array<i64: 98, 192>}]} {
    %c0 = arith.constant 0 : index
    %c0_0 = arith.constant 0 : index
    %0 = vector.load %arg1[%c0, %c0_0] : memref<98x1600xbf16, #tpu.memory_space<vmem>>, vector<98x1600xbf16>
    %c0_1 = arith.constant 0 : index
    %c0_2 = arith.constant 0 : index
    %1 = vector.load %arg2[%c0_1, %c0_2] : memref<1600x192xbf16, #tpu.memory_space<vmem>>, vector<1600x192xbf16>
    %cst = arith.constant dense<0.000000e+00> : vector<98x192xf32>
    %2 = tpu.matmul %0, %1, %cst {dimension_numbers = #tpu.dot_dimension_numbers<[1], [0], [0], [1], [0, 0, 1, 1], [], []>} : vector<98x1600xbf16>, vector<1600x192xbf16>, vector<98x192xf32> -> vector<98x192xf32>
    %c0_3 = arith.constant 0 : index
    %c0_4 = arith.constant 0 : index
    %3 = vector.load %arg3[%c0_3, %c0_4] : memref<1x192xf32, #tpu.memory_space<vmem>>, vector<1x192xf32>
    %4 = vector.broadcast %3 : vector<1x192xf32> to vector<98x192xf32>
    %5 = arith.addf %2, %4 : vector<98x192xf32>
    %cst_5 = arith.constant 0.000000e+00 : f32
    %6 = vector.broadcast %cst_5 : f32 to vector<98x192xf32>
    %7 = arith.maximumf %5, %6 : vector<98x192xf32>
    %8 = arith.truncf %7 : vector<98x192xf32> to vector<98x192xbf16>
    %c0_6 = arith.constant 0 : index
    %c0_7 = arith.constant 0 : index
    %9 = vector.load %arg4[%c0_6, %c0_7] : memref<98x192xbf16, #tpu.memory_space<vmem>>, vector<98x192xbf16>
    tpu.vector_store %arg4[%c0_6, %c0_7], %8 {strides = array<i32>} : memref<98x192xbf16, #tpu.memory_space<vmem>>, vector<98x192xbf16>,
    return
  }
  func.func @transform_0(%arg0: i32) -> (i32, i32) {
    %c0_i32 = arith.constant 0 : i32
    %c0_i32_0 = arith.constant 0 : i32
    return %arg0, %c0_i32 : i32, i32
  }
  func.func @transform_1(%arg0: i32) -> (i32, i32) {
    %c0_i32 = arith.constant 0 : i32
    %c0_i32_0 = arith.constant 0 : i32
    %c0_i32_1 = arith.constant 0 : i32
    return %c0_i32, %c0_i32_0 : i32, i32
  }
  func.func @transform_2(%arg0: i32) -> (i32, i32) {
    %c0_i32 = arith.constant 0 : i32
    %c0_i32_0 = arith.constant 0 : i32
    %c0_i32_1 = arith.constant 0 : i32
    return %c0_i32, %c0_i32_0 : i32, i32
  }
  func.func @transform_3(%arg0: i32) -> (i32, i32) {
    %c0_i32 = arith.constant 0 : i32
    %c0_i32_0 = arith.constant 0 : i32
    return %arg0, %c0_i32 : i32, i32
  }
}

module attributes {stable_mosaic.version = 11 : i64} {
  func.func @_maxpool_kernel(%arg0: i32, %arg1: memref<18x192xbf16, #tpu.memory_space<vmem>>, %arg2: memref<18x192xbf16, #tpu.memory_space<vmem>>, %arg3: memref<18x192xbf16, #tpu.memory_space<vmem>>, %arg4: memref<18x192xbf16, #tpu.memory_space<vmem>>) attributes {dimension_semantics = [#tpu.dimension_semantics<parallel>], iteration_bounds = array<i64: 1>, scalar_prefetch = 0 : i64, scratch_operands = 0 : i64, tpu.core_type = #tpu.core_type<tc>, window_params = [{transform_indices = @transform_0, window_bounds = array<i64: 18, 192>}, {transform_indices = @transform_1, window_bounds = array<i64: 18, 192>}, {transform_indices = @transform_2, window_bounds = array<i64: 18, 192>}, {transform_indices = @transform_3, window_bounds = array<i64: 18, 192>}]} {
    %c0 = arith.constant 0 : index
    %c0_0 = arith.constant 0 : index
    %0 = vector.load %arg1[%c0, %c0_0] : memref<18x192xbf16, #tpu.memory_space<vmem>>, vector<18x192xbf16>
    %c0_1 = arith.constant 0 : index
    %c0_2 = arith.constant 0 : index
    %1 = vector.load %arg2[%c0_1, %c0_2] : memref<18x192xbf16, #tpu.memory_space<vmem>>, vector<18x192xbf16>
    %2 = arith.maximumf %0, %1 : vector<18x192xbf16>
    %c0_3 = arith.constant 0 : index
    %c0_4 = arith.constant 0 : index
    %3 = vector.load %arg3[%c0_3, %c0_4] : memref<18x192xbf16, #tpu.memory_space<vmem>>, vector<18x192xbf16>
    %4 = arith.maximumf %2, %3 : vector<18x192xbf16>
    %c0_5 = arith.constant 0 : index
    %c0_6 = arith.constant 0 : index
    %5 = vector.load %arg4[%c0_5, %c0_6] : memref<18x192xbf16, #tpu.memory_space<vmem>>, vector<18x192xbf16>
    tpu.vector_store %arg4[%c0_5, %c0_6], %4 {strides = array<i32>} : memref<18x192xbf16, #tpu.memory_space<vmem>>, vector<18x192xbf16>,
    return
  }
  func.func @transform_0(%arg0: i32) -> (i32, i32) {
    %c0_i32 = arith.constant 0 : i32
    %c0_i32_0 = arith.constant 0 : i32
    return %arg0, %c0_i32 : i32, i32
  }
  func.func @transform_1(%arg0: i32) -> (i32, i32) {
    %c0_i32 = arith.constant 0 : i32
    %c0_i32_0 = arith.constant 0 : i32
    return %arg0, %c0_i32 : i32, i32
  }
  func.func @transform_2(%arg0: i32) -> (i32, i32) {
    %c0_i32 = arith.constant 0 : i32
    %c0_i32_0 = arith.constant 0 : i32
    return %arg0, %c0_i32 : i32, i32
  }
  func.func @transform_3(%arg0: i32) -> (i32, i32) {
    %c0_i32 = arith.constant 0 : i32
    %c0_i32_0 = arith.constant 0 : i32
    return %arg0, %c0_i32 : i32, i32
  }
}

module attributes {stable_mosaic.version = 11 : i64} {
  func.func @_matmul_bias_relu_kernel(%arg0: i32, %arg1: memref<18x1728xbf16, #tpu.memory_space<vmem>>, %arg2: memref<1728x384xbf16, #tpu.memory_space<vmem>>, %arg3: memref<1x384xf32, #tpu.memory_space<vmem>>, %arg4: memref<18x384xbf16, #tpu.memory_space<vmem>>) attributes {dimension_semantics = [#tpu.dimension_semantics<parallel>], iteration_bounds = array<i64: 1>, scalar_prefetch = 0 : i64, scratch_operands = 0 : i64, tpu.core_type = #tpu.core_type<tc>, window_params = [{transform_indices = @transform_0, window_bounds = array<i64: 18, 1728>}, {pipeline_mode = #tpu.pipeline_mode<synchronous>, transform_indices = @transform_1, window_bounds = array<i64: 1728, 384>}, {pipeline_mode = #tpu.pipeline_mode<synchronous>, transform_indices = @transform_2, window_bounds = array<i64: 1, 384>}, {transform_indices = @transform_3, window_bounds = array<i64: 18, 384>}]} {
    %c0 = arith.constant 0 : index
    %c0_0 = arith.constant 0 : index
    %0 = vector.load %arg1[%c0, %c0_0] : memref<18x1728xbf16, #tpu.memory_space<vmem>>, vector<18x1728xbf16>
    %c0_1 = arith.constant 0 : index
    %c0_2 = arith.constant 0 : index
    %1 = vector.load %arg2[%c0_1, %c0_2] : memref<1728x384xbf16, #tpu.memory_space<vmem>>, vector<1728x384xbf16>
    %cst = arith.constant dense<0.000000e+00> : vector<18x384xf32>
    %2 = tpu.matmul %0, %1, %cst {dimension_numbers = #tpu.dot_dimension_numbers<[1], [0], [0], [1], [0, 0, 1, 1], [], []>} : vector<18x1728xbf16>, vector<1728x384xbf16>, vector<18x384xf32> -> vector<18x384xf32>
    %c0_3 = arith.constant 0 : index
    %c0_4 = arith.constant 0 : index
    %3 = vector.load %arg3[%c0_3, %c0_4] : memref<1x384xf32, #tpu.memory_space<vmem>>, vector<1x384xf32>
    %4 = vector.broadcast %3 : vector<1x384xf32> to vector<18x384xf32>
    %5 = arith.addf %2, %4 : vector<18x384xf32>
    %cst_5 = arith.constant 0.000000e+00 : f32
    %6 = vector.broadcast %cst_5 : f32 to vector<18x384xf32>
    %7 = arith.maximumf %5, %6 : vector<18x384xf32>
    %8 = arith.truncf %7 : vector<18x384xf32> to vector<18x384xbf16>
    %c0_6 = arith.constant 0 : index
    %c0_7 = arith.constant 0 : index
    %9 = vector.load %arg4[%c0_6, %c0_7] : memref<18x384xbf16, #tpu.memory_space<vmem>>, vector<18x384xbf16>
    tpu.vector_store %arg4[%c0_6, %c0_7], %8 {strides = array<i32>} : memref<18x384xbf16, #tpu.memory_space<vmem>>, vector<18x384xbf16>,
    return
  }
  func.func @transform_0(%arg0: i32) -> (i32, i32) {
    %c0_i32 = arith.constant 0 : i32
    %c0_i32_0 = arith.constant 0 : i32
    return %arg0, %c0_i32 : i32, i32
  }
  func.func @transform_1(%arg0: i32) -> (i32, i32) {
    %c0_i32 = arith.constant 0 : i32
    %c0_i32_0 = arith.constant 0 : i32
    %c0_i32_1 = arith.constant 0 : i32
    return %c0_i32, %c0_i32_0 : i32, i32
  }
  func.func @transform_2(%arg0: i32) -> (i32, i32) {
    %c0_i32 = arith.constant 0 : i32
    %c0_i32_0 = arith.constant 0 : i32
    %c0_i32_1 = arith.constant 0 : i32
    return %c0_i32, %c0_i32_0 : i32, i32
  }
  func.func @transform_3(%arg0: i32) -> (i32, i32) {
    %c0_i32 = arith.constant 0 : i32
    %c0_i32_0 = arith.constant 0 : i32
    return %arg0, %c0_i32 : i32, i32
  }
}

module attributes {stable_mosaic.version = 11 : i64} {
  func.func @_matmul_bias_relu_kernel(%arg0: i32, %arg1: memref<18x3456xbf16, #tpu.memory_space<vmem>>, %arg2: memref<3456x256xbf16, #tpu.memory_space<vmem>>, %arg3: memref<1x256xf32, #tpu.memory_space<vmem>>, %arg4: memref<18x256xbf16, #tpu.memory_space<vmem>>) attributes {dimension_semantics = [#tpu.dimension_semantics<parallel>], iteration_bounds = array<i64: 1>, scalar_prefetch = 0 : i64, scratch_operands = 0 : i64, tpu.core_type = #tpu.core_type<tc>, window_params = [{transform_indices = @transform_0, window_bounds = array<i64: 18, 3456>}, {pipeline_mode = #tpu.pipeline_mode<synchronous>, transform_indices = @transform_1, window_bounds = array<i64: 3456, 256>}, {pipeline_mode = #tpu.pipeline_mode<synchronous>, transform_indices = @transform_2, window_bounds = array<i64: 1, 256>}, {transform_indices = @transform_3, window_bounds = array<i64: 18, 256>}]} {
    %c0 = arith.constant 0 : index
    %c0_0 = arith.constant 0 : index
    %0 = vector.load %arg1[%c0, %c0_0] : memref<18x3456xbf16, #tpu.memory_space<vmem>>, vector<18x3456xbf16>
    %c0_1 = arith.constant 0 : index
    %c0_2 = arith.constant 0 : index
    %1 = vector.load %arg2[%c0_1, %c0_2] : memref<3456x256xbf16, #tpu.memory_space<vmem>>, vector<3456x256xbf16>
    %cst = arith.constant dense<0.000000e+00> : vector<18x256xf32>
    %2 = tpu.matmul %0, %1, %cst {dimension_numbers = #tpu.dot_dimension_numbers<[1], [0], [0], [1], [0, 0, 1, 1], [], []>} : vector<18x3456xbf16>, vector<3456x256xbf16>, vector<18x256xf32> -> vector<18x256xf32>
    %c0_3 = arith.constant 0 : index
    %c0_4 = arith.constant 0 : index
    %3 = vector.load %arg3[%c0_3, %c0_4] : memref<1x256xf32, #tpu.memory_space<vmem>>, vector<1x256xf32>
    %4 = vector.broadcast %3 : vector<1x256xf32> to vector<18x256xf32>
    %5 = arith.addf %2, %4 : vector<18x256xf32>
    %cst_5 = arith.constant 0.000000e+00 : f32
    %6 = vector.broadcast %cst_5 : f32 to vector<18x256xf32>
    %7 = arith.maximumf %5, %6 : vector<18x256xf32>
    %8 = arith.truncf %7 : vector<18x256xf32> to vector<18x256xbf16>
    %c0_6 = arith.constant 0 : index
    %c0_7 = arith.constant 0 : index
    %9 = vector.load %arg4[%c0_6, %c0_7] : memref<18x256xbf16, #tpu.memory_space<vmem>>, vector<18x256xbf16>
    tpu.vector_store %arg4[%c0_6, %c0_7], %8 {strides = array<i32>} : memref<18x256xbf16, #tpu.memory_space<vmem>>, vector<18x256xbf16>,
    return
  }
  func.func @transform_0(%arg0: i32) -> (i32, i32) {
    %c0_i32 = arith.constant 0 : i32
    %c0_i32_0 = arith.constant 0 : i32
    return %arg0, %c0_i32 : i32, i32
  }
  func.func @transform_1(%arg0: i32) -> (i32, i32) {
    %c0_i32 = arith.constant 0 : i32
    %c0_i32_0 = arith.constant 0 : i32
    %c0_i32_1 = arith.constant 0 : i32
    return %c0_i32, %c0_i32_0 : i32, i32
  }
  func.func @transform_2(%arg0: i32) -> (i32, i32) {
    %c0_i32 = arith.constant 0 : i32
    %c0_i32_0 = arith.constant 0 : i32
    %c0_i32_1 = arith.constant 0 : i32
    return %c0_i32, %c0_i32_0 : i32, i32
  }
  func.func @transform_3(%arg0: i32) -> (i32, i32) {
    %c0_i32 = arith.constant 0 : i32
    %c0_i32_0 = arith.constant 0 : i32
    return %arg0, %c0_i32 : i32, i32
  }
}

module attributes {stable_mosaic.version = 11 : i64} {
  func.func @_matmul_bias_relu_kernel(%arg0: i32, %arg1: memref<18x2304xbf16, #tpu.memory_space<vmem>>, %arg2: memref<2304x256xbf16, #tpu.memory_space<vmem>>, %arg3: memref<1x256xf32, #tpu.memory_space<vmem>>, %arg4: memref<18x256xbf16, #tpu.memory_space<vmem>>) attributes {dimension_semantics = [#tpu.dimension_semantics<parallel>], iteration_bounds = array<i64: 1>, scalar_prefetch = 0 : i64, scratch_operands = 0 : i64, tpu.core_type = #tpu.core_type<tc>, window_params = [{transform_indices = @transform_0, window_bounds = array<i64: 18, 2304>}, {pipeline_mode = #tpu.pipeline_mode<synchronous>, transform_indices = @transform_1, window_bounds = array<i64: 2304, 256>}, {pipeline_mode = #tpu.pipeline_mode<synchronous>, transform_indices = @transform_2, window_bounds = array<i64: 1, 256>}, {transform_indices = @transform_3, window_bounds = array<i64: 18, 256>}]} {
    %c0 = arith.constant 0 : index
    %c0_0 = arith.constant 0 : index
    %0 = vector.load %arg1[%c0, %c0_0] : memref<18x2304xbf16, #tpu.memory_space<vmem>>, vector<18x2304xbf16>
    %c0_1 = arith.constant 0 : index
    %c0_2 = arith.constant 0 : index
    %1 = vector.load %arg2[%c0_1, %c0_2] : memref<2304x256xbf16, #tpu.memory_space<vmem>>, vector<2304x256xbf16>
    %cst = arith.constant dense<0.000000e+00> : vector<18x256xf32>
    %2 = tpu.matmul %0, %1, %cst {dimension_numbers = #tpu.dot_dimension_numbers<[1], [0], [0], [1], [0, 0, 1, 1], [], []>} : vector<18x2304xbf16>, vector<2304x256xbf16>, vector<18x256xf32> -> vector<18x256xf32>
    %c0_3 = arith.constant 0 : index
    %c0_4 = arith.constant 0 : index
    %3 = vector.load %arg3[%c0_3, %c0_4] : memref<1x256xf32, #tpu.memory_space<vmem>>, vector<1x256xf32>
    %4 = vector.broadcast %3 : vector<1x256xf32> to vector<18x256xf32>
    %5 = arith.addf %2, %4 : vector<18x256xf32>
    %cst_5 = arith.constant 0.000000e+00 : f32
    %6 = vector.broadcast %cst_5 : f32 to vector<18x256xf32>
    %7 = arith.maximumf %5, %6 : vector<18x256xf32>
    %8 = arith.truncf %7 : vector<18x256xf32> to vector<18x256xbf16>
    %c0_6 = arith.constant 0 : index
    %c0_7 = arith.constant 0 : index
    %9 = vector.load %arg4[%c0_6, %c0_7] : memref<18x256xbf16, #tpu.memory_space<vmem>>, vector<18x256xbf16>
    tpu.vector_store %arg4[%c0_6, %c0_7], %8 {strides = array<i32>} : memref<18x256xbf16, #tpu.memory_space<vmem>>, vector<18x256xbf16>,
    return
  }
  func.func @transform_0(%arg0: i32) -> (i32, i32) {
    %c0_i32 = arith.constant 0 : i32
    %c0_i32_0 = arith.constant 0 : i32
    return %arg0, %c0_i32 : i32, i32
  }
  func.func @transform_1(%arg0: i32) -> (i32, i32) {
    %c0_i32 = arith.constant 0 : i32
    %c0_i32_0 = arith.constant 0 : i32
    %c0_i32_1 = arith.constant 0 : i32
    return %c0_i32, %c0_i32_0 : i32, i32
  }
  func.func @transform_2(%arg0: i32) -> (i32, i32) {
    %c0_i32 = arith.constant 0 : i32
    %c0_i32_0 = arith.constant 0 : i32
    %c0_i32_1 = arith.constant 0 : i32
    return %c0_i32, %c0_i32_0 : i32, i32
  }
  func.func @transform_3(%arg0: i32) -> (i32, i32) {
    %c0_i32 = arith.constant 0 : i32
    %c0_i32_0 = arith.constant 0 : i32
    return %arg0, %c0_i32 : i32, i32
  }
}

module attributes {stable_mosaic.version = 11 : i64} {
  func.func @_maxpool_kernel(%arg0: i32, %arg1: memref<2x256xbf16, #tpu.memory_space<vmem>>, %arg2: memref<2x256xbf16, #tpu.memory_space<vmem>>, %arg3: memref<2x256xbf16, #tpu.memory_space<vmem>>, %arg4: memref<2x256xbf16, #tpu.memory_space<vmem>>) attributes {dimension_semantics = [#tpu.dimension_semantics<parallel>], iteration_bounds = array<i64: 1>, scalar_prefetch = 0 : i64, scratch_operands = 0 : i64, tpu.core_type = #tpu.core_type<tc>, window_params = [{transform_indices = @transform_0, window_bounds = array<i64: 2, 256>}, {transform_indices = @transform_1, window_bounds = array<i64: 2, 256>}, {transform_indices = @transform_2, window_bounds = array<i64: 2, 256>}, {transform_indices = @transform_3, window_bounds = array<i64: 2, 256>}]} {
    %c0 = arith.constant 0 : index
    %c0_0 = arith.constant 0 : index
    %0 = vector.load %arg1[%c0, %c0_0] : memref<2x256xbf16, #tpu.memory_space<vmem>>, vector<2x256xbf16>
    %c0_1 = arith.constant 0 : index
    %c0_2 = arith.constant 0 : index
    %1 = vector.load %arg2[%c0_1, %c0_2] : memref<2x256xbf16, #tpu.memory_space<vmem>>, vector<2x256xbf16>
    %2 = arith.maximumf %0, %1 : vector<2x256xbf16>
    %c0_3 = arith.constant 0 : index
    %c0_4 = arith.constant 0 : index
    %3 = vector.load %arg3[%c0_3, %c0_4] : memref<2x256xbf16, #tpu.memory_space<vmem>>, vector<2x256xbf16>
    %4 = arith.maximumf %2, %3 : vector<2x256xbf16>
    %c0_5 = arith.constant 0 : index
    %c0_6 = arith.constant 0 : index
    %5 = vector.load %arg4[%c0_5, %c0_6] : memref<2x256xbf16, #tpu.memory_space<vmem>>, vector<2x256xbf16>
    tpu.vector_store %arg4[%c0_5, %c0_6], %4 {strides = array<i32>} : memref<2x256xbf16, #tpu.memory_space<vmem>>, vector<2x256xbf16>,
    return
  }
  func.func @transform_0(%arg0: i32) -> (i32, i32) {
    %c0_i32 = arith.constant 0 : i32
    %c0_i32_0 = arith.constant 0 : i32
    return %arg0, %c0_i32 : i32, i32
  }
  func.func @transform_1(%arg0: i32) -> (i32, i32) {
    %c0_i32 = arith.constant 0 : i32
    %c0_i32_0 = arith.constant 0 : i32
    return %arg0, %c0_i32 : i32, i32
  }
  func.func @transform_2(%arg0: i32) -> (i32, i32) {
    %c0_i32 = arith.constant 0 : i32
    %c0_i32_0 = arith.constant 0 : i32
    return %arg0, %c0_i32 : i32, i32
  }
  func.func @transform_3(%arg0: i32) -> (i32, i32) {
    %c0_i32 = arith.constant 0 : i32
    %c0_i32_0 = arith.constant 0 : i32
    return %arg0, %c0_i32 : i32, i32
  }
}

</mosaic_0001>

<llo_original>
// kernel: alexnet_forward.8
$region0: #{alexnet_forward.8}
  #allocation0 [shape = 'u32[]', space=smem, size = 0x4, offset = 0x4, fixed_abs, tag = 'smem constant byte address 0x4 - core index']
  #allocation1 [shape = 'u32[144,128]{1,0:T(1,128)}', space=vmem, size = 0x12000, scoped, tag = 'internal scratch']
  %s0 = inlined_call_operand.vmem [shape: bf16[450,363], index: 0, kind: input, shape index: {}]
  %s1 = inlined_call_operand.vmem [shape: bf16[363,64], index: 1, kind: input, shape index: {}]
  %s2 = inlined_call_operand.vmem [shape: f32[1,64], index: 2, kind: input, shape index: {}]
  %s3 = inlined_call_operand.vmem [shape: bf16[450,64], index: 3, kind: output, shape index: {}]
  %s4 = sld [smem:[#allocation0]]
  $region22: #{alexnet_forward.8} parent=0
    _
  %s6 = ssub.s32 1, %s4
  %s7 = scalar_select 0, %s6, %s4
  // Predicated region
  $region2: #{alexnet_forward.8} parent=0 // pred_check
    _
  $region3: #{alexnet_forward.8} parent=0 // pred_check_branch
    %9 = sbr.rel (0) target = $region5
  $region4: #{alexnet_forward.8} parent=0 // pred_region
    _
  $region5: #{alexnet_forward.8} parent=0 // pred_fallthru
    _
  // Predicated region
  $region6: #{alexnet_forward.8} parent=0 // pred_check
    _
  $region7: #{alexnet_forward.8} parent=0 // pred_check_branch
    %11 = sbr.rel (0) target = $region9
  $region8: #{alexnet_forward.8} parent=0 // pred_region
    _
  $region9: #{alexnet_forward.8} parent=0 // pred_fallthru
    _
  // Predicated region
  $region10: #{alexnet_forward.8} parent=0 // pred_check
    _
  $region11: #{alexnet_forward.8} parent=0 // pred_check_branch
    %13 = sbr.rel (0) target = $region13
  $region12: #{alexnet_forward.8} parent=0 // pred_region
    _
  $region13: #{alexnet_forward.8} parent=0 // pred_fallthru
    _
  %v15 = vld [vmem:[%s0] sm:$0xff]
  %v16 = vld [vmem:[%s0 + $0x8] sm:$0xf]
  %v17 = vld [vmem:[%s0 + $0xc] sm:$0xff]
  %v18 = vld [vmem:[%s0 + $0x14] sm:$0xf]
  %v19 = vld [vmem:[%s0 + $0x18] sm:$0xff]
  %v20 = vld [vmem:[%s0 + $0x20] sm:$0xf]
  %v21 = vld [vmem:[%s0 + $0x24] sm:$0xff]
  %v22 = vld [vmem:[%s0 + $0x2c] sm:$0xf]
  %v23 = vld [vmem:[%s0 + $0x30] sm:$0xff]
  %v24 = vld [vmem:[%s0 + $0x38] sm:$0xf]
  %v25 = vld [vmem:[%s0 + $0x3c] sm:$0xff]
  %v26 = vld [vmem:[%s0 + $0x44] sm:$0xf]
  %v27 = vld [vmem:[%s0 + $0x48] sm:$0xff]
  %v28 = vld [vmem:[%s0 + $0x50] sm:$0xf]
  %v29 = vld [vmem:[%s0 + $0x54] sm:$0xff]
  %v30 = vld [vmem:[%s0 + $0x5c] sm:$0xf]
  %v31 = vld [vmem:[%s0 + $0x60] sm:$0xff]
  %v32 = vld [vmem:[%s0 + $0x68] sm:$0xf]
  %v33 = vld [vmem:[%s0 + $0x6c] sm:$0xff]
  %v34 = vld [vmem:[%s0 + $0x74] sm:$0xf]
  %v35 = vld [vmem:[%s0 + $0x78] sm:$0xff]
  %v36 = vld [vmem:[%s0 + $0x80] sm:$0xf]
  %v37 = vld [vmem:[%s0 + $0x84] sm:$0xff]
  %v38 = vld [vmem:[%s0 + $0x8c] sm:$0xf]
  %v39 = vld [vmem:[%s0 + $0x90] sm:$0xff]
  %v40 = vld [vmem:[%s0 + $0x98] sm:$0xf]
  %v41 = vld [vmem:[%s0 + $0x9c] sm:$0xff]
  %v42 = vld [vmem:[%s0 + $0xa4] sm:$0xf]
  %v43 = vld [vmem:[%s0 + $0xa8] sm:$0xff]
  %v44 = vld [vmem:[%s0 + $0xb0] sm:$0xf]
  %v45 = vld [vmem:[%s0 + $0xb4] sm:$0xff]
  %v46 = vld [vmem:[%s0 + $0xbc] sm:$0xf]
  %v47 = vld [vmem:[%s0 + $0xc0] sm:$0xff]
  %v48 = vld [vmem:[%s0 + $0xc8] sm:$0xf]
  %v49 = vld [vmem:[%s0 + $0xcc] sm:$0xff]
  %v50 = vld [vmem:[%s0 + $0xd4] sm:$0xf]
  %v51 = vld [vmem:[%s0 + $0xd8] sm:$0xff]
  %v52 = vld [vmem:[%s0 + $0xe0] sm:$0xf]
  %v53 = vld [vmem:[%s0 + $0xe4] sm:$0xff]
  %v54 = vld [vmem:[%s0 + $0xec] sm:$0xf]
  %v55 = vld [vmem:[%s0 + $0xf0] sm:$0xff]
  %v56 = vld [vmem:[%s0 + $0xf8] sm:$0xf]
  %v57 = vld [vmem:[%s0 + $0xfc] sm:$0xff]
  %v58 = vld [vmem:[%s0 + $0x104] sm:$0xf]
  %v59 = vld [vmem:[%s0 + $0x108] sm:$0xff]
  %v60 = vld [vmem:[%s0 + $0x110] sm:$0xf]
  %v61 = vld [vmem:[%s0 + $0x114] sm:$0xff]
  %v62 = vld [vmem:[%s0 + $0x11c] sm:$0xf]
  %v63 = vld [vmem:[%s0 + $0x120] sm:$0xff]
  %v64 = vld [vmem:[%s0 + $0x128] sm:$0xf]
  %v65 = vld [vmem:[%s0 + $0x12c] sm:$0xff]
  %v66 = vld [vmem:[%s0 + $0x134] sm:$0xf]
  %v67 = vld [vmem:[%s0 + $0x138] sm:$0xff]
  %v68 = vld [vmem:[%s0 + $0x140] sm:$0xf]
  %v69 = vld [vmem:[%s0 + $0x144] sm:$0xff]
  %v70 = vld [vmem:[%s0 + $0x14c] sm:$0xf]
  %v71 = vld [vmem:[%s0 + $0x150] sm:$0xff]
  %v72 = vld [vmem:[%s0 + $0x158] sm:$0xf]
  %v73 = vld [vmem:[%s0 + $0x15c] sm:$0xff]
  %v74 = vld [vmem:[%s0 + $0x164] sm:$0xf]
  %v75 = vld [vmem:[%s0 + $0x168] sm:$0xff]
  %v76 = vld [vmem:[%s0 + $0x170] sm:$0xf]
  %v77 = vld [vmem:[%s0 + $0x174] sm:$0xff]
  %v78 = vld [vmem:[%s0 + $0x17c] sm:$0xf]
  %v79 = vld [vmem:[%s0 + $0x180] sm:$0xff]
  %v80 = vld [vmem:[%s0 + $0x188] sm:$0xf]
  %v81 = vld [vmem:[%s0 + $0x18c] sm:$0xff]
  %v82 = vld [vmem:[%s0 + $0x194] sm:$0xf]
  %v83 = vld [vmem:[%s0 + $0x198] sm:$0xff]
  %v84 = vld [vmem:[%s0 + $0x1a0] sm:$0xf]
  %v85 = vld [vmem:[%s0 + $0x1a4] sm:$0xff]
  %v86 = vld [vmem:[%s0 + $0x1ac] sm:$0xf]
  %v87 = vld [vmem:[%s0 + $0x1b0] sm:$0xff]
  %v88 = vld [vmem:[%s0 + $0x1b8] sm:$0xf]
  %v89 = vld [vmem:[%s0 + $0x1bc] sm:$0xff]
  %v90 = vld [vmem:[%s0 + $0x1c4] sm:$0xf]
  %v91 = vld [vmem:[%s0 + $0x1c8] sm:$0xff]
  %v92 = vld [vmem:[%s0 + $0x1d0] sm:$0xf]
  %v93 = vld [vmem:[%s0 + $0x1d4] sm:$0xff]
  %v94 = vld [vmem:[%s0 + $0x1dc] sm:$0xf]
  %v95 = vld [vmem:[%s0 + $0x1e0] sm:$0xff]
  %v96 = vld [vmem:[%s0 + $0x1e8] sm:$0xf]
  %v97 = vld [vmem:[%s0 + $0x1ec] sm:$0xff]
  %v98 = vld [vmem:[%s0 + $0x1f4] sm:$0xf]
  %v99 = vld [vmem:[%s0 + $0x1f8] sm:$0xff]
  %v100 = vld [vmem:[%s0 + $0x200] sm:$0xf]
  %v101 = vld [vmem:[%s0 + $0x204] sm:$0xff]
  %v102 = vld [vmem:[%s0 + $0x20c] sm:$0xf]
  %v103 = vld [vmem:[%s0 + $0x210] sm:$0xff]
  %v104 = vld [vmem:[%s0 + $0x218] sm:$0xf]
  %v105 = vld [vmem:[%s0 + $0x21c] sm:$0xff]
  %v106 = vld [vmem:[%s0 + $0x224] sm:$0xf]
  %v107 = vld [vmem:[%s0 + $0x228] sm:$0xff]
  %v108 = vld [vmem:[%s0 + $0x230] sm:$0xf]
  %v109 = vld [vmem:[%s0 + $0x234] sm:$0xff]
  %v110 = vld [vmem:[%s0 + $0x23c] sm:$0xf]
  %v111 = vld [vmem:[%s0 + $0x240] sm:$0xff]
  %v112 = vld [vmem:[%s0 + $0x248] sm:$0xf]
  %v113 = vld [vmem:[%s0 + $0x24c] sm:$0xff]
  %v114 = vld [vmem:[%s0 + $0x254] sm:$0xf]
  %v115 = vld [vmem:[%s0 + $0x258] sm:$0xff]
  %v116 = vld [vmem:[%s0 + $0x260] sm:$0xf]
  %v117 = vld [vmem:[%s0 + $0x264] sm:$0xff]
  %v118 = vld [vmem:[%s0 + $0x26c] sm:$0xf]
  %v119 = vld [vmem:[%s0 + $0x270] sm:$0xff]
  %v120 = vld [vmem:[%s0 + $0x278] sm:$0xf]
  %v121 = vld [vmem:[%s0 + $0x27c] sm:$0xff]
  %v122 = vld [vmem:[%s0 + $0x284] sm:$0xf]
  %v123 = vld [vmem:[%s0 + $0x288] sm:$0xff]
  %v124 = vld [vmem:[%s0 + $0x290] sm:$0xf]
  %v125 = vld [vmem:[%s0 + $0x294] sm:$0xff]
  %v126 = vld [vmem:[%s0 + $0x29c] sm:$0xf]
  %v127 = vld [vmem:[%s0 + $0x2a0] sm:$0x11]
  %v128 = vld [vmem:[%s0 + $0x2a8] sm:$0x1]
  %v129 = vld [vmem:[%s1] sm:$0xf]
  %v130 = vld [vmem:[%s1 + $0x4] sm:$0xf]
  %v131 = vld [vmem:[%s1 + $0x8] sm:$0xf]
  %v132 = vld [vmem:[%s1 + $0xc] sm:$0xf]
  %v133 = vld [vmem:[%s1 + $0x10] sm:$0xf]
  %v134 = vld [vmem:[%s1 + $0x14] sm:$0xf]
  %v135 = vld [vmem:[%s1 + $0x18] sm:$0xf]
  %v136 = vld [vmem:[%s1 + $0x1c] sm:$0xf]
  %v137 = vld [vmem:[%s1 + $0x20] sm:$0xf]
  %v138 = vld [vmem:[%s1 + $0x24] sm:$0xf]
  %v139 = vld [vmem:[%s1 + $0x28] sm:$0xf]
  %v140 = vld [vmem:[%s1 + $0x2c] sm:$0xf]
  %v141 = vld [vmem:[%s1 + $0x30] sm:$0xf]
  %v142 = vld [vmem:[%s1 + $0x34] sm:$0xf]
  %v143 = vld [vmem:[%s1 + $0x38] sm:$0xf]
  %v144 = vld [vmem:[%s1 + $0x3c] sm:$0xf]
  %v145 = vld [vmem:[%s1 + $0x40] sm:$0xf]
  %v146 = vld [vmem:[%s1 + $0x44] sm:$0xf]
  %v147 = vld [vmem:[%s1 + $0x48] sm:$0xf]
  %v148 = vld [vmem:[%s1 + $0x4c] sm:$0xf]
  %v149 = vld [vmem:[%s1 + $0x50] sm:$0xf]
  %v150 = vld [vmem:[%s1 + $0x54] sm:$0xf]
  %v151 = vld [vmem:[%s1 + $0x58] sm:$0xf]
  %v152 = vld [vmem:[%s1 + $0x5c] sm:$0xf]
  %v153 = vld [vmem:[%s1 + $0x60] sm:$0xf]
  %v154 = vld [vmem:[%s1 + $0x64] sm:$0xf]
  %v155 = vld [vmem:[%s1 + $0x68] sm:$0xf]
  %v156 = vld [vmem:[%s1 + $0x6c] sm:$0xf]
  %v157 = vld [vmem:[%s1 + $0x70] sm:$0xf]
  %v158 = vld [vmem:[%s1 + $0x74] sm:$0xf]
  %v159 = vld [vmem:[%s1 + $0x78] sm:$0xf]
  %v160 = vld [vmem:[%s1 + $0x7c] sm:$0xf]
  %v161 = vld [vmem:[%s1 + $0x80] sm:$0xf]
  %v162 = vld [vmem:[%s1 + $0x84] sm:$0xf]
  %v163 = vld [vmem:[%s1 + $0x88] sm:$0xf]
  %v164 = vld [vmem:[%s1 + $0x8c] sm:$0xf]
  %v165 = vld [vmem:[%s1 + $0x90] sm:$0xf]
  %v166 = vld [vmem:[%s1 + $0x94] sm:$0xf]
  %v167 = vld [vmem:[%s1 + $0x98] sm:$0xf]
  %v168 = vld [vmem:[%s1 + $0x9c] sm:$0xf]
  %v169 = vld [vmem:[%s1 + $0xa0] sm:$0xf]
  %v170 = vld [vmem:[%s1 + $0xa4] sm:$0xf]
  %v171 = vld [vmem:[%s1 + $0xa8] sm:$0xf]
  %v172 = vld [vmem:[%s1 + $0xac] sm:$0xf]
  %v173 = vld [vmem:[%s1 + $0xb0] sm:$0xf]
  %v174 = vld [vmem:[%s1 + $0xb4] sm:$0x3]
  %v175 = vld [vmem:[%s2] sm:$0x1]
  %v177 = vlaneseq
  %v178 = vshrl.u32 %v177, 7
  %v179 = vsub.s32 0, %v178
  %v180 = vrot.slane %v175, %v179
  %v296 = vunpack.c.l.b16 %v15
  %v297 = vunpack.c.h.b16 %v15
  %v298 = vunpack.c.l.b16 %v16
  %v299 = vunpack.c.l.b16 %v17
  %v300 = vunpack.c.h.b16 %v17
  %v301 = vunpack.c.l.b16 %v18
  %v302 = vunpack.c.l.b16 %v19
  %v303 = vunpack.c.h.b16 %v19
  %v304 = vunpack.c.l.b16 %v20
  %v305 = vunpack.c.l.b16 %v21
  %v306 = vunpack.c.h.b16 %v21
  %v307 = vunpack.c.l.b16 %v22
  %v308 = vunpack.c.l.b16 %v23
  %v309 = vunpack.c.h.b16 %v23
  %v310 = vunpack.c.l.b16 %v24
  %v311 = vunpack.c.l.b16 %v25
  %v312 = vunpack.c.h.b16 %v25
  %v313 = vunpack.c.l.b16 %v26
  %v314 = vunpack.c.l.b16 %v27
  %v315 = vunpack.c.h.b16 %v27
  %v316 = vunpack.c.l.b16 %v28
  %v317 = vunpack.c.l.b16 %v29
  %v318 = vunpack.c.h.b16 %v29
  %v319 = vunpack.c.l.b16 %v30
  %v320 = vunpack.c.l.b16 %v31
  %v321 = vunpack.c.h.b16 %v31
  %v322 = vunpack.c.l.b16 %v32
  %v323 = vunpack.c.l.b16 %v33
  %v324 = vunpack.c.h.b16 %v33
  %v325 = vunpack.c.l.b16 %v34
  %v326 = vunpack.c.l.b16 %v35
  %v327 = vunpack.c.h.b16 %v35
  %v328 = vunpack.c.l.b16 %v36
  %v329 = vunpack.c.l.b16 %v37
  %v330 = vunpack.c.h.b16 %v37
  %v331 = vunpack.c.l.b16 %v38
  %v332 = vunpack.c.l.b16 %v39
  %v333 = vunpack.c.h.b16 %v39
  %v334 = vunpack.c.l.b16 %v40
  %v335 = vunpack.c.l.b16 %v41
  %v336 = vunpack.c.h.b16 %v41
  %v337 = vunpack.c.l.b16 %v42
  %v338 = vunpack.c.l.b16 %v43
  %v339 = vunpack.c.h.b16 %v43
  %v340 = vunpack.c.l.b16 %v44
  %v341 = vunpack.c.l.b16 %v45
  %v342 = vunpack.c.h.b16 %v45
  %v343 = vunpack.c.l.b16 %v46
  %v344 = vunpack.c.l.b16 %v47
  %v345 = vunpack.c.h.b16 %v47
  %v346 = vunpack.c.l.b16 %v48
  %v347 = vunpack.c.l.b16 %v49
  %v348 = vunpack.c.h.b16 %v49
  %v349 = vunpack.c.l.b16 %v50
  %v350 = vunpack.c.l.b16 %v51
  %v351 = vunpack.c.h.b16 %v51
  %v352 = vunpack.c.l.b16 %v52
  %v353 = vunpack.c.l.b16 %v53
  %v354 = vunpack.c.h.b16 %v53
  %v355 = vunpack.c.l.b16 %v54
  %v356 = vunpack.c.l.b16 %v55
  %v357 = vunpack.c.h.b16 %v55
  %v358 = vunpack.c.l.b16 %v56
  %v359 = vunpack.c.l.b16 %v57
  %v360 = vunpack.c.h.b16 %v57
  %v361 = vunpack.c.l.b16 %v58
  %v362 = vunpack.c.l.b16 %v59
  %v363 = vunpack.c.h.b16 %v59
  %v364 = vunpack.c.l.b16 %v60
  %v365 = vunpack.c.l.b16 %v61
  %v366 = vunpack.c.h.b16 %v61
  %v367 = vunpack.c.l.b16 %v62
  %v368 = vunpack.c.l.b16 %v63
  %v369 = vunpack.c.h.b16 %v63
  %v370 = vunpack.c.l.b16 %v64
  %v371 = vunpack.c.l.b16 %v65
  %v372 = vunpack.c.h.b16 %v65
  %v373 = vunpack.c.l.b16 %v66
  %v374 = vunpack.c.l.b16 %v67
  %v375 = vunpack.c.h.b16 %v67
  %v376 = vunpack.c.l.b16 %v68
  %v377 = vunpack.c.l.b16 %v69
  %v378 = vunpack.c.h.b16 %v69
  %v379 = vunpack.c.l.b16 %v70
  %v380 = vunpack.c.l.b16 %v71
  %v381 = vunpack.c.h.b16 %v71
  %v382 = vunpack.c.l.b16 %v72
  %v383 = vunpack.c.l.b16 %v73
  %v384 = vunpack.c.h.b16 %v73
  %v385 = vunpack.c.l.b16 %v74
  %v386 = vunpack.c.l.b16 %v75
  %v387 = vunpack.c.h.b16 %v75
  %v388 = vunpack.c.l.b16 %v76
  %v389 = vunpack.c.l.b16 %v77
  %v390 = vunpack.c.h.b16 %v77
  %v391 = vunpack.c.l.b16 %v78
  %v392 = vunpack.c.l.b16 %v79
  %v393 = vunpack.c.h.b16 %v79
  %v394 = vunpack.c.l.b16 %v80
  %v395 = vunpack.c.l.b16 %v81
  %v396 = vunpack.c.h.b16 %v81
  %v397 = vunpack.c.l.b16 %v82
  %v398 = vunpack.c.l.b16 %v83
  %v399 = vunpack.c.h.b16 %v83
  %v400 = vunpack.c.l.b16 %v84
  %v401 = vunpack.c.l.b16 %v85
  %v402 = vunpack.c.h.b16 %v85
  %v403 = vunpack.c.l.b16 %v86
  %v404 = vunpack.c.l.b16 %v87
  %v405 = vunpack.c.h.b16 %v87
  %v406 = vunpack.c.l.b16 %v88
  %v407 = vunpack.c.l.b16 %v89
  %v408 = vunpack.c.h.b16 %v89
  %v409 = vunpack.c.l.b16 %v90
  %v410 = vunpack.c.l.b16 %v91
  %v411 = vunpack.c.h.b16 %v91
  %v412 = vunpack.c.l.b16 %v92
  %v413 = vunpack.c.l.b16 %v93
  %v414 = vunpack.c.h.b16 %v93
  %v415 = vunpack.c.l.b16 %v94
  %v416 = vunpack.c.l.b16 %v95
  %v417 = vunpack.c.h.b16 %v95
  %v418 = vunpack.c.l.b16 %v96
  %v419 = vunpack.c.l.b16 %v97
  %v420 = vunpack.c.h.b16 %v97
  %v421 = vunpack.c.l.b16 %v98
  %v422 = vunpack.c.l.b16 %v99
  %v423 = vunpack.c.h.b16 %v99
  %v424 = vunpack.c.l.b16 %v100
  %v425 = vunpack.c.l.b16 %v101
  %v426 = vunpack.c.h.b16 %v101
  %v427 = vunpack.c.l.b16 %v102
  %v428 = vunpack.c.l.b16 %v103
  %v429 = vunpack.c.h.b16 %v103
  %v430 = vunpack.c.l.b16 %v104
  %v431 = vunpack.c.l.b16 %v105
  %v432 = vunpack.c.h.b16 %v105
  %v433 = vunpack.c.l.b16 %v106
  %v434 = vunpack.c.l.b16 %v107
  %v435 = vunpack.c.h.b16 %v107
  %v436 = vunpack.c.l.b16 %v108
  %v437 = vunpack.c.l.b16 %v109
  %v438 = vunpack.c.h.b16 %v109
  %v439 = vunpack.c.l.b16 %v110
  %v440 = vunpack.c.l.b16 %v111
  %v441 = vunpack.c.h.b16 %v111
  %v442 = vunpack.c.l.b16 %v112
  %v443 = vunpack.c.l.b16 %v113
  %v444 = vunpack.c.h.b16 %v113
  %v445 = vunpack.c.l.b16 %v114
  %v446 = vunpack.c.l.b16 %v115
  %v447 = vunpack.c.h.b16 %v115
  %v448 = vunpack.c.l.b16 %v116
  %v449 = vunpack.c.l.b16 %v117
  %v450 = vunpack.c.h.b16 %v117
  %v451 = vunpack.c.l.b16 %v118
  %v452 = vunpack.c.l.b16 %v119
  %v453 = vunpack.c.h.b16 %v119
  %v454 = vunpack.c.l.b16 %v120
  %v455 = vunpack.c.l.b16 %v121
  %v456 = vunpack.c.h.b16 %v121
  %v457 = vunpack.c.l.b16 %v122
  %v458 = vunpack.c.l.b16 %v123
  %v459 = vunpack.c.h.b16 %v123
  %v460 = vunpack.c.l.b16 %v124
  %v461 = vunpack.c.l.b16 %v125
  %v462 = vunpack.c.h.b16 %v125
  %v463 = vunpack.c.l.b16 %v126
  %v464 = vunpack.c.l.b16 %v127
  %v465 = vunpack.c.h.b16 %v127
  %v466 = vunpack.c.l.b16 %v128
  %v467 = vpack.c.b16 %v299, %v296
  %v468 = vpack.c.b16 %v300, %v297
  %v469 = vpack.c.b16 %v301, %v298
  %v470 = vpack.c.b16 %v305, %v302
  %v471 = vpack.c.b16 %v306, %v303
  %v472 = vpack.c.b16 %v307, %v304
  %v473 = vpack.c.b16 %v311, %v308
  %v474 = vpack.c.b16 %v312, %v309
  %v475 = vpack.c.b16 %v313, %v310
  %v476 = vpack.c.b16 %v317, %v314
  %v477 = vpack.c.b16 %v318, %v315
  %v478 = vpack.c.b16 %v319, %v316
  %v479 = vpack.c.b16 %v323, %v320
  %v480 = vpack.c.b16 %v324, %v321
  %v481 = vpack.c.b16 %v325, %v322
  %v482 = vpack.c.b16 %v329, %v326
  %v483 = vpack.c.b16 %v330, %v327
  %v484 = vpack.c.b16 %v331, %v328
  %v485 = vpack.c.b16 %v335, %v332
  %v486 = vpack.c.b16 %v336, %v333
  %v487 = vpack.c.b16 %v337, %v334
  %v488 = vpack.c.b16 %v341, %v338
  %v489 = vpack.c.b16 %v342, %v339
  %v490 = vpack.c.b16 %v343, %v340
  %v491 = vpack.c.b16 %v347, %v344
  %v492 = vpack.c.b16 %v348, %v345
  %v493 = vpack.c.b16 %v349, %v346
  %v494 = vpack.c.b16 %v353, %v350
  %v495 = vpack.c.b16 %v354, %v351
  %v496 = vpack.c.b16 %v355, %v352
  %v497 = vpack.c.b16 %v359, %v356
  %v498 = vpack.c.b16 %v360, %v357
  %v499 = vpack.c.b16 %v361, %v358
  %v500 = vpack.c.b16 %v365, %v362
  %v501 = vpack.c.b16 %v366, %v363
  %v502 = vpack.c.b16 %v367, %v364
  %v503 = vpack.c.b16 %v371, %v368
  %v504 = vpack.c.b16 %v372, %v369
  %v505 = vpack.c.b16 %v373, %v370
  %v506 = vpack.c.b16 %v377, %v374
  %v507 = vpack.c.b16 %v378, %v375
  %v508 = vpack.c.b16 %v379, %v376
  %v509 = vpack.c.b16 %v383, %v380
  %v510 = vpack.c.b16 %v384, %v381
  %v511 = vpack.c.b16 %v385, %v382
  %v512 = vpack.c.b16 %v389, %v386
  %v513 = vpack.c.b16 %v390, %v387
  %v514 = vpack.c.b16 %v391, %v388
  %v515 = vpack.c.b16 %v395, %v392
  %v516 = vpack.c.b16 %v396, %v393
  %v517 = vpack.c.b16 %v397, %v394
  %v518 = vpack.c.b16 %v401, %v398
  %v519 = vpack.c.b16 %v402, %v399
  %v520 = vpack.c.b16 %v403, %v400
  %v521 = vpack.c.b16 %v407, %v404
  %v522 = vpack.c.b16 %v408, %v405
  %v523 = vpack.c.b16 %v409, %v406
  %v524 = vpack.c.b16 %v413, %v410
  %v525 = vpack.c.b16 %v414, %v411
  %v526 = vpack.c.b16 %v415, %v412
  %v527 = vpack.c.b16 %v419, %v416
  %v528 = vpack.c.b16 %v420, %v417
  %v529 = vpack.c.b16 %v421, %v418
  %v530 = vpack.c.b16 %v425, %v422
  %v531 = vpack.c.b16 %v426, %v423
  %v532 = vpack.c.b16 %v427, %v424
  %v533 = vpack.c.b16 %v431, %v428
  %v534 = vpack.c.b16 %v432, %v429
  %v535 = vpack.c.b16 %v433, %v430
  %v536 = vpack.c.b16 %v437, %v434
  %v537 = vpack.c.b16 %v438, %v435
  %v538 = vpack.c.b16 %v439, %v436
  %v539 = vpack.c.b16 %v443, %v440
  %v540 = vpack.c.b16 %v444, %v441
  %v541 = vpack.c.b16 %v445, %v442
  %v542 = vpack.c.b16 %v449, %v446
  %v543 = vpack.c.b16 %v450, %v447
  %v544 = vpack.c.b16 %v451, %v448
  %v545 = vpack.c.b16 %v455, %v452
  %v546 = vpack.c.b16 %v456, %v453
  %v547 = vpack.c.b16 %v457, %v454
  %v548 = vpack.c.b16 %v461, %v458
  %v549 = vpack.c.b16 %v462, %v459
  %v550 = vpack.c.b16 %v463, %v460
  %v551 = vpack.c.b16 %v464, %v464
  %v552 = vpack.c.b16 %v465, %v465
  %v553 = vpack.c.b16 %v466, %v466
  %v658 = vunpack.c.l.b16 %v129
  %v659 = vunpack.c.l.b16 %v130
  %v660 = vunpack.c.l.b16 %v131
  %v661 = vunpack.c.l.b16 %v132
  %v662 = vunpack.c.l.b16 %v133
  %v663 = vunpack.c.l.b16 %v134
  %v664 = vunpack.c.l.b16 %v135
  %v665 = vunpack.c.l.b16 %v136
  %v666 = vunpack.c.l.b16 %v137
  %v667 = vunpack.c.l.b16 %v138
  %v668 = vunpack.c.l.b16 %v139
  %v669 = vunpack.c.l.b16 %v140
  %v670 = vunpack.c.l.b16 %v141
  %v671 = vunpack.c.l.b16 %v142
  %v672 = vunpack.c.l.b16 %v143
  %v673 = vunpack.c.l.b16 %v144
  %v674 = vunpack.c.l.b16 %v145
  %v675 = vunpack.c.l.b16 %v146
  %v676 = vunpack.c.l.b16 %v147
  %v677 = vunpack.c.l.b16 %v148
  %v678 = vunpack.c.l.b16 %v149
  %v679 = vunpack.c.l.b16 %v150
  %v680 = vunpack.c.l.b16 %v151
  %v681 = vunpack.c.l.b16 %v152
  %v682 = vunpack.c.l.b16 %v153
  %v683 = vunpack.c.l.b16 %v154
  %v684 = vunpack.c.l.b16 %v155
  %v685 = vunpack.c.l.b16 %v156
  %v686 = vunpack.c.l.b16 %v157
  %v687 = vunpack.c.l.b16 %v158
  %v688 = vunpack.c.l.b16 %v159
  %v689 = vunpack.c.l.b16 %v160
  %v690 = vunpack.c.l.b16 %v161
  %v691 = vunpack.c.l.b16 %v162
  %v692 = vunpack.c.l.b16 %v163
  %v693 = vunpack.c.l.b16 %v164
  %v694 = vunpack.c.l.b16 %v165
  %v695 = vunpack.c.l.b16 %v166
  %v696 = vunpack.c.l.b16 %v167
  %v697 = vunpack.c.l.b16 %v168
  %v698 = vunpack.c.l.b16 %v169
  %v699 = vunpack.c.l.b16 %v170
  %v700 = vunpack.c.l.b16 %v171
  %v701 = vunpack.c.l.b16 %v172
  %v702 = vunpack.c.l.b16 %v173
  %v703 = vunpack.c.l.b16 %v174
  %v704 = vpack.c.b16 %v659, %v658
  %v705 = vpack.c.b16 %v661, %v660
  %v706 = vpack.c.b16 %v663, %v662
  %v707 = vpack.c.b16 %v665, %v664
  %v708 = vpack.c.b16 %v667, %v666
  %v709 = vpack.c.b16 %v669, %v668
  %v710 = vpack.c.b16 %v671, %v670
  %v711 = vpack.c.b16 %v673, %v672
  %v712 = vpack.c.b16 %v675, %v674
  %v713 = vpack.c.b16 %v677, %v676
  %v714 = vpack.c.b16 %v679, %v678
  %v715 = vpack.c.b16 %v681, %v680
  %v716 = vpack.c.b16 %v683, %v682
  %v717 = vpack.c.b16 %v685, %v684
  %v718 = vpack.c.b16 %v687, %v686
  %v719 = vpack.c.b16 %v689, %v688
  %v720 = vpack.c.b16 %v691, %v690
  %v721 = vpack.c.b16 %v693, %v692
  %v722 = vpack.c.b16 %v695, %v694
  %v723 = vpack.c.b16 %v697, %v696
  %v724 = vpack.c.b16 %v699, %v698
  %v725 = vpack.c.b16 %v701, %v700
  %v726 = vpack.c.b16 %v703, %v702
  %vm749 = vcmask 875520
  %v751 = vsel %vm749, %v469, 0
  %v754 = vsel %vm749, %v472, 0
  %v757 = vsel %vm749, %v475, 0
  %v760 = vsel %vm749, %v478, 0
  %v763 = vsel %vm749, %v481, 0
  %v766 = vsel %vm749, %v484, 0
  %v769 = vsel %vm749, %v487, 0
  %v772 = vsel %vm749, %v490, 0
  %v775 = vsel %vm749, %v493, 0
  %v778 = vsel %vm749, %v496, 0
  %v781 = vsel %vm749, %v499, 0
  %v784 = vsel %vm749, %v502, 0
  %v787 = vsel %vm749, %v505, 0
  %v790 = vsel %vm749, %v508, 0
  %v793 = vsel %vm749, %v511, 0
  %v796 = vsel %vm749, %v514, 0
  %v799 = vsel %vm749, %v517, 0
  %v802 = vsel %vm749, %v520, 0
  %v805 = vsel %vm749, %v523, 0
  %v808 = vsel %vm749, %v526, 0
  %v811 = vsel %vm749, %v529, 0
  %v814 = vsel %vm749, %v532, 0
  %v817 = vsel %vm749, %v535, 0
  %v820 = vsel %vm749, %v538, 0
  %v823 = vsel %vm749, %v541, 0
  %v826 = vsel %vm749, %v544, 0
  %v829 = vsel %vm749, %v547, 0
  %v832 = vsel %vm749, %v550, 0
  %v835 = vsel %vm749, %v553, 0
  %vm837 = vcmask 1044480
  %vm838 = vcmask 1045504
  %v839 = vsel %vm837, 4294967295, 65535
  %v840 = vsel %vm838, %v839, 0
  %v842 = vand.u32 %v726, %v840
  %844 = vmatprep.subr.bf16.mxu0 0
  %845 = vmatpush1.bf16.msra.mxu0 %v711
  %846 = vmatprep.subr.bf16.mxu0 0
  %847 = vmatpush1.bf16.msra.mxu0 %v710
  %848 = vmatprep.subr.bf16.mxu0 0
  %849 = vmatpush1.bf16.msra.mxu0 %v709
  %850 = vmatprep.subr.bf16.mxu0 0
  %851 = vmatpush1.bf16.msra.mxu0 %v708
  %852 = vmatprep.subr.bf16.mxu0 0
  %853 = vmatpush1.bf16.msra.mxu0 %v707
  %854 = vmatprep.subr.bf16.mxu0 0
  %855 = vmatpush1.bf16.msra.mxu0 %v706
  %856 = vmatprep.subr.bf16.mxu0 0
  %857 = vmatpush1.bf16.msra.mxu0 %v705
  %858 = vmatprep.subr.bf16.mxu0 0
  %859 = vmatpush1.bf16.msra.mxu0 %v704
  %860 = vmatprep.subr.bf16.mxu0 0
  %861 = vmatpush2.bf16.msra.mxu0 %v719
  %862 = vmatprep.subr.bf16.mxu0 0
  %863 = vmatpush2.bf16.msra.mxu0 %v718
  %864 = vmatprep.subr.bf16.mxu0 0
  %865 = vmatpush2.bf16.msra.mxu0 %v717
  %866 = vmatprep.subr.bf16.mxu0 0
  %867 = vmatpush2.bf16.msra.mxu0 %v716
  %868 = vmatprep.subr.bf16.mxu0 0
  %869 = vmatpush2.bf16.msra.mxu0 %v715
  %870 = vmatprep.subr.bf16.mxu0 0
  %871 = vmatpush2.bf16.msra.mxu0 %v714
  %872 = vmatprep.subr.bf16.mxu0 0
  %873 = vmatpush2.bf16.msra.mxu0 %v713
  %874 = vmatprep.subr.bf16.mxu0 0
  %875 = vmatpush2.bf16.msra.mxu0 %v712
  %876 = vmatprep.mubr.bf16.mxu0 %v468
  %877 = vmatmul.mubr.bf16.gmra.mxu0 %v467
  %v878 = vpop.f32.mrf.mxu0
  %v879 = vadd.f32 %v180, %v878
  %v880 = vpop.f32.mrf.mxu0
  %v881 = vpop.f32.mrf.mxu0
  %v882 = vadd.f32 %v180, %v881
  %v883 = vpop.f32.mrf.mxu0
  %884 = vmatprep.mubr.bf16.mxu0 %v471
  %885 = vmatmul.mubr.bf16.gmra.mxu0 %v470
  %v886 = vpop.f32.mrf.mxu0
  %v887 = vadd.f32 %v180, %v886
  %v888 = vpop.f32.mrf.mxu0
  %v889 = vpop.f32.mrf.mxu0
  %v890 = vadd.f32 %v180, %v889
  %v891 = vpop.f32.mrf.mxu0
  %892 = vmatprep.mubr.bf16.mxu0 %v474
  %893 = vmatmul.mubr.bf16.gmra.mxu0 %v473
  %v894 = vpop.f32.mrf.mxu0
  %v895 = vadd.f32 %v180, %v894
  %v896 = vpop.f32.mrf.mxu0
  %v897 = vpop.f32.mrf.mxu0
  %v898 = vadd.f32 %v180, %v897
  %v899 = vpop.f32.mrf.mxu0
  %900 = vmatprep.mubr.bf16.mxu0 %v477
  %901 = vmatmul.mubr.bf16.gmra.mxu0 %v476
  %v902 = vpop.f32.mrf.mxu0
  %v903 = vadd.f32 %v180, %v902
  %v904 = vpop.f32.mrf.mxu0
  %v905 = vpop.f32.mrf.mxu0
  %v906 = vadd.f32 %v180, %v905
  %v907 = vpop.f32.mrf.mxu0
  %908 = vmatprep.mubr.bf16.mxu0 %v480
  %909 = vmatmul.mubr.bf16.gmra.mxu0 %v479
  %v910 = vpop.f32.mrf.mxu0
  %v911 = vadd.f32 %v180, %v910
  %v912 = vpop.f32.mrf.mxu0
  %v913 = vpop.f32.mrf.mxu0
  %v914 = vadd.f32 %v180, %v913
  %v915 = vpop.f32.mrf.mxu0
  %916 = vmatprep.mubr.bf16.mxu0 %v483
  %917 = vmatmul.mubr.bf16.gmra.mxu0 %v482
  %v918 = vpop.f32.mrf.mxu0
  %v919 = vadd.f32 %v180, %v918
  %v920 = vpop.f32.mrf.mxu0
  %v921 = vpop.f32.mrf.mxu0
  %v922 = vadd.f32 %v180, %v921
  %v923 = vpop.f32.mrf.mxu0
  %924 = vmatprep.mubr.bf16.mxu0 %v486
  %925 = vmatmul.mubr.bf16.gmra.mxu0 %v485
  %v926 = vpop.f32.mrf.mxu0
  %v927 = vadd.f32 %v180, %v926
  %v928 = vpop.f32.mrf.mxu0
  %v929 = vpop.f32.mrf.mxu0
  %v930 = vadd.f32 %v180, %v929
  %v931 = vpop.f32.mrf.mxu0
  %932 = vmatprep.mubr.bf16.mxu0 %v489
  %933 = vmatmul.mubr.bf16.gmra.mxu0 %v488
  %v934 = vpop.f32.mrf.mxu0
  %v935 = vadd.f32 %v180, %v934
  %v936 = vpop.f32.mrf.mxu0
  %v937 = vpop.f32.mrf.mxu0
  %v938 = vadd.f32 %v180, %v937
  %v939 = vpop.f32.mrf.mxu0
  %940 = vmatprep.mubr.bf16.mxu0 %v492
  %941 = vmatmul.mubr.bf16.gmra.mxu0 %v491
  %v942 = vpop.f32.mrf.mxu0
  %v943 = vadd.f32 %v180, %v942
  %v944 = vpop.f32.mrf.mxu0
  %v945 = vpop.f32.mrf.mxu0
  %v946 = vadd.f32 %v180, %v945
  %v947 = vpop.f32.mrf.mxu0
  %948 = vmatprep.mubr.bf16.mxu0 %v495
  %949 = vmatmul.mubr.bf16.gmra.mxu0 %v494
  %v950 = vpop.f32.mrf.mxu0
  %v951 = vadd.f32 %v180, %v950
  %v952 = vpop.f32.mrf.mxu0
  %v953 = vpop.f32.mrf.mxu0
  %v954 = vadd.f32 %v180, %v953
  %v955 = vpop.f32.mrf.mxu0
  %956 = vmatprep.mubr.bf16.mxu0 %v498
  %957 = vmatmul.mubr.bf16.gmra.mxu0 %v497
  %v958 = vpop.f32.mrf.mxu0
  %v959 = vadd.f32 %v180, %v958
  %v960 = vpop.f32.mrf.mxu0
  %v961 = vpop.f32.mrf.mxu0
  %v962 = vadd.f32 %v180, %v961
  %v963 = vpop.f32.mrf.mxu0
  %964 = vmatprep.mubr.bf16.mxu0 %v501
  %965 = vmatmul.mubr.bf16.gmra.mxu0 %v500
  %v966 = vpop.f32.mrf.mxu0
  %v967 = vadd.f32 %v180, %v966
  %v968 = vpop.f32.mrf.mxu0
  %v969 = vpop.f32.mrf.mxu0
  %v970 = vadd.f32 %v180, %v969
  %v971 = vpop.f32.mrf.mxu0
  %972 = vmatprep.mubr.bf16.mxu0 %v504
  %973 = vmatmul.mubr.bf16.gmra.mxu0 %v503
  %v974 = vpop.f32.mrf.mxu0
  %v975 = vadd.f32 %v180, %v974
  %v976 = vpop.f32.mrf.mxu0
  %v977 = vpop.f32.mrf.mxu0
  %v978 = vadd.f32 %v180, %v977
  %v979 = vpop.f32.mrf.mxu0
  %980 = vmatprep.mubr.bf16.mxu0 %v507
  %981 = vmatmul.mubr.bf16.gmra.mxu0 %v506
  %v982 = vpop.f32.mrf.mxu0
  %v983 = vadd.f32 %v180, %v982
  %v984 = vpop.f32.mrf.mxu0
  %v985 = vpop.f32.mrf.mxu0
  %v986 = vadd.f32 %v180, %v985
  %v987 = vpop.f32.mrf.mxu0
  %988 = vmatprep.mubr.bf16.mxu0 %v510
  %989 = vmatmul.mubr.bf16.gmra.mxu0 %v509
  %v990 = vpop.f32.mrf.mxu0
  %v991 = vadd.f32 %v180, %v990
  %v992 = vpop.f32.mrf.mxu0
  %v993 = vpop.f32.mrf.mxu0
  %v994 = vadd.f32 %v180, %v993
  %v995 = vpop.f32.mrf.mxu0
  %996 = vmatprep.mubr.bf16.mxu0 %v513
  %997 = vmatmul.mubr.bf16.gmra.mxu0 %v512
  %v998 = vpop.f32.mrf.mxu0
  %v999 = vadd.f32 %v180, %v998
  %v1000 = vpop.f32.mrf.mxu0
  %v1001 = vpop.f32.mrf.mxu0
  %v1002 = vadd.f32 %v180, %v1001
  %v1003 = vpop.f32.mrf.mxu0
  %1004 = vmatprep.mubr.bf16.mxu0 %v516
  %1005 = vmatmul.mubr.bf16.gmra.mxu0 %v515
  %v1006 = vpop.f32.mrf.mxu0
  %v1007 = vadd.f32 %v180, %v1006
  %v1008 = vpop.f32.mrf.mxu0
  %v1009 = vpop.f32.mrf.mxu0
  %v1010 = vadd.f32 %v180, %v1009
  %v1011 = vpop.f32.mrf.mxu0
  %1012 = vmatprep.mubr.bf16.mxu0 %v519
  %1013 = vmatmul.mubr.bf16.gmra.mxu0 %v518
  %v1014 = vpop.f32.mrf.mxu0
  %v1015 = vadd.f32 %v180, %v1014
  %v1016 = vpop.f32.mrf.mxu0
  %v1017 = vpop.f32.mrf.mxu0
  %v1018 = vadd.f32 %v180, %v1017
  %v1019 = vpop.f32.mrf.mxu0
  %1020 = vmatprep.mubr.bf16.mxu0 %v522
  %1021 = vmatmul.mubr.bf16.gmra.mxu0 %v521
  %v1022 = vpop.f32.mrf.mxu0
  %v1023 = vadd.f32 %v180, %v1022
  %v1024 = vpop.f32.mrf.mxu0
  %v1025 = vpop.f32.mrf.mxu0
  %v1026 = vadd.f32 %v180, %v1025
  %v1027 = vpop.f32.mrf.mxu0
  %1028 = vmatprep.mubr.bf16.mxu0 %v525
  %1029 = vmatmul.mubr.bf16.gmra.mxu0 %v524
  %v1030 = vpop.f32.mrf.mxu0
  %v1031 = vadd.f32 %v180, %v1030
  %v1032 = vpop.f32.mrf.mxu0
  %v1033 = vpop.f32.mrf.mxu0
  %v1034 = vadd.f32 %v180, %v1033
  %v1035 = vpop.f32.mrf.mxu0
  %1036 = vmatprep.mubr.bf16.mxu0 %v528
  %1037 = vmatmul.mubr.bf16.gmra.mxu0 %v527
  %v1038 = vpop.f32.mrf.mxu0
  %v1039 = vadd.f32 %v180, %v1038
  %v1040 = vpop.f32.mrf.mxu0
  %v1041 = vpop.f32.mrf.mxu0
  %v1042 = vadd.f32 %v180, %v1041
  %v1043 = vpop.f32.mrf.mxu0
  %1044 = vmatprep.mubr.bf16.mxu0 %v531
  %1045 = vmatmul.mubr.bf16.gmra.mxu0 %v530
  %v1046 = vpop.f32.mrf.mxu0
  %v1047 = vadd.f32 %v180, %v1046
  %v1048 = vpop.f32.mrf.mxu0
  %v1049 = vpop.f32.mrf.mxu0
  %v1050 = vadd.f32 %v180, %v1049
  %v1051 = vpop.f32.mrf.mxu0
  %1052 = vmatprep.mubr.bf16.mxu0 %v534
  %1053 = vmatmul.mubr.bf16.gmra.mxu0 %v533
  %v1054 = vpop.f32.mrf.mxu0
  %v1055 = vadd.f32 %v180, %v1054
  %v1056 = vpop.f32.mrf.mxu0
  %v1057 = vpop.f32.mrf.mxu0
  %v1058 = vadd.f32 %v180, %v1057
  %v1059 = vpop.f32.mrf.mxu0
  %1060 = vmatprep.mubr.bf16.mxu0 %v537
  %1061 = vmatmul.mubr.bf16.gmra.mxu0 %v536
  %v1062 = vpop.f32.mrf.mxu0
  %v1063 = vadd.f32 %v180, %v1062
  %v1064 = vpop.f32.mrf.mxu0
  %v1065 = vpop.f32.mrf.mxu0
  %v1066 = vadd.f32 %v180, %v1065
  %v1067 = vpop.f32.mrf.mxu0
  %1068 = vmatprep.mubr.bf16.mxu0 %v540
  %1069 = vmatmul.mubr.bf16.gmra.mxu0 %v539
  %v1070 = vpop.f32.mrf.mxu0
  %v1071 = vadd.f32 %v180, %v1070
  %v1072 = vpop.f32.mrf.mxu0
  %v1073 = vpop.f32.mrf.mxu0
  %v1074 = vadd.f32 %v180, %v1073
  %v1075 = vpop.f32.mrf.mxu0
  %1076 = vmatprep.mubr.bf16.mxu0 %v543
  %1077 = vmatmul.mubr.bf16.gmra.mxu0 %v542
  %v1078 = vpop.f32.mrf.mxu0
  %v1079 = vadd.f32 %v180, %v1078
  %v1080 = vpop.f32.mrf.mxu0
  %v1081 = vpop.f32.mrf.mxu0
  %v1082 = vadd.f32 %v180, %v1081
  %v1083 = vpop.f32.mrf.mxu0
  %1084 = vmatprep.mubr.bf16.mxu0 %v546
  %1085 = vmatmul.mubr.bf16.gmra.mxu0 %v545
  %v1086 = vpop.f32.mrf.mxu0
  %v1087 = vadd.f32 %v180, %v1086
  %v1088 = vpop.f32.mrf.mxu0
  %v1089 = vpop.f32.mrf.mxu0
  %v1090 = vadd.f32 %v180, %v1089
  %v1091 = vpop.f32.mrf.mxu0
  %1092 = vmatprep.mubr.bf16.mxu0 %v549
  %1093 = vmatmul.mubr.bf16.gmra.mxu0 %v548
  %v1094 = vpop.f32.mrf.mxu0
  %v1095 = vadd.f32 %v180, %v1094
  %v1096 = vpop.f32.mrf.mxu0
  %v1097 = vpop.f32.mrf.mxu0
  %v1098 = vadd.f32 %v180, %v1097
  %v1099 = vpop.f32.mrf.mxu0
  %1100 = vmatprep.mubr.bf16.mxu0 %v552
  %1101 = vmatmul.mubr.bf16.gmra.mxu0 %v551
  %v1102 = vpop.f32.mrf.mxu0
  %v1103 = vadd.f32 %v180, %v1102
  %v1104 = vpop.f32.mrf.mxu0
  %v1105 = vpop.f32.mrf.mxu0
  %v1106 = vpop.f32.mrf.mxu0
  %1107 = vdwg.mxu0
  %1108 = vmatprep.subr.bf16.mxu0 0
  %1109 = vmatpush1.bf16.msra.mxu0 0
  %1110 = vmatprep.subr.bf16.mxu0 0
  %1111 = vmatpush1.bf16.msra.mxu0 %v842
  %1112 = vmatprep.subr.bf16.mxu0 0
  %1113 = vmatpush1.bf16.msra.mxu0 %v725
  %1114 = vmatprep.subr.bf16.mxu0 0
  %1115 = vmatpush1.bf16.msra.mxu0 %v724
  %1116 = vmatprep.subr.bf16.mxu0 0
  %1117 = vmatpush1.bf16.msra.mxu0 %v723
  %1118 = vmatprep.subr.bf16.mxu0 0
  %1119 = vmatpush1.bf16.msra.mxu0 %v722
  %1120 = vmatprep.subr.bf16.mxu0 0
  %1121 = vmatpush1.bf16.msra.mxu0 %v721
  %1122 = vmatprep.subr.bf16.mxu0 0
  %1123 = vmatpush1.bf16.msra.mxu0 %v720
  %1124 = vmatprep.subr.bf16.mxu0 0
  %1125 = vmatpush2.bf16.msra.mxu0 0
  %1126 = vmatprep.subr.bf16.mxu0 0
  %1127 = vmatpush2.bf16.msra.mxu0 0
  %1128 = vmatprep.subr.bf16.mxu0 0
  %1129 = vmatpush2.bf16.msra.mxu0 0
  %1130 = vmatprep.subr.bf16.mxu0 0
  %1131 = vmatpush2.bf16.msra.mxu0 0
  %1132 = vmatprep.subr.bf16.mxu0 0
  %1133 = vmatpush2.bf16.msra.mxu0 0
  %1134 = vmatprep.subr.bf16.mxu0 0
  %1135 = vmatpush2.bf16.msra.mxu0 0
  %1136 = vmatprep.subr.bf16.mxu0 0
  %1137 = vmatpush2.bf16.msra.mxu0 0
  %1138 = vmatprep.subr.bf16.mxu0 0
  %1139 = vmatpush2.bf16.msra.mxu0 0
  %1140 = vmatprep.mubr.bf16.mxu0 0
  %1141 = vmatmul.mubr.bf16.gmra.mxu0 %v751
  %v1142 = vpop.f32.mrf.mxu0
  %v1143 = vadd.f32 %v879, %v1142
  %v1144 = vpop.f32.mrf.mxu0
  %v1145 = vpop.f32.mrf.mxu0
  %v1146 = vadd.f32 %v882, %v1145
  %v1147 = vpop.f32.mrf.mxu0
  %1148 = vmatprep.mubr.bf16.mxu0 0
  %1149 = vmatmul.mubr.bf16.gmra.mxu0 %v754
  %v1150 = vpop.f32.mrf.mxu0
  %v1151 = vadd.f32 %v887, %v1150
  %v1152 = vpop.f32.mrf.mxu0
  %v1153 = vpop.f32.mrf.mxu0
  %v1154 = vadd.f32 %v890, %v1153
  %v1155 = vpop.f32.mrf.mxu0
  %1156 = vmatprep.mubr.bf16.mxu0 0
  %1157 = vmatmul.mubr.bf16.gmra.mxu0 %v757
  %v1158 = vpop.f32.mrf.mxu0
  %v1159 = vadd.f32 %v895, %v1158
  %v1160 = vpop.f32.mrf.mxu0
  %v1161 = vpop.f32.mrf.mxu0
  %v1162 = vadd.f32 %v898, %v1161
  %v1163 = vpop.f32.mrf.mxu0
  %1164 = vmatprep.mubr.bf16.mxu0 0
  %1165 = vmatmul.mubr.bf16.gmra.mxu0 %v760
  %v1166 = vpop.f32.mrf.mxu0
  %v1167 = vadd.f32 %v903, %v1166
  %v1168 = vpop.f32.mrf.mxu0
  %v1169 = vpop.f32.mrf.mxu0
  %v1170 = vadd.f32 %v906, %v1169
  %v1171 = vpop.f32.mrf.mxu0
  %1172 = vmatprep.mubr.bf16.mxu0 0
  %1173 = vmatmul.mubr.bf16.gmra.mxu0 %v763
  %v1174 = vpop.f32.mrf.mxu0
  %v1175 = vadd.f32 %v911, %v1174
  %v1176 = vpop.f32.mrf.mxu0
  %v1177 = vpop.f32.mrf.mxu0
  %v1178 = vadd.f32 %v914, %v1177
  %v1179 = vpop.f32.mrf.mxu0
  %1180 = vmatprep.mubr.bf16.mxu0 0
  %1181 = vmatmul.mubr.bf16.gmra.mxu0 %v766
  %v1182 = vpop.f32.mrf.mxu0
  %v1183 = vadd.f32 %v919, %v1182
  %v1184 = vpop.f32.mrf.mxu0
  %v1185 = vpop.f32.mrf.mxu0
  %v1186 = vadd.f32 %v922, %v1185
  %v1187 = vpop.f32.mrf.mxu0
  %1188 = vmatprep.mubr.bf16.mxu0 0
  %1189 = vmatmul.mubr.bf16.gmra.mxu0 %v769
  %v1190 = vpop.f32.mrf.mxu0
  %v1191 = vadd.f32 %v927, %v1190
  %v1192 = vpop.f32.mrf.mxu0
  %v1193 = vpop.f32.mrf.mxu0
  %v1194 = vadd.f32 %v930, %v1193
  %v1195 = vpop.f32.mrf.mxu0
  %1196 = vmatprep.mubr.bf16.mxu0 0
  %1197 = vmatmul.mubr.bf16.gmra.mxu0 %v772
  %v1198 = vpop.f32.mrf.mxu0
  %v1199 = vadd.f32 %v935, %v1198
  %v1200 = vpop.f32.mrf.mxu0
  %v1201 = vpop.f32.mrf.mxu0
  %v1202 = vadd.f32 %v938, %v1201
  %v1203 = vpop.f32.mrf.mxu0
  %1204 = vmatprep.mubr.bf16.mxu0 0
  %1205 = vmatmul.mubr.bf16.gmra.mxu0 %v775
  %v1206 = vpop.f32.mrf.mxu0
  %v1207 = vadd.f32 %v943, %v1206
  %v1208 = vpop.f32.mrf.mxu0
  %v1209 = vpop.f32.mrf.mxu0
  %v1210 = vadd.f32 %v946, %v1209
  %v1211 = vpop.f32.mrf.mxu0
  %1212 = vmatprep.mubr.bf16.mxu0 0
  %1213 = vmatmul.mubr.bf16.gmra.mxu0 %v778
  %v1214 = vpop.f32.mrf.mxu0
  %v1215 = vadd.f32 %v951, %v1214
  %v1216 = vpop.f32.mrf.mxu0
  %v1217 = vpop.f32.mrf.mxu0
  %v1218 = vadd.f32 %v954, %v1217
  %v1219 = vpop.f32.mrf.mxu0
  %1220 = vmatprep.mubr.bf16.mxu0 0
  %1221 = vmatmul.mubr.bf16.gmra.mxu0 %v781
  %v1222 = vpop.f32.mrf.mxu0
  %v1223 = vadd.f32 %v959, %v1222
  %v1224 = vpop.f32.mrf.mxu0
  %v1225 = vpop.f32.mrf.mxu0
  %v1226 = vadd.f32 %v962, %v1225
  %v1227 = vpop.f32.mrf.mxu0
  %1228 = vmatprep.mubr.bf16.mxu0 0
  %1229 = vmatmul.mubr.bf16.gmra.mxu0 %v784
  %v1230 = vpop.f32.mrf.mxu0
  %v1231 = vadd.f32 %v967, %v1230
  %v1232 = vpop.f32.mrf.mxu0
  %v1233 = vpop.f32.mrf.mxu0
  %v1234 = vadd.f32 %v970, %v1233
  %v1235 = vpop.f32.mrf.mxu0
  %1236 = vmatprep.mubr.bf16.mxu0 0
  %1237 = vmatmul.mubr.bf16.gmra.mxu0 %v787
  %v1238 = vpop.f32.mrf.mxu0
  %v1239 = vadd.f32 %v975, %v1238
  %v1240 = vpop.f32.mrf.mxu0
  %v1241 = vpop.f32.mrf.mxu0
  %v1242 = vadd.f32 %v978, %v1241
  %v1243 = vpop.f32.mrf.mxu0
  %1244 = vmatprep.mubr.bf16.mxu0 0
  %1245 = vmatmul.mubr.bf16.gmra.mxu0 %v790
  %v1246 = vpop.f32.mrf.mxu0
  %v1247 = vadd.f32 %v983, %v1246
  %v1248 = vpop.f32.mrf.mxu0
  %v1249 = vpop.f32.mrf.mxu0
  %v1250 = vadd.f32 %v986, %v1249
  %v1251 = vpop.f32.mrf.mxu0
  %1252 = vmatprep.mubr.bf16.mxu0 0
  %1253 = vmatmul.mubr.bf16.gmra.mxu0 %v793
  %v1254 = vpop.f32.mrf.mxu0
  %v1255 = vadd.f32 %v991, %v1254
  %v1256 = vpop.f32.mrf.mxu0
  %v1257 = vpop.f32.mrf.mxu0
  %v1258 = vadd.f32 %v994, %v1257
  %v1259 = vpop.f32.mrf.mxu0
  %1260 = vmatprep.mubr.bf16.mxu0 0
  %1261 = vmatmul.mubr.bf16.gmra.mxu0 %v796
  %v1262 = vpop.f32.mrf.mxu0
  %v1263 = vadd.f32 %v999, %v1262
  %v1264 = vpop.f32.mrf.mxu0
  %v1265 = vpop.f32.mrf.mxu0
  %v1266 = vadd.f32 %v1002, %v1265
  %v1267 = vpop.f32.mrf.mxu0
  %1268 = vmatprep.mubr.bf16.mxu0 0
  %1269 = vmatmul.mubr.bf16.gmra.mxu0 %v799
  %v1270 = vpop.f32.mrf.mxu0
  %v1271 = vadd.f32 %v1007, %v1270
  %v1272 = vpop.f32.mrf.mxu0
  %v1273 = vpop.f32.mrf.mxu0
  %v1274 = vadd.f32 %v1010, %v1273
  %v1275 = vpop.f32.mrf.mxu0
  %1276 = vmatprep.mubr.bf16.mxu0 0
  %1277 = vmatmul.mubr.bf16.gmra.mxu0 %v802
  %v1278 = vpop.f32.mrf.mxu0
  %v1279 = vadd.f32 %v1015, %v1278
  %v1280 = vpop.f32.mrf.mxu0
  %v1281 = vpop.f32.mrf.mxu0
  %v1282 = vadd.f32 %v1018, %v1281
  %v1283 = vpop.f32.mrf.mxu0
  %1284 = vmatprep.mubr.bf16.mxu0 0
  %1285 = vmatmul.mubr.bf16.gmra.mxu0 %v805
  %v1286 = vpop.f32.mrf.mxu0
  %v1287 = vadd.f32 %v1023, %v1286
  %v1288 = vpop.f32.mrf.mxu0
  %v1289 = vpop.f32.mrf.mxu0
  %v1290 = vadd.f32 %v1026, %v1289
  %v1291 = vpop.f32.mrf.mxu0
  %1292 = vmatprep.mubr.bf16.mxu0 0
  %1293 = vmatmul.mubr.bf16.gmra.mxu0 %v808
  %v1294 = vpop.f32.mrf.mxu0
  %v1295 = vadd.f32 %v1031, %v1294
  %v1296 = vpop.f32.mrf.mxu0
  %v1297 = vpop.f32.mrf.mxu0
  %v1298 = vadd.f32 %v1034, %v1297
  %v1299 = vpop.f32.mrf.mxu0
  %1300 = vmatprep.mubr.bf16.mxu0 0
  %1301 = vmatmul.mubr.bf16.gmra.mxu0 %v811
  %v1302 = vpop.f32.mrf.mxu0
  %v1303 = vadd.f32 %v1039, %v1302
  %v1304 = vpop.f32.mrf.mxu0
  %v1305 = vpop.f32.mrf.mxu0
  %v1306 = vadd.f32 %v1042, %v1305
  %v1307 = vpop.f32.mrf.mxu0
  %1308 = vmatprep.mubr.bf16.mxu0 0
  %1309 = vmatmul.mubr.bf16.gmra.mxu0 %v814
  %v1310 = vpop.f32.mrf.mxu0
  %v1311 = vadd.f32 %v1047, %v1310
  %v1312 = vpop.f32.mrf.mxu0
  %v1313 = vpop.f32.mrf.mxu0
  %v1314 = vadd.f32 %v1050, %v1313
  %v1315 = vpop.f32.mrf.mxu0
  %1316 = vmatprep.mubr.bf16.mxu0 0
  %1317 = vmatmul.mubr.bf16.gmra.mxu0 %v817
  %v1318 = vpop.f32.mrf.mxu0
  %v1319 = vadd.f32 %v1055, %v1318
  %v1320 = vpop.f32.mrf.mxu0
  %v1321 = vpop.f32.mrf.mxu0
  %v1322 = vadd.f32 %v1058, %v1321
  %v1323 = vpop.f32.mrf.mxu0
  %1324 = vmatprep.mubr.bf16.mxu0 0
  %1325 = vmatmul.mubr.bf16.gmra.mxu0 %v820
  %v1326 = vpop.f32.mrf.mxu0
  %v1327 = vadd.f32 %v1063, %v1326
  %v1328 = vpop.f32.mrf.mxu0
  %v1329 = vpop.f32.mrf.mxu0
  %v1330 = vadd.f32 %v1066, %v1329
  %v1331 = vpop.f32.mrf.mxu0
  %1332 = vmatprep.mubr.bf16.mxu0 0
  %1333 = vmatmul.mubr.bf16.gmra.mxu0 %v823
  %v1334 = vpop.f32.mrf.mxu0
  %v1335 = vadd.f32 %v1071, %v1334
  %v1336 = vpop.f32.mrf.mxu0
  %v1337 = vpop.f32.mrf.mxu0
  %v1338 = vadd.f32 %v1074, %v1337
  %v1339 = vpop.f32.mrf.mxu0
  %1340 = vmatprep.mubr.bf16.mxu0 0
  %1341 = vmatmul.mubr.bf16.gmra.mxu0 %v826
  %v1342 = vpop.f32.mrf.mxu0
  %v1343 = vadd.f32 %v1079, %v1342
  %v1344 = vpop.f32.mrf.mxu0
  %v1345 = vpop.f32.mrf.mxu0
  %v1346 = vadd.f32 %v1082, %v1345
  %v1347 = vpop.f32.mrf.mxu0
  %1348 = vmatprep.mubr.bf16.mxu0 0
  %1349 = vmatmul.mubr.bf16.gmra.mxu0 %v829
  %v1350 = vpop.f32.mrf.mxu0
  %v1351 = vadd.f32 %v1087, %v1350
  %v1352 = vpop.f32.mrf.mxu0
  %v1353 = vpop.f32.mrf.mxu0
  %v1354 = vadd.f32 %v1090, %v1353
  %v1355 = vpop.f32.mrf.mxu0
  %1356 = vmatprep.mubr.bf16.mxu0 0
  %1357 = vmatmul.mubr.bf16.gmra.mxu0 %v832
  %v1358 = vpop.f32.mrf.mxu0
  %v1359 = vadd.f32 %v1095, %v1358
  %v1360 = vpop.f32.mrf.mxu0
  %v1361 = vpop.f32.mrf.mxu0
  %v1362 = vadd.f32 %v1098, %v1361
  %v1363 = vpop.f32.mrf.mxu0
  %1364 = vmatprep.mubr.bf16.mxu0 0
  %1365 = vmatmul.mubr.bf16.gmra.mxu0 %v835
  %v1366 = vpop.f32.mrf.mxu0
  %v1367 = vadd.f32 %v1103, %v1366
  %v1368 = vpop.f32.mrf.mxu0
  %v1369 = vpop.f32.mrf.mxu0
  %v1370 = vpop.f32.mrf.mxu0
  %1371 = vdwg.mxu0
  %v1372 = vmax.f32 %v1143, 0.0
  %v1373 = vmax.f32 %v1146, 0.0
  %v1374 = vmax.f32 %v1151, 0.0
  %v1375 = vmax.f32 %v1154, 0.0
  %v1376 = vmax.f32 %v1159, 0.0
  %v1377 = vmax.f32 %v1162, 0.0
  %v1378 = vmax.f32 %v1167, 0.0
  %v1379 = vmax.f32 %v1170, 0.0
  %v1380 = vmax.f32 %v1175, 0.0
  %v1381 = vmax.f32 %v1178, 0.0
  %v1382 = vmax.f32 %v1183, 0.0
  %v1383 = vmax.f32 %v1186, 0.0
  %v1384 = vmax.f32 %v1191, 0.0
  %v1385 = vmax.f32 %v1194, 0.0
  %v1386 = vmax.f32 %v1199, 0.0
  %v1387 = vmax.f32 %v1202, 0.0
  %v1388 = vmax.f32 %v1207, 0.0
  %v1389 = vmax.f32 %v1210, 0.0
  %v1390 = vmax.f32 %v1215, 0.0
  %v1391 = vmax.f32 %v1218, 0.0
  %v1392 = vmax.f32 %v1223, 0.0
  %v1393 = vmax.f32 %v1226, 0.0
  %v1394 = vmax.f32 %v1231, 0.0
  %v1395 = vmax.f32 %v1234, 0.0
  %v1396 = vmax.f32 %v1239, 0.0
  %v1397 = vmax.f32 %v1242, 0.0
  %v1398 = vmax.f32 %v1247, 0.0
  %v1399 = vmax.f32 %v1250, 0.0
  %v1400 = vmax.f32 %v1255, 0.0
  %v1401 = vmax.f32 %v1258, 0.0
  %v1402 = vmax.f32 %v1263, 0.0
  %v1403 = vmax.f32 %v1266, 0.0
  %v1404 = vmax.f32 %v1271, 0.0
  %v1405 = vmax.f32 %v1274, 0.0
  %v1406 = vmax.f32 %v1279, 0.0
  %v1407 = vmax.f32 %v1282, 0.0
  %v1408 = vmax.f32 %v1287, 0.0
  %v1409 = vmax.f32 %v1290, 0.0
  %v1410 = vmax.f32 %v1295, 0.0
  %v1411 = vmax.f32 %v1298, 0.0
  %v1412 = vmax.f32 %v1303, 0.0
  %v1413 = vmax.f32 %v1306, 0.0
  %v1414 = vmax.f32 %v1311, 0.0
  %v1415 = vmax.f32 %v1314, 0.0
  %v1416 = vmax.f32 %v1319, 0.0
  %v1417 = vmax.f32 %v1322, 0.0
  %v1418 = vmax.f32 %v1327, 0.0
  %v1419 = vmax.f32 %v1330, 0.0
  %v1420 = vmax.f32 %v1335, 0.0
  %v1421 = vmax.f32 %v1338, 0.0
  %v1422 = vmax.f32 %v1343, 0.0
  %v1423 = vmax.f32 %v1346, 0.0
  %v1424 = vmax.f32 %v1351, 0.0
  %v1425 = vmax.f32 %v1354, 0.0
  %v1426 = vmax.f32 %v1359, 0.0
  %v1427 = vmax.f32 %v1362, 0.0
  %v1428 = vmax.f32 %v1367, 0.0
  %v1429 = vpack.c.bf16 %v1373, %v1372
  %v1430 = vpack.c.bf16 %v1375, %v1374
  %v1431 = vpack.c.bf16 %v1377, %v1376
  %v1432 = vpack.c.bf16 %v1379, %v1378
  %v1433 = vpack.c.bf16 %v1381, %v1380
  %v1434 = vpack.c.bf16 %v1383, %v1382
  %v1435 = vpack.c.bf16 %v1385, %v1384
  %v1436 = vpack.c.bf16 %v1387, %v1386
  %v1437 = vpack.c.bf16 %v1389, %v1388
  %v1438 = vpack.c.bf16 %v1391, %v1390
  %v1439 = vpack.c.bf16 %v1393, %v1392
  %v1440 = vpack.c.bf16 %v1395, %v1394
  %v1441 = vpack.c.bf16 %v1397, %v1396
  %v1442 = vpack.c.bf16 %v1399, %v1398
  %v1443 = vpack.c.bf16 %v1401, %v1400
  %v1444 = vpack.c.bf16 %v1403, %v1402
  %v1445 = vpack.c.bf16 %v1405, %v1404
  %v1446 = vpack.c.bf16 %v1407, %v1406
  %v1447 = vpack.c.bf16 %v1409, %v1408
  %v1448 = vpack.c.bf16 %v1411, %v1410
  %v1449 = vpack.c.bf16 %v1413, %v1412
  %v1450 = vpack.c.bf16 %v1415, %v1414
  %v1451 = vpack.c.bf16 %v1417, %v1416
  %v1452 = vpack.c.bf16 %v1419, %v1418
  %v1453 = vpack.c.bf16 %v1421, %v1420
  %v1454 = vpack.c.bf16 %v1423, %v1422
  %v1455 = vpack.c.bf16 %v1425, %v1424
  %v1456 = vpack.c.bf16 %v1427, %v1426
  %v1457 = vpack.c.bf16 %v1428, %v1428
  %v1487 = vunpack.c.l.b16 %v1429
  %v1488 = vunpack.c.h.b16 %v1429
  %v1489 = vunpack.c.l.b16 %v1430
  %v1490 = vunpack.c.h.b16 %v1430
  %v1491 = vunpack.c.l.b16 %v1431
  %v1492 = vunpack.c.h.b16 %v1431
  %v1493 = vunpack.c.l.b16 %v1432
  %v1494 = vunpack.c.h.b16 %v1432
  %v1495 = vunpack.c.l.b16 %v1433
  %v1496 = vunpack.c.h.b16 %v1433
  %v1497 = vunpack.c.l.b16 %v1434
  %v1498 = vunpack.c.h.b16 %v1434
  %v1499 = vunpack.c.l.b16 %v1435
  %v1500 = vunpack.c.h.b16 %v1435
  %v1501 = vunpack.c.l.b16 %v1436
  %v1502 = vunpack.c.h.b16 %v1436
  %v1503 = vunpack.c.l.b16 %v1437
  %v1504 = vunpack.c.h.b16 %v1437
  %v1505 = vunpack.c.l.b16 %v1438
  %v1506 = vunpack.c.h.b16 %v1438
  %v1507 = vunpack.c.l.b16 %v1439
  %v1508 = vunpack.c.h.b16 %v1439
  %v1509 = vunpack.c.l.b16 %v1440
  %v1510 = vunpack.c.h.b16 %v1440
  %v1511 = vunpack.c.l.b16 %v1441
  %v1512 = vunpack.c.h.b16 %v1441
  %v1513 = vunpack.c.l.b16 %v1442
  %v1514 = vunpack.c.h.b16 %v1442
  %v1515 = vunpack.c.l.b16 %v1443
  %v1516 = vunpack.c.h.b16 %v1443
  %v1517 = vunpack.c.l.b16 %v1444
  %v1518 = vunpack.c.h.b16 %v1444
  %v1519 = vunpack.c.l.b16 %v1445
  %v1520 = vunpack.c.h.b16 %v1445
  %v1521 = vunpack.c.l.b16 %v1446
  %v1522 = vunpack.c.h.b16 %v1446
  %v1523 = vunpack.c.l.b16 %v1447
  %v1524 = vunpack.c.h.b16 %v1447
  %v1525 = vunpack.c.l.b16 %v1448
  %v1526 = vunpack.c.h.b16 %v1448
  %v1527 = vunpack.c.l.b16 %v1449
  %v1528 = vunpack.c.h.b16 %v1449
  %v1529 = vunpack.c.l.b16 %v1450
  %v1530 = vunpack.c.h.b16 %v1450
  %v1531 = vunpack.c.l.b16 %v1451
  %v1532 = vunpack.c.h.b16 %v1451
  %v1533 = vunpack.c.l.b16 %v1452
  %v1534 = vunpack.c.h.b16 %v1452
  %v1535 = vunpack.c.l.b16 %v1453
  %v1536 = vunpack.c.h.b16 %v1453
  %v1537 = vunpack.c.l.b16 %v1454
  %v1538 = vunpack.c.h.b16 %v1454
  %v1539 = vunpack.c.l.b16 %v1455
  %v1540 = vunpack.c.h.b16 %v1455
  %v1541 = vunpack.c.l.b16 %v1456
  %v1542 = vunpack.c.h.b16 %v1456
  %v1543 = vunpack.c.l.b16 %v1457
  %v1544 = vpack.c.b16 %v1487, %v1487
  %v1545 = vpack.c.b16 %v1488, %v1488
  %v1546 = vpack.c.b16 %v1489, %v1489
  %v1547 = vpack.c.b16 %v1490, %v1490
  %v1548 = vpack.c.b16 %v1491, %v1491
  %v1549 = vpack.c.b16 %v1492, %v1492
  %v1550 = vpack.c.b16 %v1493, %v1493
  %v1551 = vpack.c.b16 %v1494, %v1494
  %v1552 = vpack.c.b16 %v1495, %v1495
  %v1553 = vpack.c.b16 %v1496, %v1496
  %v1554 = vpack.c.b16 %v1497, %v1497
  %v1555 = vpack.c.b16 %v1498, %v1498
  %v1556 = vpack.c.b16 %v1499, %v1499
  %v1557 = vpack.c.b16 %v1500, %v1500
  %v1558 = vpack.c.b16 %v1501, %v1501
  %v1559 = vpack.c.b16 %v1502, %v1502
  %v1560 = vpack.c.b16 %v1503, %v1503
  %v1561 = vpack.c.b16 %v1504, %v1504
  %v1562 = vpack.c.b16 %v1505, %v1505
  %v1563 = vpack.c.b16 %v1506, %v1506
  %v1564 = vpack.c.b16 %v1507, %v1507
  %v1565 = vpack.c.b16 %v1508, %v1508
  %v1566 = vpack.c.b16 %v1509, %v1509
  %v1567 = vpack.c.b16 %v1510, %v1510
  %v1568 = vpack.c.b16 %v1511, %v1511
  %v1569 = vpack.c.b16 %v1512, %v1512
  %v1570 = vpack.c.b16 %v1513, %v1513
  %v1571 = vpack.c.b16 %v1514, %v1514
  %v1572 = vpack.c.b16 %v1515, %v1515
  %v1573 = vpack.c.b16 %v1516, %v1516
  %v1574 = vpack.c.b16 %v1517, %v1517
  %v1575 = vpack.c.b16 %v1518, %v1518
  %v1576 = vpack.c.b16 %v1519, %v1519
  %v1577 = vpack.c.b16 %v1520, %v1520
  %v1578 = vpack.c.b16 %v1521, %v1521
  %v1579 = vpack.c.b16 %v1522, %v1522
  %v1580 = vpack.c.b16 %v1523, %v1523
  %v1581 = vpack.c.b16 %v1524, %v1524
  %v1582 = vpack.c.b16 %v1525, %v1525
  %v1583 = vpack.c.b16 %v1526, %v1526
  %v1584 = vpack.c.b16 %v1527, %v1527
  %v1585 = vpack.c.b16 %v1528, %v1528
  %v1586 = vpack.c.b16 %v1529, %v1529
  %v1587 = vpack.c.b16 %v1530, %v1530
  %v1588 = vpack.c.b16 %v1531, %v1531
  %v1589 = vpack.c.b16 %v1532, %v1532
  %v1590 = vpack.c.b16 %v1533, %v1533
  %v1591 = vpack.c.b16 %v1534, %v1534
  %v1592 = vpack.c.b16 %v1535, %v1535
  %v1593 = vpack.c.b16 %v1536, %v1536
  %v1594 = vpack.c.b16 %v1537, %v1537
  %v1595 = vpack.c.b16 %v1538, %v1538
  %v1596 = vpack.c.b16 %v1539, %v1539
  %v1597 = vpack.c.b16 %v1540, %v1540
  %v1598 = vpack.c.b16 %v1541, %v1541
  %v1599 = vpack.c.b16 %v1542, %v1542
  %v1600 = vpack.c.b16 %v1543, %v1543
  %vm1658 = vcmask 519168
  %1659 = vst.msk [vmem:[%s3] sm:$0xf] %vm1658, %v1544
  %1660 = vst.msk [vmem:[%s3 + $0x4] sm:$0xf] %vm1658, %v1545
  %1661 = vst.msk [vmem:[%s3 + $0x8] sm:$0xf] %vm1658, %v1546
  %1662 = vst.msk [vmem:[%s3 + $0xc] sm:$0xf] %vm1658, %v1547
  %1663 = vst.msk [vmem:[%s3 + $0x10] sm:$0xf] %vm1658, %v1548
  %1664 = vst.msk [vmem:[%s3 + $0x14] sm:$0xf] %vm1658, %v1549
  %1665 = vst.msk [vmem:[%s3 + $0x18] sm:$0xf] %vm1658, %v1550
  %1666 = vst.msk [vmem:[%s3 + $0x1c] sm:$0xf] %vm1658, %v1551
  %1667 = vst.msk [vmem:[%s3 + $0x20] sm:$0xf] %vm1658, %v1552
  %1668 = vst.msk [vmem:[%s3 + $0x24] sm:$0xf] %vm1658, %v1553
  %1669 = vst.msk [vmem:[%s3 + $0x28] sm:$0xf] %vm1658, %v1554
  %1670 = vst.msk [vmem:[%s3 + $0x2c] sm:$0xf] %vm1658, %v1555
  %1671 = vst.msk [vmem:[%s3 + $0x30] sm:$0xf] %vm1658, %v1556
  %1672 = vst.msk [vmem:[%s3 + $0x34] sm:$0xf] %vm1658, %v1557
  %1673 = vst.msk [vmem:[%s3 + $0x38] sm:$0xf] %vm1658, %v1558
  %1674 = vst.msk [vmem:[%s3 + $0x3c] sm:$0xf] %vm1658, %v1559
  %1675 = vst.msk [vmem:[%s3 + $0x40] sm:$0xf] %vm1658, %v1560
  %1676 = vst.msk [vmem:[%s3 + $0x44] sm:$0xf] %vm1658, %v1561
  %1677 = vst.msk [vmem:[%s3 + $0x48] sm:$0xf] %vm1658, %v1562
  %1678 = vst.msk [vmem:[%s3 + $0x4c] sm:$0xf] %vm1658, %v1563
  %1679 = vst.msk [vmem:[%s3 + $0x50] sm:$0xf] %vm1658, %v1564
  %1680 = vst.msk [vmem:[%s3 + $0x54] sm:$0xf] %vm1658, %v1565
  %1681 = vst.msk [vmem:[%s3 + $0x58] sm:$0xf] %vm1658, %v1566
  %1682 = vst.msk [vmem:[%s3 + $0x5c] sm:$0xf] %vm1658, %v1567
  %1683 = vst.msk [vmem:[%s3 + $0x60] sm:$0xf] %vm1658, %v1568
  %1684 = vst.msk [vmem:[%s3 + $0x64] sm:$0xf] %vm1658, %v1569
  %1685 = vst.msk [vmem:[%s3 + $0x68] sm:$0xf] %vm1658, %v1570
  %1686 = vst.msk [vmem:[%s3 + $0x6c] sm:$0xf] %vm1658, %v1571
  %1687 = vst.msk [vmem:[%s3 + $0x70] sm:$0xf] %vm1658, %v1572
  %1688 = vst.msk [vmem:[%s3 + $0x74] sm:$0xf] %vm1658, %v1573
  %1689 = vst.msk [vmem:[%s3 + $0x78] sm:$0xf] %vm1658, %v1574
  %1690 = vst.msk [vmem:[%s3 + $0x7c] sm:$0xf] %vm1658, %v1575
  %1691 = vst.msk [vmem:[%s3 + $0x80] sm:$0xf] %vm1658, %v1576
  %1692 = vst.msk [vmem:[%s3 + $0x84] sm:$0xf] %vm1658, %v1577
  %1693 = vst.msk [vmem:[%s3 + $0x88] sm:$0xf] %vm1658, %v1578
  %1694 = vst.msk [vmem:[%s3 + $0x8c] sm:$0xf] %vm1658, %v1579
  %1695 = vst.msk [vmem:[%s3 + $0x90] sm:$0xf] %vm1658, %v1580
  %1696 = vst.msk [vmem:[%s3 + $0x94] sm:$0xf] %vm1658, %v1581
  %1697 = vst.msk [vmem:[%s3 + $0x98] sm:$0xf] %vm1658, %v1582
  %1698 = vst.msk [vmem:[%s3 + $0x9c] sm:$0xf] %vm1658, %v1583
  %1699 = vst.msk [vmem:[%s3 + $0xa0] sm:$0xf] %vm1658, %v1584
  %1700 = vst.msk [vmem:[%s3 + $0xa4] sm:$0xf] %vm1658, %v1585
  %1701 = vst.msk [vmem:[%s3 + $0xa8] sm:$0xf] %vm1658, %v1586
  %1702 = vst.msk [vmem:[%s3 + $0xac] sm:$0xf] %vm1658, %v1587
  %1703 = vst.msk [vmem:[%s3 + $0xb0] sm:$0xf] %vm1658, %v1588
  %1704 = vst.msk [vmem:[%s3 + $0xb4] sm:$0xf] %vm1658, %v1589
  %1705 = vst.msk [vmem:[%s3 + $0xb8] sm:$0xf] %vm1658, %v1590
  %1706 = vst.msk [vmem:[%s3 + $0xbc] sm:$0xf] %vm1658, %v1591
  %1707 = vst.msk [vmem:[%s3 + $0xc0] sm:$0xf] %vm1658, %v1592
  %1708 = vst.msk [vmem:[%s3 + $0xc4] sm:$0xf] %vm1658, %v1593
  %1709 = vst.msk [vmem:[%s3 + $0xc8] sm:$0xf] %vm1658, %v1594
  %1710 = vst.msk [vmem:[%s3 + $0xcc] sm:$0xf] %vm1658, %v1595
  %1711 = vst.msk [vmem:[%s3 + $0xd0] sm:$0xf] %vm1658, %v1596
  %1712 = vst.msk [vmem:[%s3 + $0xd4] sm:$0xf] %vm1658, %v1597
  %1713 = vst.msk [vmem:[%s3 + $0xd8] sm:$0xf] %vm1658, %v1598
  %1714 = vst.msk [vmem:[%s3 + $0xdc] sm:$0xf] %vm1658, %v1599
  %vm1715 = vcmask 516096
  %1716 = vst.msk [vmem:[%s3 + $0xe0] sm:$0x1] %vm1715, %v1600
  // Predicated region
  $region14: #{alexnet_forward.8} parent=0 // pred_check
    _
  $region15: #{alexnet_forward.8} parent=0 // pred_check_branch
    %1718 = sbr.rel (0) target = $region17
  $region16: #{alexnet_forward.8} parent=0 // pred_region
    _
  $region17: #{alexnet_forward.8} parent=0 // pred_fallthru
    _
  // Predicated region
  $region18: #{alexnet_forward.8} parent=0 // pred_check
    _
  $region19: #{alexnet_forward.8} parent=0 // pred_check_branch
    %1720 = sbr.rel (0) target = $region21
  $region20: #{alexnet_forward.8} parent=0 // pred_region
    _
  $region21: #{alexnet_forward.8} parent=0 // pred_fallthru
    _

// kernel: alexnet_forward.9
$region0: #{alexnet_forward.9}
  #allocation0 [shape = 'u32[]', space=smem, size = 0x4, offset = 0x4, fixed_abs, tag = 'smem constant byte address 0x4 - core index']
  #allocation1 [shape = 'u32[144,128]{1,0:T(1,128)}', space=vmem, size = 0x12000, scoped, tag = 'internal scratch']
  %s0 = inlined_call_operand.vmem [shape: bf16[98,64], index: 0, kind: input, shape index: {}]
  %s1 = inlined_call_operand.vmem [shape: bf16[98,64], index: 1, kind: input, shape index: {}]
  %s2 = inlined_call_operand.vmem [shape: bf16[98,64], index: 2, kind: input, shape index: {}]
  %s3 = inlined_call_operand.vmem [shape: bf16[98,64], index: 3, kind: output, shape index: {}]
  %s4 = sld [smem:[#allocation0]]
  $region22: #{alexnet_forward.9} parent=0
    _
  %s6 = ssub.s32 1, %s4
  %s7 = scalar_select 0, %s6, %s4
  // Predicated region
  $region2: #{alexnet_forward.9} parent=0 // pred_check
    _
  $region3: #{alexnet_forward.9} parent=0 // pred_check_branch
    %9 = sbr.rel (0) target = $region5
  $region4: #{alexnet_forward.9} parent=0 // pred_region
    _
  $region5: #{alexnet_forward.9} parent=0 // pred_fallthru
    _
  // Predicated region
  $region6: #{alexnet_forward.9} parent=0 // pred_check
    _
  $region7: #{alexnet_forward.9} parent=0 // pred_check_branch
    %11 = sbr.rel (0) target = $region9
  $region8: #{alexnet_forward.9} parent=0 // pred_region
    _
  $region9: #{alexnet_forward.9} parent=0 // pred_fallthru
    _
  // Predicated region
  $region10: #{alexnet_forward.9} parent=0 // pred_check
    _
  $region11: #{alexnet_forward.9} parent=0 // pred_check_branch
    %13 = sbr.rel (0) target = $region13
  $region12: #{alexnet_forward.9} parent=0 // pred_region
    _
  $region13: #{alexnet_forward.9} parent=0 // pred_fallthru
    _
  %v14 = vld [vmem:[%s0] sm:$0xf]
  %v15 = vld [vmem:[%s0 + $0x4] sm:$0xf]
  %v16 = vld [vmem:[%s0 + $0x8] sm:$0xf]
  %v17 = vld [vmem:[%s0 + $0xc] sm:$0xf]
  %v18 = vld [vmem:[%s0 + $0x10] sm:$0xf]
  %v19 = vld [vmem:[%s0 + $0x14] sm:$0xf]
  %v20 = vld [vmem:[%s0 + $0x18] sm:$0xf]
  %v21 = vld [vmem:[%s0 + $0x1c] sm:$0xf]
  %v22 = vld [vmem:[%s0 + $0x20] sm:$0xf]
  %v23 = vld [vmem:[%s0 + $0x24] sm:$0xf]
  %v24 = vld [vmem:[%s0 + $0x28] sm:$0xf]
  %v25 = vld [vmem:[%s0 + $0x2c] sm:$0xf]
  %v26 = vld [vmem:[%s0 + $0x30] sm:$0x1]
  %v27 = vld [vmem:[%s1] sm:$0xf]
  %v28 = vld [vmem:[%s1 + $0x4] sm:$0xf]
  %v29 = vld [vmem:[%s1 + $0x8] sm:$0xf]
  %v30 = vld [vmem:[%s1 + $0xc] sm:$0xf]
  %v31 = vld [vmem:[%s1 + $0x10] sm:$0xf]
  %v32 = vld [vmem:[%s1 + $0x14] sm:$0xf]
  %v33 = vld [vmem:[%s1 + $0x18] sm:$0xf]
  %v34 = vld [vmem:[%s1 + $0x1c] sm:$0xf]
  %v35 = vld [vmem:[%s1 + $0x20] sm:$0xf]
  %v36 = vld [vmem:[%s1 + $0x24] sm:$0xf]
  %v37 = vld [vmem:[%s1 + $0x28] sm:$0xf]
  %v38 = vld [vmem:[%s1 + $0x2c] sm:$0xf]
  %v39 = vld [vmem:[%s1 + $0x30] sm:$0x1]
  %v40 = vmax.bf16 %v14, %v27
  %v41 = vmax.bf16 %v15, %v28
  %v42 = vmax.bf16 %v16, %v29
  %v43 = vmax.bf16 %v17, %v30
  %v44 = vmax.bf16 %v18, %v31
  %v45 = vmax.bf16 %v19, %v32
  %v46 = vmax.bf16 %v20, %v33
  %v47 = vmax.bf16 %v21, %v34
  %v48 = vmax.bf16 %v22, %v35
  %v49 = vmax.bf16 %v23, %v36
  %v50 = vmax.bf16 %v24, %v37
  %v51 = vmax.bf16 %v25, %v38
  %v52 = vmax.bf16 %v26, %v39
  %v53 = vld [vmem:[%s2] sm:$0xf]
  %v54 = vld [vmem:[%s2 + $0x4] sm:$0xf]
  %v55 = vld [vmem:[%s2 + $0x8] sm:$0xf]
  %v56 = vld [vmem:[%s2 + $0xc] sm:$0xf]
  %v57 = vld [vmem:[%s2 + $0x10] sm:$0xf]
  %v58 = vld [vmem:[%s2 + $0x14] sm:$0xf]
  %v59 = vld [vmem:[%s2 + $0x18] sm:$0xf]
  %v60 = vld [vmem:[%s2 + $0x1c] sm:$0xf]
  %v61 = vld [vmem:[%s2 + $0x20] sm:$0xf]
  %v62 = vld [vmem:[%s2 + $0x24] sm:$0xf]
  %v63 = vld [vmem:[%s2 + $0x28] sm:$0xf]
  %v64 = vld [vmem:[%s2 + $0x2c] sm:$0xf]
  %v65 = vld [vmem:[%s2 + $0x30] sm:$0x1]
  %v66 = vmax.bf16 %v40, %v53
  %v67 = vmax.bf16 %v41, %v54
  %v68 = vmax.bf16 %v42, %v55
  %v69 = vmax.bf16 %v43, %v56
  %v70 = vmax.bf16 %v44, %v57
  %v71 = vmax.bf16 %v45, %v58
  %v72 = vmax.bf16 %v46, %v59
  %v73 = vmax.bf16 %v47, %v60
  %v74 = vmax.bf16 %v48, %v61
  %v75 = vmax.bf16 %v49, %v62
  %v76 = vmax.bf16 %v50, %v63
  %v77 = vmax.bf16 %v51, %v64
  %v78 = vmax.bf16 %v52, %v65
  %vm79 = vcmask 519168
  %80 = vst.msk [vmem:[%s3] sm:$0xf] %vm79, %v66
  %81 = vst.msk [vmem:[%s3 + $0x4] sm:$0xf] %vm79, %v67
  %82 = vst.msk [vmem:[%s3 + $0x8] sm:$0xf] %vm79, %v68
  %83 = vst.msk [vmem:[%s3 + $0xc] sm:$0xf] %vm79, %v69
  %84 = vst.msk [vmem:[%s3 + $0x10] sm:$0xf] %vm79, %v70
  %85 = vst.msk [vmem:[%s3 + $0x14] sm:$0xf] %vm79, %v71
  %86 = vst.msk [vmem:[%s3 + $0x18] sm:$0xf] %vm79, %v72
  %87 = vst.msk [vmem:[%s3 + $0x1c] sm:$0xf] %vm79, %v73
  %88 = vst.msk [vmem:[%s3 + $0x20] sm:$0xf] %vm79, %v74
  %89 = vst.msk [vmem:[%s3 + $0x24] sm:$0xf] %vm79, %v75
  %90 = vst.msk [vmem:[%s3 + $0x28] sm:$0xf] %vm79, %v76
  %91 = vst.msk [vmem:[%s3 + $0x2c] sm:$0xf] %vm79, %v77
  %vm92 = vcmask 516096
  %93 = vst.msk [vmem:[%s3 + $0x30] sm:$0x1] %vm92, %v78
  // Predicated region
  $region14: #{alexnet_forward.9} parent=0 // pred_check
    _
  $region15: #{alexnet_forward.9} parent=0 // pred_check_branch
    %95 = sbr.rel (0) target = $region17
  $region16: #{alexnet_forward.9} parent=0 // pred_region
    _
  $region17: #{alexnet_forward.9} parent=0 // pred_fallthru
    _
  // Predicated region
  $region18: #{alexnet_forward.9} parent=0 // pred_check
    _
  $region19: #{alexnet_forward.9} parent=0 // pred_check_branch
    %97 = sbr.rel (0) target = $region21
  $region20: #{alexnet_forward.9} parent=0 // pred_region
    _
  $region21: #{alexnet_forward.9} parent=0 // pred_fallthru
    _

// kernel: alexnet_forward.11
$region0: #{alexnet_forward.11}
  #allocation0 [shape = 'u32[]', space=smem, size = 0x4, offset = 0x4, fixed_abs, tag = 'smem constant byte address 0x4 - core index']
  #allocation1 [shape = 'u32[144,128]{1,0:T(1,128)}', space=vmem, size = 0x12000, scoped, tag = 'internal scratch']
  %s0 = inlined_call_operand.vmem [shape: bf16[18,192], index: 0, kind: input, shape index: {}]
  %s1 = inlined_call_operand.vmem [shape: bf16[18,192], index: 1, kind: input, shape index: {}]
  %s2 = inlined_call_operand.vmem [shape: bf16[18,192], index: 2, kind: input, shape index: {}]
  %s3 = inlined_call_operand.vmem [shape: bf16[18,192], index: 3, kind: output, shape index: {}]
  %s4 = sld [smem:[#allocation0]]
  $region22: #{alexnet_forward.11} parent=0
    _
  %s6 = ssub.s32 1, %s4
  %s7 = scalar_select 0, %s6, %s4
  // Predicated region
  $region2: #{alexnet_forward.11} parent=0 // pred_check
    _
  $region3: #{alexnet_forward.11} parent=0 // pred_check_branch
    %9 = sbr.rel (0) target = $region5
  $region4: #{alexnet_forward.11} parent=0 // pred_region
    _
  $region5: #{alexnet_forward.11} parent=0 // pred_fallthru
    _
  // Predicated region
  $region6: #{alexnet_forward.11} parent=0 // pred_check
    _
  $region7: #{alexnet_forward.11} parent=0 // pred_check_branch
    %11 = sbr.rel (0) target = $region9
  $region8: #{alexnet_forward.11} parent=0 // pred_region
    _
  $region9: #{alexnet_forward.11} parent=0 // pred_fallthru
    _
  // Predicated region
  $region10: #{alexnet_forward.11} parent=0 // pred_check
    _
  $region11: #{alexnet_forward.11} parent=0 // pred_check_branch
    %13 = sbr.rel (0) target = $region13
  $region12: #{alexnet_forward.11} parent=0 // pred_region
    _
  $region13: #{alexnet_forward.11} parent=0 // pred_fallthru
    _
  %v14 = vld [vmem:[%s0] sm:$0xff]
  %v15 = vld [vmem:[%s0 + $0x8] sm:$0xff]
  %v16 = vld [vmem:[%s0 + $0x10] sm:$0x11]
  %v17 = vld [vmem:[%s1] sm:$0xff]
  %v18 = vld [vmem:[%s1 + $0x8] sm:$0xff]
  %v19 = vld [vmem:[%s1 + $0x10] sm:$0x11]
  %v20 = vmax.bf16 %v14, %v17
  %v21 = vmax.bf16 %v15, %v18
  %v22 = vmax.bf16 %v16, %v19
  %v23 = vld [vmem:[%s2] sm:$0xff]
  %v24 = vld [vmem:[%s2 + $0x8] sm:$0xff]
  %v25 = vld [vmem:[%s2 + $0x10] sm:$0x11]
  %v26 = vmax.bf16 %v20, %v23
  %v27 = vmax.bf16 %v21, %v24
  %v28 = vmax.bf16 %v22, %v25
  %vm29 = vcmask 1043456
  %vm30 = vcmask 523268
  %vm31 = vmor %vm30, %vm29
  %32 = vst.msk [vmem:[%s3] sm:$0xff] %vm31, %v26
  %33 = vst.msk [vmem:[%s3 + $0x8] sm:$0xff] %vm31, %v27
  %vm34 = vcmask 1040384
  %vm35 = vcmask 520196
  %vm36 = vmor %vm35, %vm34
  %37 = vst.msk [vmem:[%s3 + $0x10] sm:$0x11] %vm36, %v28
  // Predicated region
  $region14: #{alexnet_forward.11} parent=0 // pred_check
    _
  $region15: #{alexnet_forward.11} parent=0 // pred_check_branch
    %39 = sbr.rel (0) target = $region17
  $region16: #{alexnet_forward.11} parent=0 // pred_region
    _
  $region17: #{alexnet_forward.11} parent=0 // pred_fallthru
    _
  // Predicated region
  $region18: #{alexnet_forward.11} parent=0 // pred_check
    _
  $region19: #{alexnet_forward.11} parent=0 // pred_check_branch
    %41 = sbr.rel (0) target = $region21
  $region20: #{alexnet_forward.11} parent=0 // pred_region
    _
  $region21: #{alexnet_forward.11} parent=0 // pred_fallthru
    _

// kernel: alexnet_forward.10
$region0: #{alexnet_forward.10}
  #allocation0 [shape = 'u32[]', space=smem, size = 0x4, offset = 0x4, fixed_abs, tag = 'smem constant byte address 0x4 - core index']
  #allocation1 [shape = 'u32[144,128]{1,0:T(1,128)}', space=vmem, size = 0x12000, scoped, tag = 'internal scratch']
  %s0 = inlined_call_operand.vmem [shape: bf16[98,1600], index: 0, kind: input, shape index: {}]
  %s1 = inlined_call_operand.vmem [shape: bf16[1600,192], index: 1, kind: input, shape index: {}]
  %s2 = inlined_call_operand.vmem [shape: f32[1,192], index: 2, kind: input, shape index: {}]
  %s3 = inlined_call_operand.vmem [shape: bf16[98,192], index: 3, kind: output, shape index: {}]
  %s4 = sld [smem:[#allocation0]]
  $region22: #{alexnet_forward.10} parent=0
    _
  %s6 = ssub.s32 1, %s4
  %s7 = scalar_select 0, %s6, %s4
  // Predicated region
  $region2: #{alexnet_forward.10} parent=0 // pred_check
    _
  $region3: #{alexnet_forward.10} parent=0 // pred_check_branch
    %9 = sbr.rel (0) target = $region5
  $region4: #{alexnet_forward.10} parent=0 // pred_region
    _
  $region5: #{alexnet_forward.10} parent=0 // pred_fallthru
    _
  // Predicated region
  $region6: #{alexnet_forward.10} parent=0 // pred_check
    _
  $region7: #{alexnet_forward.10} parent=0 // pred_check_branch
    %11 = sbr.rel (0) target = $region9
  $region8: #{alexnet_forward.10} parent=0 // pred_region
    _
  $region9: #{alexnet_forward.10} parent=0 // pred_fallthru
    _
  // Predicated region
  $region10: #{alexnet_forward.10} parent=0 // pred_check
    _
  $region11: #{alexnet_forward.10} parent=0 // pred_check_branch
    %13 = sbr.rel (0) target = $region13
  $region12: #{alexnet_forward.10} parent=0 // pred_region
    _
  $region13: #{alexnet_forward.10} parent=0 // pred_fallthru
    _
  %v15 = vld [vmem:[%s0] sm:$0xff]
  %v16 = vld [vmem:[%s0 + $0x8] sm:$0xff]
  %v17 = vld [vmem:[%s0 + $0x10] sm:$0xff]
  %v18 = vld [vmem:[%s0 + $0x18] sm:$0xff]
  %v19 = vld [vmem:[%s0 + $0x20] sm:$0xff]
  %v20 = vld [vmem:[%s0 + $0x28] sm:$0xff]
  %v21 = vld [vmem:[%s0 + $0x30] sm:$0xf]
  %v22 = vld [vmem:[%s0 + $0x34] sm:$0xff]
  %v23 = vld [vmem:[%s0 + $0x3c] sm:$0xff]
  %v24 = vld [vmem:[%s0 + $0x44] sm:$0xff]
  %v25 = vld [vmem:[%s0 + $0x4c] sm:$0xff]
  %v26 = vld [vmem:[%s0 + $0x54] sm:$0xff]
  %v27 = vld [vmem:[%s0 + $0x5c] sm:$0xff]
  %v28 = vld [vmem:[%s0 + $0x64] sm:$0xf]
  %v29 = vld [vmem:[%s0 + $0x68] sm:$0xff]
  %v30 = vld [vmem:[%s0 + $0x70] sm:$0xff]
  %v31 = vld [vmem:[%s0 + $0x78] sm:$0xff]
  %v32 = vld [vmem:[%s0 + $0x80] sm:$0xff]
  %v33 = vld [vmem:[%s0 + $0x88] sm:$0xff]
  %v34 = vld [vmem:[%s0 + $0x90] sm:$0xff]
  %v35 = vld [vmem:[%s0 + $0x98] sm:$0xf]
  %v36 = vld [vmem:[%s0 + $0x9c] sm:$0xff]
  %v37 = vld [vmem:[%s0 + $0xa4] sm:$0xff]
  %v38 = vld [vmem:[%s0 + $0xac] sm:$0xff]
  %v39 = vld [vmem:[%s0 + $0xb4] sm:$0xff]
  %v40 = vld [vmem:[%s0 + $0xbc] sm:$0xff]
  %v41 = vld [vmem:[%s0 + $0xc4] sm:$0xff]
  %v42 = vld [vmem:[%s0 + $0xcc] sm:$0xf]
  %v43 = vld [vmem:[%s0 + $0xd0] sm:$0xff]
  %v44 = vld [vmem:[%s0 + $0xd8] sm:$0xff]
  %v45 = vld [vmem:[%s0 + $0xe0] sm:$0xff]
  %v46 = vld [vmem:[%s0 + $0xe8] sm:$0xff]
  %v47 = vld [vmem:[%s0 + $0xf0] sm:$0xff]
  %v48 = vld [vmem:[%s0 + $0xf8] sm:$0xff]
  %v49 = vld [vmem:[%s0 + $0x100] sm:$0xf]
  %v50 = vld [vmem:[%s0 + $0x104] sm:$0xff]
  %v51 = vld [vmem:[%s0 + $0x10c] sm:$0xff]
  %v52 = vld [vmem:[%s0 + $0x114] sm:$0xff]
  %v53 = vld [vmem:[%s0 + $0x11c] sm:$0xff]
  %v54 = vld [vmem:[%s0 + $0x124] sm:$0xff]
  %v55 = vld [vmem:[%s0 + $0x12c] sm:$0xff]
  %v56 = vld [vmem:[%s0 + $0x134] sm:$0xf]
  %v57 = vld [vmem:[%s0 + $0x138] sm:$0xff]
  %v58 = vld [vmem:[%s0 + $0x140] sm:$0xff]
  %v59 = vld [vmem:[%s0 + $0x148] sm:$0xff]
  %v60 = vld [vmem:[%s0 + $0x150] sm:$0xff]
  %v61 = vld [vmem:[%s0 + $0x158] sm:$0xff]
  %v62 = vld [vmem:[%s0 + $0x160] sm:$0xff]
  %v63 = vld [vmem:[%s0 + $0x168] sm:$0xf]
  %v64 = vld [vmem:[%s0 + $0x16c] sm:$0xff]
  %v65 = vld [vmem:[%s0 + $0x174] sm:$0xff]
  %v66 = vld [vmem:[%s0 + $0x17c] sm:$0xff]
  %v67 = vld [vmem:[%s0 + $0x184] sm:$0xff]
  %v68 = vld [vmem:[%s0 + $0x18c] sm:$0xff]
  %v69 = vld [vmem:[%s0 + $0x194] sm:$0xff]
  %v70 = vld [vmem:[%s0 + $0x19c] sm:$0xf]
  %v71 = vld [vmem:[%s0 + $0x1a0] sm:$0xff]
  %v72 = vld [vmem:[%s0 + $0x1a8] sm:$0xff]
  %v73 = vld [vmem:[%s0 + $0x1b0] sm:$0xff]
  %v74 = vld [vmem:[%s0 + $0x1b8] sm:$0xff]
  %v75 = vld [vmem:[%s0 + $0x1c0] sm:$0xff]
  %v76 = vld [vmem:[%s0 + $0x1c8] sm:$0xff]
  %v77 = vld [vmem:[%s0 + $0x1d0] sm:$0xf]
  %v78 = vld [vmem:[%s0 + $0x1d4] sm:$0xff]
  %v79 = vld [vmem:[%s0 + $0x1dc] sm:$0xff]
  %v80 = vld [vmem:[%s0 + $0x1e4] sm:$0xff]
  %v81 = vld [vmem:[%s0 + $0x1ec] sm:$0xff]
  %v82 = vld [vmem:[%s0 + $0x1f4] sm:$0xff]
  %v83 = vld [vmem:[%s0 + $0x1fc] sm:$0xff]
  %v84 = vld [vmem:[%s0 + $0x204] sm:$0xf]
  %v85 = vld [vmem:[%s0 + $0x208] sm:$0xff]
  %v86 = vld [vmem:[%s0 + $0x210] sm:$0xff]
  %v87 = vld [vmem:[%s0 + $0x218] sm:$0xff]
  %v88 = vld [vmem:[%s0 + $0x220] sm:$0xff]
  %v89 = vld [vmem:[%s0 + $0x228] sm:$0xff]
  %v90 = vld [vmem:[%s0 + $0x230] sm:$0xff]
  %v91 = vld [vmem:[%s0 + $0x238] sm:$0xf]
  %v92 = vld [vmem:[%s0 + $0x23c] sm:$0xff]
  %v93 = vld [vmem:[%s0 + $0x244] sm:$0xff]
  %v94 = vld [vmem:[%s0 + $0x24c] sm:$0xff]
  %v95 = vld [vmem:[%s0 + $0x254] sm:$0xff]
  %v96 = vld [vmem:[%s0 + $0x25c] sm:$0xff]
  %v97 = vld [vmem:[%s0 + $0x264] sm:$0xff]
  %v98 = vld [vmem:[%s0 + $0x26c] sm:$0xf]
  %v99 = vld [vmem:[%s0 + $0x270] sm:$0x11]
  %v100 = vld [vmem:[%s0 + $0x278] sm:$0x11]
  %v101 = vld [vmem:[%s0 + $0x280] sm:$0x11]
  %v102 = vld [vmem:[%s0 + $0x288] sm:$0x11]
  %v103 = vld [vmem:[%s0 + $0x290] sm:$0x11]
  %v104 = vld [vmem:[%s0 + $0x298] sm:$0x11]
  %v105 = vld [vmem:[%s0 + $0x2a0] sm:$0x1]
  %v106 = vld [vmem:[%s1] sm:$0xff]
  %v107 = vld [vmem:[%s1 + $0x8] sm:$0xff]
  %v108 = vld [vmem:[%s1 + $0x10] sm:$0xff]
  %v109 = vld [vmem:[%s1 + $0x18] sm:$0xff]
  %v110 = vld [vmem:[%s1 + $0x20] sm:$0xff]
  %v111 = vld [vmem:[%s1 + $0x28] sm:$0xff]
  %v112 = vld [vmem:[%s1 + $0x30] sm:$0xff]
  %v113 = vld [vmem:[%s1 + $0x38] sm:$0xff]
  %v114 = vld [vmem:[%s1 + $0x40] sm:$0xff]
  %v115 = vld [vmem:[%s1 + $0x48] sm:$0xff]
  %v116 = vld [vmem:[%s1 + $0x50] sm:$0xff]
  %v117 = vld [vmem:[%s1 + $0x58] sm:$0xff]
  %v118 = vld [vmem:[%s1 + $0x60] sm:$0xff]
  %v119 = vld [vmem:[%s1 + $0x68] sm:$0xff]
  %v120 = vld [vmem:[%s1 + $0x70] sm:$0xff]
  %v121 = vld [vmem:[%s1 + $0x78] sm:$0xff]
  %v122 = vld [vmem:[%s1 + $0x80] sm:$0xff]
  %v123 = vld [vmem:[%s1 + $0x88] sm:$0xff]
  %v124 = vld [vmem:[%s1 + $0x90] sm:$0xff]
  %v125 = vld [vmem:[%s1 + $0x98] sm:$0xff]
  %v126 = vld [vmem:[%s1 + $0xa0] sm:$0xff]
  %v127 = vld [vmem:[%s1 + $0xa8] sm:$0xff]
  %v128 = vld [vmem:[%s1 + $0xb0] sm:$0xff]
  %v129 = vld [vmem:[%s1 + $0xb8] sm:$0xff]
  %v130 = vld [vmem:[%s1 + $0xc0] sm:$0xff]
  %v131 = vld [vmem:[%s1 + $0xc8] sm:$0xff]
  %v132 = vld [vmem:[%s1 + $0xd0] sm:$0xff]
  %v133 = vld [vmem:[%s1 + $0xd8] sm:$0xff]
  %v134 = vld [vmem:[%s1 + $0xe0] sm:$0xff]
  %v135 = vld [vmem:[%s1 + $0xe8] sm:$0xff]
  %v136 = vld [vmem:[%s1 + $0xf0] sm:$0xff]
  %v137 = vld [vmem:[%s1 + $0xf8] sm:$0xff]
  %v138 = vld [vmem:[%s1 + $0x100] sm:$0xff]
  %v139 = vld [vmem:[%s1 + $0x108] sm:$0xff]
  %v140 = vld [vmem:[%s1 + $0x110] sm:$0xff]
  %v141 = vld [vmem:[%s1 + $0x118] sm:$0xff]
  %v142 = vld [vmem:[%s1 + $0x120] sm:$0xff]
  %v143 = vld [vmem:[%s1 + $0x128] sm:$0xff]
  %v144 = vld [vmem:[%s1 + $0x130] sm:$0xff]
  %v145 = vld [vmem:[%s1 + $0x138] sm:$0xff]
  %v146 = vld [vmem:[%s1 + $0x140] sm:$0xff]
  %v147 = vld [vmem:[%s1 + $0x148] sm:$0xff]
  %v148 = vld [vmem:[%s1 + $0x150] sm:$0xff]
  %v149 = vld [vmem:[%s1 + $0x158] sm:$0xff]
  %v150 = vld [vmem:[%s1 + $0x160] sm:$0xff]
  %v151 = vld [vmem:[%s1 + $0x168] sm:$0xff]
  %v152 = vld [vmem:[%s1 + $0x170] sm:$0xff]
  %v153 = vld [vmem:[%s1 + $0x178] sm:$0xff]
  %v154 = vld [vmem:[%s1 + $0x180] sm:$0xff]
  %v155 = vld [vmem:[%s1 + $0x188] sm:$0xff]
  %v156 = vld [vmem:[%s1 + $0x190] sm:$0xff]
  %v157 = vld [vmem:[%s1 + $0x198] sm:$0xff]
  %v158 = vld [vmem:[%s1 + $0x1a0] sm:$0xff]
  %v159 = vld [vmem:[%s1 + $0x1a8] sm:$0xff]
  %v160 = vld [vmem:[%s1 + $0x1b0] sm:$0xff]
  %v161 = vld [vmem:[%s1 + $0x1b8] sm:$0xff]
  %v162 = vld [vmem:[%s1 + $0x1c0] sm:$0xff]
  %v163 = vld [vmem:[%s1 + $0x1c8] sm:$0xff]
  %v164 = vld [vmem:[%s1 + $0x1d0] sm:$0xff]
  %v165 = vld [vmem:[%s1 + $0x1d8] sm:$0xff]
  %v166 = vld [vmem:[%s1 + $0x1e0] sm:$0xff]
  %v167 = vld [vmem:[%s1 + $0x1e8] sm:$0xff]
  %v168 = vld [vmem:[%s1 + $0x1f0] sm:$0xff]
  %v169 = vld [vmem:[%s1 + $0x1f8] sm:$0xff]
  %v170 = vld [vmem:[%s1 + $0x200] sm:$0xff]
  %v171 = vld [vmem:[%s1 + $0x208] sm:$0xff]
  %v172 = vld [vmem:[%s1 + $0x210] sm:$0xff]
  %v173 = vld [vmem:[%s1 + $0x218] sm:$0xff]
  %v174 = vld [vmem:[%s1 + $0x220] sm:$0xff]
  %v175 = vld [vmem:[%s1 + $0x228] sm:$0xff]
  %v176 = vld [vmem:[%s1 + $0x230] sm:$0xff]
  %v177 = vld [vmem:[%s1 + $0x238] sm:$0xff]
  %v178 = vld [vmem:[%s1 + $0x240] sm:$0xff]
  %v179 = vld [vmem:[%s1 + $0x248] sm:$0xff]
  %v180 = vld [vmem:[%s1 + $0x250] sm:$0xff]
  %v181 = vld [vmem:[%s1 + $0x258] sm:$0xff]
  %v182 = vld [vmem:[%s1 + $0x260] sm:$0xff]
  %v183 = vld [vmem:[%s1 + $0x268] sm:$0xff]
  %v184 = vld [vmem:[%s1 + $0x270] sm:$0xff]
  %v185 = vld [vmem:[%s1 + $0x278] sm:$0xff]
  %v186 = vld [vmem:[%s1 + $0x280] sm:$0xff]
  %v187 = vld [vmem:[%s1 + $0x288] sm:$0xff]
  %v188 = vld [vmem:[%s1 + $0x290] sm:$0xff]
  %v189 = vld [vmem:[%s1 + $0x298] sm:$0xff]
  %v190 = vld [vmem:[%s1 + $0x2a0] sm:$0xff]
  %v191 = vld [vmem:[%s1 + $0x2a8] sm:$0xff]
  %v192 = vld [vmem:[%s1 + $0x2b0] sm:$0xff]
  %v193 = vld [vmem:[%s1 + $0x2b8] sm:$0xff]
  %v194 = vld [vmem:[%s1 + $0x2c0] sm:$0xff]
  %v195 = vld [vmem:[%s1 + $0x2c8] sm:$0xff]
  %v196 = vld [vmem:[%s1 + $0x2d0] sm:$0xff]
  %v197 = vld [vmem:[%s1 + $0x2d8] sm:$0xff]
  %v198 = vld [vmem:[%s1 + $0x2e0] sm:$0xff]
  %v199 = vld [vmem:[%s1 + $0x2e8] sm:$0xff]
  %v200 = vld [vmem:[%s1 + $0x2f0] sm:$0xff]
  %v201 = vld [vmem:[%s1 + $0x2f8] sm:$0xff]
  %v202 = vld [vmem:[%s1 + $0x300] sm:$0xff]
  %v203 = vld [vmem:[%s1 + $0x308] sm:$0xff]
  %v204 = vld [vmem:[%s1 + $0x310] sm:$0xff]
  %v205 = vld [vmem:[%s1 + $0x318] sm:$0xff]
  %v206 = vld [vmem:[%s1 + $0x320] sm:$0xff]
  %v207 = vld [vmem:[%s1 + $0x328] sm:$0xff]
  %v208 = vld [vmem:[%s1 + $0x330] sm:$0xff]
  %v209 = vld [vmem:[%s1 + $0x338] sm:$0xff]
  %v210 = vld [vmem:[%s1 + $0x340] sm:$0xff]
  %v211 = vld [vmem:[%s1 + $0x348] sm:$0xff]
  %v212 = vld [vmem:[%s1 + $0x350] sm:$0xff]
  %v213 = vld [vmem:[%s1 + $0x358] sm:$0xff]
  %v214 = vld [vmem:[%s1 + $0x360] sm:$0xff]
  %v215 = vld [vmem:[%s1 + $0x368] sm:$0xff]
  %v216 = vld [vmem:[%s1 + $0x370] sm:$0xff]
  %v217 = vld [vmem:[%s1 + $0x378] sm:$0xff]
  %v218 = vld [vmem:[%s1 + $0x380] sm:$0xff]
  %v219 = vld [vmem:[%s1 + $0x388] sm:$0xff]
  %v220 = vld [vmem:[%s1 + $0x390] sm:$0xff]
  %v221 = vld [vmem:[%s1 + $0x398] sm:$0xff]
  %v222 = vld [vmem:[%s1 + $0x3a0] sm:$0xff]
  %v223 = vld [vmem:[%s1 + $0x3a8] sm:$0xff]
  %v224 = vld [vmem:[%s1 + $0x3b0] sm:$0xff]
  %v225 = vld [vmem:[%s1 + $0x3b8] sm:$0xff]
  %v226 = vld [vmem:[%s1 + $0x3c0] sm:$0xff]
  %v227 = vld [vmem:[%s1 + $0x3c8] sm:$0xff]
  %v228 = vld [vmem:[%s1 + $0x3d0] sm:$0xff]
  %v229 = vld [vmem:[%s1 + $0x3d8] sm:$0xff]
  %v230 = vld [vmem:[%s1 + $0x3e0] sm:$0xff]
  %v231 = vld [vmem:[%s1 + $0x3e8] sm:$0xff]
  %v232 = vld [vmem:[%s1 + $0x3f0] sm:$0xff]
  %v233 = vld [vmem:[%s1 + $0x3f8] sm:$0xff]
  %v234 = vld [vmem:[%s1 + $0x400] sm:$0xff]
  %v235 = vld [vmem:[%s1 + $0x408] sm:$0xff]
  %v236 = vld [vmem:[%s1 + $0x410] sm:$0xff]
  %v237 = vld [vmem:[%s1 + $0x418] sm:$0xff]
  %v238 = vld [vmem:[%s1 + $0x420] sm:$0xff]
  %v239 = vld [vmem:[%s1 + $0x428] sm:$0xff]
  %v240 = vld [vmem:[%s1 + $0x430] sm:$0xff]
  %v241 = vld [vmem:[%s1 + $0x438] sm:$0xff]
  %v242 = vld [vmem:[%s1 + $0x440] sm:$0xff]
  %v243 = vld [vmem:[%s1 + $0x448] sm:$0xff]
  %v244 = vld [vmem:[%s1 + $0x450] sm:$0xff]
  %v245 = vld [vmem:[%s1 + $0x458] sm:$0xff]
  %v246 = vld [vmem:[%s1 + $0x460] sm:$0xff]
  %v247 = vld [vmem:[%s1 + $0x468] sm:$0xff]
  %v248 = vld [vmem:[%s1 + $0x470] sm:$0xff]
  %v249 = vld [vmem:[%s1 + $0x478] sm:$0xff]
  %v250 = vld [vmem:[%s1 + $0x480] sm:$0xff]
  %v251 = vld [vmem:[%s1 + $0x488] sm:$0xff]
  %v252 = vld [vmem:[%s1 + $0x490] sm:$0xff]
  %v253 = vld [vmem:[%s1 + $0x498] sm:$0xff]
  %v254 = vld [vmem:[%s1 + $0x4a0] sm:$0xff]
  %v255 = vld [vmem:[%s1 + $0x4a8] sm:$0xff]
  %v256 = vld [vmem:[%s1 + $0x4b0] sm:$0xff]
  %v257 = vld [vmem:[%s1 + $0x4b8] sm:$0xff]
  %v258 = vld [vmem:[%s1 + $0x4c0] sm:$0xff]
  %v259 = vld [vmem:[%s1 + $0x4c8] sm:$0xff]
  %v260 = vld [vmem:[%s1 + $0x4d0] sm:$0xff]
  %v261 = vld [vmem:[%s1 + $0x4d8] sm:$0xff]
  %v262 = vld [vmem:[%s1 + $0x4e0] sm:$0xff]
  %v263 = vld [vmem:[%s1 + $0x4e8] sm:$0xff]
  %v264 = vld [vmem:[%s1 + $0x4f0] sm:$0xff]
  %v265 = vld [vmem:[%s1 + $0x4f8] sm:$0xff]
  %v266 = vld [vmem:[%s1 + $0x500] sm:$0xff]
  %v267 = vld [vmem:[%s1 + $0x508] sm:$0xff]
  %v268 = vld [vmem:[%s1 + $0x510] sm:$0xff]
  %v269 = vld [vmem:[%s1 + $0x518] sm:$0xff]
  %v270 = vld [vmem:[%s1 + $0x520] sm:$0xff]
  %v271 = vld [vmem:[%s1 + $0x528] sm:$0xff]
  %v272 = vld [vmem:[%s1 + $0x530] sm:$0xff]
  %v273 = vld [vmem:[%s1 + $0x538] sm:$0xff]
  %v274 = vld [vmem:[%s1 + $0x540] sm:$0xff]
  %v275 = vld [vmem:[%s1 + $0x548] sm:$0xff]
  %v276 = vld [vmem:[%s1 + $0x550] sm:$0xff]
  %v277 = vld [vmem:[%s1 + $0x558] sm:$0xff]
  %v278 = vld [vmem:[%s1 + $0x560] sm:$0xff]
  %v279 = vld [vmem:[%s1 + $0x568] sm:$0xff]
  %v280 = vld [vmem:[%s1 + $0x570] sm:$0xff]
  %v281 = vld [vmem:[%s1 + $0x578] sm:$0xff]
  %v282 = vld [vmem:[%s1 + $0x580] sm:$0xff]
  %v283 = vld [vmem:[%s1 + $0x588] sm:$0xff]
  %v284 = vld [vmem:[%s1 + $0x590] sm:$0xff]
  %v285 = vld [vmem:[%s1 + $0x598] sm:$0xff]
  %v286 = vld [vmem:[%s1 + $0x5a0] sm:$0xff]
  %v287 = vld [vmem:[%s1 + $0x5a8] sm:$0xff]
  %v288 = vld [vmem:[%s1 + $0x5b0] sm:$0xff]
  %v289 = vld [vmem:[%s1 + $0x5b8] sm:$0xff]
  %v290 = vld [vmem:[%s1 + $0x5c0] sm:$0xff]
  %v291 = vld [vmem:[%s1 + $0x5c8] sm:$0xff]
  %v292 = vld [vmem:[%s1 + $0x5d0] sm:$0xff]
  %v293 = vld [vmem:[%s1 + $0x5d8] sm:$0xff]
  %v294 = vld [vmem:[%s1 + $0x5e0] sm:$0xff]
  %v295 = vld [vmem:[%s1 + $0x5e8] sm:$0xff]
  %v296 = vld [vmem:[%s1 + $0x5f0] sm:$0xff]
  %v297 = vld [vmem:[%s1 + $0x5f8] sm:$0xff]
  %v298 = vld [vmem:[%s1 + $0x600] sm:$0xff]
  %v299 = vld [vmem:[%s1 + $0x608] sm:$0xff]
  %v300 = vld [vmem:[%s1 + $0x610] sm:$0xff]
  %v301 = vld [vmem:[%s1 + $0x618] sm:$0xff]
  %v302 = vld [vmem:[%s1 + $0x620] sm:$0xff]
  %v303 = vld [vmem:[%s1 + $0x628] sm:$0xff]
  %v304 = vld [vmem:[%s1 + $0x630] sm:$0xff]
  %v305 = vld [vmem:[%s1 + $0x638] sm:$0xff]
  %v306 = vld [vmem:[%s2] sm:$0x3]
  %v308 = vlaneseq
  %v309 = vshrl.u32 %v308, 7
  %v310 = vsub.s32 0, %v309
  %v311 = vrot.slane %v306, %v310
  %v312 = vlaneseq
  %v313 = vshrl.u32 %v312, 7
  %v314 = vsub.s32 1, %v313
  %v315 = vrot.slane %v306, %v314
  %v409 = vunpack.c.l.b16 %v15
  %v410 = vunpack.c.h.b16 %v15
  %v411 = vunpack.c.l.b16 %v16
  %v412 = vunpack.c.h.b16 %v16
  %v413 = vunpack.c.l.b16 %v17
  %v414 = vunpack.c.h.b16 %v17
  %v415 = vunpack.c.l.b16 %v18
  %v416 = vunpack.c.h.b16 %v18
  %v417 = vunpack.c.l.b16 %v19
  %v418 = vunpack.c.h.b16 %v19
  %v419 = vunpack.c.l.b16 %v20
  %v420 = vunpack.c.h.b16 %v20
  %v421 = vunpack.c.l.b16 %v21
  %v422 = vunpack.c.l.b16 %v22
  %v423 = vunpack.c.h.b16 %v22
  %v424 = vunpack.c.l.b16 %v23
  %v425 = vunpack.c.h.b16 %v23
  %v426 = vunpack.c.l.b16 %v24
  %v427 = vunpack.c.h.b16 %v24
  %v428 = vunpack.c.l.b16 %v25
  %v429 = vunpack.c.h.b16 %v25
  %v430 = vunpack.c.l.b16 %v26
  %v431 = vunpack.c.h.b16 %v26
  %v432 = vunpack.c.l.b16 %v27
  %v433 = vunpack.c.h.b16 %v27
  %v434 = vunpack.c.l.b16 %v28
  %v435 = vunpack.c.l.b16 %v29
  %v436 = vunpack.c.h.b16 %v29
  %v437 = vunpack.c.l.b16 %v30
  %v438 = vunpack.c.h.b16 %v30
  %v439 = vunpack.c.l.b16 %v31
  %v440 = vunpack.c.h.b16 %v31
  %v441 = vunpack.c.l.b16 %v32
  %v442 = vunpack.c.h.b16 %v32
  %v443 = vunpack.c.l.b16 %v33
  %v444 = vunpack.c.h.b16 %v33
  %v445 = vunpack.c.l.b16 %v34
  %v446 = vunpack.c.h.b16 %v34
  %v447 = vunpack.c.l.b16 %v35
  %v448 = vunpack.c.l.b16 %v36
  %v449 = vunpack.c.h.b16 %v36
  %v450 = vunpack.c.l.b16 %v37
  %v451 = vunpack.c.h.b16 %v37
  %v452 = vunpack.c.l.b16 %v38
  %v453 = vunpack.c.h.b16 %v38
  %v454 = vunpack.c.l.b16 %v39
  %v455 = vunpack.c.h.b16 %v39
  %v456 = vunpack.c.l.b16 %v40
  %v457 = vunpack.c.h.b16 %v40
  %v458 = vunpack.c.l.b16 %v41
  %v459 = vunpack.c.h.b16 %v41
  %v460 = vunpack.c.l.b16 %v42
  %v461 = vunpack.c.l.b16 %v43
  %v462 = vunpack.c.h.b16 %v43
  %v463 = vunpack.c.l.b16 %v44
  %v464 = vunpack.c.h.b16 %v44
  %v465 = vunpack.c.l.b16 %v45
  %v466 = vunpack.c.h.b16 %v45
  %v467 = vunpack.c.l.b16 %v46
  %v468 = vunpack.c.h.b16 %v46
  %v469 = vunpack.c.l.b16 %v47
  %v470 = vunpack.c.h.b16 %v47
  %v471 = vunpack.c.l.b16 %v48
  %v472 = vunpack.c.h.b16 %v48
  %v473 = vunpack.c.l.b16 %v49
  %v474 = vunpack.c.l.b16 %v50
  %v475 = vunpack.c.h.b16 %v50
  %v476 = vunpack.c.l.b16 %v51
  %v477 = vunpack.c.h.b16 %v51
  %v478 = vunpack.c.l.b16 %v52
  %v479 = vunpack.c.h.b16 %v52
  %v480 = vunpack.c.l.b16 %v53
  %v481 = vunpack.c.h.b16 %v53
  %v482 = vunpack.c.l.b16 %v54
  %v483 = vunpack.c.h.b16 %v54
  %v484 = vunpack.c.l.b16 %v55
  %v485 = vunpack.c.h.b16 %v55
  %v486 = vunpack.c.l.b16 %v56
  %v487 = vunpack.c.l.b16 %v57
  %v488 = vunpack.c.h.b16 %v57
  %v489 = vunpack.c.l.b16 %v58
  %v490 = vunpack.c.h.b16 %v58
  %v491 = vunpack.c.l.b16 %v59
  %v492 = vunpack.c.h.b16 %v59
  %v493 = vunpack.c.l.b16 %v60
  %v494 = vunpack.c.h.b16 %v60
  %v495 = vunpack.c.l.b16 %v61
  %v496 = vunpack.c.h.b16 %v61
  %v497 = vunpack.c.l.b16 %v62
  %v498 = vunpack.c.h.b16 %v62
  %v499 = vunpack.c.l.b16 %v63
  %v500 = vunpack.c.l.b16 %v64
  %v501 = vunpack.c.h.b16 %v64
  %v502 = vunpack.c.l.b16 %v65
  %v503 = vunpack.c.h.b16 %v65
  %v504 = vunpack.c.l.b16 %v66
  %v505 = vunpack.c.h.b16 %v66
  %v506 = vunpack.c.l.b16 %v67
  %v507 = vunpack.c.h.b16 %v67
  %v508 = vunpack.c.l.b16 %v68
  %v509 = vunpack.c.h.b16 %v68
  %v510 = vunpack.c.l.b16 %v69
  %v511 = vunpack.c.h.b16 %v69
  %v512 = vunpack.c.l.b16 %v70
  %v513 = vunpack.c.l.b16 %v71
  %v514 = vunpack.c.h.b16 %v71
  %v515 = vunpack.c.l.b16 %v72
  %v516 = vunpack.c.h.b16 %v72
  %v517 = vunpack.c.l.b16 %v73
  %v518 = vunpack.c.h.b16 %v73
  %v519 = vunpack.c.l.b16 %v74
  %v520 = vunpack.c.h.b16 %v74
  %v521 = vunpack.c.l.b16 %v75
  %v522 = vunpack.c.h.b16 %v75
  %v523 = vunpack.c.l.b16 %v76
  %v524 = vunpack.c.h.b16 %v76
  %v525 = vunpack.c.l.b16 %v77
  %v526 = vunpack.c.l.b16 %v78
  %v527 = vunpack.c.h.b16 %v78
  %v528 = vunpack.c.l.b16 %v79
  %v529 = vunpack.c.h.b16 %v79
  %v530 = vunpack.c.l.b16 %v80
  %v531 = vunpack.c.h.b16 %v80
  %v532 = vunpack.c.l.b16 %v81
  %v533 = vunpack.c.h.b16 %v81
  %v534 = vunpack.c.l.b16 %v82
  %v535 = vunpack.c.h.b16 %v82
  %v536 = vunpack.c.l.b16 %v83
  %v537 = vunpack.c.h.b16 %v83
  %v538 = vunpack.c.l.b16 %v84
  %v539 = vunpack.c.l.b16 %v85
  %v540 = vunpack.c.h.b16 %v85
  %v541 = vunpack.c.l.b16 %v86
  %v542 = vunpack.c.h.b16 %v86
  %v543 = vunpack.c.l.b16 %v87
  %v544 = vunpack.c.h.b16 %v87
  %v545 = vunpack.c.l.b16 %v88
  %v546 = vunpack.c.h.b16 %v88
  %v547 = vunpack.c.l.b16 %v89
  %v548 = vunpack.c.h.b16 %v89
  %v549 = vunpack.c.l.b16 %v90
  %v550 = vunpack.c.h.b16 %v90
  %v551 = vunpack.c.l.b16 %v91
  %v552 = vunpack.c.l.b16 %v92
  %v553 = vunpack.c.h.b16 %v92
  %v554 = vunpack.c.l.b16 %v93
  %v555 = vunpack.c.h.b16 %v93
  %v556 = vunpack.c.l.b16 %v94
  %v557 = vunpack.c.h.b16 %v94
  %v558 = vunpack.c.l.b16 %v95
  %v559 = vunpack.c.h.b16 %v95
  %v560 = vunpack.c.l.b16 %v96
  %v561 = vunpack.c.h.b16 %v96
  %v562 = vunpack.c.l.b16 %v97
  %v563 = vunpack.c.h.b16 %v97
  %v564 = vunpack.c.l.b16 %v98
  %v565 = vunpack.c.l.b16 %v99
  %v566 = vunpack.c.h.b16 %v99
  %v567 = vunpack.c.l.b16 %v100
  %v568 = vunpack.c.h.b16 %v100
  %v569 = vunpack.c.l.b16 %v101
  %v570 = vunpack.c.h.b16 %v101
  %v571 = vunpack.c.l.b16 %v102
  %v572 = vunpack.c.h.b16 %v102
  %v573 = vunpack.c.l.b16 %v103
  %v574 = vunpack.c.h.b16 %v103
  %v575 = vunpack.c.l.b16 %v104
  %v576 = vunpack.c.h.b16 %v104
  %v577 = vunpack.c.l.b16 %v105
  %v578 = vpack.c.b16 %v422, %v409
  %v579 = vpack.c.b16 %v423, %v410
  %v580 = vpack.c.b16 %v424, %v411
  %v581 = vpack.c.b16 %v425, %v412
  %v582 = vpack.c.b16 %v426, %v413
  %v583 = vpack.c.b16 %v427, %v414
  %v584 = vpack.c.b16 %v428, %v415
  %v585 = vpack.c.b16 %v429, %v416
  %v586 = vpack.c.b16 %v430, %v417
  %v587 = vpack.c.b16 %v431, %v418
  %v588 = vpack.c.b16 %v432, %v419
  %v589 = vpack.c.b16 %v433, %v420
  %v590 = vpack.c.b16 %v434, %v421
  %v591 = vpack.c.b16 %v448, %v435
  %v592 = vpack.c.b16 %v449, %v436
  %v593 = vpack.c.b16 %v450, %v437
  %v594 = vpack.c.b16 %v451, %v438
  %v595 = vpack.c.b16 %v452, %v439
  %v596 = vpack.c.b16 %v453, %v440
  %v597 = vpack.c.b16 %v454, %v441
  %v598 = vpack.c.b16 %v455, %v442
  %v599 = vpack.c.b16 %v456, %v443
  %v600 = vpack.c.b16 %v457, %v444
  %v601 = vpack.c.b16 %v458, %v445
  %v602 = vpack.c.b16 %v459, %v446
  %v603 = vpack.c.b16 %v460, %v447
  %v604 = vpack.c.b16 %v474, %v461
  %v605 = vpack.c.b16 %v475, %v462
  %v606 = vpack.c.b16 %v476, %v463
  %v607 = vpack.c.b16 %v477, %v464
  %v608 = vpack.c.b16 %v478, %v465
  %v609 = vpack.c.b16 %v479, %v466
  %v610 = vpack.c.b16 %v480, %v467
  %v611 = vpack.c.b16 %v481, %v468
  %v612 = vpack.c.b16 %v482, %v469
  %v613 = vpack.c.b16 %v483, %v470
  %v614 = vpack.c.b16 %v484, %v471
  %v615 = vpack.c.b16 %v485, %v472
  %v616 = vpack.c.b16 %v486, %v473
  %v617 = vpack.c.b16 %v500, %v487
  %v618 = vpack.c.b16 %v501, %v488
  %v619 = vpack.c.b16 %v502, %v489
  %v620 = vpack.c.b16 %v503, %v490
  %v621 = vpack.c.b16 %v504, %v491
  %v622 = vpack.c.b16 %v505, %v492
  %v623 = vpack.c.b16 %v506, %v493
  %v624 = vpack.c.b16 %v507, %v494
  %v625 = vpack.c.b16 %v508, %v495
  %v626 = vpack.c.b16 %v509, %v496
  %v627 = vpack.c.b16 %v510, %v497
  %v628 = vpack.c.b16 %v511, %v498
  %v629 = vpack.c.b16 %v512, %v499
  %v630 = vpack.c.b16 %v526, %v513
  %v631 = vpack.c.b16 %v527, %v514
  %v632 = vpack.c.b16 %v528, %v515
  %v633 = vpack.c.b16 %v529, %v516
  %v634 = vpack.c.b16 %v530, %v517
  %v635 = vpack.c.b16 %v531, %v518
  %v636 = vpack.c.b16 %v532, %v519
  %v637 = vpack.c.b16 %v533, %v520
  %v638 = vpack.c.b16 %v534, %v521
  %v639 = vpack.c.b16 %v535, %v522
  %v640 = vpack.c.b16 %v536, %v523
  %v641 = vpack.c.b16 %v537, %v524
  %v642 = vpack.c.b16 %v538, %v525
  %v643 = vpack.c.b16 %v552, %v539
  %v644 = vpack.c.b16 %v553, %v540
  %v645 = vpack.c.b16 %v554, %v541
  %v646 = vpack.c.b16 %v555, %v542
  %v647 = vpack.c.b16 %v556, %v543
  %v648 = vpack.c.b16 %v557, %v544
  %v649 = vpack.c.b16 %v558, %v545
  %v650 = vpack.c.b16 %v559, %v546
  %v651 = vpack.c.b16 %v560, %v547
  %v652 = vpack.c.b16 %v561, %v548
  %v653 = vpack.c.b16 %v562, %v549
  %v654 = vpack.c.b16 %v563, %v550
  %v655 = vpack.c.b16 %v564, %v551
  %v656 = vpack.c.b16 %v565, %v565
  %v657 = vpack.c.b16 %v566, %v566
  %v658 = vpack.c.b16 %v567, %v567
  %v659 = vpack.c.b16 %v568, %v568
  %v660 = vpack.c.b16 %v569, %v569
  %v661 = vpack.c.b16 %v570, %v570
  %v662 = vpack.c.b16 %v571, %v571
  %v663 = vpack.c.b16 %v572, %v572
  %v664 = vpack.c.b16 %v573, %v573
  %v665 = vpack.c.b16 %v574, %v574
  %v666 = vpack.c.b16 %v575, %v575
  %v667 = vpack.c.b16 %v576, %v576
  %v668 = vpack.c.b16 %v577, %v577
  %v953 = vunpack.c.l.b16 %v106
  %v954 = vunpack.c.h.b16 %v106
  %v955 = vunpack.c.l.b16 %v107
  %v956 = vunpack.c.h.b16 %v107
  %v957 = vunpack.c.l.b16 %v108
  %v958 = vunpack.c.h.b16 %v108
  %v959 = vunpack.c.l.b16 %v109
  %v960 = vunpack.c.h.b16 %v109
  %v961 = vunpack.c.l.b16 %v110
  %v962 = vunpack.c.h.b16 %v110
  %v963 = vunpack.c.l.b16 %v111
  %v964 = vunpack.c.h.b16 %v111
  %v965 = vunpack.c.l.b16 %v112
  %v966 = vunpack.c.h.b16 %v112
  %v967 = vunpack.c.l.b16 %v113
  %v968 = vunpack.c.h.b16 %v113
  %v969 = vunpack.c.l.b16 %v114
  %v970 = vunpack.c.h.b16 %v114
  %v971 = vunpack.c.l.b16 %v115
  %v972 = vunpack.c.h.b16 %v115
  %v973 = vunpack.c.l.b16 %v116
  %v974 = vunpack.c.h.b16 %v116
  %v975 = vunpack.c.l.b16 %v117
  %v976 = vunpack.c.h.b16 %v117
  %v977 = vunpack.c.l.b16 %v118
  %v978 = vunpack.c.h.b16 %v118
  %v979 = vunpack.c.l.b16 %v119
  %v980 = vunpack.c.h.b16 %v119
  %v981 = vunpack.c.l.b16 %v120
  %v982 = vunpack.c.h.b16 %v120
  %v983 = vunpack.c.l.b16 %v121
  %v984 = vunpack.c.h.b16 %v121
  %v985 = vunpack.c.l.b16 %v122
  %v986 = vunpack.c.h.b16 %v122
  %v987 = vunpack.c.l.b16 %v123
  %v988 = vunpack.c.h.b16 %v123
  %v989 = vunpack.c.l.b16 %v124
  %v990 = vunpack.c.h.b16 %v124
  %v991 = vunpack.c.l.b16 %v125
  %v992 = vunpack.c.h.b16 %v125
  %v993 = vunpack.c.l.b16 %v126
  %v994 = vunpack.c.h.b16 %v126
  %v995 = vunpack.c.l.b16 %v127
  %v996 = vunpack.c.h.b16 %v127
  %v997 = vunpack.c.l.b16 %v128
  %v998 = vunpack.c.h.b16 %v128
  %v999 = vunpack.c.l.b16 %v129
  %v1000 = vunpack.c.h.b16 %v129
  %v1001 = vunpack.c.l.b16 %v130
  %v1002 = vunpack.c.h.b16 %v130
  %v1003 = vunpack.c.l.b16 %v131
  %v1004 = vunpack.c.h.b16 %v131
  %v1005 = vunpack.c.l.b16 %v132
  %v1006 = vunpack.c.h.b16 %v132
  %v1007 = vunpack.c.l.b16 %v133
  %v1008 = vunpack.c.h.b16 %v133
  %v1009 = vunpack.c.l.b16 %v134
  %v1010 = vunpack.c.h.b16 %v134
  %v1011 = vunpack.c.l.b16 %v135
  %v1012 = vunpack.c.h.b16 %v135
  %v1013 = vunpack.c.l.b16 %v136
  %v1014 = vunpack.c.h.b16 %v136
  %v1015 = vunpack.c.l.b16 %v137
  %v1016 = vunpack.c.h.b16 %v137
  %v1017 = vunpack.c.l.b16 %v138
  %v1018 = vunpack.c.h.b16 %v138
  %v1019 = vunpack.c.l.b16 %v139
  %v1020 = vunpack.c.h.b16 %v139
  %v1021 = vunpack.c.l.b16 %v140
  %v1022 = vunpack.c.h.b16 %v140
  %v1023 = vunpack.c.l.b16 %v141
  %v1024 = vunpack.c.h.b16 %v141
  %v1025 = vunpack.c.l.b16 %v142
  %v1026 = vunpack.c.h.b16 %v142
  %v1027 = vunpack.c.l.b16 %v143
  %v1028 = vunpack.c.h.b16 %v143
  %v1029 = vunpack.c.l.b16 %v144
  %v1030 = vunpack.c.h.b16 %v144
  %v1031 = vunpack.c.l.b16 %v145
  %v1032 = vunpack.c.h.b16 %v145
  %v1033 = vunpack.c.l.b16 %v146
  %v1034 = vunpack.c.h.b16 %v146
  %v1035 = vunpack.c.l.b16 %v147
  %v1036 = vunpack.c.h.b16 %v147
  %v1037 = vunpack.c.l.b16 %v148
  %v1038 = vunpack.c.h.b16 %v148
  %v1039 = vunpack.c.l.b16 %v149
  %v1040 = vunpack.c.h.b16 %v149
  %v1041 = vunpack.c.l.b16 %v150
  %v1042 = vunpack.c.h.b16 %v150
  %v1043 = vunpack.c.l.b16 %v151
  %v1044 = vunpack.c.h.b16 %v151
  %v1045 = vunpack.c.l.b16 %v152
  %v1046 = vunpack.c.h.b16 %v152
  %v1047 = vunpack.c.l.b16 %v153
  %v1048 = vunpack.c.h.b16 %v153
  %v1049 = vunpack.c.l.b16 %v154
  %v1050 = vunpack.c.h.b16 %v154
  %v1051 = vunpack.c.l.b16 %v155
  %v1052 = vunpack.c.h.b16 %v155
  %v1053 = vunpack.c.l.b16 %v156
  %v1054 = vunpack.c.h.b16 %v156
  %v1055 = vunpack.c.l.b16 %v157
  %v1056 = vunpack.c.h.b16 %v157
  %v1057 = vunpack.c.l.b16 %v158
  %v1058 = vunpack.c.h.b16 %v158
  %v1059 = vunpack.c.l.b16 %v159
  %v1060 = vunpack.c.h.b16 %v159
  %v1061 = vunpack.c.l.b16 %v160
  %v1062 = vunpack.c.h.b16 %v160
  %v1063 = vunpack.c.l.b16 %v161
  %v1064 = vunpack.c.h.b16 %v161
  %v1065 = vunpack.c.l.b16 %v162
  %v1066 = vunpack.c.h.b16 %v162
  %v1067 = vunpack.c.l.b16 %v163
  %v1068 = vunpack.c.h.b16 %v163
  %v1069 = vunpack.c.l.b16 %v164
  %v1070 = vunpack.c.h.b16 %v164
  %v1071 = vunpack.c.l.b16 %v165
  %v1072 = vunpack.c.h.b16 %v165
  %v1073 = vunpack.c.l.b16 %v166
  %v1074 = vunpack.c.h.b16 %v166
  %v1075 = vunpack.c.l.b16 %v167
  %v1076 = vunpack.c.h.b16 %v167
  %v1077 = vunpack.c.l.b16 %v168
  %v1078 = vunpack.c.h.b16 %v168
  %v1079 = vunpack.c.l.b16 %v169
  %v1080 = vunpack.c.h.b16 %v169
  %v1081 = vunpack.c.l.b16 %v170
  %v1082 = vunpack.c.h.b16 %v170
  %v1083 = vunpack.c.l.b16 %v171
  %v1084 = vunpack.c.h.b16 %v171
  %v1085 = vunpack.c.l.b16 %v172
  %v1086 = vunpack.c.h.b16 %v172
  %v1087 = vunpack.c.l.b16 %v173
  %v1088 = vunpack.c.h.b16 %v173
  %v1089 = vunpack.c.l.b16 %v174
  %v1090 = vunpack.c.h.b16 %v174
  %v1091 = vunpack.c.l.b16 %v175
  %v1092 = vunpack.c.h.b16 %v175
  %v1093 = vunpack.c.l.b16 %v176
  %v1094 = vunpack.c.h.b16 %v176
  %v1095 = vunpack.c.l.b16 %v177
  %v1096 = vunpack.c.h.b16 %v177
  %v1097 = vunpack.c.l.b16 %v178
  %v1098 = vunpack.c.h.b16 %v178
  %v1099 = vunpack.c.l.b16 %v179
  %v1100 = vunpack.c.h.b16 %v179
  %v1101 = vunpack.c.l.b16 %v180
  %v1102 = vunpack.c.h.b16 %v180
  %v1103 = vunpack.c.l.b16 %v181
  %v1104 = vunpack.c.h.b16 %v181
  %v1105 = vunpack.c.l.b16 %v182
  %v1106 = vunpack.c.h.b16 %v182
  %v1107 = vunpack.c.l.b16 %v183
  %v1108 = vunpack.c.h.b16 %v183
  %v1109 = vunpack.c.l.b16 %v184
  %v1110 = vunpack.c.h.b16 %v184
  %v1111 = vunpack.c.l.b16 %v185
  %v1112 = vunpack.c.h.b16 %v185
  %v1113 = vunpack.c.l.b16 %v186
  %v1114 = vunpack.c.h.b16 %v186
  %v1115 = vunpack.c.l.b16 %v187
  %v1116 = vunpack.c.h.b16 %v187
  %v1117 = vunpack.c.l.b16 %v188
  %v1118 = vunpack.c.h.b16 %v188
  %v1119 = vunpack.c.l.b16 %v189
  %v1120 = vunpack.c.h.b16 %v189
  %v1121 = vunpack.c.l.b16 %v190
  %v1122 = vunpack.c.h.b16 %v190
  %v1123 = vunpack.c.l.b16 %v191
  %v1124 = vunpack.c.h.b16 %v191
  %v1125 = vunpack.c.l.b16 %v192
  %v1126 = vunpack.c.h.b16 %v192
  %v1127 = vunpack.c.l.b16 %v193
  %v1128 = vunpack.c.h.b16 %v193
  %v1129 = vunpack.c.l.b16 %v194
  %v1130 = vunpack.c.h.b16 %v194
  %v1131 = vunpack.c.l.b16 %v195
  %v1132 = vunpack.c.h.b16 %v195
  %v1133 = vunpack.c.l.b16 %v196
  %v1134 = vunpack.c.h.b16 %v196
  %v1135 = vunpack.c.l.b16 %v197
  %v1136 = vunpack.c.h.b16 %v197
  %v1137 = vunpack.c.l.b16 %v198
  %v1138 = vunpack.c.h.b16 %v198
  %v1139 = vunpack.c.l.b16 %v199
  %v1140 = vunpack.c.h.b16 %v199
  %v1141 = vunpack.c.l.b16 %v200
  %v1142 = vunpack.c.h.b16 %v200
  %v1143 = vunpack.c.l.b16 %v201
  %v1144 = vunpack.c.h.b16 %v201
  %v1145 = vunpack.c.l.b16 %v202
  %v1146 = vunpack.c.h.b16 %v202
  %v1147 = vunpack.c.l.b16 %v203
  %v1148 = vunpack.c.h.b16 %v203
  %v1149 = vunpack.c.l.b16 %v204
  %v1150 = vunpack.c.h.b16 %v204
  %v1151 = vunpack.c.l.b16 %v205
  %v1152 = vunpack.c.h.b16 %v205
  %v1153 = vunpack.c.l.b16 %v206
  %v1154 = vunpack.c.h.b16 %v206
  %v1155 = vunpack.c.l.b16 %v207
  %v1156 = vunpack.c.h.b16 %v207
  %v1157 = vunpack.c.l.b16 %v208
  %v1158 = vunpack.c.h.b16 %v208
  %v1159 = vunpack.c.l.b16 %v209
  %v1160 = vunpack.c.h.b16 %v209
  %v1161 = vunpack.c.l.b16 %v210
  %v1162 = vunpack.c.h.b16 %v210
  %v1163 = vunpack.c.l.b16 %v211
  %v1164 = vunpack.c.h.b16 %v211
  %v1165 = vunpack.c.l.b16 %v212
  %v1166 = vunpack.c.h.b16 %v212
  %v1167 = vunpack.c.l.b16 %v213
  %v1168 = vunpack.c.h.b16 %v213
  %v1169 = vunpack.c.l.b16 %v214
  %v1170 = vunpack.c.h.b16 %v214
  %v1171 = vunpack.c.l.b16 %v215
  %v1172 = vunpack.c.h.b16 %v215
  %v1173 = vunpack.c.l.b16 %v216
  %v1174 = vunpack.c.h.b16 %v216
  %v1175 = vunpack.c.l.b16 %v217
  %v1176 = vunpack.c.h.b16 %v217
  %v1177 = vunpack.c.l.b16 %v218
  %v1178 = vunpack.c.h.b16 %v218
  %v1179 = vunpack.c.l.b16 %v219
  %v1180 = vunpack.c.h.b16 %v219
  %v1181 = vunpack.c.l.b16 %v220
  %v1182 = vunpack.c.h.b16 %v220
  %v1183 = vunpack.c.l.b16 %v221
  %v1184 = vunpack.c.h.b16 %v221
  %v1185 = vunpack.c.l.b16 %v222
  %v1186 = vunpack.c.h.b16 %v222
  %v1187 = vunpack.c.l.b16 %v223
  %v1188 = vunpack.c.h.b16 %v223
  %v1189 = vunpack.c.l.b16 %v224
  %v1190 = vunpack.c.h.b16 %v224
  %v1191 = vunpack.c.l.b16 %v225
  %v1192 = vunpack.c.h.b16 %v225
  %v1193 = vunpack.c.l.b16 %v226
  %v1194 = vunpack.c.h.b16 %v226
  %v1195 = vunpack.c.l.b16 %v227
  %v1196 = vunpack.c.h.b16 %v227
  %v1197 = vunpack.c.l.b16 %v228
  %v1198 = vunpack.c.h.b16 %v228
  %v1199 = vunpack.c.l.b16 %v229
  %v1200 = vunpack.c.h.b16 %v229
  %v1201 = vunpack.c.l.b16 %v230
  %v1202 = vunpack.c.h.b16 %v230
  %v1203 = vunpack.c.l.b16 %v231
  %v1204 = vunpack.c.h.b16 %v231
  %v1205 = vunpack.c.l.b16 %v232
  %v1206 = vunpack.c.h.b16 %v232
  %v1207 = vunpack.c.l.b16 %v233
  %v1208 = vunpack.c.h.b16 %v233
  %v1209 = vunpack.c.l.b16 %v234
  %v1210 = vunpack.c.h.b16 %v234
  %v1211 = vunpack.c.l.b16 %v235
  %v1212 = vunpack.c.h.b16 %v235
  %v1213 = vunpack.c.l.b16 %v236
  %v1214 = vunpack.c.h.b16 %v236
  %v1215 = vunpack.c.l.b16 %v237
  %v1216 = vunpack.c.h.b16 %v237
  %v1217 = vunpack.c.l.b16 %v238
  %v1218 = vunpack.c.h.b16 %v238
  %v1219 = vunpack.c.l.b16 %v239
  %v1220 = vunpack.c.h.b16 %v239
  %v1221 = vunpack.c.l.b16 %v240
  %v1222 = vunpack.c.h.b16 %v240
  %v1223 = vunpack.c.l.b16 %v241
  %v1224 = vunpack.c.h.b16 %v241
  %v1225 = vunpack.c.l.b16 %v242
  %v1226 = vunpack.c.h.b16 %v242
  %v1227 = vunpack.c.l.b16 %v243
  %v1228 = vunpack.c.h.b16 %v243
  %v1229 = vunpack.c.l.b16 %v244
  %v1230 = vunpack.c.h.b16 %v244
  %v1231 = vunpack.c.l.b16 %v245
  %v1232 = vunpack.c.h.b16 %v245
  %v1233 = vunpack.c.l.b16 %v246
  %v1234 = vunpack.c.h.b16 %v246
  %v1235 = vunpack.c.l.b16 %v247
  %v1236 = vunpack.c.h.b16 %v247
  %v1237 = vunpack.c.l.b16 %v248
  %v1238 = vunpack.c.h.b16 %v248
  %v1239 = vunpack.c.l.b16 %v249
  %v1240 = vunpack.c.h.b16 %v249
  %v1241 = vunpack.c.l.b16 %v250
  %v1242 = vunpack.c.h.b16 %v250
  %v1243 = vunpack.c.l.b16 %v251
  %v1244 = vunpack.c.h.b16 %v251
  %v1245 = vunpack.c.l.b16 %v252
  %v1246 = vunpack.c.h.b16 %v252
  %v1247 = vunpack.c.l.b16 %v253
  %v1248 = vunpack.c.h.b16 %v253
  %v1249 = vunpack.c.l.b16 %v254
  %v1250 = vunpack.c.h.b16 %v254
  %v1251 = vunpack.c.l.b16 %v255
  %v1252 = vunpack.c.h.b16 %v255
  %v1253 = vunpack.c.l.b16 %v256
  %v1254 = vunpack.c.h.b16 %v256
  %v1255 = vunpack.c.l.b16 %v257
  %v1256 = vunpack.c.h.b16 %v257
  %v1257 = vunpack.c.l.b16 %v258
  %v1258 = vunpack.c.h.b16 %v258
  %v1259 = vunpack.c.l.b16 %v259
  %v1260 = vunpack.c.h.b16 %v259
  %v1261 = vunpack.c.l.b16 %v260
  %v1262 = vunpack.c.h.b16 %v260
  %v1263 = vunpack.c.l.b16 %v261
  %v1264 = vunpack.c.h.b16 %v261
  %v1265 = vunpack.c.l.b16 %v262
  %v1266 = vunpack.c.h.b16 %v262
  %v1267 = vunpack.c.l.b16 %v263
  %v1268 = vunpack.c.h.b16 %v263
  %v1269 = vunpack.c.l.b16 %v264
  %v1270 = vunpack.c.h.b16 %v264
  %v1271 = vunpack.c.l.b16 %v265
  %v1272 = vunpack.c.h.b16 %v265
  %v1273 = vunpack.c.l.b16 %v266
  %v1274 = vunpack.c.h.b16 %v266
  %v1275 = vunpack.c.l.b16 %v267
  %v1276 = vunpack.c.h.b16 %v267
  %v1277 = vunpack.c.l.b16 %v268
  %v1278 = vunpack.c.h.b16 %v268
  %v1279 = vunpack.c.l.b16 %v269
  %v1280 = vunpack.c.h.b16 %v269
  %v1281 = vunpack.c.l.b16 %v270
  %v1282 = vunpack.c.h.b16 %v270
  %v1283 = vunpack.c.l.b16 %v271
  %v1284 = vunpack.c.h.b16 %v271
  %v1285 = vunpack.c.l.b16 %v272
  %v1286 = vunpack.c.h.b16 %v272
  %v1287 = vunpack.c.l.b16 %v273
  %v1288 = vunpack.c.h.b16 %v273
  %v1289 = vunpack.c.l.b16 %v274
  %v1290 = vunpack.c.h.b16 %v274
  %v1291 = vunpack.c.l.b16 %v275
  %v1292 = vunpack.c.h.b16 %v275
  %v1293 = vunpack.c.l.b16 %v276
  %v1294 = vunpack.c.h.b16 %v276
  %v1295 = vunpack.c.l.b16 %v277
  %v1296 = vunpack.c.h.b16 %v277
  %v1297 = vunpack.c.l.b16 %v278
  %v1298 = vunpack.c.h.b16 %v278
  %v1299 = vunpack.c.l.b16 %v279
  %v1300 = vunpack.c.h.b16 %v279
  %v1301 = vunpack.c.l.b16 %v280
  %v1302 = vunpack.c.h.b16 %v280
  %v1303 = vunpack.c.l.b16 %v281
  %v1304 = vunpack.c.h.b16 %v281
  %v1305 = vunpack.c.l.b16 %v282
  %v1306 = vunpack.c.h.b16 %v282
  %v1307 = vunpack.c.l.b16 %v283
  %v1308 = vunpack.c.h.b16 %v283
  %v1309 = vunpack.c.l.b16 %v284
  %v1310 = vunpack.c.h.b16 %v284
  %v1311 = vunpack.c.l.b16 %v285
  %v1312 = vunpack.c.h.b16 %v285
  %v1313 = vunpack.c.l.b16 %v286
  %v1314 = vunpack.c.h.b16 %v286
  %v1315 = vunpack.c.l.b16 %v287
  %v1316 = vunpack.c.h.b16 %v287
  %v1317 = vunpack.c.l.b16 %v288
  %v1318 = vunpack.c.h.b16 %v288
  %v1319 = vunpack.c.l.b16 %v289
  %v1320 = vunpack.c.h.b16 %v289
  %v1321 = vunpack.c.l.b16 %v290
  %v1322 = vunpack.c.h.b16 %v290
  %v1323 = vunpack.c.l.b16 %v291
  %v1324 = vunpack.c.h.b16 %v291
  %v1325 = vunpack.c.l.b16 %v292
  %v1326 = vunpack.c.h.b16 %v292
  %v1327 = vunpack.c.l.b16 %v293
  %v1328 = vunpack.c.h.b16 %v293
  %v1329 = vunpack.c.l.b16 %v294
  %v1330 = vunpack.c.h.b16 %v294
  %v1331 = vunpack.c.l.b16 %v295
  %v1332 = vunpack.c.h.b16 %v295
  %v1333 = vunpack.c.l.b16 %v296
  %v1334 = vunpack.c.h.b16 %v296
  %v1335 = vunpack.c.l.b16 %v297
  %v1336 = vunpack.c.h.b16 %v297
  %v1337 = vunpack.c.l.b16 %v298
  %v1338 = vunpack.c.h.b16 %v298
  %v1339 = vunpack.c.l.b16 %v299
  %v1340 = vunpack.c.h.b16 %v299
  %v1341 = vunpack.c.l.b16 %v300
  %v1342 = vunpack.c.h.b16 %v300
  %v1343 = vunpack.c.l.b16 %v301
  %v1344 = vunpack.c.h.b16 %v301
  %v1345 = vunpack.c.l.b16 %v302
  %v1346 = vunpack.c.h.b16 %v302
  %v1347 = vunpack.c.l.b16 %v303
  %v1348 = vunpack.c.h.b16 %v303
  %v1349 = vunpack.c.l.b16 %v304
  %v1350 = vunpack.c.h.b16 %v304
  %v1351 = vunpack.c.l.b16 %v305
  %v1352 = vunpack.c.h.b16 %v305
  %v1353 = vpack.c.b16 %v955, %v953
  %v1354 = vpack.c.b16 %v956, %v954
  %v1355 = vpack.c.b16 %v959, %v957
  %v1356 = vpack.c.b16 %v960, %v958
  %v1357 = vpack.c.b16 %v963, %v961
  %v1358 = vpack.c.b16 %v964, %v962
  %v1359 = vpack.c.b16 %v967, %v965
  %v1360 = vpack.c.b16 %v968, %v966
  %v1361 = vpack.c.b16 %v971, %v969
  %v1362 = vpack.c.b16 %v972, %v970
  %v1363 = vpack.c.b16 %v975, %v973
  %v1364 = vpack.c.b16 %v976, %v974
  %v1365 = vpack.c.b16 %v979, %v977
  %v1366 = vpack.c.b16 %v980, %v978
  %v1367 = vpack.c.b16 %v983, %v981
  %v1368 = vpack.c.b16 %v984, %v982
  %v1369 = vpack.c.b16 %v987, %v985
  %v1370 = vpack.c.b16 %v988, %v986
  %v1371 = vpack.c.b16 %v991, %v989
  %v1372 = vpack.c.b16 %v992, %v990
  %v1373 = vpack.c.b16 %v995, %v993
  %v1374 = vpack.c.b16 %v996, %v994
  %v1375 = vpack.c.b16 %v999, %v997
  %v1376 = vpack.c.b16 %v1000, %v998
  %v1377 = vpack.c.b16 %v1003, %v1001
  %v1378 = vpack.c.b16 %v1004, %v1002
  %v1379 = vpack.c.b16 %v1007, %v1005
  %v1380 = vpack.c.b16 %v1008, %v1006
  %v1381 = vpack.c.b16 %v1011, %v1009
  %v1382 = vpack.c.b16 %v1012, %v1010
  %v1383 = vpack.c.b16 %v1015, %v1013
  %v1384 = vpack.c.b16 %v1016, %v1014
  %v1385 = vpack.c.b16 %v1019, %v1017
  %v1386 = vpack.c.b16 %v1020, %v1018
  %v1387 = vpack.c.b16 %v1023, %v1021
  %v1388 = vpack.c.b16 %v1024, %v1022
  %v1389 = vpack.c.b16 %v1027, %v1025
  %v1390 = vpack.c.b16 %v1028, %v1026
  %v1391 = vpack.c.b16 %v1031, %v1029
  %v1392 = vpack.c.b16 %v1032, %v1030
  %v1393 = vpack.c.b16 %v1035, %v1033
  %v1394 = vpack.c.b16 %v1036, %v1034
  %v1395 = vpack.c.b16 %v1039, %v1037
  %v1396 = vpack.c.b16 %v1040, %v1038
  %v1397 = vpack.c.b16 %v1043, %v1041
  %v1398 = vpack.c.b16 %v1044, %v1042
  %v1399 = vpack.c.b16 %v1047, %v1045
  %v1400 = vpack.c.b16 %v1048, %v1046
  %v1401 = vpack.c.b16 %v1051, %v1049
  %v1402 = vpack.c.b16 %v1052, %v1050
  %v1403 = vpack.c.b16 %v1055, %v1053
  %v1404 = vpack.c.b16 %v1056, %v1054
  %v1405 = vpack.c.b16 %v1059, %v1057
  %v1406 = vpack.c.b16 %v1060, %v1058
  %v1407 = vpack.c.b16 %v1063, %v1061
  %v1408 = vpack.c.b16 %v1064, %v1062
  %v1409 = vpack.c.b16 %v1067, %v1065
  %v1410 = vpack.c.b16 %v1068, %v1066
  %v1411 = vpack.c.b16 %v1071, %v1069
  %v1412 = vpack.c.b16 %v1072, %v1070
  %v1413 = vpack.c.b16 %v1075, %v1073
  %v1414 = vpack.c.b16 %v1076, %v1074
  %v1415 = vpack.c.b16 %v1079, %v1077
  %v1416 = vpack.c.b16 %v1080, %v1078
  %v1417 = vpack.c.b16 %v1083, %v1081
  %v1418 = vpack.c.b16 %v1084, %v1082
  %v1419 = vpack.c.b16 %v1087, %v1085
  %v1420 = vpack.c.b16 %v1088, %v1086
  %v1421 = vpack.c.b16 %v1091, %v1089
  %v1422 = vpack.c.b16 %v1092, %v1090
  %v1423 = vpack.c.b16 %v1095, %v1093
  %v1424 = vpack.c.b16 %v1096, %v1094
  %v1425 = vpack.c.b16 %v1099, %v1097
  %v1426 = vpack.c.b16 %v1100, %v1098
  %v1427 = vpack.c.b16 %v1103, %v1101
  %v1428 = vpack.c.b16 %v1104, %v1102
  %v1429 = vpack.c.b16 %v1107, %v1105
  %v1430 = vpack.c.b16 %v1108, %v1106
  %v1431 = vpack.c.b16 %v1111, %v1109
  %v1432 = vpack.c.b16 %v1112, %v1110
  %v1433 = vpack.c.b16 %v1115, %v1113
  %v1434 = vpack.c.b16 %v1116, %v1114
  %v1435 = vpack.c.b16 %v1119, %v1117
  %v1436 = vpack.c.b16 %v1120, %v1118
  %v1437 = vpack.c.b16 %v1123, %v1121
  %v1438 = vpack.c.b16 %v1124, %v1122
  %v1439 = vpack.c.b16 %v1127, %v1125
  %v1440 = vpack.c.b16 %v1128, %v1126
  %v1441 = vpack.c.b16 %v1131, %v1129
  %v1442 = vpack.c.b16 %v1132, %v1130
  %v1443 = vpack.c.b16 %v1135, %v1133
  %v1444 = vpack.c.b16 %v1136, %v1134
  %v1445 = vpack.c.b16 %v1139, %v1137
  %v1446 = vpack.c.b16 %v1140, %v1138
  %v1447 = vpack.c.b16 %v1143, %v1141
  %v1448 = vpack.c.b16 %v1144, %v1142
  %v1449 = vpack.c.b16 %v1147, %v1145
  %v1450 = vpack.c.b16 %v1148, %v1146
  %v1451 = vpack.c.b16 %v1151, %v1149
  %v1452 = vpack.c.b16 %v1152, %v1150
  %v1453 = vpack.c.b16 %v1155, %v1153
  %v1454 = vpack.c.b16 %v1156, %v1154
  %v1455 = vpack.c.b16 %v1159, %v1157
  %v1456 = vpack.c.b16 %v1160, %v1158
  %v1457 = vpack.c.b16 %v1163, %v1161
  %v1458 = vpack.c.b16 %v1164, %v1162
  %v1459 = vpack.c.b16 %v1167, %v1165
  %v1460 = vpack.c.b16 %v1168, %v1166
  %v1461 = vpack.c.b16 %v1171, %v1169
  %v1462 = vpack.c.b16 %v1172, %v1170
  %v1463 = vpack.c.b16 %v1175, %v1173
  %v1464 = vpack.c.b16 %v1176, %v1174
  %v1465 = vpack.c.b16 %v1179, %v1177
  %v1466 = vpack.c.b16 %v1180, %v1178
  %v1467 = vpack.c.b16 %v1183, %v1181
  %v1468 = vpack.c.b16 %v1184, %v1182
  %v1469 = vpack.c.b16 %v1187, %v1185
  %v1470 = vpack.c.b16 %v1188, %v1186
  %v1471 = vpack.c.b16 %v1191, %v1189
  %v1472 = vpack.c.b16 %v1192, %v1190
  %v1473 = vpack.c.b16 %v1195, %v1193
  %v1474 = vpack.c.b16 %v1196, %v1194
  %v1475 = vpack.c.b16 %v1199, %v1197
  %v1476 = vpack.c.b16 %v1200, %v1198
  %v1477 = vpack.c.b16 %v1203, %v1201
  %v1478 = vpack.c.b16 %v1204, %v1202
  %v1479 = vpack.c.b16 %v1207, %v1205
  %v1480 = vpack.c.b16 %v1208, %v1206
  %v1481 = vpack.c.b16 %v1211, %v1209
  %v1482 = vpack.c.b16 %v1212, %v1210
  %v1483 = vpack.c.b16 %v1215, %v1213
  %v1484 = vpack.c.b16 %v1216, %v1214
  %v1485 = vpack.c.b16 %v1219, %v1217
  %v1486 = vpack.c.b16 %v1220, %v1218
  %v1487 = vpack.c.b16 %v1223, %v1221
  %v1488 = vpack.c.b16 %v1224, %v1222
  %v1489 = vpack.c.b16 %v1227, %v1225
  %v1490 = vpack.c.b16 %v1228, %v1226
  %v1491 = vpack.c.b16 %v1231, %v1229
  %v1492 = vpack.c.b16 %v1232, %v1230
  %v1493 = vpack.c.b16 %v1235, %v1233
  %v1494 = vpack.c.b16 %v1236, %v1234
  %v1495 = vpack.c.b16 %v1239, %v1237
  %v1496 = vpack.c.b16 %v1240, %v1238
  %v1497 = vpack.c.b16 %v1243, %v1241
  %v1498 = vpack.c.b16 %v1244, %v1242
  %v1499 = vpack.c.b16 %v1247, %v1245
  %v1500 = vpack.c.b16 %v1248, %v1246
  %v1501 = vpack.c.b16 %v1251, %v1249
  %v1502 = vpack.c.b16 %v1252, %v1250
  %v1503 = vpack.c.b16 %v1255, %v1253
  %v1504 = vpack.c.b16 %v1256, %v1254
  %v1505 = vpack.c.b16 %v1259, %v1257
  %v1506 = vpack.c.b16 %v1260, %v1258
  %v1507 = vpack.c.b16 %v1263, %v1261
  %v1508 = vpack.c.b16 %v1264, %v1262
  %v1509 = vpack.c.b16 %v1267, %v1265
  %v1510 = vpack.c.b16 %v1268, %v1266
  %v1511 = vpack.c.b16 %v1271, %v1269
  %v1512 = vpack.c.b16 %v1272, %v1270
  %v1513 = vpack.c.b16 %v1275, %v1273
  %v1514 = vpack.c.b16 %v1276, %v1274
  %v1515 = vpack.c.b16 %v1279, %v1277
  %v1516 = vpack.c.b16 %v1280, %v1278
  %v1517 = vpack.c.b16 %v1283, %v1281
  %v1518 = vpack.c.b16 %v1284, %v1282
  %v1519 = vpack.c.b16 %v1287, %v1285
  %v1520 = vpack.c.b16 %v1288, %v1286
  %v1521 = vpack.c.b16 %v1291, %v1289
  %v1522 = vpack.c.b16 %v1292, %v1290
  %v1523 = vpack.c.b16 %v1295, %v1293
  %v1524 = vpack.c.b16 %v1296, %v1294
  %v1525 = vpack.c.b16 %v1299, %v1297
  %v1526 = vpack.c.b16 %v1300, %v1298
  %v1527 = vpack.c.b16 %v1303, %v1301
  %v1528 = vpack.c.b16 %v1304, %v1302
  %v1529 = vpack.c.b16 %v1307, %v1305
  %v1530 = vpack.c.b16 %v1308, %v1306
  %v1531 = vpack.c.b16 %v1311, %v1309
  %v1532 = vpack.c.b16 %v1312, %v1310
  %v1533 = vpack.c.b16 %v1315, %v1313
  %v1534 = vpack.c.b16 %v1316, %v1314
  %v1535 = vpack.c.b16 %v1319, %v1317
  %v1536 = vpack.c.b16 %v1320, %v1318
  %v1537 = vpack.c.b16 %v1323, %v1321
  %v1538 = vpack.c.b16 %v1324, %v1322
  %v1539 = vpack.c.b16 %v1327, %v1325
  %v1540 = vpack.c.b16 %v1328, %v1326
  %v1541 = vpack.c.b16 %v1331, %v1329
  %v1542 = vpack.c.b16 %v1332, %v1330
  %v1543 = vpack.c.b16 %v1335, %v1333
  %v1544 = vpack.c.b16 %v1336, %v1334
  %v1545 = vpack.c.b16 %v1339, %v1337
  %v1546 = vpack.c.b16 %v1340, %v1338
  %v1547 = vpack.c.b16 %v1343, %v1341
  %v1548 = vpack.c.b16 %v1344, %v1342
  %v1549 = vpack.c.b16 %v1347, %v1345
  %v1550 = vpack.c.b16 %v1348, %v1346
  %v1551 = vpack.c.b16 %v1351, %v1349
  %v1552 = vpack.c.b16 %v1352, %v1350
  %vm1753 = vcmask 523264
  %v1755 = vsel %vm1753, %v590, 0
  %v1758 = vsel %vm1753, %v603, 0
  %v1761 = vsel %vm1753, %v616, 0
  %v1764 = vsel %vm1753, %v629, 0
  %v1767 = vsel %vm1753, %v642, 0
  %v1770 = vsel %vm1753, %v655, 0
  %v1773 = vsel %vm1753, %v668, 0
  %1775 = vmatprep.subr.bf16.mxu0 %v1368
  %1776 = vmatpush1.bf16.msra.mxu0 %v1367
  %1777 = vmatprep.subr.bf16.mxu0 %v1366
  %1778 = vmatpush1.bf16.msra.mxu0 %v1365
  %1779 = vmatprep.subr.bf16.mxu0 %v1364
  %1780 = vmatpush1.bf16.msra.mxu0 %v1363
  %1781 = vmatprep.subr.bf16.mxu0 %v1362
  %1782 = vmatpush1.bf16.msra.mxu0 %v1361
  %1783 = vmatprep.subr.bf16.mxu0 %v1360
  %1784 = vmatpush1.bf16.msra.mxu0 %v1359
  %1785 = vmatprep.subr.bf16.mxu0 %v1358
  %1786 = vmatpush1.bf16.msra.mxu0 %v1357
  %1787 = vmatprep.subr.bf16.mxu0 %v1356
  %1788 = vmatpush1.bf16.msra.mxu0 %v1355
  %1789 = vmatprep.subr.bf16.mxu0 %v1354
  %1790 = vmatpush1.bf16.msra.mxu0 %v1353
  %1791 = vmatprep.subr.bf16.mxu0 %v1384
  %1792 = vmatpush2.bf16.msra.mxu0 %v1383
  %1793 = vmatprep.subr.bf16.mxu0 %v1382
  %1794 = vmatpush2.bf16.msra.mxu0 %v1381
  %1795 = vmatprep.subr.bf16.mxu0 %v1380
  %1796 = vmatpush2.bf16.msra.mxu0 %v1379
  %1797 = vmatprep.subr.bf16.mxu0 %v1378
  %1798 = vmatpush2.bf16.msra.mxu0 %v1377
  %1799 = vmatprep.subr.bf16.mxu0 %v1376
  %1800 = vmatpush2.bf16.msra.mxu0 %v1375
  %1801 = vmatprep.subr.bf16.mxu0 %v1374
  %1802 = vmatpush2.bf16.msra.mxu0 %v1373
  %1803 = vmatprep.subr.bf16.mxu0 %v1372
  %1804 = vmatpush2.bf16.msra.mxu0 %v1371
  %1805 = vmatprep.subr.bf16.mxu0 %v1370
  %1806 = vmatpush2.bf16.msra.mxu0 %v1369
  %1807 = vmatprep.mubr.bf16.mxu0 %v579
  %1808 = vmatmul.mubr.bf16.gmra.mxu0 %v578
  %v1809 = vpop.f32.mrf.mxu0
  %v1810 = vadd.f32 %v311, %v1809
  %v1811 = vpop.f32.mrf.mxu0
  %v1812 = vadd.f32 %v315, %v1811
  %v1813 = vpop.f32.mrf.mxu0
  %v1814 = vadd.f32 %v311, %v1813
  %v1815 = vpop.f32.mrf.mxu0
  %v1816 = vadd.f32 %v315, %v1815
  %1817 = vmatprep.mubr.bf16.mxu0 %v592
  %1818 = vmatmul.mubr.bf16.gmra.mxu0 %v591
  %v1819 = vpop.f32.mrf.mxu0
  %v1820 = vadd.f32 %v311, %v1819
  %v1821 = vpop.f32.mrf.mxu0
  %v1822 = vadd.f32 %v315, %v1821
  %v1823 = vpop.f32.mrf.mxu0
  %v1824 = vadd.f32 %v311, %v1823
  %v1825 = vpop.f32.mrf.mxu0
  %v1826 = vadd.f32 %v315, %v1825
  %1827 = vmatprep.mubr.bf16.mxu0 %v605
  %1828 = vmatmul.mubr.bf16.gmra.mxu0 %v604
  %v1829 = vpop.f32.mrf.mxu0
  %v1830 = vadd.f32 %v311, %v1829
  %v1831 = vpop.f32.mrf.mxu0
  %v1832 = vadd.f32 %v315, %v1831
  %v1833 = vpop.f32.mrf.mxu0
  %v1834 = vadd.f32 %v311, %v1833
  %v1835 = vpop.f32.mrf.mxu0
  %v1836 = vadd.f32 %v315, %v1835
  %1837 = vmatprep.mubr.bf16.mxu0 %v618
  %1838 = vmatmul.mubr.bf16.gmra.mxu0 %v617
  %v1839 = vpop.f32.mrf.mxu0
  %v1840 = vadd.f32 %v311, %v1839
  %v1841 = vpop.f32.mrf.mxu0
  %v1842 = vadd.f32 %v315, %v1841
  %v1843 = vpop.f32.mrf.mxu0
  %v1844 = vadd.f32 %v311, %v1843
  %v1845 = vpop.f32.mrf.mxu0
  %v1846 = vadd.f32 %v315, %v1845
  %1847 = vmatprep.mubr.bf16.mxu0 %v631
  %1848 = vmatmul.mubr.bf16.gmra.mxu0 %v630
  %v1849 = vpop.f32.mrf.mxu0
  %v1850 = vadd.f32 %v311, %v1849
  %v1851 = vpop.f32.mrf.mxu0
  %v1852 = vadd.f32 %v315, %v1851
  %v1853 = vpop.f32.mrf.mxu0
  %v1854 = vadd.f32 %v311, %v1853
  %v1855 = vpop.f32.mrf.mxu0
  %v1856 = vadd.f32 %v315, %v1855
  %1857 = vmatprep.mubr.bf16.mxu0 %v644
  %1858 = vmatmul.mubr.bf16.gmra.mxu0 %v643
  %v1859 = vpop.f32.mrf.mxu0
  %v1860 = vadd.f32 %v311, %v1859
  %v1861 = vpop.f32.mrf.mxu0
  %v1862 = vadd.f32 %v315, %v1861
  %v1863 = vpop.f32.mrf.mxu0
  %v1864 = vadd.f32 %v311, %v1863
  %v1865 = vpop.f32.mrf.mxu0
  %v1866 = vadd.f32 %v315, %v1865
  %1867 = vmatprep.mubr.bf16.mxu0 %v657
  %1868 = vmatmul.mubr.bf16.gmra.mxu0 %v656
  %v1869 = vpop.f32.mrf.mxu0
  %v1870 = vadd.f32 %v311, %v1869
  %v1871 = vpop.f32.mrf.mxu0
  %v1872 = vadd.f32 %v315, %v1871
  %v1873 = vpop.f32.mrf.mxu0
  %v1874 = vpop.f32.mrf.mxu0
  %1875 = vdwg.mxu0
  %1876 = vmatprep.subr.bf16.mxu0 %v1400
  %1877 = vmatpush1.bf16.msra.mxu0 %v1399
  %1878 = vmatprep.subr.bf16.mxu0 %v1398
  %1879 = vmatpush1.bf16.msra.mxu0 %v1397
  %1880 = vmatprep.subr.bf16.mxu0 %v1396
  %1881 = vmatpush1.bf16.msra.mxu0 %v1395
  %1882 = vmatprep.subr.bf16.mxu0 %v1394
  %1883 = vmatpush1.bf16.msra.mxu0 %v1393
  %1884 = vmatprep.subr.bf16.mxu0 %v1392
  %1885 = vmatpush1.bf16.msra.mxu0 %v1391
  %1886 = vmatprep.subr.bf16.mxu0 %v1390
  %1887 = vmatpush1.bf16.msra.mxu0 %v1389
  %1888 = vmatprep.subr.bf16.mxu0 %v1388
  %1889 = vmatpush1.bf16.msra.mxu0 %v1387
  %1890 = vmatprep.subr.bf16.mxu0 %v1386
  %1891 = vmatpush1.bf16.msra.mxu0 %v1385
  %1892 = vmatprep.subr.bf16.mxu0 %v1416
  %1893 = vmatpush2.bf16.msra.mxu0 %v1415
  %1894 = vmatprep.subr.bf16.mxu0 %v1414
  %1895 = vmatpush2.bf16.msra.mxu0 %v1413
  %1896 = vmatprep.subr.bf16.mxu0 %v1412
  %1897 = vmatpush2.bf16.msra.mxu0 %v1411
  %1898 = vmatprep.subr.bf16.mxu0 %v1410
  %1899 = vmatpush2.bf16.msra.mxu0 %v1409
  %1900 = vmatprep.subr.bf16.mxu0 %v1408
  %1901 = vmatpush2.bf16.msra.mxu0 %v1407
  %1902 = vmatprep.subr.bf16.mxu0 %v1406
  %1903 = vmatpush2.bf16.msra.mxu0 %v1405
  %1904 = vmatprep.subr.bf16.mxu0 %v1404
  %1905 = vmatpush2.bf16.msra.mxu0 %v1403
  %1906 = vmatprep.subr.bf16.mxu0 %v1402
  %1907 = vmatpush2.bf16.msra.mxu0 %v1401
  %1908 = vmatprep.mubr.bf16.mxu0 %v581
  %1909 = vmatmul.mubr.bf16.gmra.mxu0 %v580
  %v1910 = vpop.f32.mrf.mxu0
  %v1911 = vadd.f32 %v1810, %v1910
  %v1912 = vpop.f32.mrf.mxu0
  %v1913 = vadd.f32 %v1812, %v1912
  %v1914 = vpop.f32.mrf.mxu0
  %v1915 = vadd.f32 %v1814, %v1914
  %v1916 = vpop.f32.mrf.mxu0
  %v1917 = vadd.f32 %v1816, %v1916
  %1918 = vmatprep.mubr.bf16.mxu0 %v594
  %1919 = vmatmul.mubr.bf16.gmra.mxu0 %v593
  %v1920 = vpop.f32.mrf.mxu0
  %v1921 = vadd.f32 %v1820, %v1920
  %v1922 = vpop.f32.mrf.mxu0
  %v1923 = vadd.f32 %v1822, %v1922
  %v1924 = vpop.f32.mrf.mxu0
  %v1925 = vadd.f32 %v1824, %v1924
  %v1926 = vpop.f32.mrf.mxu0
  %v1927 = vadd.f32 %v1826, %v1926
  %1928 = vmatprep.mubr.bf16.mxu0 %v607
  %1929 = vmatmul.mubr.bf16.gmra.mxu0 %v606
  %v1930 = vpop.f32.mrf.mxu0
  %v1931 = vadd.f32 %v1830, %v1930
  %v1932 = vpop.f32.mrf.mxu0
  %v1933 = vadd.f32 %v1832, %v1932
  %v1934 = vpop.f32.mrf.mxu0
  %v1935 = vadd.f32 %v1834, %v1934
  %v1936 = vpop.f32.mrf.mxu0
  %v1937 = vadd.f32 %v1836, %v1936
  %1938 = vmatprep.mubr.bf16.mxu0 %v620
  %1939 = vmatmul.mubr.bf16.gmra.mxu0 %v619
  %v1940 = vpop.f32.mrf.mxu0
  %v1941 = vadd.f32 %v1840, %v1940
  %v1942 = vpop.f32.mrf.mxu0
  %v1943 = vadd.f32 %v1842, %v1942
  %v1944 = vpop.f32.mrf.mxu0
  %v1945 = vadd.f32 %v1844, %v1944
  %v1946 = vpop.f32.mrf.mxu0
  %v1947 = vadd.f32 %v1846, %v1946
  %1948 = vmatprep.mubr.bf16.mxu0 %v633
  %1949 = vmatmul.mubr.bf16.gmra.mxu0 %v632
  %v1950 = vpop.f32.mrf.mxu0
  %v1951 = vadd.f32 %v1850, %v1950
  %v1952 = vpop.f32.mrf.mxu0
  %v1953 = vadd.f32 %v1852, %v1952
  %v1954 = vpop.f32.mrf.mxu0
  %v1955 = vadd.f32 %v1854, %v1954
  %v1956 = vpop.f32.mrf.mxu0
  %v1957 = vadd.f32 %v1856, %v1956
  %1958 = vmatprep.mubr.bf16.mxu0 %v646
  %1959 = vmatmul.mubr.bf16.gmra.mxu0 %v645
  %v1960 = vpop.f32.mrf.mxu0
  %v1961 = vadd.f32 %v1860, %v1960
  %v1962 = vpop.f32.mrf.mxu0
  %v1963 = vadd.f32 %v1862, %v1962
  %v1964 = vpop.f32.mrf.mxu0
  %v1965 = vadd.f32 %v1864, %v1964
  %v1966 = vpop.f32.mrf.mxu0
  %v1967 = vadd.f32 %v1866, %v1966
  %1968 = vmatprep.mubr.bf16.mxu0 %v659
  %1969 = vmatmul.mubr.bf16.gmra.mxu0 %v658
  %v1970 = vpop.f32.mrf.mxu0
  %v1971 = vadd.f32 %v1870, %v1970
  %v1972 = vpop.f32.mrf.mxu0
  %v1973 = vadd.f32 %v1872, %v1972
  %v1974 = vpop.f32.mrf.mxu0
  %v1975 = vpop.f32.mrf.mxu0
  %1976 = vdwg.mxu0
  %1977 = vmatprep.subr.bf16.mxu0 %v1432
  %1978 = vmatpush1.bf16.msra.mxu0 %v1431
  %1979 = vmatprep.subr.bf16.mxu0 %v1430
  %1980 = vmatpush1.bf16.msra.mxu0 %v1429
  %1981 = vmatprep.subr.bf16.mxu0 %v1428
  %1982 = vmatpush1.bf16.msra.mxu0 %v1427
  %1983 = vmatprep.subr.bf16.mxu0 %v1426
  %1984 = vmatpush1.bf16.msra.mxu0 %v1425
  %1985 = vmatprep.subr.bf16.mxu0 %v1424
  %1986 = vmatpush1.bf16.msra.mxu0 %v1423
  %1987 = vmatprep.subr.bf16.mxu0 %v1422
  %1988 = vmatpush1.bf16.msra.mxu0 %v1421
  %1989 = vmatprep.subr.bf16.mxu0 %v1420
  %1990 = vmatpush1.bf16.msra.mxu0 %v1419
  %1991 = vmatprep.subr.bf16.mxu0 %v1418
  %1992 = vmatpush1.bf16.msra.mxu0 %v1417
  %1993 = vmatprep.subr.bf16.mxu0 %v1448
  %1994 = vmatpush2.bf16.msra.mxu0 %v1447
  %1995 = vmatprep.subr.bf16.mxu0 %v1446
  %1996 = vmatpush2.bf16.msra.mxu0 %v1445
  %1997 = vmatprep.subr.bf16.mxu0 %v1444
  %1998 = vmatpush2.bf16.msra.mxu0 %v1443
  %1999 = vmatprep.subr.bf16.mxu0 %v1442
  %2000 = vmatpush2.bf16.msra.mxu0 %v1441
  %2001 = vmatprep.subr.bf16.mxu0 %v1440
  %2002 = vmatpush2.bf16.msra.mxu0 %v1439
  %2003 = vmatprep.subr.bf16.mxu0 %v1438
  %2004 = vmatpush2.bf16.msra.mxu0 %v1437
  %2005 = vmatprep.subr.bf16.mxu0 %v1436
  %2006 = vmatpush2.bf16.msra.mxu0 %v1435
  %2007 = vmatprep.subr.bf16.mxu0 %v1434
  %2008 = vmatpush2.bf16.msra.mxu0 %v1433
  %2009 = vmatprep.mubr.bf16.mxu0 %v583
  %2010 = vmatmul.mubr.bf16.gmra.mxu0 %v582
  %v2011 = vpop.f32.mrf.mxu0
  %v2012 = vadd.f32 %v1911, %v2011
  %v2013 = vpop.f32.mrf.mxu0
  %v2014 = vadd.f32 %v1913, %v2013
  %v2015 = vpop.f32.mrf.mxu0
  %v2016 = vadd.f32 %v1915, %v2015
  %v2017 = vpop.f32.mrf.mxu0
  %v2018 = vadd.f32 %v1917, %v2017
  %2019 = vmatprep.mubr.bf16.mxu0 %v596
  %2020 = vmatmul.mubr.bf16.gmra.mxu0 %v595
  %v2021 = vpop.f32.mrf.mxu0
  %v2022 = vadd.f32 %v1921, %v2021
  %v2023 = vpop.f32.mrf.mxu0
  %v2024 = vadd.f32 %v1923, %v2023
  %v2025 = vpop.f32.mrf.mxu0
  %v2026 = vadd.f32 %v1925, %v2025
  %v2027 = vpop.f32.mrf.mxu0
  %v2028 = vadd.f32 %v1927, %v2027
  %2029 = vmatprep.mubr.bf16.mxu0 %v609
  %2030 = vmatmul.mubr.bf16.gmra.mxu0 %v608
  %v2031 = vpop.f32.mrf.mxu0
  %v2032 = vadd.f32 %v1931, %v2031
  %v2033 = vpop.f32.mrf.mxu0
  %v2034 = vadd.f32 %v1933, %v2033
  %v2035 = vpop.f32.mrf.mxu0
  %v2036 = vadd.f32 %v1935, %v2035
  %v2037 = vpop.f32.mrf.mxu0
  %v2038 = vadd.f32 %v1937, %v2037
  %2039 = vmatprep.mubr.bf16.mxu0 %v622
  %2040 = vmatmul.mubr.bf16.gmra.mxu0 %v621
  %v2041 = vpop.f32.mrf.mxu0
  %v2042 = vadd.f32 %v1941, %v2041
  %v2043 = vpop.f32.mrf.mxu0
  %v2044 = vadd.f32 %v1943, %v2043
  %v2045 = vpop.f32.mrf.mxu0
  %v2046 = vadd.f32 %v1945, %v2045
  %v2047 = vpop.f32.mrf.mxu0
  %v2048 = vadd.f32 %v1947, %v2047
  %2049 = vmatprep.mubr.bf16.mxu0 %v635
  %2050 = vmatmul.mubr.bf16.gmra.mxu0 %v634
  %v2051 = vpop.f32.mrf.mxu0
  %v2052 = vadd.f32 %v1951, %v2051
  %v2053 = vpop.f32.mrf.mxu0
  %v2054 = vadd.f32 %v1953, %v2053
  %v2055 = vpop.f32.mrf.mxu0
  %v2056 = vadd.f32 %v1955, %v2055
  %v2057 = vpop.f32.mrf.mxu0
  %v2058 = vadd.f32 %v1957, %v2057
  %2059 = vmatprep.mubr.bf16.mxu0 %v648
  %2060 = vmatmul.mubr.bf16.gmra.mxu0 %v647
  %v2061 = vpop.f32.mrf.mxu0
  %v2062 = vadd.f32 %v1961, %v2061
  %v2063 = vpop.f32.mrf.mxu0
  %v2064 = vadd.f32 %v1963, %v2063
  %v2065 = vpop.f32.mrf.mxu0
  %v2066 = vadd.f32 %v1965, %v2065
  %v2067 = vpop.f32.mrf.mxu0
  %v2068 = vadd.f32 %v1967, %v2067
  %2069 = vmatprep.mubr.bf16.mxu0 %v661
  %2070 = vmatmul.mubr.bf16.gmra.mxu0 %v660
  %v2071 = vpop.f32.mrf.mxu0
  %v2072 = vadd.f32 %v1971, %v2071
  %v2073 = vpop.f32.mrf.mxu0
  %v2074 = vadd.f32 %v1973, %v2073
  %v2075 = vpop.f32.mrf.mxu0
  %v2076 = vpop.f32.mrf.mxu0
  %2077 = vdwg.mxu0
  %2078 = vmatprep.subr.bf16.mxu0 %v1464
  %2079 = vmatpush1.bf16.msra.mxu0 %v1463
  %2080 = vmatprep.subr.bf16.mxu0 %v1462
  %2081 = vmatpush1.bf16.msra.mxu0 %v1461
  %2082 = vmatprep.subr.bf16.mxu0 %v1460
  %2083 = vmatpush1.bf16.msra.mxu0 %v1459
  %2084 = vmatprep.subr.bf16.mxu0 %v1458
  %2085 = vmatpush1.bf16.msra.mxu0 %v1457
  %2086 = vmatprep.subr.bf16.mxu0 %v1456
  %2087 = vmatpush1.bf16.msra.mxu0 %v1455
  %2088 = vmatprep.subr.bf16.mxu0 %v1454
  %2089 = vmatpush1.bf16.msra.mxu0 %v1453
  %2090 = vmatprep.subr.bf16.mxu0 %v1452
  %2091 = vmatpush1.bf16.msra.mxu0 %v1451
  %2092 = vmatprep.subr.bf16.mxu0 %v1450
  %2093 = vmatpush1.bf16.msra.mxu0 %v1449
  %2094 = vmatprep.subr.bf16.mxu0 %v1480
  %2095 = vmatpush2.bf16.msra.mxu0 %v1479
  %2096 = vmatprep.subr.bf16.mxu0 %v1478
  %2097 = vmatpush2.bf16.msra.mxu0 %v1477
  %2098 = vmatprep.subr.bf16.mxu0 %v1476
  %2099 = vmatpush2.bf16.msra.mxu0 %v1475
  %2100 = vmatprep.subr.bf16.mxu0 %v1474
  %2101 = vmatpush2.bf16.msra.mxu0 %v1473
  %2102 = vmatprep.subr.bf16.mxu0 %v1472
  %2103 = vmatpush2.bf16.msra.mxu0 %v1471
  %2104 = vmatprep.subr.bf16.mxu0 %v1470
  %2105 = vmatpush2.bf16.msra.mxu0 %v1469
  %2106 = vmatprep.subr.bf16.mxu0 %v1468
  %2107 = vmatpush2.bf16.msra.mxu0 %v1467
  %2108 = vmatprep.subr.bf16.mxu0 %v1466
  %2109 = vmatpush2.bf16.msra.mxu0 %v1465
  %2110 = vmatprep.mubr.bf16.mxu0 %v585
  %2111 = vmatmul.mubr.bf16.gmra.mxu0 %v584
  %v2112 = vpop.f32.mrf.mxu0
  %v2113 = vadd.f32 %v2012, %v2112
  %v2114 = vpop.f32.mrf.mxu0
  %v2115 = vadd.f32 %v2014, %v2114
  %v2116 = vpop.f32.mrf.mxu0
  %v2117 = vadd.f32 %v2016, %v2116
  %v2118 = vpop.f32.mrf.mxu0
  %v2119 = vadd.f32 %v2018, %v2118
  %2120 = vmatprep.mubr.bf16.mxu0 %v598
  %2121 = vmatmul.mubr.bf16.gmra.mxu0 %v597
  %v2122 = vpop.f32.mrf.mxu0
  %v2123 = vadd.f32 %v2022, %v2122
  %v2124 = vpop.f32.mrf.mxu0
  %v2125 = vadd.f32 %v2024, %v2124
  %v2126 = vpop.f32.mrf.mxu0
  %v2127 = vadd.f32 %v2026, %v2126
  %v2128 = vpop.f32.mrf.mxu0
  %v2129 = vadd.f32 %v2028, %v2128
  %2130 = vmatprep.mubr.bf16.mxu0 %v611
  %2131 = vmatmul.mubr.bf16.gmra.mxu0 %v610
  %v2132 = vpop.f32.mrf.mxu0
  %v2133 = vadd.f32 %v2032, %v2132
  %v2134 = vpop.f32.mrf.mxu0
  %v2135 = vadd.f32 %v2034, %v2134
  %v2136 = vpop.f32.mrf.mxu0
  %v2137 = vadd.f32 %v2036, %v2136
  %v2138 = vpop.f32.mrf.mxu0
  %v2139 = vadd.f32 %v2038, %v2138
  %2140 = vmatprep.mubr.bf16.mxu0 %v624
  %2141 = vmatmul.mubr.bf16.gmra.mxu0 %v623
  %v2142 = vpop.f32.mrf.mxu0
  %v2143 = vadd.f32 %v2042, %v2142
  %v2144 = vpop.f32.mrf.mxu0
  %v2145 = vadd.f32 %v2044, %v2144
  %v2146 = vpop.f32.mrf.mxu0
  %v2147 = vadd.f32 %v2046, %v2146
  %v2148 = vpop.f32.mrf.mxu0
  %v2149 = vadd.f32 %v2048, %v2148
  %2150 = vmatprep.mubr.bf16.mxu0 %v637
  %2151 = vmatmul.mubr.bf16.gmra.mxu0 %v636
  %v2152 = vpop.f32.mrf.mxu0
  %v2153 = vadd.f32 %v2052, %v2152
  %v2154 = vpop.f32.mrf.mxu0
  %v2155 = vadd.f32 %v2054, %v2154
  %v2156 = vpop.f32.mrf.mxu0
  %v2157 = vadd.f32 %v2056, %v2156
  %v2158 = vpop.f32.mrf.mxu0
  %v2159 = vadd.f32 %v2058, %v2158
  %2160 = vmatprep.mubr.bf16.mxu0 %v650
  %2161 = vmatmul.mubr.bf16.gmra.mxu0 %v649
  %v2162 = vpop.f32.mrf.mxu0
  %v2163 = vadd.f32 %v2062, %v2162
  %v2164 = vpop.f32.mrf.mxu0
  %v2165 = vadd.f32 %v2064, %v2164
  %v2166 = vpop.f32.mrf.mxu0
  %v2167 = vadd.f32 %v2066, %v2166
  %v2168 = vpop.f32.mrf.mxu0
  %v2169 = vadd.f32 %v2068, %v2168
  %2170 = vmatprep.mubr.bf16.mxu0 %v663
  %2171 = vmatmul.mubr.bf16.gmra.mxu0 %v662
  %v2172 = vpop.f32.mrf.mxu0
  %v2173 = vadd.f32 %v2072, %v2172
  %v2174 = vpop.f32.mrf.mxu0
  %v2175 = vadd.f32 %v2074, %v2174
  %v2176 = vpop.f32.mrf.mxu0
  %v2177 = vpop.f32.mrf.mxu0
  %2178 = vdwg.mxu0
  %2179 = vmatprep.subr.bf16.mxu0 %v1496
  %2180 = vmatpush1.bf16.msra.mxu0 %v1495
  %2181 = vmatprep.subr.bf16.mxu0 %v1494
  %2182 = vmatpush1.bf16.msra.mxu0 %v1493
  %2183 = vmatprep.subr.bf16.mxu0 %v1492
  %2184 = vmatpush1.bf16.msra.mxu0 %v1491
  %2185 = vmatprep.subr.bf16.mxu0 %v1490
  %2186 = vmatpush1.bf16.msra.mxu0 %v1489
  %2187 = vmatprep.subr.bf16.mxu0 %v1488
  %2188 = vmatpush1.bf16.msra.mxu0 %v1487
  %2189 = vmatprep.subr.bf16.mxu0 %v1486
  %2190 = vmatpush1.bf16.msra.mxu0 %v1485
  %2191 = vmatprep.subr.bf16.mxu0 %v1484
  %2192 = vmatpush1.bf16.msra.mxu0 %v1483
  %2193 = vmatprep.subr.bf16.mxu0 %v1482
  %2194 = vmatpush1.bf16.msra.mxu0 %v1481
  %2195 = vmatprep.subr.bf16.mxu0 %v1512
  %2196 = vmatpush2.bf16.msra.mxu0 %v1511
  %2197 = vmatprep.subr.bf16.mxu0 %v1510
  %2198 = vmatpush2.bf16.msra.mxu0 %v1509
  %2199 = vmatprep.subr.bf16.mxu0 %v1508
  %2200 = vmatpush2.bf16.msra.mxu0 %v1507
  %2201 = vmatprep.subr.bf16.mxu0 %v1506
  %2202 = vmatpush2.bf16.msra.mxu0 %v1505
  %2203 = vmatprep.subr.bf16.mxu0 %v1504
  %2204 = vmatpush2.bf16.msra.mxu0 %v1503
  %2205 = vmatprep.subr.bf16.mxu0 %v1502
  %2206 = vmatpush2.bf16.msra.mxu0 %v1501
  %2207 = vmatprep.subr.bf16.mxu0 %v1500
  %2208 = vmatpush2.bf16.msra.mxu0 %v1499
  %2209 = vmatprep.subr.bf16.mxu0 %v1498
  %2210 = vmatpush2.bf16.msra.mxu0 %v1497
  %2211 = vmatprep.mubr.bf16.mxu0 %v587
  %2212 = vmatmul.mubr.bf16.gmra.mxu0 %v586
  %v2213 = vpop.f32.mrf.mxu0
  %v2214 = vadd.f32 %v2113, %v2213
  %v2215 = vpop.f32.mrf.mxu0
  %v2216 = vadd.f32 %v2115, %v2215
  %v2217 = vpop.f32.mrf.mxu0
  %v2218 = vadd.f32 %v2117, %v2217
  %v2219 = vpop.f32.mrf.mxu0
  %v2220 = vadd.f32 %v2119, %v2219
  %2221 = vmatprep.mubr.bf16.mxu0 %v600
  %2222 = vmatmul.mubr.bf16.gmra.mxu0 %v599
  %v2223 = vpop.f32.mrf.mxu0
  %v2224 = vadd.f32 %v2123, %v2223
  %v2225 = vpop.f32.mrf.mxu0
  %v2226 = vadd.f32 %v2125, %v2225
  %v2227 = vpop.f32.mrf.mxu0
  %v2228 = vadd.f32 %v2127, %v2227
  %v2229 = vpop.f32.mrf.mxu0
  %v2230 = vadd.f32 %v2129, %v2229
  %2231 = vmatprep.mubr.bf16.mxu0 %v613
  %2232 = vmatmul.mubr.bf16.gmra.mxu0 %v612
  %v2233 = vpop.f32.mrf.mxu0
  %v2234 = vadd.f32 %v2133, %v2233
  %v2235 = vpop.f32.mrf.mxu0
  %v2236 = vadd.f32 %v2135, %v2235
  %v2237 = vpop.f32.mrf.mxu0
  %v2238 = vadd.f32 %v2137, %v2237
  %v2239 = vpop.f32.mrf.mxu0
  %v2240 = vadd.f32 %v2139, %v2239
  %2241 = vmatprep.mubr.bf16.mxu0 %v626
  %2242 = vmatmul.mubr.bf16.gmra.mxu0 %v625
  %v2243 = vpop.f32.mrf.mxu0
  %v2244 = vadd.f32 %v2143, %v2243
  %v2245 = vpop.f32.mrf.mxu0
  %v2246 = vadd.f32 %v2145, %v2245
  %v2247 = vpop.f32.mrf.mxu0
  %v2248 = vadd.f32 %v2147, %v2247
  %v2249 = vpop.f32.mrf.mxu0
  %v2250 = vadd.f32 %v2149, %v2249
  %2251 = vmatprep.mubr.bf16.mxu0 %v639
  %2252 = vmatmul.mubr.bf16.gmra.mxu0 %v638
  %v2253 = vpop.f32.mrf.mxu0
  %v2254 = vadd.f32 %v2153, %v2253
  %v2255 = vpop.f32.mrf.mxu0
  %v2256 = vadd.f32 %v2155, %v2255
  %v2257 = vpop.f32.mrf.mxu0
  %v2258 = vadd.f32 %v2157, %v2257
  %v2259 = vpop.f32.mrf.mxu0
  %v2260 = vadd.f32 %v2159, %v2259
  %2261 = vmatprep.mubr.bf16.mxu0 %v652
  %2262 = vmatmul.mubr.bf16.gmra.mxu0 %v651
  %v2263 = vpop.f32.mrf.mxu0
  %v2264 = vadd.f32 %v2163, %v2263
  %v2265 = vpop.f32.mrf.mxu0
  %v2266 = vadd.f32 %v2165, %v2265
  %v2267 = vpop.f32.mrf.mxu0
  %v2268 = vadd.f32 %v2167, %v2267
  %v2269 = vpop.f32.mrf.mxu0
  %v2270 = vadd.f32 %v2169, %v2269
  %2271 = vmatprep.mubr.bf16.mxu0 %v665
  %2272 = vmatmul.mubr.bf16.gmra.mxu0 %v664
  %v2273 = vpop.f32.mrf.mxu0
  %v2274 = vadd.f32 %v2173, %v2273
  %v2275 = vpop.f32.mrf.mxu0
  %v2276 = vadd.f32 %v2175, %v2275
  %v2277 = vpop.f32.mrf.mxu0
  %v2278 = vpop.f32.mrf.mxu0
  %2279 = vdwg.mxu0
  %2280 = vmatprep.subr.bf16.mxu0 %v1528
  %2281 = vmatpush1.bf16.msra.mxu0 %v1527
  %2282 = vmatprep.subr.bf16.mxu0 %v1526
  %2283 = vmatpush1.bf16.msra.mxu0 %v1525
  %2284 = vmatprep.subr.bf16.mxu0 %v1524
  %2285 = vmatpush1.bf16.msra.mxu0 %v1523
  %2286 = vmatprep.subr.bf16.mxu0 %v1522
  %2287 = vmatpush1.bf16.msra.mxu0 %v1521
  %2288 = vmatprep.subr.bf16.mxu0 %v1520
  %2289 = vmatpush1.bf16.msra.mxu0 %v1519
  %2290 = vmatprep.subr.bf16.mxu0 %v1518
  %2291 = vmatpush1.bf16.msra.mxu0 %v1517
  %2292 = vmatprep.subr.bf16.mxu0 %v1516
  %2293 = vmatpush1.bf16.msra.mxu0 %v1515
  %2294 = vmatprep.subr.bf16.mxu0 %v1514
  %2295 = vmatpush1.bf16.msra.mxu0 %v1513
  %2296 = vmatprep.subr.bf16.mxu0 %v1544
  %2297 = vmatpush2.bf16.msra.mxu0 %v1543
  %2298 = vmatprep.subr.bf16.mxu0 %v1542
  %2299 = vmatpush2.bf16.msra.mxu0 %v1541
  %2300 = vmatprep.subr.bf16.mxu0 %v1540
  %2301 = vmatpush2.bf16.msra.mxu0 %v1539
  %2302 = vmatprep.subr.bf16.mxu0 %v1538
  %2303 = vmatpush2.bf16.msra.mxu0 %v1537
  %2304 = vmatprep.subr.bf16.mxu0 %v1536
  %2305 = vmatpush2.bf16.msra.mxu0 %v1535
  %2306 = vmatprep.subr.bf16.mxu0 %v1534
  %2307 = vmatpush2.bf16.msra.mxu0 %v1533
  %2308 = vmatprep.subr.bf16.mxu0 %v1532
  %2309 = vmatpush2.bf16.msra.mxu0 %v1531
  %2310 = vmatprep.subr.bf16.mxu0 %v1530
  %2311 = vmatpush2.bf16.msra.mxu0 %v1529
  %2312 = vmatprep.mubr.bf16.mxu0 %v589
  %2313 = vmatmul.mubr.bf16.gmra.mxu0 %v588
  %v2314 = vpop.f32.mrf.mxu0
  %v2315 = vadd.f32 %v2214, %v2314
  %v2316 = vpop.f32.mrf.mxu0
  %v2317 = vadd.f32 %v2216, %v2316
  %v2318 = vpop.f32.mrf.mxu0
  %v2319 = vadd.f32 %v2218, %v2318
  %v2320 = vpop.f32.mrf.mxu0
  %v2321 = vadd.f32 %v2220, %v2320
  %2322 = vmatprep.mubr.bf16.mxu0 %v602
  %2323 = vmatmul.mubr.bf16.gmra.mxu0 %v601
  %v2324 = vpop.f32.mrf.mxu0
  %v2325 = vadd.f32 %v2224, %v2324
  %v2326 = vpop.f32.mrf.mxu0
  %v2327 = vadd.f32 %v2226, %v2326
  %v2328 = vpop.f32.mrf.mxu0
  %v2329 = vadd.f32 %v2228, %v2328
  %v2330 = vpop.f32.mrf.mxu0
  %v2331 = vadd.f32 %v2230, %v2330
  %2332 = vmatprep.mubr.bf16.mxu0 %v615
  %2333 = vmatmul.mubr.bf16.gmra.mxu0 %v614
  %v2334 = vpop.f32.mrf.mxu0
  %v2335 = vadd.f32 %v2234, %v2334
  %v2336 = vpop.f32.mrf.mxu0
  %v2337 = vadd.f32 %v2236, %v2336
  %v2338 = vpop.f32.mrf.mxu0
  %v2339 = vadd.f32 %v2238, %v2338
  %v2340 = vpop.f32.mrf.mxu0
  %v2341 = vadd.f32 %v2240, %v2340
  %2342 = vmatprep.mubr.bf16.mxu0 %v628
  %2343 = vmatmul.mubr.bf16.gmra.mxu0 %v627
  %v2344 = vpop.f32.mrf.mxu0
  %v2345 = vadd.f32 %v2244, %v2344
  %v2346 = vpop.f32.mrf.mxu0
  %v2347 = vadd.f32 %v2246, %v2346
  %v2348 = vpop.f32.mrf.mxu0
  %v2349 = vadd.f32 %v2248, %v2348
  %v2350 = vpop.f32.mrf.mxu0
  %v2351 = vadd.f32 %v2250, %v2350
  %2352 = vmatprep.mubr.bf16.mxu0 %v641
  %2353 = vmatmul.mubr.bf16.gmra.mxu0 %v640
  %v2354 = vpop.f32.mrf.mxu0
  %v2355 = vadd.f32 %v2254, %v2354
  %v2356 = vpop.f32.mrf.mxu0
  %v2357 = vadd.f32 %v2256, %v2356
  %v2358 = vpop.f32.mrf.mxu0
  %v2359 = vadd.f32 %v2258, %v2358
  %v2360 = vpop.f32.mrf.mxu0
  %v2361 = vadd.f32 %v2260, %v2360
  %2362 = vmatprep.mubr.bf16.mxu0 %v654
  %2363 = vmatmul.mubr.bf16.gmra.mxu0 %v653
  %v2364 = vpop.f32.mrf.mxu0
  %v2365 = vadd.f32 %v2264, %v2364
  %v2366 = vpop.f32.mrf.mxu0
  %v2367 = vadd.f32 %v2266, %v2366
  %v2368 = vpop.f32.mrf.mxu0
  %v2369 = vadd.f32 %v2268, %v2368
  %v2370 = vpop.f32.mrf.mxu0
  %v2371 = vadd.f32 %v2270, %v2370
  %2372 = vmatprep.mubr.bf16.mxu0 %v667
  %2373 = vmatmul.mubr.bf16.gmra.mxu0 %v666
  %v2374 = vpop.f32.mrf.mxu0
  %v2375 = vadd.f32 %v2274, %v2374
  %v2376 = vpop.f32.mrf.mxu0
  %v2377 = vadd.f32 %v2276, %v2376
  %v2378 = vpop.f32.mrf.mxu0
  %v2379 = vpop.f32.mrf.mxu0
  %2380 = vdwg.mxu0
  %2381 = vmatprep.subr.bf16.mxu0 0
  %2382 = vmatpush1.bf16.msra.mxu0 0
  %2383 = vmatprep.subr.bf16.mxu0 0
  %2384 = vmatpush1.bf16.msra.mxu0 0
  %2385 = vmatprep.subr.bf16.mxu0 0
  %2386 = vmatpush1.bf16.msra.mxu0 0
  %2387 = vmatprep.subr.bf16.mxu0 0
  %2388 = vmatpush1.bf16.msra.mxu0 0
  %2389 = vmatprep.subr.bf16.mxu0 %v1552
  %2390 = vmatpush1.bf16.msra.mxu0 %v1551
  %2391 = vmatprep.subr.bf16.mxu0 %v1550
  %2392 = vmatpush1.bf16.msra.mxu0 %v1549
  %2393 = vmatprep.subr.bf16.mxu0 %v1548
  %2394 = vmatpush1.bf16.msra.mxu0 %v1547
  %2395 = vmatprep.subr.bf16.mxu0 %v1546
  %2396 = vmatpush1.bf16.msra.mxu0 %v1545
  %2397 = vmatprep.subr.bf16.mxu0 0
  %2398 = vmatpush2.bf16.msra.mxu0 0
  %2399 = vmatprep.subr.bf16.mxu0 0
  %2400 = vmatpush2.bf16.msra.mxu0 0
  %2401 = vmatprep.subr.bf16.mxu0 0
  %2402 = vmatpush2.bf16.msra.mxu0 0
  %2403 = vmatprep.subr.bf16.mxu0 0
  %2404 = vmatpush2.bf16.msra.mxu0 0
  %2405 = vmatprep.subr.bf16.mxu0 0
  %2406 = vmatpush2.bf16.msra.mxu0 0
  %2407 = vmatprep.subr.bf16.mxu0 0
  %2408 = vmatpush2.bf16.msra.mxu0 0
  %2409 = vmatprep.subr.bf16.mxu0 0
  %2410 = vmatpush2.bf16.msra.mxu0 0
  %2411 = vmatprep.subr.bf16.mxu0 0
  %2412 = vmatpush2.bf16.msra.mxu0 0
  %2413 = vmatprep.mubr.bf16.mxu0 0
  %2414 = vmatmul.mubr.bf16.gmra.mxu0 %v1755
  %v2415 = vpop.f32.mrf.mxu0
  %v2416 = vadd.f32 %v2315, %v2415
  %v2417 = vpop.f32.mrf.mxu0
  %v2418 = vadd.f32 %v2317, %v2417
  %v2419 = vpop.f32.mrf.mxu0
  %v2420 = vadd.f32 %v2319, %v2419
  %v2421 = vpop.f32.mrf.mxu0
  %v2422 = vadd.f32 %v2321, %v2421
  %2423 = vmatprep.mubr.bf16.mxu0 0
  %2424 = vmatmul.mubr.bf16.gmra.mxu0 %v1758
  %v2425 = vpop.f32.mrf.mxu0
  %v2426 = vadd.f32 %v2325, %v2425
  %v2427 = vpop.f32.mrf.mxu0
  %v2428 = vadd.f32 %v2327, %v2427
  %v2429 = vpop.f32.mrf.mxu0
  %v2430 = vadd.f32 %v2329, %v2429
  %v2431 = vpop.f32.mrf.mxu0
  %v2432 = vadd.f32 %v2331, %v2431
  %2433 = vmatprep.mubr.bf16.mxu0 0
  %2434 = vmatmul.mubr.bf16.gmra.mxu0 %v1761
  %v2435 = vpop.f32.mrf.mxu0
  %v2436 = vadd.f32 %v2335, %v2435
  %v2437 = vpop.f32.mrf.mxu0
  %v2438 = vadd.f32 %v2337, %v2437
  %v2439 = vpop.f32.mrf.mxu0
  %v2440 = vadd.f32 %v2339, %v2439
  %v2441 = vpop.f32.mrf.mxu0
  %v2442 = vadd.f32 %v2341, %v2441
  %2443 = vmatprep.mubr.bf16.mxu0 0
  %2444 = vmatmul.mubr.bf16.gmra.mxu0 %v1764
  %v2445 = vpop.f32.mrf.mxu0
  %v2446 = vadd.f32 %v2345, %v2445
  %v2447 = vpop.f32.mrf.mxu0
  %v2448 = vadd.f32 %v2347, %v2447
  %v2449 = vpop.f32.mrf.mxu0
  %v2450 = vadd.f32 %v2349, %v2449
  %v2451 = vpop.f32.mrf.mxu0
  %v2452 = vadd.f32 %v2351, %v2451
  %2453 = vmatprep.mubr.bf16.mxu0 0
  %2454 = vmatmul.mubr.bf16.gmra.mxu0 %v1767
  %v2455 = vpop.f32.mrf.mxu0
  %v2456 = vadd.f32 %v2355, %v2455
  %v2457 = vpop.f32.mrf.mxu0
  %v2458 = vadd.f32 %v2357, %v2457
  %v2459 = vpop.f32.mrf.mxu0
  %v2460 = vadd.f32 %v2359, %v2459
  %v2461 = vpop.f32.mrf.mxu0
  %v2462 = vadd.f32 %v2361, %v2461
  %2463 = vmatprep.mubr.bf16.mxu0 0
  %2464 = vmatmul.mubr.bf16.gmra.mxu0 %v1770
  %v2465 = vpop.f32.mrf.mxu0
  %v2466 = vadd.f32 %v2365, %v2465
  %v2467 = vpop.f32.mrf.mxu0
  %v2468 = vadd.f32 %v2367, %v2467
  %v2469 = vpop.f32.mrf.mxu0
  %v2470 = vadd.f32 %v2369, %v2469
  %v2471 = vpop.f32.mrf.mxu0
  %v2472 = vadd.f32 %v2371, %v2471
  %2473 = vmatprep.mubr.bf16.mxu0 0
  %2474 = vmatmul.mubr.bf16.gmra.mxu0 %v1773
  %v2475 = vpop.f32.mrf.mxu0
  %v2476 = vadd.f32 %v2375, %v2475
  %v2477 = vpop.f32.mrf.mxu0
  %v2478 = vadd.f32 %v2377, %v2477
  %v2479 = vpop.f32.mrf.mxu0
  %v2480 = vpop.f32.mrf.mxu0
  %2481 = vdwg.mxu0
  %v2482 = vmax.f32 %v2416, 0.0
  %v2483 = vmax.f32 %v2418, 0.0
  %v2484 = vmax.f32 %v2420, 0.0
  %v2485 = vmax.f32 %v2422, 0.0
  %v2486 = vmax.f32 %v2426, 0.0
  %v2487 = vmax.f32 %v2428, 0.0
  %v2488 = vmax.f32 %v2430, 0.0
  %v2489 = vmax.f32 %v2432, 0.0
  %v2490 = vmax.f32 %v2436, 0.0
  %v2491 = vmax.f32 %v2438, 0.0
  %v2492 = vmax.f32 %v2440, 0.0
  %v2493 = vmax.f32 %v2442, 0.0
  %v2494 = vmax.f32 %v2446, 0.0
  %v2495 = vmax.f32 %v2448, 0.0
  %v2496 = vmax.f32 %v2450, 0.0
  %v2497 = vmax.f32 %v2452, 0.0
  %v2498 = vmax.f32 %v2456, 0.0
  %v2499 = vmax.f32 %v2458, 0.0
  %v2500 = vmax.f32 %v2460, 0.0
  %v2501 = vmax.f32 %v2462, 0.0
  %v2502 = vmax.f32 %v2466, 0.0
  %v2503 = vmax.f32 %v2468, 0.0
  %v2504 = vmax.f32 %v2470, 0.0
  %v2505 = vmax.f32 %v2472, 0.0
  %v2506 = vmax.f32 %v2476, 0.0
  %v2507 = vmax.f32 %v2478, 0.0
  %v2508 = vpack.c.bf16 %v2484, %v2482
  %v2509 = vpack.c.bf16 %v2485, %v2483
  %v2510 = vpack.c.bf16 %v2488, %v2486
  %v2511 = vpack.c.bf16 %v2489, %v2487
  %v2512 = vpack.c.bf16 %v2492, %v2490
  %v2513 = vpack.c.bf16 %v2493, %v2491
  %v2514 = vpack.c.bf16 %v2496, %v2494
  %v2515 = vpack.c.bf16 %v2497, %v2495
  %v2516 = vpack.c.bf16 %v2500, %v2498
  %v2517 = vpack.c.bf16 %v2501, %v2499
  %v2518 = vpack.c.bf16 %v2504, %v2502
  %v2519 = vpack.c.bf16 %v2505, %v2503
  %v2520 = vpack.c.bf16 %v2506, %v2506
  %v2521 = vpack.c.bf16 %v2507, %v2507
  %v2536 = vunpack.c.l.b16 %v2508
  %v2537 = vunpack.c.l.b16 %v2509
  %v2538 = vunpack.c.h.b16 %v2508
  %v2539 = vunpack.c.h.b16 %v2509
  %v2540 = vunpack.c.l.b16 %v2510
  %v2541 = vunpack.c.l.b16 %v2511
  %v2542 = vunpack.c.h.b16 %v2510
  %v2543 = vunpack.c.h.b16 %v2511
  %v2544 = vunpack.c.l.b16 %v2512
  %v2545 = vunpack.c.l.b16 %v2513
  %v2546 = vunpack.c.h.b16 %v2512
  %v2547 = vunpack.c.h.b16 %v2513
  %v2548 = vunpack.c.l.b16 %v2514
  %v2549 = vunpack.c.l.b16 %v2515
  %v2550 = vunpack.c.h.b16 %v2514
  %v2551 = vunpack.c.h.b16 %v2515
  %v2552 = vunpack.c.l.b16 %v2516
  %v2553 = vunpack.c.l.b16 %v2517
  %v2554 = vunpack.c.h.b16 %v2516
  %v2555 = vunpack.c.h.b16 %v2517
  %v2556 = vunpack.c.l.b16 %v2518
  %v2557 = vunpack.c.l.b16 %v2519
  %v2558 = vunpack.c.h.b16 %v2518
  %v2559 = vunpack.c.h.b16 %v2519
  %v2560 = vunpack.c.l.b16 %v2520
  %v2561 = vunpack.c.l.b16 %v2521
  %v2562 = vpack.c.b16 %v2537, %v2536
  %v2563 = vpack.c.b16 %v2539, %v2538
  %v2564 = vpack.c.b16 %v2541, %v2540
  %v2565 = vpack.c.b16 %v2543, %v2542
  %v2566 = vpack.c.b16 %v2545, %v2544
  %v2567 = vpack.c.b16 %v2547, %v2546
  %v2568 = vpack.c.b16 %v2549, %v2548
  %v2569 = vpack.c.b16 %v2551, %v2550
  %v2570 = vpack.c.b16 %v2553, %v2552
  %v2571 = vpack.c.b16 %v2555, %v2554
  %v2572 = vpack.c.b16 %v2557, %v2556
  %v2573 = vpack.c.b16 %v2559, %v2558
  %v2574 = vpack.c.b16 %v2561, %v2560
  %vm2588 = vcmask 1043456
  %vm2589 = vcmask 523268
  %vm2590 = vmor %vm2589, %vm2588
  %2591 = vst.msk [vmem:[%s3] sm:$0xff] %vm2590, %v2562
  %2592 = vst.msk [vmem:[%s3 + $0x8] sm:$0xff] %vm2590, %v2563
  %2593 = vst.msk [vmem:[%s3 + $0x10] sm:$0xff] %vm2590, %v2564
  %2594 = vst.msk [vmem:[%s3 + $0x18] sm:$0xff] %vm2590, %v2565
  %2595 = vst.msk [vmem:[%s3 + $0x20] sm:$0xff] %vm2590, %v2566
  %2596 = vst.msk [vmem:[%s3 + $0x28] sm:$0xff] %vm2590, %v2567
  %2597 = vst.msk [vmem:[%s3 + $0x30] sm:$0xff] %vm2590, %v2568
  %2598 = vst.msk [vmem:[%s3 + $0x38] sm:$0xff] %vm2590, %v2569
  %2599 = vst.msk [vmem:[%s3 + $0x40] sm:$0xff] %vm2590, %v2570
  %2600 = vst.msk [vmem:[%s3 + $0x48] sm:$0xff] %vm2590, %v2571
  %2601 = vst.msk [vmem:[%s3 + $0x50] sm:$0xff] %vm2590, %v2572
  %2602 = vst.msk [vmem:[%s3 + $0x58] sm:$0xff] %vm2590, %v2573
  %vm2603 = vcmask 1040384
  %vm2604 = vcmask 520196
  %vm2605 = vmor %vm2604, %vm2603
  %2606 = vst.msk [vmem:[%s3 + $0x60] sm:$0x11] %vm2605, %v2574
  // Predicated region
  $region14: #{alexnet_forward.10} parent=0 // pred_check
    _
  $region15: #{alexnet_forward.10} parent=0 // pred_check_branch
    %2608 = sbr.rel (0) target = $region17
  $region16: #{alexnet_forward.10} parent=0 // pred_region
    _
  $region17: #{alexnet_forward.10} parent=0 // pred_fallthru
    _
  // Predicated region
  $region18: #{alexnet_forward.10} parent=0 // pred_check
    _
  $region19: #{alexnet_forward.10} parent=0 // pred_check_branch
    %2610 = sbr.rel (0) target = $region21
  $region20: #{alexnet_forward.10} parent=0 // pred_region
    _
  $region21: #{alexnet_forward.10} parent=0 // pred_fallthru
    _

// kernel: alexnet_forward.12
$region0: #{alexnet_forward.12}
  #allocation0 [shape = 'u32[]', space=smem, size = 0x4, offset = 0x4, fixed_abs, tag = 'smem constant byte address 0x4 - core index']
  #allocation1 [shape = 'u32[144,128]{1,0:T(1,128)}', space=vmem, size = 0x12000, scoped, tag = 'internal scratch']
  %s0 = inlined_call_operand.vmem [shape: bf16[18,1728], index: 0, kind: input, shape index: {}]
  %s1 = inlined_call_operand.vmem [shape: bf16[1728,384], index: 1, kind: input, shape index: {}]
  %s2 = inlined_call_operand.vmem [shape: f32[1,384], index: 2, kind: input, shape index: {}]
  %s3 = inlined_call_operand.vmem [shape: bf16[18,384], index: 3, kind: output, shape index: {}]
  %s4 = sld [smem:[#allocation0]]
  $region22: #{alexnet_forward.12} parent=0
    _
  %s6 = ssub.s32 1, %s4
  %s7 = scalar_select 0, %s6, %s4
  // Predicated region
  $region2: #{alexnet_forward.12} parent=0 // pred_check
    _
  $region3: #{alexnet_forward.12} parent=0 // pred_check_branch
    %9 = sbr.rel (0) target = $region5
  $region4: #{alexnet_forward.12} parent=0 // pred_region
    _
  $region5: #{alexnet_forward.12} parent=0 // pred_fallthru
    _
  // Predicated region
  $region6: #{alexnet_forward.12} parent=0 // pred_check
    _
  $region7: #{alexnet_forward.12} parent=0 // pred_check_branch
    %11 = sbr.rel (0) target = $region9
  $region8: #{alexnet_forward.12} parent=0 // pred_region
    _
  $region9: #{alexnet_forward.12} parent=0 // pred_fallthru
    _
  // Predicated region
  $region10: #{alexnet_forward.12} parent=0 // pred_check
    _
  $region11: #{alexnet_forward.12} parent=0 // pred_check_branch
    %13 = sbr.rel (0) target = $region13
  $region12: #{alexnet_forward.12} parent=0 // pred_region
    _
  $region13: #{alexnet_forward.12} parent=0 // pred_fallthru
    _
  %v15 = vld [vmem:[%s0] sm:$0xff]
  %v16 = vld [vmem:[%s0 + $0x8] sm:$0xff]
  %v17 = vld [vmem:[%s0 + $0x10] sm:$0xff]
  %v18 = vld [vmem:[%s0 + $0x18] sm:$0xff]
  %v19 = vld [vmem:[%s0 + $0x20] sm:$0xff]
  %v20 = vld [vmem:[%s0 + $0x28] sm:$0xff]
  %v21 = vld [vmem:[%s0 + $0x30] sm:$0xff]
  %v22 = vld [vmem:[%s0 + $0x38] sm:$0xff]
  %v23 = vld [vmem:[%s0 + $0x40] sm:$0xff]
  %v24 = vld [vmem:[%s0 + $0x48] sm:$0xff]
  %v25 = vld [vmem:[%s0 + $0x50] sm:$0xff]
  %v26 = vld [vmem:[%s0 + $0x58] sm:$0xff]
  %v27 = vld [vmem:[%s0 + $0x60] sm:$0xff]
  %v28 = vld [vmem:[%s0 + $0x68] sm:$0xff]
  %v29 = vld [vmem:[%s0 + $0x70] sm:$0x11]
  %v30 = vld [vmem:[%s0 + $0x78] sm:$0x11]
  %v31 = vld [vmem:[%s0 + $0x80] sm:$0x11]
  %v32 = vld [vmem:[%s0 + $0x88] sm:$0x11]
  %v33 = vld [vmem:[%s0 + $0x90] sm:$0x11]
  %v34 = vld [vmem:[%s0 + $0x98] sm:$0x11]
  %v35 = vld [vmem:[%s0 + $0xa0] sm:$0x11]
  %v36 = vld [vmem:[%s1] sm:$0xff]
  %v37 = vld [vmem:[%s1 + $0x8] sm:$0xf]
  %v38 = vld [vmem:[%s1 + $0xc] sm:$0xff]
  %v39 = vld [vmem:[%s1 + $0x14] sm:$0xf]
  %v40 = vld [vmem:[%s1 + $0x18] sm:$0xff]
  %v41 = vld [vmem:[%s1 + $0x20] sm:$0xf]
  %v42 = vld [vmem:[%s1 + $0x24] sm:$0xff]
  %v43 = vld [vmem:[%s1 + $0x2c] sm:$0xf]
  %v44 = vld [vmem:[%s1 + $0x30] sm:$0xff]
  %v45 = vld [vmem:[%s1 + $0x38] sm:$0xf]
  %v46 = vld [vmem:[%s1 + $0x3c] sm:$0xff]
  %v47 = vld [vmem:[%s1 + $0x44] sm:$0xf]
  %v48 = vld [vmem:[%s1 + $0x48] sm:$0xff]
  %v49 = vld [vmem:[%s1 + $0x50] sm:$0xf]
  %v50 = vld [vmem:[%s1 + $0x54] sm:$0xff]
  %v51 = vld [vmem:[%s1 + $0x5c] sm:$0xf]
  %v52 = vld [vmem:[%s1 + $0x60] sm:$0xff]
  %v53 = vld [vmem:[%s1 + $0x68] sm:$0xf]
  %v54 = vld [vmem:[%s1 + $0x6c] sm:$0xff]
  %v55 = vld [vmem:[%s1 + $0x74] sm:$0xf]
  %v56 = vld [vmem:[%s1 + $0x78] sm:$0xff]
  %v57 = vld [vmem:[%s1 + $0x80] sm:$0xf]
  %v58 = vld [vmem:[%s1 + $0x84] sm:$0xff]
  %v59 = vld [vmem:[%s1 + $0x8c] sm:$0xf]
  %v60 = vld [vmem:[%s1 + $0x90] sm:$0xff]
  %v61 = vld [vmem:[%s1 + $0x98] sm:$0xf]
  %v62 = vld [vmem:[%s1 + $0x9c] sm:$0xff]
  %v63 = vld [vmem:[%s1 + $0xa4] sm:$0xf]
  %v64 = vld [vmem:[%s1 + $0xa8] sm:$0xff]
  %v65 = vld [vmem:[%s1 + $0xb0] sm:$0xf]
  %v66 = vld [vmem:[%s1 + $0xb4] sm:$0xff]
  %v67 = vld [vmem:[%s1 + $0xbc] sm:$0xf]
  %v68 = vld [vmem:[%s1 + $0xc0] sm:$0xff]
  %v69 = vld [vmem:[%s1 + $0xc8] sm:$0xf]
  %v70 = vld [vmem:[%s1 + $0xcc] sm:$0xff]
  %v71 = vld [vmem:[%s1 + $0xd4] sm:$0xf]
  %v72 = vld [vmem:[%s1 + $0xd8] sm:$0xff]
  %v73 = vld [vmem:[%s1 + $0xe0] sm:$0xf]
  %v74 = vld [vmem:[%s1 + $0xe4] sm:$0xff]
  %v75 = vld [vmem:[%s1 + $0xec] sm:$0xf]
  %v76 = vld [vmem:[%s1 + $0xf0] sm:$0xff]
  %v77 = vld [vmem:[%s1 + $0xf8] sm:$0xf]
  %v78 = vld [vmem:[%s1 + $0xfc] sm:$0xff]
  %v79 = vld [vmem:[%s1 + $0x104] sm:$0xf]
  %v80 = vld [vmem:[%s1 + $0x108] sm:$0xff]
  %v81 = vld [vmem:[%s1 + $0x110] sm:$0xf]
  %v82 = vld [vmem:[%s1 + $0x114] sm:$0xff]
  %v83 = vld [vmem:[%s1 + $0x11c] sm:$0xf]
  %v84 = vld [vmem:[%s1 + $0x120] sm:$0xff]
  %v85 = vld [vmem:[%s1 + $0x128] sm:$0xf]
  %v86 = vld [vmem:[%s1 + $0x12c] sm:$0xff]
  %v87 = vld [vmem:[%s1 + $0x134] sm:$0xf]
  %v88 = vld [vmem:[%s1 + $0x138] sm:$0xff]
  %v89 = vld [vmem:[%s1 + $0x140] sm:$0xf]
  %v90 = vld [vmem:[%s1 + $0x144] sm:$0xff]
  %v91 = vld [vmem:[%s1 + $0x14c] sm:$0xf]
  %v92 = vld [vmem:[%s1 + $0x150] sm:$0xff]
  %v93 = vld [vmem:[%s1 + $0x158] sm:$0xf]
  %v94 = vld [vmem:[%s1 + $0x15c] sm:$0xff]
  %v95 = vld [vmem:[%s1 + $0x164] sm:$0xf]
  %v96 = vld [vmem:[%s1 + $0x168] sm:$0xff]
  %v97 = vld [vmem:[%s1 + $0x170] sm:$0xf]
  %v98 = vld [vmem:[%s1 + $0x174] sm:$0xff]
  %v99 = vld [vmem:[%s1 + $0x17c] sm:$0xf]
  %v100 = vld [vmem:[%s1 + $0x180] sm:$0xff]
  %v101 = vld [vmem:[%s1 + $0x188] sm:$0xf]
  %v102 = vld [vmem:[%s1 + $0x18c] sm:$0xff]
  %v103 = vld [vmem:[%s1 + $0x194] sm:$0xf]
  %v104 = vld [vmem:[%s1 + $0x198] sm:$0xff]
  %v105 = vld [vmem:[%s1 + $0x1a0] sm:$0xf]
  %v106 = vld [vmem:[%s1 + $0x1a4] sm:$0xff]
  %v107 = vld [vmem:[%s1 + $0x1ac] sm:$0xf]
  %v108 = vld [vmem:[%s1 + $0x1b0] sm:$0xff]
  %v109 = vld [vmem:[%s1 + $0x1b8] sm:$0xf]
  %v110 = vld [vmem:[%s1 + $0x1bc] sm:$0xff]
  %v111 = vld [vmem:[%s1 + $0x1c4] sm:$0xf]
  %v112 = vld [vmem:[%s1 + $0x1c8] sm:$0xff]
  %v113 = vld [vmem:[%s1 + $0x1d0] sm:$0xf]
  %v114 = vld [vmem:[%s1 + $0x1d4] sm:$0xff]
  %v115 = vld [vmem:[%s1 + $0x1dc] sm:$0xf]
  %v116 = vld [vmem:[%s1 + $0x1e0] sm:$0xff]
  %v117 = vld [vmem:[%s1 + $0x1e8] sm:$0xf]
  %v118 = vld [vmem:[%s1 + $0x1ec] sm:$0xff]
  %v119 = vld [vmem:[%s1 + $0x1f4] sm:$0xf]
  %v120 = vld [vmem:[%s1 + $0x1f8] sm:$0xff]
  %v121 = vld [vmem:[%s1 + $0x200] sm:$0xf]
  %v122 = vld [vmem:[%s1 + $0x204] sm:$0xff]
  %v123 = vld [vmem:[%s1 + $0x20c] sm:$0xf]
  %v124 = vld [vmem:[%s1 + $0x210] sm:$0xff]
  %v125 = vld [vmem:[%s1 + $0x218] sm:$0xf]
  %v126 = vld [vmem:[%s1 + $0x21c] sm:$0xff]
  %v127 = vld [vmem:[%s1 + $0x224] sm:$0xf]
  %v128 = vld [vmem:[%s1 + $0x228] sm:$0xff]
  %v129 = vld [vmem:[%s1 + $0x230] sm:$0xf]
  %v130 = vld [vmem:[%s1 + $0x234] sm:$0xff]
  %v131 = vld [vmem:[%s1 + $0x23c] sm:$0xf]
  %v132 = vld [vmem:[%s1 + $0x240] sm:$0xff]
  %v133 = vld [vmem:[%s1 + $0x248] sm:$0xf]
  %v134 = vld [vmem:[%s1 + $0x24c] sm:$0xff]
  %v135 = vld [vmem:[%s1 + $0x254] sm:$0xf]
  %v136 = vld [vmem:[%s1 + $0x258] sm:$0xff]
  %v137 = vld [vmem:[%s1 + $0x260] sm:$0xf]
  %v138 = vld [vmem:[%s1 + $0x264] sm:$0xff]
  %v139 = vld [vmem:[%s1 + $0x26c] sm:$0xf]
  %v140 = vld [vmem:[%s1 + $0x270] sm:$0xff]
  %v141 = vld [vmem:[%s1 + $0x278] sm:$0xf]
  %v142 = vld [vmem:[%s1 + $0x27c] sm:$0xff]
  %v143 = vld [vmem:[%s1 + $0x284] sm:$0xf]
  %v144 = vld [vmem:[%s1 + $0x288] sm:$0xff]
  %v145 = vld [vmem:[%s1 + $0x290] sm:$0xf]
  %v146 = vld [vmem:[%s1 + $0x294] sm:$0xff]
  %v147 = vld [vmem:[%s1 + $0x29c] sm:$0xf]
  %v148 = vld [vmem:[%s1 + $0x2a0] sm:$0xff]
  %v149 = vld [vmem:[%s1 + $0x2a8] sm:$0xf]
  %v150 = vld [vmem:[%s1 + $0x2ac] sm:$0xff]
  %v151 = vld [vmem:[%s1 + $0x2b4] sm:$0xf]
  %v152 = vld [vmem:[%s1 + $0x2b8] sm:$0xff]
  %v153 = vld [vmem:[%s1 + $0x2c0] sm:$0xf]
  %v154 = vld [vmem:[%s1 + $0x2c4] sm:$0xff]
  %v155 = vld [vmem:[%s1 + $0x2cc] sm:$0xf]
  %v156 = vld [vmem:[%s1 + $0x2d0] sm:$0xff]
  %v157 = vld [vmem:[%s1 + $0x2d8] sm:$0xf]
  %v158 = vld [vmem:[%s1 + $0x2dc] sm:$0xff]
  %v159 = vld [vmem:[%s1 + $0x2e4] sm:$0xf]
  %v160 = vld [vmem:[%s1 + $0x2e8] sm:$0xff]
  %v161 = vld [vmem:[%s1 + $0x2f0] sm:$0xf]
  %v162 = vld [vmem:[%s1 + $0x2f4] sm:$0xff]
  %v163 = vld [vmem:[%s1 + $0x2fc] sm:$0xf]
  %v164 = vld [vmem:[%s1 + $0x300] sm:$0xff]
  %v165 = vld [vmem:[%s1 + $0x308] sm:$0xf]
  %v166 = vld [vmem:[%s1 + $0x30c] sm:$0xff]
  %v167 = vld [vmem:[%s1 + $0x314] sm:$0xf]
  %v168 = vld [vmem:[%s1 + $0x318] sm:$0xff]
  %v169 = vld [vmem:[%s1 + $0x320] sm:$0xf]
  %v170 = vld [vmem:[%s1 + $0x324] sm:$0xff]
  %v171 = vld [vmem:[%s1 + $0x32c] sm:$0xf]
  %v172 = vld [vmem:[%s1 + $0x330] sm:$0xff]
  %v173 = vld [vmem:[%s1 + $0x338] sm:$0xf]
  %v174 = vld [vmem:[%s1 + $0x33c] sm:$0xff]
  %v175 = vld [vmem:[%s1 + $0x344] sm:$0xf]
  %v176 = vld [vmem:[%s1 + $0x348] sm:$0xff]
  %v177 = vld [vmem:[%s1 + $0x350] sm:$0xf]
  %v178 = vld [vmem:[%s1 + $0x354] sm:$0xff]
  %v179 = vld [vmem:[%s1 + $0x35c] sm:$0xf]
  %v180 = vld [vmem:[%s1 + $0x360] sm:$0xff]
  %v181 = vld [vmem:[%s1 + $0x368] sm:$0xf]
  %v182 = vld [vmem:[%s1 + $0x36c] sm:$0xff]
  %v183 = vld [vmem:[%s1 + $0x374] sm:$0xf]
  %v184 = vld [vmem:[%s1 + $0x378] sm:$0xff]
  %v185 = vld [vmem:[%s1 + $0x380] sm:$0xf]
  %v186 = vld [vmem:[%s1 + $0x384] sm:$0xff]
  %v187 = vld [vmem:[%s1 + $0x38c] sm:$0xf]
  %v188 = vld [vmem:[%s1 + $0x390] sm:$0xff]
  %v189 = vld [vmem:[%s1 + $0x398] sm:$0xf]
  %v190 = vld [vmem:[%s1 + $0x39c] sm:$0xff]
  %v191 = vld [vmem:[%s1 + $0x3a4] sm:$0xf]
  %v192 = vld [vmem:[%s1 + $0x3a8] sm:$0xff]
  %v193 = vld [vmem:[%s1 + $0x3b0] sm:$0xf]
  %v194 = vld [vmem:[%s1 + $0x3b4] sm:$0xff]
  %v195 = vld [vmem:[%s1 + $0x3bc] sm:$0xf]
  %v196 = vld [vmem:[%s1 + $0x3c0] sm:$0xff]
  %v197 = vld [vmem:[%s1 + $0x3c8] sm:$0xf]
  %v198 = vld [vmem:[%s1 + $0x3cc] sm:$0xff]
  %v199 = vld [vmem:[%s1 + $0x3d4] sm:$0xf]
  %v200 = vld [vmem:[%s1 + $0x3d8] sm:$0xff]
  %v201 = vld [vmem:[%s1 + $0x3e0] sm:$0xf]
  %v202 = vld [vmem:[%s1 + $0x3e4] sm:$0xff]
  %v203 = vld [vmem:[%s1 + $0x3ec] sm:$0xf]
  %v204 = vld [vmem:[%s1 + $0x3f0] sm:$0xff]
  %v205 = vld [vmem:[%s1 + $0x3f8] sm:$0xf]
  %v206 = vld [vmem:[%s1 + $0x3fc] sm:$0xff]
  %v207 = vld [vmem:[%s1 + $0x404] sm:$0xf]
  %v208 = vld [vmem:[%s1 + $0x408] sm:$0xff]
  %v209 = vld [vmem:[%s1 + $0x410] sm:$0xf]
  %v210 = vld [vmem:[%s1 + $0x414] sm:$0xff]
  %v211 = vld [vmem:[%s1 + $0x41c] sm:$0xf]
  %v212 = vld [vmem:[%s1 + $0x420] sm:$0xff]
  %v213 = vld [vmem:[%s1 + $0x428] sm:$0xf]
  %v214 = vld [vmem:[%s1 + $0x42c] sm:$0xff]
  %v215 = vld [vmem:[%s1 + $0x434] sm:$0xf]
  %v216 = vld [vmem:[%s1 + $0x438] sm:$0xff]
  %v217 = vld [vmem:[%s1 + $0x440] sm:$0xf]
  %v218 = vld [vmem:[%s1 + $0x444] sm:$0xff]
  %v219 = vld [vmem:[%s1 + $0x44c] sm:$0xf]
  %v220 = vld [vmem:[%s1 + $0x450] sm:$0xff]
  %v221 = vld [vmem:[%s1 + $0x458] sm:$0xf]
  %v222 = vld [vmem:[%s1 + $0x45c] sm:$0xff]
  %v223 = vld [vmem:[%s1 + $0x464] sm:$0xf]
  %v224 = vld [vmem:[%s1 + $0x468] sm:$0xff]
  %v225 = vld [vmem:[%s1 + $0x470] sm:$0xf]
  %v226 = vld [vmem:[%s1 + $0x474] sm:$0xff]
  %v227 = vld [vmem:[%s1 + $0x47c] sm:$0xf]
  %v228 = vld [vmem:[%s1 + $0x480] sm:$0xff]
  %v229 = vld [vmem:[%s1 + $0x488] sm:$0xf]
  %v230 = vld [vmem:[%s1 + $0x48c] sm:$0xff]
  %v231 = vld [vmem:[%s1 + $0x494] sm:$0xf]
  %v232 = vld [vmem:[%s1 + $0x498] sm:$0xff]
  %v233 = vld [vmem:[%s1 + $0x4a0] sm:$0xf]
  %v234 = vld [vmem:[%s1 + $0x4a4] sm:$0xff]
  %v235 = vld [vmem:[%s1 + $0x4ac] sm:$0xf]
  %v236 = vld [vmem:[%s1 + $0x4b0] sm:$0xff]
  %v237 = vld [vmem:[%s1 + $0x4b8] sm:$0xf]
  %v238 = vld [vmem:[%s1 + $0x4bc] sm:$0xff]
  %v239 = vld [vmem:[%s1 + $0x4c4] sm:$0xf]
  %v240 = vld [vmem:[%s1 + $0x4c8] sm:$0xff]
  %v241 = vld [vmem:[%s1 + $0x4d0] sm:$0xf]
  %v242 = vld [vmem:[%s1 + $0x4d4] sm:$0xff]
  %v243 = vld [vmem:[%s1 + $0x4dc] sm:$0xf]
  %v244 = vld [vmem:[%s1 + $0x4e0] sm:$0xff]
  %v245 = vld [vmem:[%s1 + $0x4e8] sm:$0xf]
  %v246 = vld [vmem:[%s1 + $0x4ec] sm:$0xff]
  %v247 = vld [vmem:[%s1 + $0x4f4] sm:$0xf]
  %v248 = vld [vmem:[%s1 + $0x4f8] sm:$0xff]
  %v249 = vld [vmem:[%s1 + $0x500] sm:$0xf]
  %v250 = vld [vmem:[%s1 + $0x504] sm:$0xff]
  %v251 = vld [vmem:[%s1 + $0x50c] sm:$0xf]
  %v252 = vld [vmem:[%s1 + $0x510] sm:$0xff]
  %v253 = vld [vmem:[%s1 + $0x518] sm:$0xf]
  %v254 = vld [vmem:[%s1 + $0x51c] sm:$0xff]
  %v255 = vld [vmem:[%s1 + $0x524] sm:$0xf]
  %v256 = vld [vmem:[%s1 + $0x528] sm:$0xff]
  %v257 = vld [vmem:[%s1 + $0x530] sm:$0xf]
  %v258 = vld [vmem:[%s1 + $0x534] sm:$0xff]
  %v259 = vld [vmem:[%s1 + $0x53c] sm:$0xf]
  %v260 = vld [vmem:[%s1 + $0x540] sm:$0xff]
  %v261 = vld [vmem:[%s1 + $0x548] sm:$0xf]
  %v262 = vld [vmem:[%s1 + $0x54c] sm:$0xff]
  %v263 = vld [vmem:[%s1 + $0x554] sm:$0xf]
  %v264 = vld [vmem:[%s1 + $0x558] sm:$0xff]
  %v265 = vld [vmem:[%s1 + $0x560] sm:$0xf]
  %v266 = vld [vmem:[%s1 + $0x564] sm:$0xff]
  %v267 = vld [vmem:[%s1 + $0x56c] sm:$0xf]
  %v268 = vld [vmem:[%s1 + $0x570] sm:$0xff]
  %v269 = vld [vmem:[%s1 + $0x578] sm:$0xf]
  %v270 = vld [vmem:[%s1 + $0x57c] sm:$0xff]
  %v271 = vld [vmem:[%s1 + $0x584] sm:$0xf]
  %v272 = vld [vmem:[%s1 + $0x588] sm:$0xff]
  %v273 = vld [vmem:[%s1 + $0x590] sm:$0xf]
  %v274 = vld [vmem:[%s1 + $0x594] sm:$0xff]
  %v275 = vld [vmem:[%s1 + $0x59c] sm:$0xf]
  %v276 = vld [vmem:[%s1 + $0x5a0] sm:$0xff]
  %v277 = vld [vmem:[%s1 + $0x5a8] sm:$0xf]
  %v278 = vld [vmem:[%s1 + $0x5ac] sm:$0xff]
  %v279 = vld [vmem:[%s1 + $0x5b4] sm:$0xf]
  %v280 = vld [vmem:[%s1 + $0x5b8] sm:$0xff]
  %v281 = vld [vmem:[%s1 + $0x5c0] sm:$0xf]
  %v282 = vld [vmem:[%s1 + $0x5c4] sm:$0xff]
  %v283 = vld [vmem:[%s1 + $0x5cc] sm:$0xf]
  %v284 = vld [vmem:[%s1 + $0x5d0] sm:$0xff]
  %v285 = vld [vmem:[%s1 + $0x5d8] sm:$0xf]
  %v286 = vld [vmem:[%s1 + $0x5dc] sm:$0xff]
  %v287 = vld [vmem:[%s1 + $0x5e4] sm:$0xf]
  %v288 = vld [vmem:[%s1 + $0x5e8] sm:$0xff]
  %v289 = vld [vmem:[%s1 + $0x5f0] sm:$0xf]
  %v290 = vld [vmem:[%s1 + $0x5f4] sm:$0xff]
  %v291 = vld [vmem:[%s1 + $0x5fc] sm:$0xf]
  %v292 = vld [vmem:[%s1 + $0x600] sm:$0xff]
  %v293 = vld [vmem:[%s1 + $0x608] sm:$0xf]
  %v294 = vld [vmem:[%s1 + $0x60c] sm:$0xff]
  %v295 = vld [vmem:[%s1 + $0x614] sm:$0xf]
  %v296 = vld [vmem:[%s1 + $0x618] sm:$0xff]
  %v297 = vld [vmem:[%s1 + $0x620] sm:$0xf]
  %v298 = vld [vmem:[%s1 + $0x624] sm:$0xff]
  %v299 = vld [vmem:[%s1 + $0x62c] sm:$0xf]
  %v300 = vld [vmem:[%s1 + $0x630] sm:$0xff]
  %v301 = vld [vmem:[%s1 + $0x638] sm:$0xf]
  %v302 = vld [vmem:[%s1 + $0x63c] sm:$0xff]
  %v303 = vld [vmem:[%s1 + $0x644] sm:$0xf]
  %v304 = vld [vmem:[%s1 + $0x648] sm:$0xff]
  %v305 = vld [vmem:[%s1 + $0x650] sm:$0xf]
  %v306 = vld [vmem:[%s1 + $0x654] sm:$0xff]
  %v307 = vld [vmem:[%s1 + $0x65c] sm:$0xf]
  %v308 = vld [vmem:[%s1 + $0x660] sm:$0xff]
  %v309 = vld [vmem:[%s1 + $0x668] sm:$0xf]
  %v310 = vld [vmem:[%s1 + $0x66c] sm:$0xff]
  %v311 = vld [vmem:[%s1 + $0x674] sm:$0xf]
  %v312 = vld [vmem:[%s1 + $0x678] sm:$0xff]
  %v313 = vld [vmem:[%s1 + $0x680] sm:$0xf]
  %v314 = vld [vmem:[%s1 + $0x684] sm:$0xff]
  %v315 = vld [vmem:[%s1 + $0x68c] sm:$0xf]
  %v316 = vld [vmem:[%s1 + $0x690] sm:$0xff]
  %v317 = vld [vmem:[%s1 + $0x698] sm:$0xf]
  %v318 = vld [vmem:[%s1 + $0x69c] sm:$0xff]
  %v319 = vld [vmem:[%s1 + $0x6a4] sm:$0xf]
  %v320 = vld [vmem:[%s1 + $0x6a8] sm:$0xff]
  %v321 = vld [vmem:[%s1 + $0x6b0] sm:$0xf]
  %v322 = vld [vmem:[%s1 + $0x6b4] sm:$0xff]
  %v323 = vld [vmem:[%s1 + $0x6bc] sm:$0xf]
  %v324 = vld [vmem:[%s1 + $0x6c0] sm:$0xff]
  %v325 = vld [vmem:[%s1 + $0x6c8] sm:$0xf]
  %v326 = vld [vmem:[%s1 + $0x6cc] sm:$0xff]
  %v327 = vld [vmem:[%s1 + $0x6d4] sm:$0xf]
  %v328 = vld [vmem:[%s1 + $0x6d8] sm:$0xff]
  %v329 = vld [vmem:[%s1 + $0x6e0] sm:$0xf]
  %v330 = vld [vmem:[%s1 + $0x6e4] sm:$0xff]
  %v331 = vld [vmem:[%s1 + $0x6ec] sm:$0xf]
  %v332 = vld [vmem:[%s1 + $0x6f0] sm:$0xff]
  %v333 = vld [vmem:[%s1 + $0x6f8] sm:$0xf]
  %v334 = vld [vmem:[%s1 + $0x6fc] sm:$0xff]
  %v335 = vld [vmem:[%s1 + $0x704] sm:$0xf]
  %v336 = vld [vmem:[%s1 + $0x708] sm:$0xff]
  %v337 = vld [vmem:[%s1 + $0x710] sm:$0xf]
  %v338 = vld [vmem:[%s1 + $0x714] sm:$0xff]
  %v339 = vld [vmem:[%s1 + $0x71c] sm:$0xf]
  %v340 = vld [vmem:[%s1 + $0x720] sm:$0xff]
  %v341 = vld [vmem:[%s1 + $0x728] sm:$0xf]
  %v342 = vld [vmem:[%s1 + $0x72c] sm:$0xff]
  %v343 = vld [vmem:[%s1 + $0x734] sm:$0xf]
  %v344 = vld [vmem:[%s1 + $0x738] sm:$0xff]
  %v345 = vld [vmem:[%s1 + $0x740] sm:$0xf]
  %v346 = vld [vmem:[%s1 + $0x744] sm:$0xff]
  %v347 = vld [vmem:[%s1 + $0x74c] sm:$0xf]
  %v348 = vld [vmem:[%s1 + $0x750] sm:$0xff]
  %v349 = vld [vmem:[%s1 + $0x758] sm:$0xf]
  %v350 = vld [vmem:[%s1 + $0x75c] sm:$0xff]
  %v351 = vld [vmem:[%s1 + $0x764] sm:$0xf]
  %v352 = vld [vmem:[%s1 + $0x768] sm:$0xff]
  %v353 = vld [vmem:[%s1 + $0x770] sm:$0xf]
  %v354 = vld [vmem:[%s1 + $0x774] sm:$0xff]
  %v355 = vld [vmem:[%s1 + $0x77c] sm:$0xf]
  %v356 = vld [vmem:[%s1 + $0x780] sm:$0xff]
  %v357 = vld [vmem:[%s1 + $0x788] sm:$0xf]
  %v358 = vld [vmem:[%s1 + $0x78c] sm:$0xff]
  %v359 = vld [vmem:[%s1 + $0x794] sm:$0xf]
  %v360 = vld [vmem:[%s1 + $0x798] sm:$0xff]
  %v361 = vld [vmem:[%s1 + $0x7a0] sm:$0xf]
  %v362 = vld [vmem:[%s1 + $0x7a4] sm:$0xff]
  %v363 = vld [vmem:[%s1 + $0x7ac] sm:$0xf]
  %v364 = vld [vmem:[%s1 + $0x7b0] sm:$0xff]
  %v365 = vld [vmem:[%s1 + $0x7b8] sm:$0xf]
  %v366 = vld [vmem:[%s1 + $0x7bc] sm:$0xff]
  %v367 = vld [vmem:[%s1 + $0x7c4] sm:$0xf]
  %v368 = vld [vmem:[%s1 + $0x7c8] sm:$0xff]
  %v369 = vld [vmem:[%s1 + $0x7d0] sm:$0xf]
  %v370 = vld [vmem:[%s1 + $0x7d4] sm:$0xff]
  %v371 = vld [vmem:[%s1 + $0x7dc] sm:$0xf]
  %v372 = vld [vmem:[%s1 + $0x7e0] sm:$0xff]
  %v373 = vld [vmem:[%s1 + $0x7e8] sm:$0xf]
  %v374 = vld [vmem:[%s1 + $0x7ec] sm:$0xff]
  %v375 = vld [vmem:[%s1 + $0x7f4] sm:$0xf]
  %v376 = vld [vmem:[%s1 + $0x7f8] sm:$0xff]
  %v377 = vld [vmem:[%s1 + $0x800] sm:$0xf]
  %v378 = vld [vmem:[%s1 + $0x804] sm:$0xff]
  %v379 = vld [vmem:[%s1 + $0x80c] sm:$0xf]
  %v380 = vld [vmem:[%s1 + $0x810] sm:$0xff]
  %v381 = vld [vmem:[%s1 + $0x818] sm:$0xf]
  %v382 = vld [vmem:[%s1 + $0x81c] sm:$0xff]
  %v383 = vld [vmem:[%s1 + $0x824] sm:$0xf]
  %v384 = vld [vmem:[%s1 + $0x828] sm:$0xff]
  %v385 = vld [vmem:[%s1 + $0x830] sm:$0xf]
  %v386 = vld [vmem:[%s1 + $0x834] sm:$0xff]
  %v387 = vld [vmem:[%s1 + $0x83c] sm:$0xf]
  %v388 = vld [vmem:[%s1 + $0x840] sm:$0xff]
  %v389 = vld [vmem:[%s1 + $0x848] sm:$0xf]
  %v390 = vld [vmem:[%s1 + $0x84c] sm:$0xff]
  %v391 = vld [vmem:[%s1 + $0x854] sm:$0xf]
  %v392 = vld [vmem:[%s1 + $0x858] sm:$0xff]
  %v393 = vld [vmem:[%s1 + $0x860] sm:$0xf]
  %v394 = vld [vmem:[%s1 + $0x864] sm:$0xff]
  %v395 = vld [vmem:[%s1 + $0x86c] sm:$0xf]
  %v396 = vld [vmem:[%s1 + $0x870] sm:$0xff]
  %v397 = vld [vmem:[%s1 + $0x878] sm:$0xf]
  %v398 = vld [vmem:[%s1 + $0x87c] sm:$0xff]
  %v399 = vld [vmem:[%s1 + $0x884] sm:$0xf]
  %v400 = vld [vmem:[%s1 + $0x888] sm:$0xff]
  %v401 = vld [vmem:[%s1 + $0x890] sm:$0xf]
  %v402 = vld [vmem:[%s1 + $0x894] sm:$0xff]
  %v403 = vld [vmem:[%s1 + $0x89c] sm:$0xf]
  %v404 = vld [vmem:[%s1 + $0x8a0] sm:$0xff]
  %v405 = vld [vmem:[%s1 + $0x8a8] sm:$0xf]
  %v406 = vld [vmem:[%s1 + $0x8ac] sm:$0xff]
  %v407 = vld [vmem:[%s1 + $0x8b4] sm:$0xf]
  %v408 = vld [vmem:[%s1 + $0x8b8] sm:$0xff]
  %v409 = vld [vmem:[%s1 + $0x8c0] sm:$0xf]
  %v410 = vld [vmem:[%s1 + $0x8c4] sm:$0xff]
  %v411 = vld [vmem:[%s1 + $0x8cc] sm:$0xf]
  %v412 = vld [vmem:[%s1 + $0x8d0] sm:$0xff]
  %v413 = vld [vmem:[%s1 + $0x8d8] sm:$0xf]
  %v414 = vld [vmem:[%s1 + $0x8dc] sm:$0xff]
  %v415 = vld [vmem:[%s1 + $0x8e4] sm:$0xf]
  %v416 = vld [vmem:[%s1 + $0x8e8] sm:$0xff]
  %v417 = vld [vmem:[%s1 + $0x8f0] sm:$0xf]
  %v418 = vld [vmem:[%s1 + $0x8f4] sm:$0xff]
  %v419 = vld [vmem:[%s1 + $0x8fc] sm:$0xf]
  %v420 = vld [vmem:[%s1 + $0x900] sm:$0xff]
  %v421 = vld [vmem:[%s1 + $0x908] sm:$0xf]
  %v422 = vld [vmem:[%s1 + $0x90c] sm:$0xff]
  %v423 = vld [vmem:[%s1 + $0x914] sm:$0xf]
  %v424 = vld [vmem:[%s1 + $0x918] sm:$0xff]
  %v425 = vld [vmem:[%s1 + $0x920] sm:$0xf]
  %v426 = vld [vmem:[%s1 + $0x924] sm:$0xff]
  %v427 = vld [vmem:[%s1 + $0x92c] sm:$0xf]
  %v428 = vld [vmem:[%s1 + $0x930] sm:$0xff]
  %v429 = vld [vmem:[%s1 + $0x938] sm:$0xf]
  %v430 = vld [vmem:[%s1 + $0x93c] sm:$0xff]
  %v431 = vld [vmem:[%s1 + $0x944] sm:$0xf]
  %v432 = vld [vmem:[%s1 + $0x948] sm:$0xff]
  %v433 = vld [vmem:[%s1 + $0x950] sm:$0xf]
  %v434 = vld [vmem:[%s1 + $0x954] sm:$0xff]
  %v435 = vld [vmem:[%s1 + $0x95c] sm:$0xf]
  %v436 = vld [vmem:[%s1 + $0x960] sm:$0xff]
  %v437 = vld [vmem:[%s1 + $0x968] sm:$0xf]
  %v438 = vld [vmem:[%s1 + $0x96c] sm:$0xff]
  %v439 = vld [vmem:[%s1 + $0x974] sm:$0xf]
  %v440 = vld [vmem:[%s1 + $0x978] sm:$0xff]
  %v441 = vld [vmem:[%s1 + $0x980] sm:$0xf]
  %v442 = vld [vmem:[%s1 + $0x984] sm:$0xff]
  %v443 = vld [vmem:[%s1 + $0x98c] sm:$0xf]
  %v444 = vld [vmem:[%s1 + $0x990] sm:$0xff]
  %v445 = vld [vmem:[%s1 + $0x998] sm:$0xf]
  %v446 = vld [vmem:[%s1 + $0x99c] sm:$0xff]
  %v447 = vld [vmem:[%s1 + $0x9a4] sm:$0xf]
  %v448 = vld [vmem:[%s1 + $0x9a8] sm:$0xff]
  %v449 = vld [vmem:[%s1 + $0x9b0] sm:$0xf]
  %v450 = vld [vmem:[%s1 + $0x9b4] sm:$0xff]
  %v451 = vld [vmem:[%s1 + $0x9bc] sm:$0xf]
  %v452 = vld [vmem:[%s1 + $0x9c0] sm:$0xff]
  %v453 = vld [vmem:[%s1 + $0x9c8] sm:$0xf]
  %v454 = vld [vmem:[%s1 + $0x9cc] sm:$0xff]
  %v455 = vld [vmem:[%s1 + $0x9d4] sm:$0xf]
  %v456 = vld [vmem:[%s1 + $0x9d8] sm:$0xff]
  %v457 = vld [vmem:[%s1 + $0x9e0] sm:$0xf]
  %v458 = vld [vmem:[%s1 + $0x9e4] sm:$0xff]
  %v459 = vld [vmem:[%s1 + $0x9ec] sm:$0xf]
  %v460 = vld [vmem:[%s1 + $0x9f0] sm:$0xff]
  %v461 = vld [vmem:[%s1 + $0x9f8] sm:$0xf]
  %v462 = vld [vmem:[%s1 + $0x9fc] sm:$0xff]
  %v463 = vld [vmem:[%s1 + $0xa04] sm:$0xf]
  %v464 = vld [vmem:[%s1 + $0xa08] sm:$0xff]
  %v465 = vld [vmem:[%s1 + $0xa10] sm:$0xf]
  %v466 = vld [vmem:[%s1 + $0xa14] sm:$0xff]
  %v467 = vld [vmem:[%s1 + $0xa1c] sm:$0xf]
  %v468 = vld [vmem:[%s2] sm:$0x7]
  %v470 = vlaneseq
  %v471 = vshrl.u32 %v470, 7
  %v472 = vsub.s32 0, %v471
  %v473 = vrot.slane %v468, %v472
  %v474 = vlaneseq
  %v475 = vshrl.u32 %v474, 7
  %v476 = vsub.s32 1, %v475
  %v477 = vrot.slane %v468, %v476
  %v478 = vlaneseq
  %v479 = vshrl.u32 %v478, 7
  %v480 = vsub.s32 2, %v479
  %v481 = vrot.slane %v468, %v480
  %v506 = vunpack.c.l.b16 %v15
  %v507 = vunpack.c.h.b16 %v15
  %v508 = vunpack.c.l.b16 %v16
  %v509 = vunpack.c.h.b16 %v16
  %v510 = vunpack.c.l.b16 %v17
  %v511 = vunpack.c.h.b16 %v17
  %v512 = vunpack.c.l.b16 %v18
  %v513 = vunpack.c.h.b16 %v18
  %v514 = vunpack.c.l.b16 %v19
  %v515 = vunpack.c.h.b16 %v19
  %v516 = vunpack.c.l.b16 %v20
  %v517 = vunpack.c.h.b16 %v20
  %v518 = vunpack.c.l.b16 %v21
  %v519 = vunpack.c.h.b16 %v21
  %v520 = vunpack.c.l.b16 %v22
  %v521 = vunpack.c.h.b16 %v22
  %v522 = vunpack.c.l.b16 %v23
  %v523 = vunpack.c.h.b16 %v23
  %v524 = vunpack.c.l.b16 %v24
  %v525 = vunpack.c.h.b16 %v24
  %v526 = vunpack.c.l.b16 %v25
  %v527 = vunpack.c.h.b16 %v25
  %v528 = vunpack.c.l.b16 %v26
  %v529 = vunpack.c.h.b16 %v26
  %v530 = vunpack.c.l.b16 %v27
  %v531 = vunpack.c.h.b16 %v27
  %v532 = vunpack.c.l.b16 %v28
  %v533 = vunpack.c.h.b16 %v28
  %v534 = vunpack.c.l.b16 %v29
  %v535 = vunpack.c.h.b16 %v29
  %v536 = vunpack.c.l.b16 %v30
  %v537 = vunpack.c.h.b16 %v30
  %v538 = vunpack.c.l.b16 %v31
  %v539 = vunpack.c.h.b16 %v31
  %v540 = vunpack.c.l.b16 %v32
  %v541 = vunpack.c.h.b16 %v32
  %v542 = vunpack.c.l.b16 %v33
  %v543 = vunpack.c.h.b16 %v33
  %v544 = vunpack.c.l.b16 %v34
  %v545 = vunpack.c.h.b16 %v34
  %v546 = vunpack.c.l.b16 %v35
  %v547 = vunpack.c.h.b16 %v35
  %v548 = vpack.c.b16 %v520, %v506
  %v549 = vpack.c.b16 %v521, %v507
  %v550 = vpack.c.b16 %v522, %v508
  %v551 = vpack.c.b16 %v523, %v509
  %v552 = vpack.c.b16 %v524, %v510
  %v553 = vpack.c.b16 %v525, %v511
  %v554 = vpack.c.b16 %v526, %v512
  %v555 = vpack.c.b16 %v527, %v513
  %v556 = vpack.c.b16 %v528, %v514
  %v557 = vpack.c.b16 %v529, %v515
  %v558 = vpack.c.b16 %v530, %v516
  %v559 = vpack.c.b16 %v531, %v517
  %v560 = vpack.c.b16 %v532, %v518
  %v561 = vpack.c.b16 %v533, %v519
  %v562 = vpack.c.b16 %v534, %v534
  %v563 = vpack.c.b16 %v535, %v535
  %v564 = vpack.c.b16 %v536, %v536
  %v565 = vpack.c.b16 %v537, %v537
  %v566 = vpack.c.b16 %v538, %v538
  %v567 = vpack.c.b16 %v539, %v539
  %v568 = vpack.c.b16 %v540, %v540
  %v569 = vpack.c.b16 %v541, %v541
  %v570 = vpack.c.b16 %v542, %v542
  %v571 = vpack.c.b16 %v543, %v543
  %v572 = vpack.c.b16 %v544, %v544
  %v573 = vpack.c.b16 %v545, %v545
  %v574 = vpack.c.b16 %v546, %v546
  %v575 = vpack.c.b16 %v547, %v547
  %v1034 = vunpack.c.l.b16 %v36
  %v1035 = vunpack.c.h.b16 %v36
  %v1036 = vunpack.c.l.b16 %v37
  %v1037 = vunpack.c.l.b16 %v38
  %v1038 = vunpack.c.h.b16 %v38
  %v1039 = vunpack.c.l.b16 %v39
  %v1040 = vunpack.c.l.b16 %v40
  %v1041 = vunpack.c.h.b16 %v40
  %v1042 = vunpack.c.l.b16 %v41
  %v1043 = vunpack.c.l.b16 %v42
  %v1044 = vunpack.c.h.b16 %v42
  %v1045 = vunpack.c.l.b16 %v43
  %v1046 = vunpack.c.l.b16 %v44
  %v1047 = vunpack.c.h.b16 %v44
  %v1048 = vunpack.c.l.b16 %v45
  %v1049 = vunpack.c.l.b16 %v46
  %v1050 = vunpack.c.h.b16 %v46
  %v1051 = vunpack.c.l.b16 %v47
  %v1052 = vunpack.c.l.b16 %v48
  %v1053 = vunpack.c.h.b16 %v48
  %v1054 = vunpack.c.l.b16 %v49
  %v1055 = vunpack.c.l.b16 %v50
  %v1056 = vunpack.c.h.b16 %v50
  %v1057 = vunpack.c.l.b16 %v51
  %v1058 = vunpack.c.l.b16 %v52
  %v1059 = vunpack.c.h.b16 %v52
  %v1060 = vunpack.c.l.b16 %v53
  %v1061 = vunpack.c.l.b16 %v54
  %v1062 = vunpack.c.h.b16 %v54
  %v1063 = vunpack.c.l.b16 %v55
  %v1064 = vunpack.c.l.b16 %v56
  %v1065 = vunpack.c.h.b16 %v56
  %v1066 = vunpack.c.l.b16 %v57
  %v1067 = vunpack.c.l.b16 %v58
  %v1068 = vunpack.c.h.b16 %v58
  %v1069 = vunpack.c.l.b16 %v59
  %v1070 = vunpack.c.l.b16 %v60
  %v1071 = vunpack.c.h.b16 %v60
  %v1072 = vunpack.c.l.b16 %v61
  %v1073 = vunpack.c.l.b16 %v62
  %v1074 = vunpack.c.h.b16 %v62
  %v1075 = vunpack.c.l.b16 %v63
  %v1076 = vunpack.c.l.b16 %v64
  %v1077 = vunpack.c.h.b16 %v64
  %v1078 = vunpack.c.l.b16 %v65
  %v1079 = vunpack.c.l.b16 %v66
  %v1080 = vunpack.c.h.b16 %v66
  %v1081 = vunpack.c.l.b16 %v67
  %v1082 = vunpack.c.l.b16 %v68
  %v1083 = vunpack.c.h.b16 %v68
  %v1084 = vunpack.c.l.b16 %v69
  %v1085 = vunpack.c.l.b16 %v70
  %v1086 = vunpack.c.h.b16 %v70
  %v1087 = vunpack.c.l.b16 %v71
  %v1088 = vunpack.c.l.b16 %v72
  %v1089 = vunpack.c.h.b16 %v72
  %v1090 = vunpack.c.l.b16 %v73
  %v1091 = vunpack.c.l.b16 %v74
  %v1092 = vunpack.c.h.b16 %v74
  %v1093 = vunpack.c.l.b16 %v75
  %v1094 = vunpack.c.l.b16 %v76
  %v1095 = vunpack.c.h.b16 %v76
  %v1096 = vunpack.c.l.b16 %v77
  %v1097 = vunpack.c.l.b16 %v78
  %v1098 = vunpack.c.h.b16 %v78
  %v1099 = vunpack.c.l.b16 %v79
  %v1100 = vunpack.c.l.b16 %v80
  %v1101 = vunpack.c.h.b16 %v80
  %v1102 = vunpack.c.l.b16 %v81
  %v1103 = vunpack.c.l.b16 %v82
  %v1104 = vunpack.c.h.b16 %v82
  %v1105 = vunpack.c.l.b16 %v83
  %v1106 = vunpack.c.l.b16 %v84
  %v1107 = vunpack.c.h.b16 %v84
  %v1108 = vunpack.c.l.b16 %v85
  %v1109 = vunpack.c.l.b16 %v86
  %v1110 = vunpack.c.h.b16 %v86
  %v1111 = vunpack.c.l.b16 %v87
  %v1112 = vunpack.c.l.b16 %v88
  %v1113 = vunpack.c.h.b16 %v88
  %v1114 = vunpack.c.l.b16 %v89
  %v1115 = vunpack.c.l.b16 %v90
  %v1116 = vunpack.c.h.b16 %v90
  %v1117 = vunpack.c.l.b16 %v91
  %v1118 = vunpack.c.l.b16 %v92
  %v1119 = vunpack.c.h.b16 %v92
  %v1120 = vunpack.c.l.b16 %v93
  %v1121 = vunpack.c.l.b16 %v94
  %v1122 = vunpack.c.h.b16 %v94
  %v1123 = vunpack.c.l.b16 %v95
  %v1124 = vunpack.c.l.b16 %v96
  %v1125 = vunpack.c.h.b16 %v96
  %v1126 = vunpack.c.l.b16 %v97
  %v1127 = vunpack.c.l.b16 %v98
  %v1128 = vunpack.c.h.b16 %v98
  %v1129 = vunpack.c.l.b16 %v99
  %v1130 = vunpack.c.l.b16 %v100
  %v1131 = vunpack.c.h.b16 %v100
  %v1132 = vunpack.c.l.b16 %v101
  %v1133 = vunpack.c.l.b16 %v102
  %v1134 = vunpack.c.h.b16 %v102
  %v1135 = vunpack.c.l.b16 %v103
  %v1136 = vunpack.c.l.b16 %v104
  %v1137 = vunpack.c.h.b16 %v104
  %v1138 = vunpack.c.l.b16 %v105
  %v1139 = vunpack.c.l.b16 %v106
  %v1140 = vunpack.c.h.b16 %v106
  %v1141 = vunpack.c.l.b16 %v107
  %v1142 = vunpack.c.l.b16 %v108
  %v1143 = vunpack.c.h.b16 %v108
  %v1144 = vunpack.c.l.b16 %v109
  %v1145 = vunpack.c.l.b16 %v110
  %v1146 = vunpack.c.h.b16 %v110
  %v1147 = vunpack.c.l.b16 %v111
  %v1148 = vunpack.c.l.b16 %v112
  %v1149 = vunpack.c.h.b16 %v112
  %v1150 = vunpack.c.l.b16 %v113
  %v1151 = vunpack.c.l.b16 %v114
  %v1152 = vunpack.c.h.b16 %v114
  %v1153 = vunpack.c.l.b16 %v115
  %v1154 = vunpack.c.l.b16 %v116
  %v1155 = vunpack.c.h.b16 %v116
  %v1156 = vunpack.c.l.b16 %v117
  %v1157 = vunpack.c.l.b16 %v118
  %v1158 = vunpack.c.h.b16 %v118
  %v1159 = vunpack.c.l.b16 %v119
  %v1160 = vunpack.c.l.b16 %v120
  %v1161 = vunpack.c.h.b16 %v120
  %v1162 = vunpack.c.l.b16 %v121
  %v1163 = vunpack.c.l.b16 %v122
  %v1164 = vunpack.c.h.b16 %v122
  %v1165 = vunpack.c.l.b16 %v123
  %v1166 = vunpack.c.l.b16 %v124
  %v1167 = vunpack.c.h.b16 %v124
  %v1168 = vunpack.c.l.b16 %v125
  %v1169 = vunpack.c.l.b16 %v126
  %v1170 = vunpack.c.h.b16 %v126
  %v1171 = vunpack.c.l.b16 %v127
  %v1172 = vunpack.c.l.b16 %v128
  %v1173 = vunpack.c.h.b16 %v128
  %v1174 = vunpack.c.l.b16 %v129
  %v1175 = vunpack.c.l.b16 %v130
  %v1176 = vunpack.c.h.b16 %v130
  %v1177 = vunpack.c.l.b16 %v131
  %v1178 = vunpack.c.l.b16 %v132
  %v1179 = vunpack.c.h.b16 %v132
  %v1180 = vunpack.c.l.b16 %v133
  %v1181 = vunpack.c.l.b16 %v134
  %v1182 = vunpack.c.h.b16 %v134
  %v1183 = vunpack.c.l.b16 %v135
  %v1184 = vunpack.c.l.b16 %v136
  %v1185 = vunpack.c.h.b16 %v136
  %v1186 = vunpack.c.l.b16 %v137
  %v1187 = vunpack.c.l.b16 %v138
  %v1188 = vunpack.c.h.b16 %v138
  %v1189 = vunpack.c.l.b16 %v139
  %v1190 = vunpack.c.l.b16 %v140
  %v1191 = vunpack.c.h.b16 %v140
  %v1192 = vunpack.c.l.b16 %v141
  %v1193 = vunpack.c.l.b16 %v142
  %v1194 = vunpack.c.h.b16 %v142
  %v1195 = vunpack.c.l.b16 %v143
  %v1196 = vunpack.c.l.b16 %v144
  %v1197 = vunpack.c.h.b16 %v144
  %v1198 = vunpack.c.l.b16 %v145
  %v1199 = vunpack.c.l.b16 %v146
  %v1200 = vunpack.c.h.b16 %v146
  %v1201 = vunpack.c.l.b16 %v147
  %v1202 = vunpack.c.l.b16 %v148
  %v1203 = vunpack.c.h.b16 %v148
  %v1204 = vunpack.c.l.b16 %v149
  %v1205 = vunpack.c.l.b16 %v150
  %v1206 = vunpack.c.h.b16 %v150
  %v1207 = vunpack.c.l.b16 %v151
  %v1208 = vunpack.c.l.b16 %v152
  %v1209 = vunpack.c.h.b16 %v152
  %v1210 = vunpack.c.l.b16 %v153
  %v1211 = vunpack.c.l.b16 %v154
  %v1212 = vunpack.c.h.b16 %v154
  %v1213 = vunpack.c.l.b16 %v155
  %v1214 = vunpack.c.l.b16 %v156
  %v1215 = vunpack.c.h.b16 %v156
  %v1216 = vunpack.c.l.b16 %v157
  %v1217 = vunpack.c.l.b16 %v158
  %v1218 = vunpack.c.h.b16 %v158
  %v1219 = vunpack.c.l.b16 %v159
  %v1220 = vunpack.c.l.b16 %v160
  %v1221 = vunpack.c.h.b16 %v160
  %v1222 = vunpack.c.l.b16 %v161
  %v1223 = vunpack.c.l.b16 %v162
  %v1224 = vunpack.c.h.b16 %v162
  %v1225 = vunpack.c.l.b16 %v163
  %v1226 = vunpack.c.l.b16 %v164
  %v1227 = vunpack.c.h.b16 %v164
  %v1228 = vunpack.c.l.b16 %v165
  %v1229 = vunpack.c.l.b16 %v166
  %v1230 = vunpack.c.h.b16 %v166
  %v1231 = vunpack.c.l.b16 %v167
  %v1232 = vunpack.c.l.b16 %v168
  %v1233 = vunpack.c.h.b16 %v168
  %v1234 = vunpack.c.l.b16 %v169
  %v1235 = vunpack.c.l.b16 %v170
  %v1236 = vunpack.c.h.b16 %v170
  %v1237 = vunpack.c.l.b16 %v171
  %v1238 = vunpack.c.l.b16 %v172
  %v1239 = vunpack.c.h.b16 %v172
  %v1240 = vunpack.c.l.b16 %v173
  %v1241 = vunpack.c.l.b16 %v174
  %v1242 = vunpack.c.h.b16 %v174
  %v1243 = vunpack.c.l.b16 %v175
  %v1244 = vunpack.c.l.b16 %v176
  %v1245 = vunpack.c.h.b16 %v176
  %v1246 = vunpack.c.l.b16 %v177
  %v1247 = vunpack.c.l.b16 %v178
  %v1248 = vunpack.c.h.b16 %v178
  %v1249 = vunpack.c.l.b16 %v179
  %v1250 = vunpack.c.l.b16 %v180
  %v1251 = vunpack.c.h.b16 %v180
  %v1252 = vunpack.c.l.b16 %v181
  %v1253 = vunpack.c.l.b16 %v182
  %v1254 = vunpack.c.h.b16 %v182
  %v1255 = vunpack.c.l.b16 %v183
  %v1256 = vunpack.c.l.b16 %v184
  %v1257 = vunpack.c.h.b16 %v184
  %v1258 = vunpack.c.l.b16 %v185
  %v1259 = vunpack.c.l.b16 %v186
  %v1260 = vunpack.c.h.b16 %v186
  %v1261 = vunpack.c.l.b16 %v187
  %v1262 = vunpack.c.l.b16 %v188
  %v1263 = vunpack.c.h.b16 %v188
  %v1264 = vunpack.c.l.b16 %v189
  %v1265 = vunpack.c.l.b16 %v190
  %v1266 = vunpack.c.h.b16 %v190
  %v1267 = vunpack.c.l.b16 %v191
  %v1268 = vunpack.c.l.b16 %v192
  %v1269 = vunpack.c.h.b16 %v192
  %v1270 = vunpack.c.l.b16 %v193
  %v1271 = vunpack.c.l.b16 %v194
  %v1272 = vunpack.c.h.b16 %v194
  %v1273 = vunpack.c.l.b16 %v195
  %v1274 = vunpack.c.l.b16 %v196
  %v1275 = vunpack.c.h.b16 %v196
  %v1276 = vunpack.c.l.b16 %v197
  %v1277 = vunpack.c.l.b16 %v198
  %v1278 = vunpack.c.h.b16 %v198
  %v1279 = vunpack.c.l.b16 %v199
  %v1280 = vunpack.c.l.b16 %v200
  %v1281 = vunpack.c.h.b16 %v200
  %v1282 = vunpack.c.l.b16 %v201
  %v1283 = vunpack.c.l.b16 %v202
  %v1284 = vunpack.c.h.b16 %v202
  %v1285 = vunpack.c.l.b16 %v203
  %v1286 = vunpack.c.l.b16 %v204
  %v1287 = vunpack.c.h.b16 %v204
  %v1288 = vunpack.c.l.b16 %v205
  %v1289 = vunpack.c.l.b16 %v206
  %v1290 = vunpack.c.h.b16 %v206
  %v1291 = vunpack.c.l.b16 %v207
  %v1292 = vunpack.c.l.b16 %v208
  %v1293 = vunpack.c.h.b16 %v208
  %v1294 = vunpack.c.l.b16 %v209
  %v1295 = vunpack.c.l.b16 %v210
  %v1296 = vunpack.c.h.b16 %v210
  %v1297 = vunpack.c.l.b16 %v211
  %v1298 = vunpack.c.l.b16 %v212
  %v1299 = vunpack.c.h.b16 %v212
  %v1300 = vunpack.c.l.b16 %v213
  %v1301 = vunpack.c.l.b16 %v214
  %v1302 = vunpack.c.h.b16 %v214
  %v1303 = vunpack.c.l.b16 %v215
  %v1304 = vunpack.c.l.b16 %v216
  %v1305 = vunpack.c.h.b16 %v216
  %v1306 = vunpack.c.l.b16 %v217
  %v1307 = vunpack.c.l.b16 %v218
  %v1308 = vunpack.c.h.b16 %v218
  %v1309 = vunpack.c.l.b16 %v219
  %v1310 = vunpack.c.l.b16 %v220
  %v1311 = vunpack.c.h.b16 %v220
  %v1312 = vunpack.c.l.b16 %v221
  %v1313 = vunpack.c.l.b16 %v222
  %v1314 = vunpack.c.h.b16 %v222
  %v1315 = vunpack.c.l.b16 %v223
  %v1316 = vunpack.c.l.b16 %v224
  %v1317 = vunpack.c.h.b16 %v224
  %v1318 = vunpack.c.l.b16 %v225
  %v1319 = vunpack.c.l.b16 %v226
  %v1320 = vunpack.c.h.b16 %v226
  %v1321 = vunpack.c.l.b16 %v227
  %v1322 = vunpack.c.l.b16 %v228
  %v1323 = vunpack.c.h.b16 %v228
  %v1324 = vunpack.c.l.b16 %v229
  %v1325 = vunpack.c.l.b16 %v230
  %v1326 = vunpack.c.h.b16 %v230
  %v1327 = vunpack.c.l.b16 %v231
  %v1328 = vunpack.c.l.b16 %v232
  %v1329 = vunpack.c.h.b16 %v232
  %v1330 = vunpack.c.l.b16 %v233
  %v1331 = vunpack.c.l.b16 %v234
  %v1332 = vunpack.c.h.b16 %v234
  %v1333 = vunpack.c.l.b16 %v235
  %v1334 = vunpack.c.l.b16 %v236
  %v1335 = vunpack.c.h.b16 %v236
  %v1336 = vunpack.c.l.b16 %v237
  %v1337 = vunpack.c.l.b16 %v238
  %v1338 = vunpack.c.h.b16 %v238
  %v1339 = vunpack.c.l.b16 %v239
  %v1340 = vunpack.c.l.b16 %v240
  %v1341 = vunpack.c.h.b16 %v240
  %v1342 = vunpack.c.l.b16 %v241
  %v1343 = vunpack.c.l.b16 %v242
  %v1344 = vunpack.c.h.b16 %v242
  %v1345 = vunpack.c.l.b16 %v243
  %v1346 = vunpack.c.l.b16 %v244
  %v1347 = vunpack.c.h.b16 %v244
  %v1348 = vunpack.c.l.b16 %v245
  %v1349 = vunpack.c.l.b16 %v246
  %v1350 = vunpack.c.h.b16 %v246
  %v1351 = vunpack.c.l.b16 %v247
  %v1352 = vunpack.c.l.b16 %v248
  %v1353 = vunpack.c.h.b16 %v248
  %v1354 = vunpack.c.l.b16 %v249
  %v1355 = vunpack.c.l.b16 %v250
  %v1356 = vunpack.c.h.b16 %v250
  %v1357 = vunpack.c.l.b16 %v251
  %v1358 = vunpack.c.l.b16 %v252
  %v1359 = vunpack.c.h.b16 %v252
  %v1360 = vunpack.c.l.b16 %v253
  %v1361 = vunpack.c.l.b16 %v254
  %v1362 = vunpack.c.h.b16 %v254
  %v1363 = vunpack.c.l.b16 %v255
  %v1364 = vunpack.c.l.b16 %v256
  %v1365 = vunpack.c.h.b16 %v256
  %v1366 = vunpack.c.l.b16 %v257
  %v1367 = vunpack.c.l.b16 %v258
  %v1368 = vunpack.c.h.b16 %v258
  %v1369 = vunpack.c.l.b16 %v259
  %v1370 = vunpack.c.l.b16 %v260
  %v1371 = vunpack.c.h.b16 %v260
  %v1372 = vunpack.c.l.b16 %v261
  %v1373 = vunpack.c.l.b16 %v262
  %v1374 = vunpack.c.h.b16 %v262
  %v1375 = vunpack.c.l.b16 %v263
  %v1376 = vunpack.c.l.b16 %v264
  %v1377 = vunpack.c.h.b16 %v264
  %v1378 = vunpack.c.l.b16 %v265
  %v1379 = vunpack.c.l.b16 %v266
  %v1380 = vunpack.c.h.b16 %v266
  %v1381 = vunpack.c.l.b16 %v267
  %v1382 = vunpack.c.l.b16 %v268
  %v1383 = vunpack.c.h.b16 %v268
  %v1384 = vunpack.c.l.b16 %v269
  %v1385 = vunpack.c.l.b16 %v270
  %v1386 = vunpack.c.h.b16 %v270
  %v1387 = vunpack.c.l.b16 %v271
  %v1388 = vunpack.c.l.b16 %v272
  %v1389 = vunpack.c.h.b16 %v272
  %v1390 = vunpack.c.l.b16 %v273
  %v1391 = vunpack.c.l.b16 %v274
  %v1392 = vunpack.c.h.b16 %v274
  %v1393 = vunpack.c.l.b16 %v275
  %v1394 = vunpack.c.l.b16 %v276
  %v1395 = vunpack.c.h.b16 %v276
  %v1396 = vunpack.c.l.b16 %v277
  %v1397 = vunpack.c.l.b16 %v278
  %v1398 = vunpack.c.h.b16 %v278
  %v1399 = vunpack.c.l.b16 %v279
  %v1400 = vunpack.c.l.b16 %v280
  %v1401 = vunpack.c.h.b16 %v280
  %v1402 = vunpack.c.l.b16 %v281
  %v1403 = vunpack.c.l.b16 %v282
  %v1404 = vunpack.c.h.b16 %v282
  %v1405 = vunpack.c.l.b16 %v283
  %v1406 = vunpack.c.l.b16 %v284
  %v1407 = vunpack.c.h.b16 %v284
  %v1408 = vunpack.c.l.b16 %v285
  %v1409 = vunpack.c.l.b16 %v286
  %v1410 = vunpack.c.h.b16 %v286
  %v1411 = vunpack.c.l.b16 %v287
  %v1412 = vunpack.c.l.b16 %v288
  %v1413 = vunpack.c.h.b16 %v288
  %v1414 = vunpack.c.l.b16 %v289
  %v1415 = vunpack.c.l.b16 %v290
  %v1416 = vunpack.c.h.b16 %v290
  %v1417 = vunpack.c.l.b16 %v291
  %v1418 = vunpack.c.l.b16 %v292
  %v1419 = vunpack.c.h.b16 %v292
  %v1420 = vunpack.c.l.b16 %v293
  %v1421 = vunpack.c.l.b16 %v294
  %v1422 = vunpack.c.h.b16 %v294
  %v1423 = vunpack.c.l.b16 %v295
  %v1424 = vunpack.c.l.b16 %v296
  %v1425 = vunpack.c.h.b16 %v296
  %v1426 = vunpack.c.l.b16 %v297
  %v1427 = vunpack.c.l.b16 %v298
  %v1428 = vunpack.c.h.b16 %v298
  %v1429 = vunpack.c.l.b16 %v299
  %v1430 = vunpack.c.l.b16 %v300
  %v1431 = vunpack.c.h.b16 %v300
  %v1432 = vunpack.c.l.b16 %v301
  %v1433 = vunpack.c.l.b16 %v302
  %v1434 = vunpack.c.h.b16 %v302
  %v1435 = vunpack.c.l.b16 %v303
  %v1436 = vunpack.c.l.b16 %v304
  %v1437 = vunpack.c.h.b16 %v304
  %v1438 = vunpack.c.l.b16 %v305
  %v1439 = vunpack.c.l.b16 %v306
  %v1440 = vunpack.c.h.b16 %v306
  %v1441 = vunpack.c.l.b16 %v307
  %v1442 = vunpack.c.l.b16 %v308
  %v1443 = vunpack.c.h.b16 %v308
  %v1444 = vunpack.c.l.b16 %v309
  %v1445 = vunpack.c.l.b16 %v310
  %v1446 = vunpack.c.h.b16 %v310
  %v1447 = vunpack.c.l.b16 %v311
  %v1448 = vunpack.c.l.b16 %v312
  %v1449 = vunpack.c.h.b16 %v312
  %v1450 = vunpack.c.l.b16 %v313
  %v1451 = vunpack.c.l.b16 %v314
  %v1452 = vunpack.c.h.b16 %v314
  %v1453 = vunpack.c.l.b16 %v315
  %v1454 = vunpack.c.l.b16 %v316
  %v1455 = vunpack.c.h.b16 %v316
  %v1456 = vunpack.c.l.b16 %v317
  %v1457 = vunpack.c.l.b16 %v318
  %v1458 = vunpack.c.h.b16 %v318
  %v1459 = vunpack.c.l.b16 %v319
  %v1460 = vunpack.c.l.b16 %v320
  %v1461 = vunpack.c.h.b16 %v320
  %v1462 = vunpack.c.l.b16 %v321
  %v1463 = vunpack.c.l.b16 %v322
  %v1464 = vunpack.c.h.b16 %v322
  %v1465 = vunpack.c.l.b16 %v323
  %v1466 = vunpack.c.l.b16 %v324
  %v1467 = vunpack.c.h.b16 %v324
  %v1468 = vunpack.c.l.b16 %v325
  %v1469 = vunpack.c.l.b16 %v326
  %v1470 = vunpack.c.h.b16 %v326
  %v1471 = vunpack.c.l.b16 %v327
  %v1472 = vunpack.c.l.b16 %v328
  %v1473 = vunpack.c.h.b16 %v328
  %v1474 = vunpack.c.l.b16 %v329
  %v1475 = vunpack.c.l.b16 %v330
  %v1476 = vunpack.c.h.b16 %v330
  %v1477 = vunpack.c.l.b16 %v331
  %v1478 = vunpack.c.l.b16 %v332
  %v1479 = vunpack.c.h.b16 %v332
  %v1480 = vunpack.c.l.b16 %v333
  %v1481 = vunpack.c.l.b16 %v334
  %v1482 = vunpack.c.h.b16 %v334
  %v1483 = vunpack.c.l.b16 %v335
  %v1484 = vunpack.c.l.b16 %v336
  %v1485 = vunpack.c.h.b16 %v336
  %v1486 = vunpack.c.l.b16 %v337
  %v1487 = vunpack.c.l.b16 %v338
  %v1488 = vunpack.c.h.b16 %v338
  %v1489 = vunpack.c.l.b16 %v339
  %v1490 = vunpack.c.l.b16 %v340
  %v1491 = vunpack.c.h.b16 %v340
  %v1492 = vunpack.c.l.b16 %v341
  %v1493 = vunpack.c.l.b16 %v342
  %v1494 = vunpack.c.h.b16 %v342
  %v1495 = vunpack.c.l.b16 %v343
  %v1496 = vunpack.c.l.b16 %v344
  %v1497 = vunpack.c.h.b16 %v344
  %v1498 = vunpack.c.l.b16 %v345
  %v1499 = vunpack.c.l.b16 %v346
  %v1500 = vunpack.c.h.b16 %v346
  %v1501 = vunpack.c.l.b16 %v347
  %v1502 = vunpack.c.l.b16 %v348
  %v1503 = vunpack.c.h.b16 %v348
  %v1504 = vunpack.c.l.b16 %v349
  %v1505 = vunpack.c.l.b16 %v350
  %v1506 = vunpack.c.h.b16 %v350
  %v1507 = vunpack.c.l.b16 %v351
  %v1508 = vunpack.c.l.b16 %v352
  %v1509 = vunpack.c.h.b16 %v352
  %v1510 = vunpack.c.l.b16 %v353
  %v1511 = vunpack.c.l.b16 %v354
  %v1512 = vunpack.c.h.b16 %v354
  %v1513 = vunpack.c.l.b16 %v355
  %v1514 = vunpack.c.l.b16 %v356
  %v1515 = vunpack.c.h.b16 %v356
  %v1516 = vunpack.c.l.b16 %v357
  %v1517 = vunpack.c.l.b16 %v358
  %v1518 = vunpack.c.h.b16 %v358
  %v1519 = vunpack.c.l.b16 %v359
  %v1520 = vunpack.c.l.b16 %v360
  %v1521 = vunpack.c.h.b16 %v360
  %v1522 = vunpack.c.l.b16 %v361
  %v1523 = vunpack.c.l.b16 %v362
  %v1524 = vunpack.c.h.b16 %v362
  %v1525 = vunpack.c.l.b16 %v363
  %v1526 = vunpack.c.l.b16 %v364
  %v1527 = vunpack.c.h.b16 %v364
  %v1528 = vunpack.c.l.b16 %v365
  %v1529 = vunpack.c.l.b16 %v366
  %v1530 = vunpack.c.h.b16 %v366
  %v1531 = vunpack.c.l.b16 %v367
  %v1532 = vunpack.c.l.b16 %v368
  %v1533 = vunpack.c.h.b16 %v368
  %v1534 = vunpack.c.l.b16 %v369
  %v1535 = vunpack.c.l.b16 %v370
  %v1536 = vunpack.c.h.b16 %v370
  %v1537 = vunpack.c.l.b16 %v371
  %v1538 = vunpack.c.l.b16 %v372
  %v1539 = vunpack.c.h.b16 %v372
  %v1540 = vunpack.c.l.b16 %v373
  %v1541 = vunpack.c.l.b16 %v374
  %v1542 = vunpack.c.h.b16 %v374
  %v1543 = vunpack.c.l.b16 %v375
  %v1544 = vunpack.c.l.b16 %v376
  %v1545 = vunpack.c.h.b16 %v376
  %v1546 = vunpack.c.l.b16 %v377
  %v1547 = vunpack.c.l.b16 %v378
  %v1548 = vunpack.c.h.b16 %v378
  %v1549 = vunpack.c.l.b16 %v379
  %v1550 = vunpack.c.l.b16 %v380
  %v1551 = vunpack.c.h.b16 %v380
  %v1552 = vunpack.c.l.b16 %v381
  %v1553 = vunpack.c.l.b16 %v382
  %v1554 = vunpack.c.h.b16 %v382
  %v1555 = vunpack.c.l.b16 %v383
  %v1556 = vunpack.c.l.b16 %v384
  %v1557 = vunpack.c.h.b16 %v384
  %v1558 = vunpack.c.l.b16 %v385
  %v1559 = vunpack.c.l.b16 %v386
  %v1560 = vunpack.c.h.b16 %v386
  %v1561 = vunpack.c.l.b16 %v387
  %v1562 = vunpack.c.l.b16 %v388
  %v1563 = vunpack.c.h.b16 %v388
  %v1564 = vunpack.c.l.b16 %v389
  %v1565 = vunpack.c.l.b16 %v390
  %v1566 = vunpack.c.h.b16 %v390
  %v1567 = vunpack.c.l.b16 %v391
  %v1568 = vunpack.c.l.b16 %v392
  %v1569 = vunpack.c.h.b16 %v392
  %v1570 = vunpack.c.l.b16 %v393
  %v1571 = vunpack.c.l.b16 %v394
  %v1572 = vunpack.c.h.b16 %v394
  %v1573 = vunpack.c.l.b16 %v395
  %v1574 = vunpack.c.l.b16 %v396
  %v1575 = vunpack.c.h.b16 %v396
  %v1576 = vunpack.c.l.b16 %v397
  %v1577 = vunpack.c.l.b16 %v398
  %v1578 = vunpack.c.h.b16 %v398
  %v1579 = vunpack.c.l.b16 %v399
  %v1580 = vunpack.c.l.b16 %v400
  %v1581 = vunpack.c.h.b16 %v400
  %v1582 = vunpack.c.l.b16 %v401
  %v1583 = vunpack.c.l.b16 %v402
  %v1584 = vunpack.c.h.b16 %v402
  %v1585 = vunpack.c.l.b16 %v403
  %v1586 = vunpack.c.l.b16 %v404
  %v1587 = vunpack.c.h.b16 %v404
  %v1588 = vunpack.c.l.b16 %v405
  %v1589 = vunpack.c.l.b16 %v406
  %v1590 = vunpack.c.h.b16 %v406
  %v1591 = vunpack.c.l.b16 %v407
  %v1592 = vunpack.c.l.b16 %v408
  %v1593 = vunpack.c.h.b16 %v408
  %v1594 = vunpack.c.l.b16 %v409
  %v1595 = vunpack.c.l.b16 %v410
  %v1596 = vunpack.c.h.b16 %v410
  %v1597 = vunpack.c.l.b16 %v411
  %v1598 = vunpack.c.l.b16 %v412
  %v1599 = vunpack.c.h.b16 %v412
  %v1600 = vunpack.c.l.b16 %v413
  %v1601 = vunpack.c.l.b16 %v414
  %v1602 = vunpack.c.h.b16 %v414
  %v1603 = vunpack.c.l.b16 %v415
  %v1604 = vunpack.c.l.b16 %v416
  %v1605 = vunpack.c.h.b16 %v416
  %v1606 = vunpack.c.l.b16 %v417
  %v1607 = vunpack.c.l.b16 %v418
  %v1608 = vunpack.c.h.b16 %v418
  %v1609 = vunpack.c.l.b16 %v419
  %v1610 = vunpack.c.l.b16 %v420
  %v1611 = vunpack.c.h.b16 %v420
  %v1612 = vunpack.c.l.b16 %v421
  %v1613 = vunpack.c.l.b16 %v422
  %v1614 = vunpack.c.h.b16 %v422
  %v1615 = vunpack.c.l.b16 %v423
  %v1616 = vunpack.c.l.b16 %v424
  %v1617 = vunpack.c.h.b16 %v424
  %v1618 = vunpack.c.l.b16 %v425
  %v1619 = vunpack.c.l.b16 %v426
  %v1620 = vunpack.c.h.b16 %v426
  %v1621 = vunpack.c.l.b16 %v427
  %v1622 = vunpack.c.l.b16 %v428
  %v1623 = vunpack.c.h.b16 %v428
  %v1624 = vunpack.c.l.b16 %v429
  %v1625 = vunpack.c.l.b16 %v430
  %v1626 = vunpack.c.h.b16 %v430
  %v1627 = vunpack.c.l.b16 %v431
  %v1628 = vunpack.c.l.b16 %v432
  %v1629 = vunpack.c.h.b16 %v432
  %v1630 = vunpack.c.l.b16 %v433
  %v1631 = vunpack.c.l.b16 %v434
  %v1632 = vunpack.c.h.b16 %v434
  %v1633 = vunpack.c.l.b16 %v435
  %v1634 = vunpack.c.l.b16 %v436
  %v1635 = vunpack.c.h.b16 %v436
  %v1636 = vunpack.c.l.b16 %v437
  %v1637 = vunpack.c.l.b16 %v438
  %v1638 = vunpack.c.h.b16 %v438
  %v1639 = vunpack.c.l.b16 %v439
  %v1640 = vunpack.c.l.b16 %v440
  %v1641 = vunpack.c.h.b16 %v440
  %v1642 = vunpack.c.l.b16 %v441
  %v1643 = vunpack.c.l.b16 %v442
  %v1644 = vunpack.c.h.b16 %v442
  %v1645 = vunpack.c.l.b16 %v443
  %v1646 = vunpack.c.l.b16 %v444
  %v1647 = vunpack.c.h.b16 %v444
  %v1648 = vunpack.c.l.b16 %v445
  %v1649 = vunpack.c.l.b16 %v446
  %v1650 = vunpack.c.h.b16 %v446
  %v1651 = vunpack.c.l.b16 %v447
  %v1652 = vunpack.c.l.b16 %v448
  %v1653 = vunpack.c.h.b16 %v448
  %v1654 = vunpack.c.l.b16 %v449
  %v1655 = vunpack.c.l.b16 %v450
  %v1656 = vunpack.c.h.b16 %v450
  %v1657 = vunpack.c.l.b16 %v451
  %v1658 = vunpack.c.l.b16 %v452
  %v1659 = vunpack.c.h.b16 %v452
  %v1660 = vunpack.c.l.b16 %v453
  %v1661 = vunpack.c.l.b16 %v454
  %v1662 = vunpack.c.h.b16 %v454
  %v1663 = vunpack.c.l.b16 %v455
  %v1664 = vunpack.c.l.b16 %v456
  %v1665 = vunpack.c.h.b16 %v456
  %v1666 = vunpack.c.l.b16 %v457
  %v1667 = vunpack.c.l.b16 %v458
  %v1668 = vunpack.c.h.b16 %v458
  %v1669 = vunpack.c.l.b16 %v459
  %v1670 = vunpack.c.l.b16 %v460
  %v1671 = vunpack.c.h.b16 %v460
  %v1672 = vunpack.c.l.b16 %v461
  %v1673 = vunpack.c.l.b16 %v462
  %v1674 = vunpack.c.h.b16 %v462
  %v1675 = vunpack.c.l.b16 %v463
  %v1676 = vunpack.c.l.b16 %v464
  %v1677 = vunpack.c.h.b16 %v464
  %v1678 = vunpack.c.l.b16 %v465
  %v1679 = vunpack.c.l.b16 %v466
  %v1680 = vunpack.c.h.b16 %v466
  %v1681 = vunpack.c.l.b16 %v467
  %v1682 = vpack.c.b16 %v1037, %v1034
  %v1683 = vpack.c.b16 %v1038, %v1035
  %v1684 = vpack.c.b16 %v1039, %v1036
  %v1685 = vpack.c.b16 %v1043, %v1040
  %v1686 = vpack.c.b16 %v1044, %v1041
  %v1687 = vpack.c.b16 %v1045, %v1042
  %v1688 = vpack.c.b16 %v1049, %v1046
  %v1689 = vpack.c.b16 %v1050, %v1047
  %v1690 = vpack.c.b16 %v1051, %v1048
  %v1691 = vpack.c.b16 %v1055, %v1052
  %v1692 = vpack.c.b16 %v1056, %v1053
  %v1693 = vpack.c.b16 %v1057, %v1054
  %v1694 = vpack.c.b16 %v1061, %v1058
  %v1695 = vpack.c.b16 %v1062, %v1059
  %v1696 = vpack.c.b16 %v1063, %v1060
  %v1697 = vpack.c.b16 %v1067, %v1064
  %v1698 = vpack.c.b16 %v1068, %v1065
  %v1699 = vpack.c.b16 %v1069, %v1066
  %v1700 = vpack.c.b16 %v1073, %v1070
  %v1701 = vpack.c.b16 %v1074, %v1071
  %v1702 = vpack.c.b16 %v1075, %v1072
  %v1703 = vpack.c.b16 %v1079, %v1076
  %v1704 = vpack.c.b16 %v1080, %v1077
  %v1705 = vpack.c.b16 %v1081, %v1078
  %v1706 = vpack.c.b16 %v1085, %v1082
  %v1707 = vpack.c.b16 %v1086, %v1083
  %v1708 = vpack.c.b16 %v1087, %v1084
  %v1709 = vpack.c.b16 %v1091, %v1088
  %v1710 = vpack.c.b16 %v1092, %v1089
  %v1711 = vpack.c.b16 %v1093, %v1090
  %v1712 = vpack.c.b16 %v1097, %v1094
  %v1713 = vpack.c.b16 %v1098, %v1095
  %v1714 = vpack.c.b16 %v1099, %v1096
  %v1715 = vpack.c.b16 %v1103, %v1100
  %v1716 = vpack.c.b16 %v1104, %v1101
  %v1717 = vpack.c.b16 %v1105, %v1102
  %v1718 = vpack.c.b16 %v1109, %v1106
  %v1719 = vpack.c.b16 %v1110, %v1107
  %v1720 = vpack.c.b16 %v1111, %v1108
  %v1721 = vpack.c.b16 %v1115, %v1112
  %v1722 = vpack.c.b16 %v1116, %v1113
  %v1723 = vpack.c.b16 %v1117, %v1114
  %v1724 = vpack.c.b16 %v1121, %v1118
  %v1725 = vpack.c.b16 %v1122, %v1119
  %v1726 = vpack.c.b16 %v1123, %v1120
  %v1727 = vpack.c.b16 %v1127, %v1124
  %v1728 = vpack.c.b16 %v1128, %v1125
  %v1729 = vpack.c.b16 %v1129, %v1126
  %v1730 = vpack.c.b16 %v1133, %v1130
  %v1731 = vpack.c.b16 %v1134, %v1131
  %v1732 = vpack.c.b16 %v1135, %v1132
  %v1733 = vpack.c.b16 %v1139, %v1136
  %v1734 = vpack.c.b16 %v1140, %v1137
  %v1735 = vpack.c.b16 %v1141, %v1138
  %v1736 = vpack.c.b16 %v1145, %v1142
  %v1737 = vpack.c.b16 %v1146, %v1143
  %v1738 = vpack.c.b16 %v1147, %v1144
  %v1739 = vpack.c.b16 %v1151, %v1148
  %v1740 = vpack.c.b16 %v1152, %v1149
  %v1741 = vpack.c.b16 %v1153, %v1150
  %v1742 = vpack.c.b16 %v1157, %v1154
  %v1743 = vpack.c.b16 %v1158, %v1155
  %v1744 = vpack.c.b16 %v1159, %v1156
  %v1745 = vpack.c.b16 %v1163, %v1160
  %v1746 = vpack.c.b16 %v1164, %v1161
  %v1747 = vpack.c.b16 %v1165, %v1162
  %v1748 = vpack.c.b16 %v1169, %v1166
  %v1749 = vpack.c.b16 %v1170, %v1167
  %v1750 = vpack.c.b16 %v1171, %v1168
  %v1751 = vpack.c.b16 %v1175, %v1172
  %v1752 = vpack.c.b16 %v1176, %v1173
  %v1753 = vpack.c.b16 %v1177, %v1174
  %v1754 = vpack.c.b16 %v1181, %v1178
  %v1755 = vpack.c.b16 %v1182, %v1179
  %v1756 = vpack.c.b16 %v1183, %v1180
  %v1757 = vpack.c.b16 %v1187, %v1184
  %v1758 = vpack.c.b16 %v1188, %v1185
  %v1759 = vpack.c.b16 %v1189, %v1186
  %v1760 = vpack.c.b16 %v1193, %v1190
  %v1761 = vpack.c.b16 %v1194, %v1191
  %v1762 = vpack.c.b16 %v1195, %v1192
  %v1763 = vpack.c.b16 %v1199, %v1196
  %v1764 = vpack.c.b16 %v1200, %v1197
  %v1765 = vpack.c.b16 %v1201, %v1198
  %v1766 = vpack.c.b16 %v1205, %v1202
  %v1767 = vpack.c.b16 %v1206, %v1203
  %v1768 = vpack.c.b16 %v1207, %v1204
  %v1769 = vpack.c.b16 %v1211, %v1208
  %v1770 = vpack.c.b16 %v1212, %v1209
  %v1771 = vpack.c.b16 %v1213, %v1210
  %v1772 = vpack.c.b16 %v1217, %v1214
  %v1773 = vpack.c.b16 %v1218, %v1215
  %v1774 = vpack.c.b16 %v1219, %v1216
  %v1775 = vpack.c.b16 %v1223, %v1220
  %v1776 = vpack.c.b16 %v1224, %v1221
  %v1777 = vpack.c.b16 %v1225, %v1222
  %v1778 = vpack.c.b16 %v1229, %v1226
  %v1779 = vpack.c.b16 %v1230, %v1227
  %v1780 = vpack.c.b16 %v1231, %v1228
  %v1781 = vpack.c.b16 %v1235, %v1232
  %v1782 = vpack.c.b16 %v1236, %v1233
  %v1783 = vpack.c.b16 %v1237, %v1234
  %v1784 = vpack.c.b16 %v1241, %v1238
  %v1785 = vpack.c.b16 %v1242, %v1239
  %v1786 = vpack.c.b16 %v1243, %v1240
  %v1787 = vpack.c.b16 %v1247, %v1244
  %v1788 = vpack.c.b16 %v1248, %v1245
  %v1789 = vpack.c.b16 %v1249, %v1246
  %v1790 = vpack.c.b16 %v1253, %v1250
  %v1791 = vpack.c.b16 %v1254, %v1251
  %v1792 = vpack.c.b16 %v1255, %v1252
  %v1793 = vpack.c.b16 %v1259, %v1256
  %v1794 = vpack.c.b16 %v1260, %v1257
  %v1795 = vpack.c.b16 %v1261, %v1258
  %v1796 = vpack.c.b16 %v1265, %v1262
  %v1797 = vpack.c.b16 %v1266, %v1263
  %v1798 = vpack.c.b16 %v1267, %v1264
  %v1799 = vpack.c.b16 %v1271, %v1268
  %v1800 = vpack.c.b16 %v1272, %v1269
  %v1801 = vpack.c.b16 %v1273, %v1270
  %v1802 = vpack.c.b16 %v1277, %v1274
  %v1803 = vpack.c.b16 %v1278, %v1275
  %v1804 = vpack.c.b16 %v1279, %v1276
  %v1805 = vpack.c.b16 %v1283, %v1280
  %v1806 = vpack.c.b16 %v1284, %v1281
  %v1807 = vpack.c.b16 %v1285, %v1282
  %v1808 = vpack.c.b16 %v1289, %v1286
  %v1809 = vpack.c.b16 %v1290, %v1287
  %v1810 = vpack.c.b16 %v1291, %v1288
  %v1811 = vpack.c.b16 %v1295, %v1292
  %v1812 = vpack.c.b16 %v1296, %v1293
  %v1813 = vpack.c.b16 %v1297, %v1294
  %v1814 = vpack.c.b16 %v1301, %v1298
  %v1815 = vpack.c.b16 %v1302, %v1299
  %v1816 = vpack.c.b16 %v1303, %v1300
  %v1817 = vpack.c.b16 %v1307, %v1304
  %v1818 = vpack.c.b16 %v1308, %v1305
  %v1819 = vpack.c.b16 %v1309, %v1306
  %v1820 = vpack.c.b16 %v1313, %v1310
  %v1821 = vpack.c.b16 %v1314, %v1311
  %v1822 = vpack.c.b16 %v1315, %v1312
  %v1823 = vpack.c.b16 %v1319, %v1316
  %v1824 = vpack.c.b16 %v1320, %v1317
  %v1825 = vpack.c.b16 %v1321, %v1318
  %v1826 = vpack.c.b16 %v1325, %v1322
  %v1827 = vpack.c.b16 %v1326, %v1323
  %v1828 = vpack.c.b16 %v1327, %v1324
  %v1829 = vpack.c.b16 %v1331, %v1328
  %v1830 = vpack.c.b16 %v1332, %v1329
  %v1831 = vpack.c.b16 %v1333, %v1330
  %v1832 = vpack.c.b16 %v1337, %v1334
  %v1833 = vpack.c.b16 %v1338, %v1335
  %v1834 = vpack.c.b16 %v1339, %v1336
  %v1835 = vpack.c.b16 %v1343, %v1340
  %v1836 = vpack.c.b16 %v1344, %v1341
  %v1837 = vpack.c.b16 %v1345, %v1342
  %v1838 = vpack.c.b16 %v1349, %v1346
  %v1839 = vpack.c.b16 %v1350, %v1347
  %v1840 = vpack.c.b16 %v1351, %v1348
  %v1841 = vpack.c.b16 %v1355, %v1352
  %v1842 = vpack.c.b16 %v1356, %v1353
  %v1843 = vpack.c.b16 %v1357, %v1354
  %v1844 = vpack.c.b16 %v1361, %v1358
  %v1845 = vpack.c.b16 %v1362, %v1359
  %v1846 = vpack.c.b16 %v1363, %v1360
  %v1847 = vpack.c.b16 %v1367, %v1364
  %v1848 = vpack.c.b16 %v1368, %v1365
  %v1849 = vpack.c.b16 %v1369, %v1366
  %v1850 = vpack.c.b16 %v1373, %v1370
  %v1851 = vpack.c.b16 %v1374, %v1371
  %v1852 = vpack.c.b16 %v1375, %v1372
  %v1853 = vpack.c.b16 %v1379, %v1376
  %v1854 = vpack.c.b16 %v1380, %v1377
  %v1855 = vpack.c.b16 %v1381, %v1378
  %v1856 = vpack.c.b16 %v1385, %v1382
  %v1857 = vpack.c.b16 %v1386, %v1383
  %v1858 = vpack.c.b16 %v1387, %v1384
  %v1859 = vpack.c.b16 %v1391, %v1388
  %v1860 = vpack.c.b16 %v1392, %v1389
  %v1861 = vpack.c.b16 %v1393, %v1390
  %v1862 = vpack.c.b16 %v1397, %v1394
  %v1863 = vpack.c.b16 %v1398, %v1395
  %v1864 = vpack.c.b16 %v1399, %v1396
  %v1865 = vpack.c.b16 %v1403, %v1400
  %v1866 = vpack.c.b16 %v1404, %v1401
  %v1867 = vpack.c.b16 %v1405, %v1402
  %v1868 = vpack.c.b16 %v1409, %v1406
  %v1869 = vpack.c.b16 %v1410, %v1407
  %v1870 = vpack.c.b16 %v1411, %v1408
  %v1871 = vpack.c.b16 %v1415, %v1412
  %v1872 = vpack.c.b16 %v1416, %v1413
  %v1873 = vpack.c.b16 %v1417, %v1414
  %v1874 = vpack.c.b16 %v1421, %v1418
  %v1875 = vpack.c.b16 %v1422, %v1419
  %v1876 = vpack.c.b16 %v1423, %v1420
  %v1877 = vpack.c.b16 %v1427, %v1424
  %v1878 = vpack.c.b16 %v1428, %v1425
  %v1879 = vpack.c.b16 %v1429, %v1426
  %v1880 = vpack.c.b16 %v1433, %v1430
  %v1881 = vpack.c.b16 %v1434, %v1431
  %v1882 = vpack.c.b16 %v1435, %v1432
  %v1883 = vpack.c.b16 %v1439, %v1436
  %v1884 = vpack.c.b16 %v1440, %v1437
  %v1885 = vpack.c.b16 %v1441, %v1438
  %v1886 = vpack.c.b16 %v1445, %v1442
  %v1887 = vpack.c.b16 %v1446, %v1443
  %v1888 = vpack.c.b16 %v1447, %v1444
  %v1889 = vpack.c.b16 %v1451, %v1448
  %v1890 = vpack.c.b16 %v1452, %v1449
  %v1891 = vpack.c.b16 %v1453, %v1450
  %v1892 = vpack.c.b16 %v1457, %v1454
  %v1893 = vpack.c.b16 %v1458, %v1455
  %v1894 = vpack.c.b16 %v1459, %v1456
  %v1895 = vpack.c.b16 %v1463, %v1460
  %v1896 = vpack.c.b16 %v1464, %v1461
  %v1897 = vpack.c.b16 %v1465, %v1462
  %v1898 = vpack.c.b16 %v1469, %v1466
  %v1899 = vpack.c.b16 %v1470, %v1467
  %v1900 = vpack.c.b16 %v1471, %v1468
  %v1901 = vpack.c.b16 %v1475, %v1472
  %v1902 = vpack.c.b16 %v1476, %v1473
  %v1903 = vpack.c.b16 %v1477, %v1474
  %v1904 = vpack.c.b16 %v1481, %v1478
  %v1905 = vpack.c.b16 %v1482, %v1479
  %v1906 = vpack.c.b16 %v1483, %v1480
  %v1907 = vpack.c.b16 %v1487, %v1484
  %v1908 = vpack.c.b16 %v1488, %v1485
  %v1909 = vpack.c.b16 %v1489, %v1486
  %v1910 = vpack.c.b16 %v1493, %v1490
  %v1911 = vpack.c.b16 %v1494, %v1491
  %v1912 = vpack.c.b16 %v1495, %v1492
  %v1913 = vpack.c.b16 %v1499, %v1496
  %v1914 = vpack.c.b16 %v1500, %v1497
  %v1915 = vpack.c.b16 %v1501, %v1498
  %v1916 = vpack.c.b16 %v1505, %v1502
  %v1917 = vpack.c.b16 %v1506, %v1503
  %v1918 = vpack.c.b16 %v1507, %v1504
  %v1919 = vpack.c.b16 %v1511, %v1508
  %v1920 = vpack.c.b16 %v1512, %v1509
  %v1921 = vpack.c.b16 %v1513, %v1510
  %v1922 = vpack.c.b16 %v1517, %v1514
  %v1923 = vpack.c.b16 %v1518, %v1515
  %v1924 = vpack.c.b16 %v1519, %v1516
  %v1925 = vpack.c.b16 %v1523, %v1520
  %v1926 = vpack.c.b16 %v1524, %v1521
  %v1927 = vpack.c.b16 %v1525, %v1522
  %v1928 = vpack.c.b16 %v1529, %v1526
  %v1929 = vpack.c.b16 %v1530, %v1527
  %v1930 = vpack.c.b16 %v1531, %v1528
  %v1931 = vpack.c.b16 %v1535, %v1532
  %v1932 = vpack.c.b16 %v1536, %v1533
  %v1933 = vpack.c.b16 %v1537, %v1534
  %v1934 = vpack.c.b16 %v1541, %v1538
  %v1935 = vpack.c.b16 %v1542, %v1539
  %v1936 = vpack.c.b16 %v1543, %v1540
  %v1937 = vpack.c.b16 %v1547, %v1544
  %v1938 = vpack.c.b16 %v1548, %v1545
  %v1939 = vpack.c.b16 %v1549, %v1546
  %v1940 = vpack.c.b16 %v1553, %v1550
  %v1941 = vpack.c.b16 %v1554, %v1551
  %v1942 = vpack.c.b16 %v1555, %v1552
  %v1943 = vpack.c.b16 %v1559, %v1556
  %v1944 = vpack.c.b16 %v1560, %v1557
  %v1945 = vpack.c.b16 %v1561, %v1558
  %v1946 = vpack.c.b16 %v1565, %v1562
  %v1947 = vpack.c.b16 %v1566, %v1563
  %v1948 = vpack.c.b16 %v1567, %v1564
  %v1949 = vpack.c.b16 %v1571, %v1568
  %v1950 = vpack.c.b16 %v1572, %v1569
  %v1951 = vpack.c.b16 %v1573, %v1570
  %v1952 = vpack.c.b16 %v1577, %v1574
  %v1953 = vpack.c.b16 %v1578, %v1575
  %v1954 = vpack.c.b16 %v1579, %v1576
  %v1955 = vpack.c.b16 %v1583, %v1580
  %v1956 = vpack.c.b16 %v1584, %v1581
  %v1957 = vpack.c.b16 %v1585, %v1582
  %v1958 = vpack.c.b16 %v1589, %v1586
  %v1959 = vpack.c.b16 %v1590, %v1587
  %v1960 = vpack.c.b16 %v1591, %v1588
  %v1961 = vpack.c.b16 %v1595, %v1592
  %v1962 = vpack.c.b16 %v1596, %v1593
  %v1963 = vpack.c.b16 %v1597, %v1594
  %v1964 = vpack.c.b16 %v1601, %v1598
  %v1965 = vpack.c.b16 %v1602, %v1599
  %v1966 = vpack.c.b16 %v1603, %v1600
  %v1967 = vpack.c.b16 %v1607, %v1604
  %v1968 = vpack.c.b16 %v1608, %v1605
  %v1969 = vpack.c.b16 %v1609, %v1606
  %v1970 = vpack.c.b16 %v1613, %v1610
  %v1971 = vpack.c.b16 %v1614, %v1611
  %v1972 = vpack.c.b16 %v1615, %v1612
  %v1973 = vpack.c.b16 %v1619, %v1616
  %v1974 = vpack.c.b16 %v1620, %v1617
  %v1975 = vpack.c.b16 %v1621, %v1618
  %v1976 = vpack.c.b16 %v1625, %v1622
  %v1977 = vpack.c.b16 %v1626, %v1623
  %v1978 = vpack.c.b16 %v1627, %v1624
  %v1979 = vpack.c.b16 %v1631, %v1628
  %v1980 = vpack.c.b16 %v1632, %v1629
  %v1981 = vpack.c.b16 %v1633, %v1630
  %v1982 = vpack.c.b16 %v1637, %v1634
  %v1983 = vpack.c.b16 %v1638, %v1635
  %v1984 = vpack.c.b16 %v1639, %v1636
  %v1985 = vpack.c.b16 %v1643, %v1640
  %v1986 = vpack.c.b16 %v1644, %v1641
  %v1987 = vpack.c.b16 %v1645, %v1642
  %v1988 = vpack.c.b16 %v1649, %v1646
  %v1989 = vpack.c.b16 %v1650, %v1647
  %v1990 = vpack.c.b16 %v1651, %v1648
  %v1991 = vpack.c.b16 %v1655, %v1652
  %v1992 = vpack.c.b16 %v1656, %v1653
  %v1993 = vpack.c.b16 %v1657, %v1654
  %v1994 = vpack.c.b16 %v1661, %v1658
  %v1995 = vpack.c.b16 %v1662, %v1659
  %v1996 = vpack.c.b16 %v1663, %v1660
  %v1997 = vpack.c.b16 %v1667, %v1664
  %v1998 = vpack.c.b16 %v1668, %v1665
  %v1999 = vpack.c.b16 %v1669, %v1666
  %v2000 = vpack.c.b16 %v1673, %v1670
  %v2001 = vpack.c.b16 %v1674, %v1671
  %v2002 = vpack.c.b16 %v1675, %v1672
  %v2003 = vpack.c.b16 %v1679, %v1676
  %v2004 = vpack.c.b16 %v1680, %v1677
  %v2005 = vpack.c.b16 %v1681, %v1678
  %vm2330 = vcmask 523264
  %v2332 = vsel %vm2330, %v561, 0
  %v2335 = vsel %vm2330, %v575, 0
  %2337 = vmatprep.subr.bf16.mxu0 %v1704
  %2338 = vmatpush1.bf16.msra.mxu0 %v1703
  %2339 = vmatprep.subr.bf16.mxu0 %v1701
  %2340 = vmatpush1.bf16.msra.mxu0 %v1700
  %2341 = vmatprep.subr.bf16.mxu0 %v1698
  %2342 = vmatpush1.bf16.msra.mxu0 %v1697
  %2343 = vmatprep.subr.bf16.mxu0 %v1695
  %2344 = vmatpush1.bf16.msra.mxu0 %v1694
  %2345 = vmatprep.subr.bf16.mxu0 %v1692
  %2346 = vmatpush1.bf16.msra.mxu0 %v1691
  %2347 = vmatprep.subr.bf16.mxu0 %v1689
  %2348 = vmatpush1.bf16.msra.mxu0 %v1688
  %2349 = vmatprep.subr.bf16.mxu0 %v1686
  %2350 = vmatpush1.bf16.msra.mxu0 %v1685
  %2351 = vmatprep.subr.bf16.mxu0 %v1683
  %2352 = vmatpush1.bf16.msra.mxu0 %v1682
  %2353 = vmatprep.subr.bf16.mxu0 %v1728
  %2354 = vmatpush2.bf16.msra.mxu0 %v1727
  %2355 = vmatprep.subr.bf16.mxu0 %v1725
  %2356 = vmatpush2.bf16.msra.mxu0 %v1724
  %2357 = vmatprep.subr.bf16.mxu0 %v1722
  %2358 = vmatpush2.bf16.msra.mxu0 %v1721
  %2359 = vmatprep.subr.bf16.mxu0 %v1719
  %2360 = vmatpush2.bf16.msra.mxu0 %v1718
  %2361 = vmatprep.subr.bf16.mxu0 %v1716
  %2362 = vmatpush2.bf16.msra.mxu0 %v1715
  %2363 = vmatprep.subr.bf16.mxu0 %v1713
  %2364 = vmatpush2.bf16.msra.mxu0 %v1712
  %2365 = vmatprep.subr.bf16.mxu0 %v1710
  %2366 = vmatpush2.bf16.msra.mxu0 %v1709
  %2367 = vmatprep.subr.bf16.mxu0 %v1707
  %2368 = vmatpush2.bf16.msra.mxu0 %v1706
  %2369 = vmatprep.mubr.bf16.mxu0 %v549
  %2370 = vmatmul.mubr.bf16.gmra.mxu0 %v548
  %v2371 = vpop.f32.mrf.mxu0
  %v2372 = vadd.f32 %v473, %v2371
  %v2373 = vpop.f32.mrf.mxu0
  %v2374 = vadd.f32 %v477, %v2373
  %v2375 = vpop.f32.mrf.mxu0
  %v2376 = vadd.f32 %v473, %v2375
  %v2377 = vpop.f32.mrf.mxu0
  %v2378 = vadd.f32 %v477, %v2377
  %2379 = vmatprep.mubr.bf16.mxu0 %v563
  %2380 = vmatmul.mubr.bf16.gmra.mxu0 %v562
  %v2381 = vpop.f32.mrf.mxu0
  %v2382 = vadd.f32 %v473, %v2381
  %v2383 = vpop.f32.mrf.mxu0
  %v2384 = vadd.f32 %v477, %v2383
  %v2385 = vpop.f32.mrf.mxu0
  %v2386 = vpop.f32.mrf.mxu0
  %2387 = vdwg.mxu0
  %2388 = vmatprep.subr.bf16.mxu0 %v1752
  %2389 = vmatpush1.bf16.msra.mxu0 %v1751
  %2390 = vmatprep.subr.bf16.mxu0 %v1749
  %2391 = vmatpush1.bf16.msra.mxu0 %v1748
  %2392 = vmatprep.subr.bf16.mxu0 %v1746
  %2393 = vmatpush1.bf16.msra.mxu0 %v1745
  %2394 = vmatprep.subr.bf16.mxu0 %v1743
  %2395 = vmatpush1.bf16.msra.mxu0 %v1742
  %2396 = vmatprep.subr.bf16.mxu0 %v1740
  %2397 = vmatpush1.bf16.msra.mxu0 %v1739
  %2398 = vmatprep.subr.bf16.mxu0 %v1737
  %2399 = vmatpush1.bf16.msra.mxu0 %v1736
  %2400 = vmatprep.subr.bf16.mxu0 %v1734
  %2401 = vmatpush1.bf16.msra.mxu0 %v1733
  %2402 = vmatprep.subr.bf16.mxu0 %v1731
  %2403 = vmatpush1.bf16.msra.mxu0 %v1730
  %2404 = vmatprep.subr.bf16.mxu0 %v1776
  %2405 = vmatpush2.bf16.msra.mxu0 %v1775
  %2406 = vmatprep.subr.bf16.mxu0 %v1773
  %2407 = vmatpush2.bf16.msra.mxu0 %v1772
  %2408 = vmatprep.subr.bf16.mxu0 %v1770
  %2409 = vmatpush2.bf16.msra.mxu0 %v1769
  %2410 = vmatprep.subr.bf16.mxu0 %v1767
  %2411 = vmatpush2.bf16.msra.mxu0 %v1766
  %2412 = vmatprep.subr.bf16.mxu0 %v1764
  %2413 = vmatpush2.bf16.msra.mxu0 %v1763
  %2414 = vmatprep.subr.bf16.mxu0 %v1761
  %2415 = vmatpush2.bf16.msra.mxu0 %v1760
  %2416 = vmatprep.subr.bf16.mxu0 %v1758
  %2417 = vmatpush2.bf16.msra.mxu0 %v1757
  %2418 = vmatprep.subr.bf16.mxu0 %v1755
  %2419 = vmatpush2.bf16.msra.mxu0 %v1754
  %2420 = vmatprep.mubr.bf16.mxu0 %v551
  %2421 = vmatmul.mubr.bf16.gmra.mxu0 %v550
  %v2422 = vpop.f32.mrf.mxu0
  %v2423 = vadd.f32 %v2372, %v2422
  %v2424 = vpop.f32.mrf.mxu0
  %v2425 = vadd.f32 %v2374, %v2424
  %v2426 = vpop.f32.mrf.mxu0
  %v2427 = vadd.f32 %v2376, %v2426
  %v2428 = vpop.f32.mrf.mxu0
  %v2429 = vadd.f32 %v2378, %v2428
  %2430 = vmatprep.mubr.bf16.mxu0 %v565
  %2431 = vmatmul.mubr.bf16.gmra.mxu0 %v564
  %v2432 = vpop.f32.mrf.mxu0
  %v2433 = vadd.f32 %v2382, %v2432
  %v2434 = vpop.f32.mrf.mxu0
  %v2435 = vadd.f32 %v2384, %v2434
  %v2436 = vpop.f32.mrf.mxu0
  %v2437 = vpop.f32.mrf.mxu0
  %2438 = vdwg.mxu0
  %2439 = vmatprep.subr.bf16.mxu0 %v1800
  %2440 = vmatpush1.bf16.msra.mxu0 %v1799
  %2441 = vmatprep.subr.bf16.mxu0 %v1797
  %2442 = vmatpush1.bf16.msra.mxu0 %v1796
  %2443 = vmatprep.subr.bf16.mxu0 %v1794
  %2444 = vmatpush1.bf16.msra.mxu0 %v1793
  %2445 = vmatprep.subr.bf16.mxu0 %v1791
  %2446 = vmatpush1.bf16.msra.mxu0 %v1790
  %2447 = vmatprep.subr.bf16.mxu0 %v1788
  %2448 = vmatpush1.bf16.msra.mxu0 %v1787
  %2449 = vmatprep.subr.bf16.mxu0 %v1785
  %2450 = vmatpush1.bf16.msra.mxu0 %v1784
  %2451 = vmatprep.subr.bf16.mxu0 %v1782
  %2452 = vmatpush1.bf16.msra.mxu0 %v1781
  %2453 = vmatprep.subr.bf16.mxu0 %v1779
  %2454 = vmatpush1.bf16.msra.mxu0 %v1778
  %2455 = vmatprep.subr.bf16.mxu0 %v1824
  %2456 = vmatpush2.bf16.msra.mxu0 %v1823
  %2457 = vmatprep.subr.bf16.mxu0 %v1821
  %2458 = vmatpush2.bf16.msra.mxu0 %v1820
  %2459 = vmatprep.subr.bf16.mxu0 %v1818
  %2460 = vmatpush2.bf16.msra.mxu0 %v1817
  %2461 = vmatprep.subr.bf16.mxu0 %v1815
  %2462 = vmatpush2.bf16.msra.mxu0 %v1814
  %2463 = vmatprep.subr.bf16.mxu0 %v1812
  %2464 = vmatpush2.bf16.msra.mxu0 %v1811
  %2465 = vmatprep.subr.bf16.mxu0 %v1809
  %2466 = vmatpush2.bf16.msra.mxu0 %v1808
  %2467 = vmatprep.subr.bf16.mxu0 %v1806
  %2468 = vmatpush2.bf16.msra.mxu0 %v1805
  %2469 = vmatprep.subr.bf16.mxu0 %v1803
  %2470 = vmatpush2.bf16.msra.mxu0 %v1802
  %2471 = vmatprep.mubr.bf16.mxu0 %v553
  %2472 = vmatmul.mubr.bf16.gmra.mxu0 %v552
  %v2473 = vpop.f32.mrf.mxu0
  %v2474 = vadd.f32 %v2423, %v2473
  %v2475 = vpop.f32.mrf.mxu0
  %v2476 = vadd.f32 %v2425, %v2475
  %v2477 = vpop.f32.mrf.mxu0
  %v2478 = vadd.f32 %v2427, %v2477
  %v2479 = vpop.f32.mrf.mxu0
  %v2480 = vadd.f32 %v2429, %v2479
  %2481 = vmatprep.mubr.bf16.mxu0 %v567
  %2482 = vmatmul.mubr.bf16.gmra.mxu0 %v566
  %v2483 = vpop.f32.mrf.mxu0
  %v2484 = vadd.f32 %v2433, %v2483
  %v2485 = vpop.f32.mrf.mxu0
  %v2486 = vadd.f32 %v2435, %v2485
  %v2487 = vpop.f32.mrf.mxu0
  %v2488 = vpop.f32.mrf.mxu0
  %2489 = vdwg.mxu0
  %2490 = vmatprep.subr.bf16.mxu0 %v1848
  %2491 = vmatpush1.bf16.msra.mxu0 %v1847
  %2492 = vmatprep.subr.bf16.mxu0 %v1845
  %2493 = vmatpush1.bf16.msra.mxu0 %v1844
  %2494 = vmatprep.subr.bf16.mxu0 %v1842
  %2495 = vmatpush1.bf16.msra.mxu0 %v1841
  %2496 = vmatprep.subr.bf16.mxu0 %v1839
  %2497 = vmatpush1.bf16.msra.mxu0 %v1838
  %2498 = vmatprep.subr.bf16.mxu0 %v1836
  %2499 = vmatpush1.bf16.msra.mxu0 %v1835
  %2500 = vmatprep.subr.bf16.mxu0 %v1833
  %2501 = vmatpush1.bf16.msra.mxu0 %v1832
  %2502 = vmatprep.subr.bf16.mxu0 %v1830
  %2503 = vmatpush1.bf16.msra.mxu0 %v1829
  %2504 = vmatprep.subr.bf16.mxu0 %v1827
  %2505 = vmatpush1.bf16.msra.mxu0 %v1826
  %2506 = vmatprep.subr.bf16.mxu0 %v1872
  %2507 = vmatpush2.bf16.msra.mxu0 %v1871
  %2508 = vmatprep.subr.bf16.mxu0 %v1869
  %2509 = vmatpush2.bf16.msra.mxu0 %v1868
  %2510 = vmatprep.subr.bf16.mxu0 %v1866
  %2511 = vmatpush2.bf16.msra.mxu0 %v1865
  %2512 = vmatprep.subr.bf16.mxu0 %v1863
  %2513 = vmatpush2.bf16.msra.mxu0 %v1862
  %2514 = vmatprep.subr.bf16.mxu0 %v1860
  %2515 = vmatpush2.bf16.msra.mxu0 %v1859
  %2516 = vmatprep.subr.bf16.mxu0 %v1857
  %2517 = vmatpush2.bf16.msra.mxu0 %v1856
  %2518 = vmatprep.subr.bf16.mxu0 %v1854
  %2519 = vmatpush2.bf16.msra.mxu0 %v1853
  %2520 = vmatprep.subr.bf16.mxu0 %v1851
  %2521 = vmatpush2.bf16.msra.mxu0 %v1850
  %2522 = vmatprep.mubr.bf16.mxu0 %v555
  %2523 = vmatmul.mubr.bf16.gmra.mxu0 %v554
  %v2524 = vpop.f32.mrf.mxu0
  %v2525 = vadd.f32 %v2474, %v2524
  %v2526 = vpop.f32.mrf.mxu0
  %v2527 = vadd.f32 %v2476, %v2526
  %v2528 = vpop.f32.mrf.mxu0
  %v2529 = vadd.f32 %v2478, %v2528
  %v2530 = vpop.f32.mrf.mxu0
  %v2531 = vadd.f32 %v2480, %v2530
  %2532 = vmatprep.mubr.bf16.mxu0 %v569
  %2533 = vmatmul.mubr.bf16.gmra.mxu0 %v568
  %v2534 = vpop.f32.mrf.mxu0
  %v2535 = vadd.f32 %v2484, %v2534
  %v2536 = vpop.f32.mrf.mxu0
  %v2537 = vadd.f32 %v2486, %v2536
  %v2538 = vpop.f32.mrf.mxu0
  %v2539 = vpop.f32.mrf.mxu0
  %2540 = vdwg.mxu0
  %2541 = vmatprep.subr.bf16.mxu0 %v1896
  %2542 = vmatpush1.bf16.msra.mxu0 %v1895
  %2543 = vmatprep.subr.bf16.mxu0 %v1893
  %2544 = vmatpush1.bf16.msra.mxu0 %v1892
  %2545 = vmatprep.subr.bf16.mxu0 %v1890
  %2546 = vmatpush1.bf16.msra.mxu0 %v1889
  %2547 = vmatprep.subr.bf16.mxu0 %v1887
  %2548 = vmatpush1.bf16.msra.mxu0 %v1886
  %2549 = vmatprep.subr.bf16.mxu0 %v1884
  %2550 = vmatpush1.bf16.msra.mxu0 %v1883
  %2551 = vmatprep.subr.bf16.mxu0 %v1881
  %2552 = vmatpush1.bf16.msra.mxu0 %v1880
  %2553 = vmatprep.subr.bf16.mxu0 %v1878
  %2554 = vmatpush1.bf16.msra.mxu0 %v1877
  %2555 = vmatprep.subr.bf16.mxu0 %v1875
  %2556 = vmatpush1.bf16.msra.mxu0 %v1874
  %2557 = vmatprep.subr.bf16.mxu0 %v1920
  %2558 = vmatpush2.bf16.msra.mxu0 %v1919
  %2559 = vmatprep.subr.bf16.mxu0 %v1917
  %2560 = vmatpush2.bf16.msra.mxu0 %v1916
  %2561 = vmatprep.subr.bf16.mxu0 %v1914
  %2562 = vmatpush2.bf16.msra.mxu0 %v1913
  %2563 = vmatprep.subr.bf16.mxu0 %v1911
  %2564 = vmatpush2.bf16.msra.mxu0 %v1910
  %2565 = vmatprep.subr.bf16.mxu0 %v1908
  %2566 = vmatpush2.bf16.msra.mxu0 %v1907
  %2567 = vmatprep.subr.bf16.mxu0 %v1905
  %2568 = vmatpush2.bf16.msra.mxu0 %v1904
  %2569 = vmatprep.subr.bf16.mxu0 %v1902
  %2570 = vmatpush2.bf16.msra.mxu0 %v1901
  %2571 = vmatprep.subr.bf16.mxu0 %v1899
  %2572 = vmatpush2.bf16.msra.mxu0 %v1898
  %2573 = vmatprep.mubr.bf16.mxu0 %v557
  %2574 = vmatmul.mubr.bf16.gmra.mxu0 %v556
  %v2575 = vpop.f32.mrf.mxu0
  %v2576 = vadd.f32 %v2525, %v2575
  %v2577 = vpop.f32.mrf.mxu0
  %v2578 = vadd.f32 %v2527, %v2577
  %v2579 = vpop.f32.mrf.mxu0
  %v2580 = vadd.f32 %v2529, %v2579
  %v2581 = vpop.f32.mrf.mxu0
  %v2582 = vadd.f32 %v2531, %v2581
  %2583 = vmatprep.mubr.bf16.mxu0 %v571
  %2584 = vmatmul.mubr.bf16.gmra.mxu0 %v570
  %v2585 = vpop.f32.mrf.mxu0
  %v2586 = vadd.f32 %v2535, %v2585
  %v2587 = vpop.f32.mrf.mxu0
  %v2588 = vadd.f32 %v2537, %v2587
  %v2589 = vpop.f32.mrf.mxu0
  %v2590 = vpop.f32.mrf.mxu0
  %2591 = vdwg.mxu0
  %2592 = vmatprep.subr.bf16.mxu0 %v1944
  %2593 = vmatpush1.bf16.msra.mxu0 %v1943
  %2594 = vmatprep.subr.bf16.mxu0 %v1941
  %2595 = vmatpush1.bf16.msra.mxu0 %v1940
  %2596 = vmatprep.subr.bf16.mxu0 %v1938
  %2597 = vmatpush1.bf16.msra.mxu0 %v1937
  %2598 = vmatprep.subr.bf16.mxu0 %v1935
  %2599 = vmatpush1.bf16.msra.mxu0 %v1934
  %2600 = vmatprep.subr.bf16.mxu0 %v1932
  %2601 = vmatpush1.bf16.msra.mxu0 %v1931
  %2602 = vmatprep.subr.bf16.mxu0 %v1929
  %2603 = vmatpush1.bf16.msra.mxu0 %v1928
  %2604 = vmatprep.subr.bf16.mxu0 %v1926
  %2605 = vmatpush1.bf16.msra.mxu0 %v1925
  %2606 = vmatprep.subr.bf16.mxu0 %v1923
  %2607 = vmatpush1.bf16.msra.mxu0 %v1922
  %2608 = vmatprep.subr.bf16.mxu0 %v1968
  %2609 = vmatpush2.bf16.msra.mxu0 %v1967
  %2610 = vmatprep.subr.bf16.mxu0 %v1965
  %2611 = vmatpush2.bf16.msra.mxu0 %v1964
  %2612 = vmatprep.subr.bf16.mxu0 %v1962
  %2613 = vmatpush2.bf16.msra.mxu0 %v1961
  %2614 = vmatprep.subr.bf16.mxu0 %v1959
  %2615 = vmatpush2.bf16.msra.mxu0 %v1958
  %2616 = vmatprep.subr.bf16.mxu0 %v1956
  %2617 = vmatpush2.bf16.msra.mxu0 %v1955
  %2618 = vmatprep.subr.bf16.mxu0 %v1953
  %2619 = vmatpush2.bf16.msra.mxu0 %v1952
  %2620 = vmatprep.subr.bf16.mxu0 %v1950
  %2621 = vmatpush2.bf16.msra.mxu0 %v1949
  %2622 = vmatprep.subr.bf16.mxu0 %v1947
  %2623 = vmatpush2.bf16.msra.mxu0 %v1946
  %2624 = vmatprep.mubr.bf16.mxu0 %v559
  %2625 = vmatmul.mubr.bf16.gmra.mxu0 %v558
  %v2626 = vpop.f32.mrf.mxu0
  %v2627 = vadd.f32 %v2576, %v2626
  %v2628 = vpop.f32.mrf.mxu0
  %v2629 = vadd.f32 %v2578, %v2628
  %v2630 = vpop.f32.mrf.mxu0
  %v2631 = vadd.f32 %v2580, %v2630
  %v2632 = vpop.f32.mrf.mxu0
  %v2633 = vadd.f32 %v2582, %v2632
  %2634 = vmatprep.mubr.bf16.mxu0 %v573
  %2635 = vmatmul.mubr.bf16.gmra.mxu0 %v572
  %v2636 = vpop.f32.mrf.mxu0
  %v2637 = vadd.f32 %v2586, %v2636
  %v2638 = vpop.f32.mrf.mxu0
  %v2639 = vadd.f32 %v2588, %v2638
  %v2640 = vpop.f32.mrf.mxu0
  %v2641 = vpop.f32.mrf.mxu0
  %2642 = vdwg.mxu0
  %2643 = vmatprep.subr.bf16.mxu0 %v1992
  %2644 = vmatpush1.bf16.msra.mxu0 %v1991
  %2645 = vmatprep.subr.bf16.mxu0 %v1989
  %2646 = vmatpush1.bf16.msra.mxu0 %v1988
  %2647 = vmatprep.subr.bf16.mxu0 %v1986
  %2648 = vmatpush1.bf16.msra.mxu0 %v1985
  %2649 = vmatprep.subr.bf16.mxu0 %v1983
  %2650 = vmatpush1.bf16.msra.mxu0 %v1982
  %2651 = vmatprep.subr.bf16.mxu0 %v1980
  %2652 = vmatpush1.bf16.msra.mxu0 %v1979
  %2653 = vmatprep.subr.bf16.mxu0 %v1977
  %2654 = vmatpush1.bf16.msra.mxu0 %v1976
  %2655 = vmatprep.subr.bf16.mxu0 %v1974
  %2656 = vmatpush1.bf16.msra.mxu0 %v1973
  %2657 = vmatprep.subr.bf16.mxu0 %v1971
  %2658 = vmatpush1.bf16.msra.mxu0 %v1970
  %2659 = vmatprep.subr.bf16.mxu0 0
  %2660 = vmatpush2.bf16.msra.mxu0 0
  %2661 = vmatprep.subr.bf16.mxu0 0
  %2662 = vmatpush2.bf16.msra.mxu0 0
  %2663 = vmatprep.subr.bf16.mxu0 0
  %2664 = vmatpush2.bf16.msra.mxu0 0
  %2665 = vmatprep.subr.bf16.mxu0 0
  %2666 = vmatpush2.bf16.msra.mxu0 0
  %2667 = vmatprep.subr.bf16.mxu0 %v2004
  %2668 = vmatpush2.bf16.msra.mxu0 %v2003
  %2669 = vmatprep.subr.bf16.mxu0 %v2001
  %2670 = vmatpush2.bf16.msra.mxu0 %v2000
  %2671 = vmatprep.subr.bf16.mxu0 %v1998
  %2672 = vmatpush2.bf16.msra.mxu0 %v1997
  %2673 = vmatprep.subr.bf16.mxu0 %v1995
  %2674 = vmatpush2.bf16.msra.mxu0 %v1994
  %2675 = vmatprep.mubr.bf16.mxu0 %v2332
  %2676 = vmatmul.mubr.bf16.gmra.mxu0 %v560
  %v2677 = vpop.f32.mrf.mxu0
  %v2678 = vadd.f32 %v2627, %v2677
  %v2679 = vpop.f32.mrf.mxu0
  %v2680 = vadd.f32 %v2629, %v2679
  %v2681 = vpop.f32.mrf.mxu0
  %v2682 = vadd.f32 %v2631, %v2681
  %v2683 = vpop.f32.mrf.mxu0
  %v2684 = vadd.f32 %v2633, %v2683
  %2685 = vmatprep.mubr.bf16.mxu0 %v2335
  %2686 = vmatmul.mubr.bf16.gmra.mxu0 %v574
  %v2687 = vpop.f32.mrf.mxu0
  %v2688 = vadd.f32 %v2637, %v2687
  %v2689 = vpop.f32.mrf.mxu0
  %v2690 = vadd.f32 %v2639, %v2689
  %v2691 = vpop.f32.mrf.mxu0
  %v2692 = vpop.f32.mrf.mxu0
  %2693 = vdwg.mxu0
  %2694 = vmatprep.subr.bf16.mxu0 0
  %2695 = vmatpush1.bf16.msra.mxu0 %v1705
  %2696 = vmatprep.subr.bf16.mxu0 0
  %2697 = vmatpush1.bf16.msra.mxu0 %v1702
  %2698 = vmatprep.subr.bf16.mxu0 0
  %2699 = vmatpush1.bf16.msra.mxu0 %v1699
  %2700 = vmatprep.subr.bf16.mxu0 0
  %2701 = vmatpush1.bf16.msra.mxu0 %v1696
  %2702 = vmatprep.subr.bf16.mxu0 0
  %2703 = vmatpush1.bf16.msra.mxu0 %v1693
  %2704 = vmatprep.subr.bf16.mxu0 0
  %2705 = vmatpush1.bf16.msra.mxu0 %v1690
  %2706 = vmatprep.subr.bf16.mxu0 0
  %2707 = vmatpush1.bf16.msra.mxu0 %v1687
  %2708 = vmatprep.subr.bf16.mxu0 0
  %2709 = vmatpush1.bf16.msra.mxu0 %v1684
  %2710 = vmatprep.subr.bf16.mxu0 0
  %2711 = vmatpush2.bf16.msra.mxu0 %v1729
  %2712 = vmatprep.subr.bf16.mxu0 0
  %2713 = vmatpush2.bf16.msra.mxu0 %v1726
  %2714 = vmatprep.subr.bf16.mxu0 0
  %2715 = vmatpush2.bf16.msra.mxu0 %v1723
  %2716 = vmatprep.subr.bf16.mxu0 0
  %2717 = vmatpush2.bf16.msra.mxu0 %v1720
  %2718 = vmatprep.subr.bf16.mxu0 0
  %2719 = vmatpush2.bf16.msra.mxu0 %v1717
  %2720 = vmatprep.subr.bf16.mxu0 0
  %2721 = vmatpush2.bf16.msra.mxu0 %v1714
  %2722 = vmatprep.subr.bf16.mxu0 0
  %2723 = vmatpush2.bf16.msra.mxu0 %v1711
  %2724 = vmatprep.subr.bf16.mxu0 0
  %2725 = vmatpush2.bf16.msra.mxu0 %v1708
  %2726 = vmatprep.mubr.bf16.mxu0 %v549
  %2727 = vmatmul.mubr.bf16.gmra.mxu0 %v548
  %v2728 = vpop.f32.mrf.mxu0
  %v2729 = vadd.f32 %v481, %v2728
  %v2730 = vpop.f32.mrf.mxu0
  %v2731 = vpop.f32.mrf.mxu0
  %v2732 = vadd.f32 %v481, %v2731
  %v2733 = vpop.f32.mrf.mxu0
  %2734 = vmatprep.mubr.bf16.mxu0 %v563
  %2735 = vmatmul.mubr.bf16.gmra.mxu0 %v562
  %v2736 = vpop.f32.mrf.mxu0
  %v2737 = vadd.f32 %v481, %v2736
  %v2738 = vpop.f32.mrf.mxu0
  %v2739 = vpop.f32.mrf.mxu0
  %v2740 = vpop.f32.mrf.mxu0
  %2741 = vdwg.mxu0
  %2742 = vmatprep.subr.bf16.mxu0 0
  %2743 = vmatpush1.bf16.msra.mxu0 %v1753
  %2744 = vmatprep.subr.bf16.mxu0 0
  %2745 = vmatpush1.bf16.msra.mxu0 %v1750
  %2746 = vmatprep.subr.bf16.mxu0 0
  %2747 = vmatpush1.bf16.msra.mxu0 %v1747
  %2748 = vmatprep.subr.bf16.mxu0 0
  %2749 = vmatpush1.bf16.msra.mxu0 %v1744
  %2750 = vmatprep.subr.bf16.mxu0 0
  %2751 = vmatpush1.bf16.msra.mxu0 %v1741
  %2752 = vmatprep.subr.bf16.mxu0 0
  %2753 = vmatpush1.bf16.msra.mxu0 %v1738
  %2754 = vmatprep.subr.bf16.mxu0 0
  %2755 = vmatpush1.bf16.msra.mxu0 %v1735
  %2756 = vmatprep.subr.bf16.mxu0 0
  %2757 = vmatpush1.bf16.msra.mxu0 %v1732
  %2758 = vmatprep.subr.bf16.mxu0 0
  %2759 = vmatpush2.bf16.msra.mxu0 %v1777
  %2760 = vmatprep.subr.bf16.mxu0 0
  %2761 = vmatpush2.bf16.msra.mxu0 %v1774
  %2762 = vmatprep.subr.bf16.mxu0 0
  %2763 = vmatpush2.bf16.msra.mxu0 %v1771
  %2764 = vmatprep.subr.bf16.mxu0 0
  %2765 = vmatpush2.bf16.msra.mxu0 %v1768
  %2766 = vmatprep.subr.bf16.mxu0 0
  %2767 = vmatpush2.bf16.msra.mxu0 %v1765
  %2768 = vmatprep.subr.bf16.mxu0 0
  %2769 = vmatpush2.bf16.msra.mxu0 %v1762
  %2770 = vmatprep.subr.bf16.mxu0 0
  %2771 = vmatpush2.bf16.msra.mxu0 %v1759
  %2772 = vmatprep.subr.bf16.mxu0 0
  %2773 = vmatpush2.bf16.msra.mxu0 %v1756
  %2774 = vmatprep.mubr.bf16.mxu0 %v551
  %2775 = vmatmul.mubr.bf16.gmra.mxu0 %v550
  %v2776 = vpop.f32.mrf.mxu0
  %v2777 = vadd.f32 %v2729, %v2776
  %v2778 = vpop.f32.mrf.mxu0
  %v2779 = vpop.f32.mrf.mxu0
  %v2780 = vadd.f32 %v2732, %v2779
  %v2781 = vpop.f32.mrf.mxu0
  %2782 = vmatprep.mubr.bf16.mxu0 %v565
  %2783 = vmatmul.mubr.bf16.gmra.mxu0 %v564
  %v2784 = vpop.f32.mrf.mxu0
  %v2785 = vadd.f32 %v2737, %v2784
  %v2786 = vpop.f32.mrf.mxu0
  %v2787 = vpop.f32.mrf.mxu0
  %v2788 = vpop.f32.mrf.mxu0
  %2789 = vdwg.mxu0
  %2790 = vmatprep.subr.bf16.mxu0 0
  %2791 = vmatpush1.bf16.msra.mxu0 %v1801
  %2792 = vmatprep.subr.bf16.mxu0 0
  %2793 = vmatpush1.bf16.msra.mxu0 %v1798
  %2794 = vmatprep.subr.bf16.mxu0 0
  %2795 = vmatpush1.bf16.msra.mxu0 %v1795
  %2796 = vmatprep.subr.bf16.mxu0 0
  %2797 = vmatpush1.bf16.msra.mxu0 %v1792
  %2798 = vmatprep.subr.bf16.mxu0 0
  %2799 = vmatpush1.bf16.msra.mxu0 %v1789
  %2800 = vmatprep.subr.bf16.mxu0 0
  %2801 = vmatpush1.bf16.msra.mxu0 %v1786
  %2802 = vmatprep.subr.bf16.mxu0 0
  %2803 = vmatpush1.bf16.msra.mxu0 %v1783
  %2804 = vmatprep.subr.bf16.mxu0 0
  %2805 = vmatpush1.bf16.msra.mxu0 %v1780
  %2806 = vmatprep.subr.bf16.mxu0 0
  %2807 = vmatpush2.bf16.msra.mxu0 %v1825
  %2808 = vmatprep.subr.bf16.mxu0 0
  %2809 = vmatpush2.bf16.msra.mxu0 %v1822
  %2810 = vmatprep.subr.bf16.mxu0 0
  %2811 = vmatpush2.bf16.msra.mxu0 %v1819
  %2812 = vmatprep.subr.bf16.mxu0 0
  %2813 = vmatpush2.bf16.msra.mxu0 %v1816
  %2814 = vmatprep.subr.bf16.mxu0 0
  %2815 = vmatpush2.bf16.msra.mxu0 %v1813
  %2816 = vmatprep.subr.bf16.mxu0 0
  %2817 = vmatpush2.bf16.msra.mxu0 %v1810
  %2818 = vmatprep.subr.bf16.mxu0 0
  %2819 = vmatpush2.bf16.msra.mxu0 %v1807
  %2820 = vmatprep.subr.bf16.mxu0 0
  %2821 = vmatpush2.bf16.msra.mxu0 %v1804
  %2822 = vmatprep.mubr.bf16.mxu0 %v553
  %2823 = vmatmul.mubr.bf16.gmra.mxu0 %v552
  %v2824 = vpop.f32.mrf.mxu0
  %v2825 = vadd.f32 %v2777, %v2824
  %v2826 = vpop.f32.mrf.mxu0
  %v2827 = vpop.f32.mrf.mxu0
  %v2828 = vadd.f32 %v2780, %v2827
  %v2829 = vpop.f32.mrf.mxu0
  %2830 = vmatprep.mubr.bf16.mxu0 %v567
  %2831 = vmatmul.mubr.bf16.gmra.mxu0 %v566
  %v2832 = vpop.f32.mrf.mxu0
  %v2833 = vadd.f32 %v2785, %v2832
  %v2834 = vpop.f32.mrf.mxu0
  %v2835 = vpop.f32.mrf.mxu0
  %v2836 = vpop.f32.mrf.mxu0
  %2837 = vdwg.mxu0
  %2838 = vmatprep.subr.bf16.mxu0 0
  %2839 = vmatpush1.bf16.msra.mxu0 %v1849
  %2840 = vmatprep.subr.bf16.mxu0 0
  %2841 = vmatpush1.bf16.msra.mxu0 %v1846
  %2842 = vmatprep.subr.bf16.mxu0 0
  %2843 = vmatpush1.bf16.msra.mxu0 %v1843
  %2844 = vmatprep.subr.bf16.mxu0 0
  %2845 = vmatpush1.bf16.msra.mxu0 %v1840
  %2846 = vmatprep.subr.bf16.mxu0 0
  %2847 = vmatpush1.bf16.msra.mxu0 %v1837
  %2848 = vmatprep.subr.bf16.mxu0 0
  %2849 = vmatpush1.bf16.msra.mxu0 %v1834
  %2850 = vmatprep.subr.bf16.mxu0 0
  %2851 = vmatpush1.bf16.msra.mxu0 %v1831
  %2852 = vmatprep.subr.bf16.mxu0 0
  %2853 = vmatpush1.bf16.msra.mxu0 %v1828
  %2854 = vmatprep.subr.bf16.mxu0 0
  %2855 = vmatpush2.bf16.msra.mxu0 %v1873
  %2856 = vmatprep.subr.bf16.mxu0 0
  %2857 = vmatpush2.bf16.msra.mxu0 %v1870
  %2858 = vmatprep.subr.bf16.mxu0 0
  %2859 = vmatpush2.bf16.msra.mxu0 %v1867
  %2860 = vmatprep.subr.bf16.mxu0 0
  %2861 = vmatpush2.bf16.msra.mxu0 %v1864
  %2862 = vmatprep.subr.bf16.mxu0 0
  %2863 = vmatpush2.bf16.msra.mxu0 %v1861
  %2864 = vmatprep.subr.bf16.mxu0 0
  %2865 = vmatpush2.bf16.msra.mxu0 %v1858
  %2866 = vmatprep.subr.bf16.mxu0 0
  %2867 = vmatpush2.bf16.msra.mxu0 %v1855
  %2868 = vmatprep.subr.bf16.mxu0 0
  %2869 = vmatpush2.bf16.msra.mxu0 %v1852
  %2870 = vmatprep.mubr.bf16.mxu0 %v555
  %2871 = vmatmul.mubr.bf16.gmra.mxu0 %v554
  %v2872 = vpop.f32.mrf.mxu0
  %v2873 = vadd.f32 %v2825, %v2872
  %v2874 = vpop.f32.mrf.mxu0
  %v2875 = vpop.f32.mrf.mxu0
  %v2876 = vadd.f32 %v2828, %v2875
  %v2877 = vpop.f32.mrf.mxu0
  %2878 = vmatprep.mubr.bf16.mxu0 %v569
  %2879 = vmatmul.mubr.bf16.gmra.mxu0 %v568
  %v2880 = vpop.f32.mrf.mxu0
  %v2881 = vadd.f32 %v2833, %v2880
  %v2882 = vpop.f32.mrf.mxu0
  %v2883 = vpop.f32.mrf.mxu0
  %v2884 = vpop.f32.mrf.mxu0
  %2885 = vdwg.mxu0
  %2886 = vmatprep.subr.bf16.mxu0 0
  %2887 = vmatpush1.bf16.msra.mxu0 %v1897
  %2888 = vmatprep.subr.bf16.mxu0 0
  %2889 = vmatpush1.bf16.msra.mxu0 %v1894
  %2890 = vmatprep.subr.bf16.mxu0 0
  %2891 = vmatpush1.bf16.msra.mxu0 %v1891
  %2892 = vmatprep.subr.bf16.mxu0 0
  %2893 = vmatpush1.bf16.msra.mxu0 %v1888
  %2894 = vmatprep.subr.bf16.mxu0 0
  %2895 = vmatpush1.bf16.msra.mxu0 %v1885
  %2896 = vmatprep.subr.bf16.mxu0 0
  %2897 = vmatpush1.bf16.msra.mxu0 %v1882
  %2898 = vmatprep.subr.bf16.mxu0 0
  %2899 = vmatpush1.bf16.msra.mxu0 %v1879
  %2900 = vmatprep.subr.bf16.mxu0 0
  %2901 = vmatpush1.bf16.msra.mxu0 %v1876
  %2902 = vmatprep.subr.bf16.mxu0 0
  %2903 = vmatpush2.bf16.msra.mxu0 %v1921
  %2904 = vmatprep.subr.bf16.mxu0 0
  %2905 = vmatpush2.bf16.msra.mxu0 %v1918
  %2906 = vmatprep.subr.bf16.mxu0 0
  %2907 = vmatpush2.bf16.msra.mxu0 %v1915
  %2908 = vmatprep.subr.bf16.mxu0 0
  %2909 = vmatpush2.bf16.msra.mxu0 %v1912
  %2910 = vmatprep.subr.bf16.mxu0 0
  %2911 = vmatpush2.bf16.msra.mxu0 %v1909
  %2912 = vmatprep.subr.bf16.mxu0 0
  %2913 = vmatpush2.bf16.msra.mxu0 %v1906
  %2914 = vmatprep.subr.bf16.mxu0 0
  %2915 = vmatpush2.bf16.msra.mxu0 %v1903
  %2916 = vmatprep.subr.bf16.mxu0 0
  %2917 = vmatpush2.bf16.msra.mxu0 %v1900
  %2918 = vmatprep.mubr.bf16.mxu0 %v557
  %2919 = vmatmul.mubr.bf16.gmra.mxu0 %v556
  %v2920 = vpop.f32.mrf.mxu0
  %v2921 = vadd.f32 %v2873, %v2920
  %v2922 = vpop.f32.mrf.mxu0
  %v2923 = vpop.f32.mrf.mxu0
  %v2924 = vadd.f32 %v2876, %v2923
  %v2925 = vpop.f32.mrf.mxu0
  %2926 = vmatprep.mubr.bf16.mxu0 %v571
  %2927 = vmatmul.mubr.bf16.gmra.mxu0 %v570
  %v2928 = vpop.f32.mrf.mxu0
  %v2929 = vadd.f32 %v2881, %v2928
  %v2930 = vpop.f32.mrf.mxu0
  %v2931 = vpop.f32.mrf.mxu0
  %v2932 = vpop.f32.mrf.mxu0
  %2933 = vdwg.mxu0
  %2934 = vmatprep.subr.bf16.mxu0 0
  %2935 = vmatpush1.bf16.msra.mxu0 %v1945
  %2936 = vmatprep.subr.bf16.mxu0 0
  %2937 = vmatpush1.bf16.msra.mxu0 %v1942
  %2938 = vmatprep.subr.bf16.mxu0 0
  %2939 = vmatpush1.bf16.msra.mxu0 %v1939
  %2940 = vmatprep.subr.bf16.mxu0 0
  %2941 = vmatpush1.bf16.msra.mxu0 %v1936
  %2942 = vmatprep.subr.bf16.mxu0 0
  %2943 = vmatpush1.bf16.msra.mxu0 %v1933
  %2944 = vmatprep.subr.bf16.mxu0 0
  %2945 = vmatpush1.bf16.msra.mxu0 %v1930
  %2946 = vmatprep.subr.bf16.mxu0 0
  %2947 = vmatpush1.bf16.msra.mxu0 %v1927
  %2948 = vmatprep.subr.bf16.mxu0 0
  %2949 = vmatpush1.bf16.msra.mxu0 %v1924
  %2950 = vmatprep.subr.bf16.mxu0 0
  %2951 = vmatpush2.bf16.msra.mxu0 %v1969
  %2952 = vmatprep.subr.bf16.mxu0 0
  %2953 = vmatpush2.bf16.msra.mxu0 %v1966
  %2954 = vmatprep.subr.bf16.mxu0 0
  %2955 = vmatpush2.bf16.msra.mxu0 %v1963
  %2956 = vmatprep.subr.bf16.mxu0 0
  %2957 = vmatpush2.bf16.msra.mxu0 %v1960
  %2958 = vmatprep.subr.bf16.mxu0 0
  %2959 = vmatpush2.bf16.msra.mxu0 %v1957
  %2960 = vmatprep.subr.bf16.mxu0 0
  %2961 = vmatpush2.bf16.msra.mxu0 %v1954
  %2962 = vmatprep.subr.bf16.mxu0 0
  %2963 = vmatpush2.bf16.msra.mxu0 %v1951
  %2964 = vmatprep.subr.bf16.mxu0 0
  %2965 = vmatpush2.bf16.msra.mxu0 %v1948
  %2966 = vmatprep.mubr.bf16.mxu0 %v559
  %2967 = vmatmul.mubr.bf16.gmra.mxu0 %v558
  %v2968 = vpop.f32.mrf.mxu0
  %v2969 = vadd.f32 %v2921, %v2968
  %v2970 = vpop.f32.mrf.mxu0
  %v2971 = vpop.f32.mrf.mxu0
  %v2972 = vadd.f32 %v2924, %v2971
  %v2973 = vpop.f32.mrf.mxu0
  %2974 = vmatprep.mubr.bf16.mxu0 %v573
  %2975 = vmatmul.mubr.bf16.gmra.mxu0 %v572
  %v2976 = vpop.f32.mrf.mxu0
  %v2977 = vadd.f32 %v2929, %v2976
  %v2978 = vpop.f32.mrf.mxu0
  %v2979 = vpop.f32.mrf.mxu0
  %v2980 = vpop.f32.mrf.mxu0
  %2981 = vdwg.mxu0
  %2982 = vmatprep.subr.bf16.mxu0 0
  %2983 = vmatpush1.bf16.msra.mxu0 %v1993
  %2984 = vmatprep.subr.bf16.mxu0 0
  %2985 = vmatpush1.bf16.msra.mxu0 %v1990
  %2986 = vmatprep.subr.bf16.mxu0 0
  %2987 = vmatpush1.bf16.msra.mxu0 %v1987
  %2988 = vmatprep.subr.bf16.mxu0 0
  %2989 = vmatpush1.bf16.msra.mxu0 %v1984
  %2990 = vmatprep.subr.bf16.mxu0 0
  %2991 = vmatpush1.bf16.msra.mxu0 %v1981
  %2992 = vmatprep.subr.bf16.mxu0 0
  %2993 = vmatpush1.bf16.msra.mxu0 %v1978
  %2994 = vmatprep.subr.bf16.mxu0 0
  %2995 = vmatpush1.bf16.msra.mxu0 %v1975
  %2996 = vmatprep.subr.bf16.mxu0 0
  %2997 = vmatpush1.bf16.msra.mxu0 %v1972
  %2998 = vmatprep.subr.bf16.mxu0 0
  %2999 = vmatpush2.bf16.msra.mxu0 0
  %3000 = vmatprep.subr.bf16.mxu0 0
  %3001 = vmatpush2.bf16.msra.mxu0 0
  %3002 = vmatprep.subr.bf16.mxu0 0
  %3003 = vmatpush2.bf16.msra.mxu0 0
  %3004 = vmatprep.subr.bf16.mxu0 0
  %3005 = vmatpush2.bf16.msra.mxu0 0
  %3006 = vmatprep.subr.bf16.mxu0 0
  %3007 = vmatpush2.bf16.msra.mxu0 %v2005
  %3008 = vmatprep.subr.bf16.mxu0 0
  %3009 = vmatpush2.bf16.msra.mxu0 %v2002
  %3010 = vmatprep.subr.bf16.mxu0 0
  %3011 = vmatpush2.bf16.msra.mxu0 %v1999
  %3012 = vmatprep.subr.bf16.mxu0 0
  %3013 = vmatpush2.bf16.msra.mxu0 %v1996
  %3014 = vmatprep.mubr.bf16.mxu0 %v2332
  %3015 = vmatmul.mubr.bf16.gmra.mxu0 %v560
  %v3016 = vpop.f32.mrf.mxu0
  %v3017 = vadd.f32 %v2969, %v3016
  %v3018 = vpop.f32.mrf.mxu0
  %v3019 = vpop.f32.mrf.mxu0
  %v3020 = vadd.f32 %v2972, %v3019
  %v3021 = vpop.f32.mrf.mxu0
  %3022 = vmatprep.mubr.bf16.mxu0 %v2335
  %3023 = vmatmul.mubr.bf16.gmra.mxu0 %v574
  %v3024 = vpop.f32.mrf.mxu0
  %v3025 = vadd.f32 %v2977, %v3024
  %v3026 = vpop.f32.mrf.mxu0
  %v3027 = vpop.f32.mrf.mxu0
  %v3028 = vpop.f32.mrf.mxu0
  %3029 = vdwg.mxu0
  %v3030 = vmax.f32 %v2678, 0.0
  %v3031 = vmax.f32 %v2680, 0.0
  %v3032 = vmax.f32 %v3017, 0.0
  %v3033 = vmax.f32 %v2682, 0.0
  %v3034 = vmax.f32 %v2684, 0.0
  %v3035 = vmax.f32 %v3020, 0.0
  %v3036 = vmax.f32 %v2688, 0.0
  %v3037 = vmax.f32 %v2690, 0.0
  %v3038 = vmax.f32 %v3025, 0.0
  %v3039 = vpack.c.bf16 %v3033, %v3030
  %v3040 = vpack.c.bf16 %v3034, %v3031
  %v3041 = vpack.c.bf16 %v3035, %v3032
  %v3042 = vpack.c.bf16 %v3036, %v3036
  %v3043 = vpack.c.bf16 %v3037, %v3037
  %v3044 = vpack.c.bf16 %v3038, %v3038
  %v3051 = vunpack.c.l.b16 %v3039
  %v3052 = vunpack.c.l.b16 %v3040
  %v3053 = vunpack.c.l.b16 %v3041
  %v3054 = vunpack.c.h.b16 %v3039
  %v3055 = vunpack.c.h.b16 %v3040
  %v3056 = vunpack.c.h.b16 %v3041
  %v3057 = vunpack.c.l.b16 %v3042
  %v3058 = vunpack.c.l.b16 %v3043
  %v3059 = vunpack.c.l.b16 %v3044
  %v3060 = vpack.c.b16 %v3052, %v3051
  %v3061 = vpack.c.b16 %v3053, %v3053
  %v3062 = vpack.c.b16 %v3055, %v3054
  %v3063 = vpack.c.b16 %v3056, %v3056
  %v3064 = vpack.c.b16 %v3058, %v3057
  %v3065 = vpack.c.b16 %v3059, %v3059
  %3072 = vst [vmem:[%s3] sm:$0xff] %v3060
  %3073 = vst [vmem:[%s3 + $0x8] sm:$0xf] %v3061
  %3074 = vst [vmem:[%s3 + $0xc] sm:$0xff] %v3062
  %3075 = vst [vmem:[%s3 + $0x14] sm:$0xf] %v3063
  %3076 = vst [vmem:[%s3 + $0x18] sm:$0x11] %v3064
  %3077 = vst [vmem:[%s3 + $0x20] sm:$0x1] %v3065
  // Predicated region
  $region14: #{alexnet_forward.12} parent=0 // pred_check
    _
  $region15: #{alexnet_forward.12} parent=0 // pred_check_branch
    %3079 = sbr.rel (0) target = $region17
  $region16: #{alexnet_forward.12} parent=0 // pred_region
    _
  $region17: #{alexnet_forward.12} parent=0 // pred_fallthru
    _
  // Predicated region
  $region18: #{alexnet_forward.12} parent=0 // pred_check
    _
  $region19: #{alexnet_forward.12} parent=0 // pred_check_branch
    %3081 = sbr.rel (0) target = $region21
  $region20: #{alexnet_forward.12} parent=0 // pred_region
    _
  $region21: #{alexnet_forward.12} parent=0 // pred_fallthru
    _

// kernel: alexnet_forward.13
$region0: #{alexnet_forward.13}
  #allocation0 [shape = 'u32[]', space=smem, size = 0x4, offset = 0x4, fixed_abs, tag = 'smem constant byte address 0x4 - core index']
  #allocation1 [shape = 'u32[144,128]{1,0:T(1,128)}', space=vmem, size = 0x12000, scoped, tag = 'internal scratch']
  %s0 = inlined_call_operand.vmem [shape: bf16[18,3456], index: 0, kind: input, shape index: {}]
  %s1 = inlined_call_operand.vmem [shape: bf16[3456,256], index: 1, kind: input, shape index: {}]
  %s2 = inlined_call_operand.vmem [shape: f32[1,256], index: 2, kind: input, shape index: {}]
  %s3 = inlined_call_operand.vmem [shape: bf16[18,256], index: 3, kind: output, shape index: {}]
  %s4 = sld [smem:[#allocation0]]
  $region22: #{alexnet_forward.13} parent=0
    _
  %s6 = ssub.s32 1, %s4
  %s7 = scalar_select 0, %s6, %s4
  // Predicated region
  $region2: #{alexnet_forward.13} parent=0 // pred_check
    _
  $region3: #{alexnet_forward.13} parent=0 // pred_check_branch
    %9 = sbr.rel (0) target = $region5
  $region4: #{alexnet_forward.13} parent=0 // pred_region
    _
  $region5: #{alexnet_forward.13} parent=0 // pred_fallthru
    _
  // Predicated region
  $region6: #{alexnet_forward.13} parent=0 // pred_check
    _
  $region7: #{alexnet_forward.13} parent=0 // pred_check_branch
    %11 = sbr.rel (0) target = $region9
  $region8: #{alexnet_forward.13} parent=0 // pred_region
    _
  $region9: #{alexnet_forward.13} parent=0 // pred_fallthru
    _
  // Predicated region
  $region10: #{alexnet_forward.13} parent=0 // pred_check
    _
  $region11: #{alexnet_forward.13} parent=0 // pred_check_branch
    %13 = sbr.rel (0) target = $region13
  $region12: #{alexnet_forward.13} parent=0 // pred_region
    _
  $region13: #{alexnet_forward.13} parent=0 // pred_fallthru
    _
  %v15 = vld [vmem:[%s0] sm:$0xff]
  %v16 = vld [vmem:[%s0 + $0x8] sm:$0xff]
  %v17 = vld [vmem:[%s0 + $0x10] sm:$0xff]
  %v18 = vld [vmem:[%s0 + $0x18] sm:$0xff]
  %v19 = vld [vmem:[%s0 + $0x20] sm:$0xff]
  %v20 = vld [vmem:[%s0 + $0x28] sm:$0xff]
  %v21 = vld [vmem:[%s0 + $0x30] sm:$0xff]
  %v22 = vld [vmem:[%s0 + $0x38] sm:$0xff]
  %v23 = vld [vmem:[%s0 + $0x40] sm:$0xff]
  %v24 = vld [vmem:[%s0 + $0x48] sm:$0xff]
  %v25 = vld [vmem:[%s0 + $0x50] sm:$0xff]
  %v26 = vld [vmem:[%s0 + $0x58] sm:$0xff]
  %v27 = vld [vmem:[%s0 + $0x60] sm:$0xff]
  %v28 = vld [vmem:[%s0 + $0x68] sm:$0xf]
  %v29 = vld [vmem:[%s0 + $0x6c] sm:$0xff]
  %v30 = vld [vmem:[%s0 + $0x74] sm:$0xff]
  %v31 = vld [vmem:[%s0 + $0x7c] sm:$0xff]
  %v32 = vld [vmem:[%s0 + $0x84] sm:$0xff]
  %v33 = vld [vmem:[%s0 + $0x8c] sm:$0xff]
  %v34 = vld [vmem:[%s0 + $0x94] sm:$0xff]
  %v35 = vld [vmem:[%s0 + $0x9c] sm:$0xff]
  %v36 = vld [vmem:[%s0 + $0xa4] sm:$0xff]
  %v37 = vld [vmem:[%s0 + $0xac] sm:$0xff]
  %v38 = vld [vmem:[%s0 + $0xb4] sm:$0xff]
  %v39 = vld [vmem:[%s0 + $0xbc] sm:$0xff]
  %v40 = vld [vmem:[%s0 + $0xc4] sm:$0xff]
  %v41 = vld [vmem:[%s0 + $0xcc] sm:$0xff]
  %v42 = vld [vmem:[%s0 + $0xd4] sm:$0xf]
  %v43 = vld [vmem:[%s0 + $0xd8] sm:$0x11]
  %v44 = vld [vmem:[%s0 + $0xe0] sm:$0x11]
  %v45 = vld [vmem:[%s0 + $0xe8] sm:$0x11]
  %v46 = vld [vmem:[%s0 + $0xf0] sm:$0x11]
  %v47 = vld [vmem:[%s0 + $0xf8] sm:$0x11]
  %v48 = vld [vmem:[%s0 + $0x100] sm:$0x11]
  %v49 = vld [vmem:[%s0 + $0x108] sm:$0x11]
  %v50 = vld [vmem:[%s0 + $0x110] sm:$0x11]
  %v51 = vld [vmem:[%s0 + $0x118] sm:$0x11]
  %v52 = vld [vmem:[%s0 + $0x120] sm:$0x11]
  %v53 = vld [vmem:[%s0 + $0x128] sm:$0x11]
  %v54 = vld [vmem:[%s0 + $0x130] sm:$0x11]
  %v55 = vld [vmem:[%s0 + $0x138] sm:$0x11]
  %v56 = vld [vmem:[%s0 + $0x140] sm:$0x1]
  %v57 = vld [vmem:[%s1] sm:$0xff]
  %v58 = vld [vmem:[%s1 + $0x8] sm:$0xff]
  %v59 = vld [vmem:[%s1 + $0x10] sm:$0xff]
  %v60 = vld [vmem:[%s1 + $0x18] sm:$0xff]
  %v61 = vld [vmem:[%s1 + $0x20] sm:$0xff]
  %v62 = vld [vmem:[%s1 + $0x28] sm:$0xff]
  %v63 = vld [vmem:[%s1 + $0x30] sm:$0xff]
  %v64 = vld [vmem:[%s1 + $0x38] sm:$0xff]
  %v65 = vld [vmem:[%s1 + $0x40] sm:$0xff]
  %v66 = vld [vmem:[%s1 + $0x48] sm:$0xff]
  %v67 = vld [vmem:[%s1 + $0x50] sm:$0xff]
  %v68 = vld [vmem:[%s1 + $0x58] sm:$0xff]
  %v69 = vld [vmem:[%s1 + $0x60] sm:$0xff]
  %v70 = vld [vmem:[%s1 + $0x68] sm:$0xff]
  %v71 = vld [vmem:[%s1 + $0x70] sm:$0xff]
  %v72 = vld [vmem:[%s1 + $0x78] sm:$0xff]
  %v73 = vld [vmem:[%s1 + $0x80] sm:$0xff]
  %v74 = vld [vmem:[%s1 + $0x88] sm:$0xff]
  %v75 = vld [vmem:[%s1 + $0x90] sm:$0xff]
  %v76 = vld [vmem:[%s1 + $0x98] sm:$0xff]
  %v77 = vld [vmem:[%s1 + $0xa0] sm:$0xff]
  %v78 = vld [vmem:[%s1 + $0xa8] sm:$0xff]
  %v79 = vld [vmem:[%s1 + $0xb0] sm:$0xff]
  %v80 = vld [vmem:[%s1 + $0xb8] sm:$0xff]
  %v81 = vld [vmem:[%s1 + $0xc0] sm:$0xff]
  %v82 = vld [vmem:[%s1 + $0xc8] sm:$0xff]
  %v83 = vld [vmem:[%s1 + $0xd0] sm:$0xff]
  %v84 = vld [vmem:[%s1 + $0xd8] sm:$0xff]
  %v85 = vld [vmem:[%s1 + $0xe0] sm:$0xff]
  %v86 = vld [vmem:[%s1 + $0xe8] sm:$0xff]
  %v87 = vld [vmem:[%s1 + $0xf0] sm:$0xff]
  %v88 = vld [vmem:[%s1 + $0xf8] sm:$0xff]
  %v89 = vld [vmem:[%s1 + $0x100] sm:$0xff]
  %v90 = vld [vmem:[%s1 + $0x108] sm:$0xff]
  %v91 = vld [vmem:[%s1 + $0x110] sm:$0xff]
  %v92 = vld [vmem:[%s1 + $0x118] sm:$0xff]
  %v93 = vld [vmem:[%s1 + $0x120] sm:$0xff]
  %v94 = vld [vmem:[%s1 + $0x128] sm:$0xff]
  %v95 = vld [vmem:[%s1 + $0x130] sm:$0xff]
  %v96 = vld [vmem:[%s1 + $0x138] sm:$0xff]
  %v97 = vld [vmem:[%s1 + $0x140] sm:$0xff]
  %v98 = vld [vmem:[%s1 + $0x148] sm:$0xff]
  %v99 = vld [vmem:[%s1 + $0x150] sm:$0xff]
  %v100 = vld [vmem:[%s1 + $0x158] sm:$0xff]
  %v101 = vld [vmem:[%s1 + $0x160] sm:$0xff]
  %v102 = vld [vmem:[%s1 + $0x168] sm:$0xff]
  %v103 = vld [vmem:[%s1 + $0x170] sm:$0xff]
  %v104 = vld [vmem:[%s1 + $0x178] sm:$0xff]
  %v105 = vld [vmem:[%s1 + $0x180] sm:$0xff]
  %v106 = vld [vmem:[%s1 + $0x188] sm:$0xff]
  %v107 = vld [vmem:[%s1 + $0x190] sm:$0xff]
  %v108 = vld [vmem:[%s1 + $0x198] sm:$0xff]
  %v109 = vld [vmem:[%s1 + $0x1a0] sm:$0xff]
  %v110 = vld [vmem:[%s1 + $0x1a8] sm:$0xff]
  %v111 = vld [vmem:[%s1 + $0x1b0] sm:$0xff]
  %v112 = vld [vmem:[%s1 + $0x1b8] sm:$0xff]
  %v113 = vld [vmem:[%s1 + $0x1c0] sm:$0xff]
  %v114 = vld [vmem:[%s1 + $0x1c8] sm:$0xff]
  %v115 = vld [vmem:[%s1 + $0x1d0] sm:$0xff]
  %v116 = vld [vmem:[%s1 + $0x1d8] sm:$0xff]
  %v117 = vld [vmem:[%s1 + $0x1e0] sm:$0xff]
  %v118 = vld [vmem:[%s1 + $0x1e8] sm:$0xff]
  %v119 = vld [vmem:[%s1 + $0x1f0] sm:$0xff]
  %v120 = vld [vmem:[%s1 + $0x1f8] sm:$0xff]
  %v121 = vld [vmem:[%s1 + $0x200] sm:$0xff]
  %v122 = vld [vmem:[%s1 + $0x208] sm:$0xff]
  %v123 = vld [vmem:[%s1 + $0x210] sm:$0xff]
  %v124 = vld [vmem:[%s1 + $0x218] sm:$0xff]
  %v125 = vld [vmem:[%s1 + $0x220] sm:$0xff]
  %v126 = vld [vmem:[%s1 + $0x228] sm:$0xff]
  %v127 = vld [vmem:[%s1 + $0x230] sm:$0xff]
  %v128 = vld [vmem:[%s1 + $0x238] sm:$0xff]
  %v129 = vld [vmem:[%s1 + $0x240] sm:$0xff]
  %v130 = vld [vmem:[%s1 + $0x248] sm:$0xff]
  %v131 = vld [vmem:[%s1 + $0x250] sm:$0xff]
  %v132 = vld [vmem:[%s1 + $0x258] sm:$0xff]
  %v133 = vld [vmem:[%s1 + $0x260] sm:$0xff]
  %v134 = vld [vmem:[%s1 + $0x268] sm:$0xff]
  %v135 = vld [vmem:[%s1 + $0x270] sm:$0xff]
  %v136 = vld [vmem:[%s1 + $0x278] sm:$0xff]
  %v137 = vld [vmem:[%s1 + $0x280] sm:$0xff]
  %v138 = vld [vmem:[%s1 + $0x288] sm:$0xff]
  %v139 = vld [vmem:[%s1 + $0x290] sm:$0xff]
  %v140 = vld [vmem:[%s1 + $0x298] sm:$0xff]
  %v141 = vld [vmem:[%s1 + $0x2a0] sm:$0xff]
  %v142 = vld [vmem:[%s1 + $0x2a8] sm:$0xff]
  %v143 = vld [vmem:[%s1 + $0x2b0] sm:$0xff]
  %v144 = vld [vmem:[%s1 + $0x2b8] sm:$0xff]
  %v145 = vld [vmem:[%s1 + $0x2c0] sm:$0xff]
  %v146 = vld [vmem:[%s1 + $0x2c8] sm:$0xff]
  %v147 = vld [vmem:[%s1 + $0x2d0] sm:$0xff]
  %v148 = vld [vmem:[%s1 + $0x2d8] sm:$0xff]
  %v149 = vld [vmem:[%s1 + $0x2e0] sm:$0xff]
  %v150 = vld [vmem:[%s1 + $0x2e8] sm:$0xff]
  %v151 = vld [vmem:[%s1 + $0x2f0] sm:$0xff]
  %v152 = vld [vmem:[%s1 + $0x2f8] sm:$0xff]
  %v153 = vld [vmem:[%s1 + $0x300] sm:$0xff]
  %v154 = vld [vmem:[%s1 + $0x308] sm:$0xff]
  %v155 = vld [vmem:[%s1 + $0x310] sm:$0xff]
  %v156 = vld [vmem:[%s1 + $0x318] sm:$0xff]
  %v157 = vld [vmem:[%s1 + $0x320] sm:$0xff]
  %v158 = vld [vmem:[%s1 + $0x328] sm:$0xff]
  %v159 = vld [vmem:[%s1 + $0x330] sm:$0xff]
  %v160 = vld [vmem:[%s1 + $0x338] sm:$0xff]
  %v161 = vld [vmem:[%s1 + $0x340] sm:$0xff]
  %v162 = vld [vmem:[%s1 + $0x348] sm:$0xff]
  %v163 = vld [vmem:[%s1 + $0x350] sm:$0xff]
  %v164 = vld [vmem:[%s1 + $0x358] sm:$0xff]
  %v165 = vld [vmem:[%s1 + $0x360] sm:$0xff]
  %v166 = vld [vmem:[%s1 + $0x368] sm:$0xff]
  %v167 = vld [vmem:[%s1 + $0x370] sm:$0xff]
  %v168 = vld [vmem:[%s1 + $0x378] sm:$0xff]
  %v169 = vld [vmem:[%s1 + $0x380] sm:$0xff]
  %v170 = vld [vmem:[%s1 + $0x388] sm:$0xff]
  %v171 = vld [vmem:[%s1 + $0x390] sm:$0xff]
  %v172 = vld [vmem:[%s1 + $0x398] sm:$0xff]
  %v173 = vld [vmem:[%s1 + $0x3a0] sm:$0xff]
  %v174 = vld [vmem:[%s1 + $0x3a8] sm:$0xff]
  %v175 = vld [vmem:[%s1 + $0x3b0] sm:$0xff]
  %v176 = vld [vmem:[%s1 + $0x3b8] sm:$0xff]
  %v177 = vld [vmem:[%s1 + $0x3c0] sm:$0xff]
  %v178 = vld [vmem:[%s1 + $0x3c8] sm:$0xff]
  %v179 = vld [vmem:[%s1 + $0x3d0] sm:$0xff]
  %v180 = vld [vmem:[%s1 + $0x3d8] sm:$0xff]
  %v181 = vld [vmem:[%s1 + $0x3e0] sm:$0xff]
  %v182 = vld [vmem:[%s1 + $0x3e8] sm:$0xff]
  %v183 = vld [vmem:[%s1 + $0x3f0] sm:$0xff]
  %v184 = vld [vmem:[%s1 + $0x3f8] sm:$0xff]
  %v185 = vld [vmem:[%s1 + $0x400] sm:$0xff]
  %v186 = vld [vmem:[%s1 + $0x408] sm:$0xff]
  %v187 = vld [vmem:[%s1 + $0x410] sm:$0xff]
  %v188 = vld [vmem:[%s1 + $0x418] sm:$0xff]
  %v189 = vld [vmem:[%s1 + $0x420] sm:$0xff]
  %v190 = vld [vmem:[%s1 + $0x428] sm:$0xff]
  %v191 = vld [vmem:[%s1 + $0x430] sm:$0xff]
  %v192 = vld [vmem:[%s1 + $0x438] sm:$0xff]
  %v193 = vld [vmem:[%s1 + $0x440] sm:$0xff]
  %v194 = vld [vmem:[%s1 + $0x448] sm:$0xff]
  %v195 = vld [vmem:[%s1 + $0x450] sm:$0xff]
  %v196 = vld [vmem:[%s1 + $0x458] sm:$0xff]
  %v197 = vld [vmem:[%s1 + $0x460] sm:$0xff]
  %v198 = vld [vmem:[%s1 + $0x468] sm:$0xff]
  %v199 = vld [vmem:[%s1 + $0x470] sm:$0xff]
  %v200 = vld [vmem:[%s1 + $0x478] sm:$0xff]
  %v201 = vld [vmem:[%s1 + $0x480] sm:$0xff]
  %v202 = vld [vmem:[%s1 + $0x488] sm:$0xff]
  %v203 = vld [vmem:[%s1 + $0x490] sm:$0xff]
  %v204 = vld [vmem:[%s1 + $0x498] sm:$0xff]
  %v205 = vld [vmem:[%s1 + $0x4a0] sm:$0xff]
  %v206 = vld [vmem:[%s1 + $0x4a8] sm:$0xff]
  %v207 = vld [vmem:[%s1 + $0x4b0] sm:$0xff]
  %v208 = vld [vmem:[%s1 + $0x4b8] sm:$0xff]
  %v209 = vld [vmem:[%s1 + $0x4c0] sm:$0xff]
  %v210 = vld [vmem:[%s1 + $0x4c8] sm:$0xff]
  %v211 = vld [vmem:[%s1 + $0x4d0] sm:$0xff]
  %v212 = vld [vmem:[%s1 + $0x4d8] sm:$0xff]
  %v213 = vld [vmem:[%s1 + $0x4e0] sm:$0xff]
  %v214 = vld [vmem:[%s1 + $0x4e8] sm:$0xff]
  %v215 = vld [vmem:[%s1 + $0x4f0] sm:$0xff]
  %v216 = vld [vmem:[%s1 + $0x4f8] sm:$0xff]
  %v217 = vld [vmem:[%s1 + $0x500] sm:$0xff]
  %v218 = vld [vmem:[%s1 + $0x508] sm:$0xff]
  %v219 = vld [vmem:[%s1 + $0x510] sm:$0xff]
  %v220 = vld [vmem:[%s1 + $0x518] sm:$0xff]
  %v221 = vld [vmem:[%s1 + $0x520] sm:$0xff]
  %v222 = vld [vmem:[%s1 + $0x528] sm:$0xff]
  %v223 = vld [vmem:[%s1 + $0x530] sm:$0xff]
  %v224 = vld [vmem:[%s1 + $0x538] sm:$0xff]
  %v225 = vld [vmem:[%s1 + $0x540] sm:$0xff]
  %v226 = vld [vmem:[%s1 + $0x548] sm:$0xff]
  %v227 = vld [vmem:[%s1 + $0x550] sm:$0xff]
  %v228 = vld [vmem:[%s1 + $0x558] sm:$0xff]
  %v229 = vld [vmem:[%s1 + $0x560] sm:$0xff]
  %v230 = vld [vmem:[%s1 + $0x568] sm:$0xff]
  %v231 = vld [vmem:[%s1 + $0x570] sm:$0xff]
  %v232 = vld [vmem:[%s1 + $0x578] sm:$0xff]
  %v233 = vld [vmem:[%s1 + $0x580] sm:$0xff]
  %v234 = vld [vmem:[%s1 + $0x588] sm:$0xff]
  %v235 = vld [vmem:[%s1 + $0x590] sm:$0xff]
  %v236 = vld [vmem:[%s1 + $0x598] sm:$0xff]
  %v237 = vld [vmem:[%s1 + $0x5a0] sm:$0xff]
  %v238 = vld [vmem:[%s1 + $0x5a8] sm:$0xff]
  %v239 = vld [vmem:[%s1 + $0x5b0] sm:$0xff]
  %v240 = vld [vmem:[%s1 + $0x5b8] sm:$0xff]
  %v241 = vld [vmem:[%s1 + $0x5c0] sm:$0xff]
  %v242 = vld [vmem:[%s1 + $0x5c8] sm:$0xff]
  %v243 = vld [vmem:[%s1 + $0x5d0] sm:$0xff]
  %v244 = vld [vmem:[%s1 + $0x5d8] sm:$0xff]
  %v245 = vld [vmem:[%s1 + $0x5e0] sm:$0xff]
  %v246 = vld [vmem:[%s1 + $0x5e8] sm:$0xff]
  %v247 = vld [vmem:[%s1 + $0x5f0] sm:$0xff]
  %v248 = vld [vmem:[%s1 + $0x5f8] sm:$0xff]
  %v249 = vld [vmem:[%s1 + $0x600] sm:$0xff]
  %v250 = vld [vmem:[%s1 + $0x608] sm:$0xff]
  %v251 = vld [vmem:[%s1 + $0x610] sm:$0xff]
  %v252 = vld [vmem:[%s1 + $0x618] sm:$0xff]
  %v253 = vld [vmem:[%s1 + $0x620] sm:$0xff]
  %v254 = vld [vmem:[%s1 + $0x628] sm:$0xff]
  %v255 = vld [vmem:[%s1 + $0x630] sm:$0xff]
  %v256 = vld [vmem:[%s1 + $0x638] sm:$0xff]
  %v257 = vld [vmem:[%s1 + $0x640] sm:$0xff]
  %v258 = vld [vmem:[%s1 + $0x648] sm:$0xff]
  %v259 = vld [vmem:[%s1 + $0x650] sm:$0xff]
  %v260 = vld [vmem:[%s1 + $0x658] sm:$0xff]
  %v261 = vld [vmem:[%s1 + $0x660] sm:$0xff]
  %v262 = vld [vmem:[%s1 + $0x668] sm:$0xff]
  %v263 = vld [vmem:[%s1 + $0x670] sm:$0xff]
  %v264 = vld [vmem:[%s1 + $0x678] sm:$0xff]
  %v265 = vld [vmem:[%s1 + $0x680] sm:$0xff]
  %v266 = vld [vmem:[%s1 + $0x688] sm:$0xff]
  %v267 = vld [vmem:[%s1 + $0x690] sm:$0xff]
  %v268 = vld [vmem:[%s1 + $0x698] sm:$0xff]
  %v269 = vld [vmem:[%s1 + $0x6a0] sm:$0xff]
  %v270 = vld [vmem:[%s1 + $0x6a8] sm:$0xff]
  %v271 = vld [vmem:[%s1 + $0x6b0] sm:$0xff]
  %v272 = vld [vmem:[%s1 + $0x6b8] sm:$0xff]
  %v273 = vld [vmem:[%s1 + $0x6c0] sm:$0xff]
  %v274 = vld [vmem:[%s1 + $0x6c8] sm:$0xff]
  %v275 = vld [vmem:[%s1 + $0x6d0] sm:$0xff]
  %v276 = vld [vmem:[%s1 + $0x6d8] sm:$0xff]
  %v277 = vld [vmem:[%s1 + $0x6e0] sm:$0xff]
  %v278 = vld [vmem:[%s1 + $0x6e8] sm:$0xff]
  %v279 = vld [vmem:[%s1 + $0x6f0] sm:$0xff]
  %v280 = vld [vmem:[%s1 + $0x6f8] sm:$0xff]
  %v281 = vld [vmem:[%s1 + $0x700] sm:$0xff]
  %v282 = vld [vmem:[%s1 + $0x708] sm:$0xff]
  %v283 = vld [vmem:[%s1 + $0x710] sm:$0xff]
  %v284 = vld [vmem:[%s1 + $0x718] sm:$0xff]
  %v285 = vld [vmem:[%s1 + $0x720] sm:$0xff]
  %v286 = vld [vmem:[%s1 + $0x728] sm:$0xff]
  %v287 = vld [vmem:[%s1 + $0x730] sm:$0xff]
  %v288 = vld [vmem:[%s1 + $0x738] sm:$0xff]
  %v289 = vld [vmem:[%s1 + $0x740] sm:$0xff]
  %v290 = vld [vmem:[%s1 + $0x748] sm:$0xff]
  %v291 = vld [vmem:[%s1 + $0x750] sm:$0xff]
  %v292 = vld [vmem:[%s1 + $0x758] sm:$0xff]
  %v293 = vld [vmem:[%s1 + $0x760] sm:$0xff]
  %v294 = vld [vmem:[%s1 + $0x768] sm:$0xff]
  %v295 = vld [vmem:[%s1 + $0x770] sm:$0xff]
  %v296 = vld [vmem:[%s1 + $0x778] sm:$0xff]
  %v297 = vld [vmem:[%s1 + $0x780] sm:$0xff]
  %v298 = vld [vmem:[%s1 + $0x788] sm:$0xff]
  %v299 = vld [vmem:[%s1 + $0x790] sm:$0xff]
  %v300 = vld [vmem:[%s1 + $0x798] sm:$0xff]
  %v301 = vld [vmem:[%s1 + $0x7a0] sm:$0xff]
  %v302 = vld [vmem:[%s1 + $0x7a8] sm:$0xff]
  %v303 = vld [vmem:[%s1 + $0x7b0] sm:$0xff]
  %v304 = vld [vmem:[%s1 + $0x7b8] sm:$0xff]
  %v305 = vld [vmem:[%s1 + $0x7c0] sm:$0xff]
  %v306 = vld [vmem:[%s1 + $0x7c8] sm:$0xff]
  %v307 = vld [vmem:[%s1 + $0x7d0] sm:$0xff]
  %v308 = vld [vmem:[%s1 + $0x7d8] sm:$0xff]
  %v309 = vld [vmem:[%s1 + $0x7e0] sm:$0xff]
  %v310 = vld [vmem:[%s1 + $0x7e8] sm:$0xff]
  %v311 = vld [vmem:[%s1 + $0x7f0] sm:$0xff]
  %v312 = vld [vmem:[%s1 + $0x7f8] sm:$0xff]
  %v313 = vld [vmem:[%s1 + $0x800] sm:$0xff]
  %v314 = vld [vmem:[%s1 + $0x808] sm:$0xff]
  %v315 = vld [vmem:[%s1 + $0x810] sm:$0xff]
  %v316 = vld [vmem:[%s1 + $0x818] sm:$0xff]
  %v317 = vld [vmem:[%s1 + $0x820] sm:$0xff]
  %v318 = vld [vmem:[%s1 + $0x828] sm:$0xff]
  %v319 = vld [vmem:[%s1 + $0x830] sm:$0xff]
  %v320 = vld [vmem:[%s1 + $0x838] sm:$0xff]
  %v321 = vld [vmem:[%s1 + $0x840] sm:$0xff]
  %v322 = vld [vmem:[%s1 + $0x848] sm:$0xff]
  %v323 = vld [vmem:[%s1 + $0x850] sm:$0xff]
  %v324 = vld [vmem:[%s1 + $0x858] sm:$0xff]
  %v325 = vld [vmem:[%s1 + $0x860] sm:$0xff]
  %v326 = vld [vmem:[%s1 + $0x868] sm:$0xff]
  %v327 = vld [vmem:[%s1 + $0x870] sm:$0xff]
  %v328 = vld [vmem:[%s1 + $0x878] sm:$0xff]
  %v329 = vld [vmem:[%s1 + $0x880] sm:$0xff]
  %v330 = vld [vmem:[%s1 + $0x888] sm:$0xff]
  %v331 = vld [vmem:[%s1 + $0x890] sm:$0xff]
  %v332 = vld [vmem:[%s1 + $0x898] sm:$0xff]
  %v333 = vld [vmem:[%s1 + $0x8a0] sm:$0xff]
  %v334 = vld [vmem:[%s1 + $0x8a8] sm:$0xff]
  %v335 = vld [vmem:[%s1 + $0x8b0] sm:$0xff]
  %v336 = vld [vmem:[%s1 + $0x8b8] sm:$0xff]
  %v337 = vld [vmem:[%s1 + $0x8c0] sm:$0xff]
  %v338 = vld [vmem:[%s1 + $0x8c8] sm:$0xff]
  %v339 = vld [vmem:[%s1 + $0x8d0] sm:$0xff]
  %v340 = vld [vmem:[%s1 + $0x8d8] sm:$0xff]
  %v341 = vld [vmem:[%s1 + $0x8e0] sm:$0xff]
  %v342 = vld [vmem:[%s1 + $0x8e8] sm:$0xff]
  %v343 = vld [vmem:[%s1 + $0x8f0] sm:$0xff]
  %v344 = vld [vmem:[%s1 + $0x8f8] sm:$0xff]
  %v345 = vld [vmem:[%s1 + $0x900] sm:$0xff]
  %v346 = vld [vmem:[%s1 + $0x908] sm:$0xff]
  %v347 = vld [vmem:[%s1 + $0x910] sm:$0xff]
  %v348 = vld [vmem:[%s1 + $0x918] sm:$0xff]
  %v349 = vld [vmem:[%s1 + $0x920] sm:$0xff]
  %v350 = vld [vmem:[%s1 + $0x928] sm:$0xff]
  %v351 = vld [vmem:[%s1 + $0x930] sm:$0xff]
  %v352 = vld [vmem:[%s1 + $0x938] sm:$0xff]
  %v353 = vld [vmem:[%s1 + $0x940] sm:$0xff]
  %v354 = vld [vmem:[%s1 + $0x948] sm:$0xff]
  %v355 = vld [vmem:[%s1 + $0x950] sm:$0xff]
  %v356 = vld [vmem:[%s1 + $0x958] sm:$0xff]
  %v357 = vld [vmem:[%s1 + $0x960] sm:$0xff]
  %v358 = vld [vmem:[%s1 + $0x968] sm:$0xff]
  %v359 = vld [vmem:[%s1 + $0x970] sm:$0xff]
  %v360 = vld [vmem:[%s1 + $0x978] sm:$0xff]
  %v361 = vld [vmem:[%s1 + $0x980] sm:$0xff]
  %v362 = vld [vmem:[%s1 + $0x988] sm:$0xff]
  %v363 = vld [vmem:[%s1 + $0x990] sm:$0xff]
  %v364 = vld [vmem:[%s1 + $0x998] sm:$0xff]
  %v365 = vld [vmem:[%s1 + $0x9a0] sm:$0xff]
  %v366 = vld [vmem:[%s1 + $0x9a8] sm:$0xff]
  %v367 = vld [vmem:[%s1 + $0x9b0] sm:$0xff]
  %v368 = vld [vmem:[%s1 + $0x9b8] sm:$0xff]
  %v369 = vld [vmem:[%s1 + $0x9c0] sm:$0xff]
  %v370 = vld [vmem:[%s1 + $0x9c8] sm:$0xff]
  %v371 = vld [vmem:[%s1 + $0x9d0] sm:$0xff]
  %v372 = vld [vmem:[%s1 + $0x9d8] sm:$0xff]
  %v373 = vld [vmem:[%s1 + $0x9e0] sm:$0xff]
  %v374 = vld [vmem:[%s1 + $0x9e8] sm:$0xff]
  %v375 = vld [vmem:[%s1 + $0x9f0] sm:$0xff]
  %v376 = vld [vmem:[%s1 + $0x9f8] sm:$0xff]
  %v377 = vld [vmem:[%s1 + $0xa00] sm:$0xff]
  %v378 = vld [vmem:[%s1 + $0xa08] sm:$0xff]
  %v379 = vld [vmem:[%s1 + $0xa10] sm:$0xff]
  %v380 = vld [vmem:[%s1 + $0xa18] sm:$0xff]
  %v381 = vld [vmem:[%s1 + $0xa20] sm:$0xff]
  %v382 = vld [vmem:[%s1 + $0xa28] sm:$0xff]
  %v383 = vld [vmem:[%s1 + $0xa30] sm:$0xff]
  %v384 = vld [vmem:[%s1 + $0xa38] sm:$0xff]
  %v385 = vld [vmem:[%s1 + $0xa40] sm:$0xff]
  %v386 = vld [vmem:[%s1 + $0xa48] sm:$0xff]
  %v387 = vld [vmem:[%s1 + $0xa50] sm:$0xff]
  %v388 = vld [vmem:[%s1 + $0xa58] sm:$0xff]
  %v389 = vld [vmem:[%s1 + $0xa60] sm:$0xff]
  %v390 = vld [vmem:[%s1 + $0xa68] sm:$0xff]
  %v391 = vld [vmem:[%s1 + $0xa70] sm:$0xff]
  %v392 = vld [vmem:[%s1 + $0xa78] sm:$0xff]
  %v393 = vld [vmem:[%s1 + $0xa80] sm:$0xff]
  %v394 = vld [vmem:[%s1 + $0xa88] sm:$0xff]
  %v395 = vld [vmem:[%s1 + $0xa90] sm:$0xff]
  %v396 = vld [vmem:[%s1 + $0xa98] sm:$0xff]
  %v397 = vld [vmem:[%s1 + $0xaa0] sm:$0xff]
  %v398 = vld [vmem:[%s1 + $0xaa8] sm:$0xff]
  %v399 = vld [vmem:[%s1 + $0xab0] sm:$0xff]
  %v400 = vld [vmem:[%s1 + $0xab8] sm:$0xff]
  %v401 = vld [vmem:[%s1 + $0xac0] sm:$0xff]
  %v402 = vld [vmem:[%s1 + $0xac8] sm:$0xff]
  %v403 = vld [vmem:[%s1 + $0xad0] sm:$0xff]
  %v404 = vld [vmem:[%s1 + $0xad8] sm:$0xff]
  %v405 = vld [vmem:[%s1 + $0xae0] sm:$0xff]
  %v406 = vld [vmem:[%s1 + $0xae8] sm:$0xff]
  %v407 = vld [vmem:[%s1 + $0xaf0] sm:$0xff]
  %v408 = vld [vmem:[%s1 + $0xaf8] sm:$0xff]
  %v409 = vld [vmem:[%s1 + $0xb00] sm:$0xff]
  %v410 = vld [vmem:[%s1 + $0xb08] sm:$0xff]
  %v411 = vld [vmem:[%s1 + $0xb10] sm:$0xff]
  %v412 = vld [vmem:[%s1 + $0xb18] sm:$0xff]
  %v413 = vld [vmem:[%s1 + $0xb20] sm:$0xff]
  %v414 = vld [vmem:[%s1 + $0xb28] sm:$0xff]
  %v415 = vld [vmem:[%s1 + $0xb30] sm:$0xff]
  %v416 = vld [vmem:[%s1 + $0xb38] sm:$0xff]
  %v417 = vld [vmem:[%s1 + $0xb40] sm:$0xff]
  %v418 = vld [vmem:[%s1 + $0xb48] sm:$0xff]
  %v419 = vld [vmem:[%s1 + $0xb50] sm:$0xff]
  %v420 = vld [vmem:[%s1 + $0xb58] sm:$0xff]
  %v421 = vld [vmem:[%s1 + $0xb60] sm:$0xff]
  %v422 = vld [vmem:[%s1 + $0xb68] sm:$0xff]
  %v423 = vld [vmem:[%s1 + $0xb70] sm:$0xff]
  %v424 = vld [vmem:[%s1 + $0xb78] sm:$0xff]
  %v425 = vld [vmem:[%s1 + $0xb80] sm:$0xff]
  %v426 = vld [vmem:[%s1 + $0xb88] sm:$0xff]
  %v427 = vld [vmem:[%s1 + $0xb90] sm:$0xff]
  %v428 = vld [vmem:[%s1 + $0xb98] sm:$0xff]
  %v429 = vld [vmem:[%s1 + $0xba0] sm:$0xff]
  %v430 = vld [vmem:[%s1 + $0xba8] sm:$0xff]
  %v431 = vld [vmem:[%s1 + $0xbb0] sm:$0xff]
  %v432 = vld [vmem:[%s1 + $0xbb8] sm:$0xff]
  %v433 = vld [vmem:[%s1 + $0xbc0] sm:$0xff]
  %v434 = vld [vmem:[%s1 + $0xbc8] sm:$0xff]
  %v435 = vld [vmem:[%s1 + $0xbd0] sm:$0xff]
  %v436 = vld [vmem:[%s1 + $0xbd8] sm:$0xff]
  %v437 = vld [vmem:[%s1 + $0xbe0] sm:$0xff]
  %v438 = vld [vmem:[%s1 + $0xbe8] sm:$0xff]
  %v439 = vld [vmem:[%s1 + $0xbf0] sm:$0xff]
  %v440 = vld [vmem:[%s1 + $0xbf8] sm:$0xff]
  %v441 = vld [vmem:[%s1 + $0xc00] sm:$0xff]
  %v442 = vld [vmem:[%s1 + $0xc08] sm:$0xff]
  %v443 = vld [vmem:[%s1 + $0xc10] sm:$0xff]
  %v444 = vld [vmem:[%s1 + $0xc18] sm:$0xff]
  %v445 = vld [vmem:[%s1 + $0xc20] sm:$0xff]
  %v446 = vld [vmem:[%s1 + $0xc28] sm:$0xff]
  %v447 = vld [vmem:[%s1 + $0xc30] sm:$0xff]
  %v448 = vld [vmem:[%s1 + $0xc38] sm:$0xff]
  %v449 = vld [vmem:[%s1 + $0xc40] sm:$0xff]
  %v450 = vld [vmem:[%s1 + $0xc48] sm:$0xff]
  %v451 = vld [vmem:[%s1 + $0xc50] sm:$0xff]
  %v452 = vld [vmem:[%s1 + $0xc58] sm:$0xff]
  %v453 = vld [vmem:[%s1 + $0xc60] sm:$0xff]
  %v454 = vld [vmem:[%s1 + $0xc68] sm:$0xff]
  %v455 = vld [vmem:[%s1 + $0xc70] sm:$0xff]
  %v456 = vld [vmem:[%s1 + $0xc78] sm:$0xff]
  %v457 = vld [vmem:[%s1 + $0xc80] sm:$0xff]
  %v458 = vld [vmem:[%s1 + $0xc88] sm:$0xff]
  %v459 = vld [vmem:[%s1 + $0xc90] sm:$0xff]
  %v460 = vld [vmem:[%s1 + $0xc98] sm:$0xff]
  %v461 = vld [vmem:[%s1 + $0xca0] sm:$0xff]
  %v462 = vld [vmem:[%s1 + $0xca8] sm:$0xff]
  %v463 = vld [vmem:[%s1 + $0xcb0] sm:$0xff]
  %v464 = vld [vmem:[%s1 + $0xcb8] sm:$0xff]
  %v465 = vld [vmem:[%s1 + $0xcc0] sm:$0xff]
  %v466 = vld [vmem:[%s1 + $0xcc8] sm:$0xff]
  %v467 = vld [vmem:[%s1 + $0xcd0] sm:$0xff]
  %v468 = vld [vmem:[%s1 + $0xcd8] sm:$0xff]
  %v469 = vld [vmem:[%s1 + $0xce0] sm:$0xff]
  %v470 = vld [vmem:[%s1 + $0xce8] sm:$0xff]
  %v471 = vld [vmem:[%s1 + $0xcf0] sm:$0xff]
  %v472 = vld [vmem:[%s1 + $0xcf8] sm:$0xff]
  %v473 = vld [vmem:[%s1 + $0xd00] sm:$0xff]
  %v474 = vld [vmem:[%s1 + $0xd08] sm:$0xff]
  %v475 = vld [vmem:[%s1 + $0xd10] sm:$0xff]
  %v476 = vld [vmem:[%s1 + $0xd18] sm:$0xff]
  %v477 = vld [vmem:[%s1 + $0xd20] sm:$0xff]
  %v478 = vld [vmem:[%s1 + $0xd28] sm:$0xff]
  %v479 = vld [vmem:[%s1 + $0xd30] sm:$0xff]
  %v480 = vld [vmem:[%s1 + $0xd38] sm:$0xff]
  %v481 = vld [vmem:[%s1 + $0xd40] sm:$0xff]
  %v482 = vld [vmem:[%s1 + $0xd48] sm:$0xff]
  %v483 = vld [vmem:[%s1 + $0xd50] sm:$0xff]
  %v484 = vld [vmem:[%s1 + $0xd58] sm:$0xff]
  %v485 = vld [vmem:[%s1 + $0xd60] sm:$0xff]
  %v486 = vld [vmem:[%s1 + $0xd68] sm:$0xff]
  %v487 = vld [vmem:[%s1 + $0xd70] sm:$0xff]
  %v488 = vld [vmem:[%s1 + $0xd78] sm:$0xff]
  %v489 = vld [vmem:[%s2] sm:$0x3]
  %v491 = vlaneseq
  %v492 = vshrl.u32 %v491, 7
  %v493 = vsub.s32 0, %v492
  %v494 = vrot.slane %v489, %v493
  %v495 = vlaneseq
  %v496 = vshrl.u32 %v495, 7
  %v497 = vsub.s32 1, %v496
  %v498 = vrot.slane %v489, %v497
  %v543 = vunpack.c.l.b16 %v15
  %v544 = vunpack.c.h.b16 %v15
  %v545 = vunpack.c.l.b16 %v16
  %v546 = vunpack.c.h.b16 %v16
  %v547 = vunpack.c.l.b16 %v17
  %v548 = vunpack.c.h.b16 %v17
  %v549 = vunpack.c.l.b16 %v18
  %v550 = vunpack.c.h.b16 %v18
  %v551 = vunpack.c.l.b16 %v19
  %v552 = vunpack.c.h.b16 %v19
  %v553 = vunpack.c.l.b16 %v20
  %v554 = vunpack.c.h.b16 %v20
  %v555 = vunpack.c.l.b16 %v21
  %v556 = vunpack.c.h.b16 %v21
  %v557 = vunpack.c.l.b16 %v22
  %v558 = vunpack.c.h.b16 %v22
  %v559 = vunpack.c.l.b16 %v23
  %v560 = vunpack.c.h.b16 %v23
  %v561 = vunpack.c.l.b16 %v24
  %v562 = vunpack.c.h.b16 %v24
  %v563 = vunpack.c.l.b16 %v25
  %v564 = vunpack.c.h.b16 %v25
  %v565 = vunpack.c.l.b16 %v26
  %v566 = vunpack.c.h.b16 %v26
  %v567 = vunpack.c.l.b16 %v27
  %v568 = vunpack.c.h.b16 %v27
  %v569 = vunpack.c.l.b16 %v28
  %v570 = vunpack.c.l.b16 %v29
  %v571 = vunpack.c.h.b16 %v29
  %v572 = vunpack.c.l.b16 %v30
  %v573 = vunpack.c.h.b16 %v30
  %v574 = vunpack.c.l.b16 %v31
  %v575 = vunpack.c.h.b16 %v31
  %v576 = vunpack.c.l.b16 %v32
  %v577 = vunpack.c.h.b16 %v32
  %v578 = vunpack.c.l.b16 %v33
  %v579 = vunpack.c.h.b16 %v33
  %v580 = vunpack.c.l.b16 %v34
  %v581 = vunpack.c.h.b16 %v34
  %v582 = vunpack.c.l.b16 %v35
  %v583 = vunpack.c.h.b16 %v35
  %v584 = vunpack.c.l.b16 %v36
  %v585 = vunpack.c.h.b16 %v36
  %v586 = vunpack.c.l.b16 %v37
  %v587 = vunpack.c.h.b16 %v37
  %v588 = vunpack.c.l.b16 %v38
  %v589 = vunpack.c.h.b16 %v38
  %v590 = vunpack.c.l.b16 %v39
  %v591 = vunpack.c.h.b16 %v39
  %v592 = vunpack.c.l.b16 %v40
  %v593 = vunpack.c.h.b16 %v40
  %v594 = vunpack.c.l.b16 %v41
  %v595 = vunpack.c.h.b16 %v41
  %v596 = vunpack.c.l.b16 %v42
  %v597 = vunpack.c.l.b16 %v43
  %v598 = vunpack.c.h.b16 %v43
  %v599 = vunpack.c.l.b16 %v44
  %v600 = vunpack.c.h.b16 %v44
  %v601 = vunpack.c.l.b16 %v45
  %v602 = vunpack.c.h.b16 %v45
  %v603 = vunpack.c.l.b16 %v46
  %v604 = vunpack.c.h.b16 %v46
  %v605 = vunpack.c.l.b16 %v47
  %v606 = vunpack.c.h.b16 %v47
  %v607 = vunpack.c.l.b16 %v48
  %v608 = vunpack.c.h.b16 %v48
  %v609 = vunpack.c.l.b16 %v49
  %v610 = vunpack.c.h.b16 %v49
  %v611 = vunpack.c.l.b16 %v50
  %v612 = vunpack.c.h.b16 %v50
  %v613 = vunpack.c.l.b16 %v51
  %v614 = vunpack.c.h.b16 %v51
  %v615 = vunpack.c.l.b16 %v52
  %v616 = vunpack.c.h.b16 %v52
  %v617 = vunpack.c.l.b16 %v53
  %v618 = vunpack.c.h.b16 %v53
  %v619 = vunpack.c.l.b16 %v54
  %v620 = vunpack.c.h.b16 %v54
  %v621 = vunpack.c.l.b16 %v55
  %v622 = vunpack.c.h.b16 %v55
  %v623 = vunpack.c.l.b16 %v56
  %v624 = vpack.c.b16 %v570, %v543
  %v625 = vpack.c.b16 %v571, %v544
  %v626 = vpack.c.b16 %v572, %v545
  %v627 = vpack.c.b16 %v573, %v546
  %v628 = vpack.c.b16 %v574, %v547
  %v629 = vpack.c.b16 %v575, %v548
  %v630 = vpack.c.b16 %v576, %v549
  %v631 = vpack.c.b16 %v577, %v550
  %v632 = vpack.c.b16 %v578, %v551
  %v633 = vpack.c.b16 %v579, %v552
  %v634 = vpack.c.b16 %v580, %v553
  %v635 = vpack.c.b16 %v581, %v554
  %v636 = vpack.c.b16 %v582, %v555
  %v637 = vpack.c.b16 %v583, %v556
  %v638 = vpack.c.b16 %v584, %v557
  %v639 = vpack.c.b16 %v585, %v558
  %v640 = vpack.c.b16 %v586, %v559
  %v641 = vpack.c.b16 %v587, %v560
  %v642 = vpack.c.b16 %v588, %v561
  %v643 = vpack.c.b16 %v589, %v562
  %v644 = vpack.c.b16 %v590, %v563
  %v645 = vpack.c.b16 %v591, %v564
  %v646 = vpack.c.b16 %v592, %v565
  %v647 = vpack.c.b16 %v593, %v566
  %v648 = vpack.c.b16 %v594, %v567
  %v649 = vpack.c.b16 %v595, %v568
  %v650 = vpack.c.b16 %v596, %v569
  %v651 = vpack.c.b16 %v597, %v597
  %v652 = vpack.c.b16 %v598, %v598
  %v653 = vpack.c.b16 %v599, %v599
  %v654 = vpack.c.b16 %v600, %v600
  %v655 = vpack.c.b16 %v601, %v601
  %v656 = vpack.c.b16 %v602, %v602
  %v657 = vpack.c.b16 %v603, %v603
  %v658 = vpack.c.b16 %v604, %v604
  %v659 = vpack.c.b16 %v605, %v605
  %v660 = vpack.c.b16 %v606, %v606
  %v661 = vpack.c.b16 %v607, %v607
  %v662 = vpack.c.b16 %v608, %v608
  %v663 = vpack.c.b16 %v609, %v609
  %v664 = vpack.c.b16 %v610, %v610
  %v665 = vpack.c.b16 %v611, %v611
  %v666 = vpack.c.b16 %v612, %v612
  %v667 = vpack.c.b16 %v613, %v613
  %v668 = vpack.c.b16 %v614, %v614
  %v669 = vpack.c.b16 %v615, %v615
  %v670 = vpack.c.b16 %v616, %v616
  %v671 = vpack.c.b16 %v617, %v617
  %v672 = vpack.c.b16 %v618, %v618
  %v673 = vpack.c.b16 %v619, %v619
  %v674 = vpack.c.b16 %v620, %v620
  %v675 = vpack.c.b16 %v621, %v621
  %v676 = vpack.c.b16 %v622, %v622
  %v677 = vpack.c.b16 %v623, %v623
  %v1164 = vunpack.c.l.b16 %v57
  %v1165 = vunpack.c.h.b16 %v57
  %v1166 = vunpack.c.l.b16 %v58
  %v1167 = vunpack.c.h.b16 %v58
  %v1168 = vunpack.c.l.b16 %v59
  %v1169 = vunpack.c.h.b16 %v59
  %v1170 = vunpack.c.l.b16 %v60
  %v1171 = vunpack.c.h.b16 %v60
  %v1172 = vunpack.c.l.b16 %v61
  %v1173 = vunpack.c.h.b16 %v61
  %v1174 = vunpack.c.l.b16 %v62
  %v1175 = vunpack.c.h.b16 %v62
  %v1176 = vunpack.c.l.b16 %v63
  %v1177 = vunpack.c.h.b16 %v63
  %v1178 = vunpack.c.l.b16 %v64
  %v1179 = vunpack.c.h.b16 %v64
  %v1180 = vunpack.c.l.b16 %v65
  %v1181 = vunpack.c.h.b16 %v65
  %v1182 = vunpack.c.l.b16 %v66
  %v1183 = vunpack.c.h.b16 %v66
  %v1184 = vunpack.c.l.b16 %v67
  %v1185 = vunpack.c.h.b16 %v67
  %v1186 = vunpack.c.l.b16 %v68
  %v1187 = vunpack.c.h.b16 %v68
  %v1188 = vunpack.c.l.b16 %v69
  %v1189 = vunpack.c.h.b16 %v69
  %v1190 = vunpack.c.l.b16 %v70
  %v1191 = vunpack.c.h.b16 %v70
  %v1192 = vunpack.c.l.b16 %v71
  %v1193 = vunpack.c.h.b16 %v71
  %v1194 = vunpack.c.l.b16 %v72
  %v1195 = vunpack.c.h.b16 %v72
  %v1196 = vunpack.c.l.b16 %v73
  %v1197 = vunpack.c.h.b16 %v73
  %v1198 = vunpack.c.l.b16 %v74
  %v1199 = vunpack.c.h.b16 %v74
  %v1200 = vunpack.c.l.b16 %v75
  %v1201 = vunpack.c.h.b16 %v75
  %v1202 = vunpack.c.l.b16 %v76
  %v1203 = vunpack.c.h.b16 %v76
  %v1204 = vunpack.c.l.b16 %v77
  %v1205 = vunpack.c.h.b16 %v77
  %v1206 = vunpack.c.l.b16 %v78
  %v1207 = vunpack.c.h.b16 %v78
  %v1208 = vunpack.c.l.b16 %v79
  %v1209 = vunpack.c.h.b16 %v79
  %v1210 = vunpack.c.l.b16 %v80
  %v1211 = vunpack.c.h.b16 %v80
  %v1212 = vunpack.c.l.b16 %v81
  %v1213 = vunpack.c.h.b16 %v81
  %v1214 = vunpack.c.l.b16 %v82
  %v1215 = vunpack.c.h.b16 %v82
  %v1216 = vunpack.c.l.b16 %v83
  %v1217 = vunpack.c.h.b16 %v83
  %v1218 = vunpack.c.l.b16 %v84
  %v1219 = vunpack.c.h.b16 %v84
  %v1220 = vunpack.c.l.b16 %v85
  %v1221 = vunpack.c.h.b16 %v85
  %v1222 = vunpack.c.l.b16 %v86
  %v1223 = vunpack.c.h.b16 %v86
  %v1224 = vunpack.c.l.b16 %v87
  %v1225 = vunpack.c.h.b16 %v87
  %v1226 = vunpack.c.l.b16 %v88
  %v1227 = vunpack.c.h.b16 %v88
  %v1228 = vunpack.c.l.b16 %v89
  %v1229 = vunpack.c.h.b16 %v89
  %v1230 = vunpack.c.l.b16 %v90
  %v1231 = vunpack.c.h.b16 %v90
  %v1232 = vunpack.c.l.b16 %v91
  %v1233 = vunpack.c.h.b16 %v91
  %v1234 = vunpack.c.l.b16 %v92
  %v1235 = vunpack.c.h.b16 %v92
  %v1236 = vunpack.c.l.b16 %v93
  %v1237 = vunpack.c.h.b16 %v93
  %v1238 = vunpack.c.l.b16 %v94
  %v1239 = vunpack.c.h.b16 %v94
  %v1240 = vunpack.c.l.b16 %v95
  %v1241 = vunpack.c.h.b16 %v95
  %v1242 = vunpack.c.l.b16 %v96
  %v1243 = vunpack.c.h.b16 %v96
  %v1244 = vunpack.c.l.b16 %v97
  %v1245 = vunpack.c.h.b16 %v97
  %v1246 = vunpack.c.l.b16 %v98
  %v1247 = vunpack.c.h.b16 %v98
  %v1248 = vunpack.c.l.b16 %v99
  %v1249 = vunpack.c.h.b16 %v99
  %v1250 = vunpack.c.l.b16 %v100
  %v1251 = vunpack.c.h.b16 %v100
  %v1252 = vunpack.c.l.b16 %v101
  %v1253 = vunpack.c.h.b16 %v101
  %v1254 = vunpack.c.l.b16 %v102
  %v1255 = vunpack.c.h.b16 %v102
  %v1256 = vunpack.c.l.b16 %v103
  %v1257 = vunpack.c.h.b16 %v103
  %v1258 = vunpack.c.l.b16 %v104
  %v1259 = vunpack.c.h.b16 %v104
  %v1260 = vunpack.c.l.b16 %v105
  %v1261 = vunpack.c.h.b16 %v105
  %v1262 = vunpack.c.l.b16 %v106
  %v1263 = vunpack.c.h.b16 %v106
  %v1264 = vunpack.c.l.b16 %v107
  %v1265 = vunpack.c.h.b16 %v107
  %v1266 = vunpack.c.l.b16 %v108
  %v1267 = vunpack.c.h.b16 %v108
  %v1268 = vunpack.c.l.b16 %v109
  %v1269 = vunpack.c.h.b16 %v109
  %v1270 = vunpack.c.l.b16 %v110
  %v1271 = vunpack.c.h.b16 %v110
  %v1272 = vunpack.c.l.b16 %v111
  %v1273 = vunpack.c.h.b16 %v111
  %v1274 = vunpack.c.l.b16 %v112
  %v1275 = vunpack.c.h.b16 %v112
  %v1276 = vunpack.c.l.b16 %v113
  %v1277 = vunpack.c.h.b16 %v113
  %v1278 = vunpack.c.l.b16 %v114
  %v1279 = vunpack.c.h.b16 %v114
  %v1280 = vunpack.c.l.b16 %v115
  %v1281 = vunpack.c.h.b16 %v115
  %v1282 = vunpack.c.l.b16 %v116
  %v1283 = vunpack.c.h.b16 %v116
  %v1284 = vunpack.c.l.b16 %v117
  %v1285 = vunpack.c.h.b16 %v117
  %v1286 = vunpack.c.l.b16 %v118
  %v1287 = vunpack.c.h.b16 %v118
  %v1288 = vunpack.c.l.b16 %v119
  %v1289 = vunpack.c.h.b16 %v119
  %v1290 = vunpack.c.l.b16 %v120
  %v1291 = vunpack.c.h.b16 %v120
  %v1292 = vunpack.c.l.b16 %v121
  %v1293 = vunpack.c.h.b16 %v121
  %v1294 = vunpack.c.l.b16 %v122
  %v1295 = vunpack.c.h.b16 %v122
  %v1296 = vunpack.c.l.b16 %v123
  %v1297 = vunpack.c.h.b16 %v123
  %v1298 = vunpack.c.l.b16 %v124
  %v1299 = vunpack.c.h.b16 %v124
  %v1300 = vunpack.c.l.b16 %v125
  %v1301 = vunpack.c.h.b16 %v125
  %v1302 = vunpack.c.l.b16 %v126
  %v1303 = vunpack.c.h.b16 %v126
  %v1304 = vunpack.c.l.b16 %v127
  %v1305 = vunpack.c.h.b16 %v127
  %v1306 = vunpack.c.l.b16 %v128
  %v1307 = vunpack.c.h.b16 %v128
  %v1308 = vunpack.c.l.b16 %v129
  %v1309 = vunpack.c.h.b16 %v129
  %v1310 = vunpack.c.l.b16 %v130
  %v1311 = vunpack.c.h.b16 %v130
  %v1312 = vunpack.c.l.b16 %v131
  %v1313 = vunpack.c.h.b16 %v131
  %v1314 = vunpack.c.l.b16 %v132
  %v1315 = vunpack.c.h.b16 %v132
  %v1316 = vunpack.c.l.b16 %v133
  %v1317 = vunpack.c.h.b16 %v133
  %v1318 = vunpack.c.l.b16 %v134
  %v1319 = vunpack.c.h.b16 %v134
  %v1320 = vunpack.c.l.b16 %v135
  %v1321 = vunpack.c.h.b16 %v135
  %v1322 = vunpack.c.l.b16 %v136
  %v1323 = vunpack.c.h.b16 %v136
  %v1324 = vunpack.c.l.b16 %v137
  %v1325 = vunpack.c.h.b16 %v137
  %v1326 = vunpack.c.l.b16 %v138
  %v1327 = vunpack.c.h.b16 %v138
  %v1328 = vunpack.c.l.b16 %v139
  %v1329 = vunpack.c.h.b16 %v139
  %v1330 = vunpack.c.l.b16 %v140
  %v1331 = vunpack.c.h.b16 %v140
  %v1332 = vunpack.c.l.b16 %v141
  %v1333 = vunpack.c.h.b16 %v141
  %v1334 = vunpack.c.l.b16 %v142
  %v1335 = vunpack.c.h.b16 %v142
  %v1336 = vunpack.c.l.b16 %v143
  %v1337 = vunpack.c.h.b16 %v143
  %v1338 = vunpack.c.l.b16 %v144
  %v1339 = vunpack.c.h.b16 %v144
  %v1340 = vunpack.c.l.b16 %v145
  %v1341 = vunpack.c.h.b16 %v145
  %v1342 = vunpack.c.l.b16 %v146
  %v1343 = vunpack.c.h.b16 %v146
  %v1344 = vunpack.c.l.b16 %v147
  %v1345 = vunpack.c.h.b16 %v147
  %v1346 = vunpack.c.l.b16 %v148
  %v1347 = vunpack.c.h.b16 %v148
  %v1348 = vunpack.c.l.b16 %v149
  %v1349 = vunpack.c.h.b16 %v149
  %v1350 = vunpack.c.l.b16 %v150
  %v1351 = vunpack.c.h.b16 %v150
  %v1352 = vunpack.c.l.b16 %v151
  %v1353 = vunpack.c.h.b16 %v151
  %v1354 = vunpack.c.l.b16 %v152
  %v1355 = vunpack.c.h.b16 %v152
  %v1356 = vunpack.c.l.b16 %v153
  %v1357 = vunpack.c.h.b16 %v153
  %v1358 = vunpack.c.l.b16 %v154
  %v1359 = vunpack.c.h.b16 %v154
  %v1360 = vunpack.c.l.b16 %v155
  %v1361 = vunpack.c.h.b16 %v155
  %v1362 = vunpack.c.l.b16 %v156
  %v1363 = vunpack.c.h.b16 %v156
  %v1364 = vunpack.c.l.b16 %v157
  %v1365 = vunpack.c.h.b16 %v157
  %v1366 = vunpack.c.l.b16 %v158
  %v1367 = vunpack.c.h.b16 %v158
  %v1368 = vunpack.c.l.b16 %v159
  %v1369 = vunpack.c.h.b16 %v159
  %v1370 = vunpack.c.l.b16 %v160
  %v1371 = vunpack.c.h.b16 %v160
  %v1372 = vunpack.c.l.b16 %v161
  %v1373 = vunpack.c.h.b16 %v161
  %v1374 = vunpack.c.l.b16 %v162
  %v1375 = vunpack.c.h.b16 %v162
  %v1376 = vunpack.c.l.b16 %v163
  %v1377 = vunpack.c.h.b16 %v163
  %v1378 = vunpack.c.l.b16 %v164
  %v1379 = vunpack.c.h.b16 %v164
  %v1380 = vunpack.c.l.b16 %v165
  %v1381 = vunpack.c.h.b16 %v165
  %v1382 = vunpack.c.l.b16 %v166
  %v1383 = vunpack.c.h.b16 %v166
  %v1384 = vunpack.c.l.b16 %v167
  %v1385 = vunpack.c.h.b16 %v167
  %v1386 = vunpack.c.l.b16 %v168
  %v1387 = vunpack.c.h.b16 %v168
  %v1388 = vunpack.c.l.b16 %v169
  %v1389 = vunpack.c.h.b16 %v169
  %v1390 = vunpack.c.l.b16 %v170
  %v1391 = vunpack.c.h.b16 %v170
  %v1392 = vunpack.c.l.b16 %v171
  %v1393 = vunpack.c.h.b16 %v171
  %v1394 = vunpack.c.l.b16 %v172
  %v1395 = vunpack.c.h.b16 %v172
  %v1396 = vunpack.c.l.b16 %v173
  %v1397 = vunpack.c.h.b16 %v173
  %v1398 = vunpack.c.l.b16 %v174
  %v1399 = vunpack.c.h.b16 %v174
  %v1400 = vunpack.c.l.b16 %v175
  %v1401 = vunpack.c.h.b16 %v175
  %v1402 = vunpack.c.l.b16 %v176
  %v1403 = vunpack.c.h.b16 %v176
  %v1404 = vunpack.c.l.b16 %v177
  %v1405 = vunpack.c.h.b16 %v177
  %v1406 = vunpack.c.l.b16 %v178
  %v1407 = vunpack.c.h.b16 %v178
  %v1408 = vunpack.c.l.b16 %v179
  %v1409 = vunpack.c.h.b16 %v179
  %v1410 = vunpack.c.l.b16 %v180
  %v1411 = vunpack.c.h.b16 %v180
  %v1412 = vunpack.c.l.b16 %v181
  %v1413 = vunpack.c.h.b16 %v181
  %v1414 = vunpack.c.l.b16 %v182
  %v1415 = vunpack.c.h.b16 %v182
  %v1416 = vunpack.c.l.b16 %v183
  %v1417 = vunpack.c.h.b16 %v183
  %v1418 = vunpack.c.l.b16 %v184
  %v1419 = vunpack.c.h.b16 %v184
  %v1420 = vunpack.c.l.b16 %v185
  %v1421 = vunpack.c.h.b16 %v185
  %v1422 = vunpack.c.l.b16 %v186
  %v1423 = vunpack.c.h.b16 %v186
  %v1424 = vunpack.c.l.b16 %v187
  %v1425 = vunpack.c.h.b16 %v187
  %v1426 = vunpack.c.l.b16 %v188
  %v1427 = vunpack.c.h.b16 %v188
  %v1428 = vunpack.c.l.b16 %v189
  %v1429 = vunpack.c.h.b16 %v189
  %v1430 = vunpack.c.l.b16 %v190
  %v1431 = vunpack.c.h.b16 %v190
  %v1432 = vunpack.c.l.b16 %v191
  %v1433 = vunpack.c.h.b16 %v191
  %v1434 = vunpack.c.l.b16 %v192
  %v1435 = vunpack.c.h.b16 %v192
  %v1436 = vunpack.c.l.b16 %v193
  %v1437 = vunpack.c.h.b16 %v193
  %v1438 = vunpack.c.l.b16 %v194
  %v1439 = vunpack.c.h.b16 %v194
  %v1440 = vunpack.c.l.b16 %v195
  %v1441 = vunpack.c.h.b16 %v195
  %v1442 = vunpack.c.l.b16 %v196
  %v1443 = vunpack.c.h.b16 %v196
  %v1444 = vunpack.c.l.b16 %v197
  %v1445 = vunpack.c.h.b16 %v197
  %v1446 = vunpack.c.l.b16 %v198
  %v1447 = vunpack.c.h.b16 %v198
  %v1448 = vunpack.c.l.b16 %v199
  %v1449 = vunpack.c.h.b16 %v199
  %v1450 = vunpack.c.l.b16 %v200
  %v1451 = vunpack.c.h.b16 %v200
  %v1452 = vunpack.c.l.b16 %v201
  %v1453 = vunpack.c.h.b16 %v201
  %v1454 = vunpack.c.l.b16 %v202
  %v1455 = vunpack.c.h.b16 %v202
  %v1456 = vunpack.c.l.b16 %v203
  %v1457 = vunpack.c.h.b16 %v203
  %v1458 = vunpack.c.l.b16 %v204
  %v1459 = vunpack.c.h.b16 %v204
  %v1460 = vunpack.c.l.b16 %v205
  %v1461 = vunpack.c.h.b16 %v205
  %v1462 = vunpack.c.l.b16 %v206
  %v1463 = vunpack.c.h.b16 %v206
  %v1464 = vunpack.c.l.b16 %v207
  %v1465 = vunpack.c.h.b16 %v207
  %v1466 = vunpack.c.l.b16 %v208
  %v1467 = vunpack.c.h.b16 %v208
  %v1468 = vunpack.c.l.b16 %v209
  %v1469 = vunpack.c.h.b16 %v209
  %v1470 = vunpack.c.l.b16 %v210
  %v1471 = vunpack.c.h.b16 %v210
  %v1472 = vunpack.c.l.b16 %v211
  %v1473 = vunpack.c.h.b16 %v211
  %v1474 = vunpack.c.l.b16 %v212
  %v1475 = vunpack.c.h.b16 %v212
  %v1476 = vunpack.c.l.b16 %v213
  %v1477 = vunpack.c.h.b16 %v213
  %v1478 = vunpack.c.l.b16 %v214
  %v1479 = vunpack.c.h.b16 %v214
  %v1480 = vunpack.c.l.b16 %v215
  %v1481 = vunpack.c.h.b16 %v215
  %v1482 = vunpack.c.l.b16 %v216
  %v1483 = vunpack.c.h.b16 %v216
  %v1484 = vunpack.c.l.b16 %v217
  %v1485 = vunpack.c.h.b16 %v217
  %v1486 = vunpack.c.l.b16 %v218
  %v1487 = vunpack.c.h.b16 %v218
  %v1488 = vunpack.c.l.b16 %v219
  %v1489 = vunpack.c.h.b16 %v219
  %v1490 = vunpack.c.l.b16 %v220
  %v1491 = vunpack.c.h.b16 %v220
  %v1492 = vunpack.c.l.b16 %v221
  %v1493 = vunpack.c.h.b16 %v221
  %v1494 = vunpack.c.l.b16 %v222
  %v1495 = vunpack.c.h.b16 %v222
  %v1496 = vunpack.c.l.b16 %v223
  %v1497 = vunpack.c.h.b16 %v223
  %v1498 = vunpack.c.l.b16 %v224
  %v1499 = vunpack.c.h.b16 %v224
  %v1500 = vunpack.c.l.b16 %v225
  %v1501 = vunpack.c.h.b16 %v225
  %v1502 = vunpack.c.l.b16 %v226
  %v1503 = vunpack.c.h.b16 %v226
  %v1504 = vunpack.c.l.b16 %v227
  %v1505 = vunpack.c.h.b16 %v227
  %v1506 = vunpack.c.l.b16 %v228
  %v1507 = vunpack.c.h.b16 %v228
  %v1508 = vunpack.c.l.b16 %v229
  %v1509 = vunpack.c.h.b16 %v229
  %v1510 = vunpack.c.l.b16 %v230
  %v1511 = vunpack.c.h.b16 %v230
  %v1512 = vunpack.c.l.b16 %v231
  %v1513 = vunpack.c.h.b16 %v231
  %v1514 = vunpack.c.l.b16 %v232
  %v1515 = vunpack.c.h.b16 %v232
  %v1516 = vunpack.c.l.b16 %v233
  %v1517 = vunpack.c.h.b16 %v233
  %v1518 = vunpack.c.l.b16 %v234
  %v1519 = vunpack.c.h.b16 %v234
  %v1520 = vunpack.c.l.b16 %v235
  %v1521 = vunpack.c.h.b16 %v235
  %v1522 = vunpack.c.l.b16 %v236
  %v1523 = vunpack.c.h.b16 %v236
  %v1524 = vunpack.c.l.b16 %v237
  %v1525 = vunpack.c.h.b16 %v237
  %v1526 = vunpack.c.l.b16 %v238
  %v1527 = vunpack.c.h.b16 %v238
  %v1528 = vunpack.c.l.b16 %v239
  %v1529 = vunpack.c.h.b16 %v239
  %v1530 = vunpack.c.l.b16 %v240
  %v1531 = vunpack.c.h.b16 %v240
  %v1532 = vunpack.c.l.b16 %v241
  %v1533 = vunpack.c.h.b16 %v241
  %v1534 = vunpack.c.l.b16 %v242
  %v1535 = vunpack.c.h.b16 %v242
  %v1536 = vunpack.c.l.b16 %v243
  %v1537 = vunpack.c.h.b16 %v243
  %v1538 = vunpack.c.l.b16 %v244
  %v1539 = vunpack.c.h.b16 %v244
  %v1540 = vunpack.c.l.b16 %v245
  %v1541 = vunpack.c.h.b16 %v245
  %v1542 = vunpack.c.l.b16 %v246
  %v1543 = vunpack.c.h.b16 %v246
  %v1544 = vunpack.c.l.b16 %v247
  %v1545 = vunpack.c.h.b16 %v247
  %v1546 = vunpack.c.l.b16 %v248
  %v1547 = vunpack.c.h.b16 %v248
  %v1548 = vunpack.c.l.b16 %v249
  %v1549 = vunpack.c.h.b16 %v249
  %v1550 = vunpack.c.l.b16 %v250
  %v1551 = vunpack.c.h.b16 %v250
  %v1552 = vunpack.c.l.b16 %v251
  %v1553 = vunpack.c.h.b16 %v251
  %v1554 = vunpack.c.l.b16 %v252
  %v1555 = vunpack.c.h.b16 %v252
  %v1556 = vunpack.c.l.b16 %v253
  %v1557 = vunpack.c.h.b16 %v253
  %v1558 = vunpack.c.l.b16 %v254
  %v1559 = vunpack.c.h.b16 %v254
  %v1560 = vunpack.c.l.b16 %v255
  %v1561 = vunpack.c.h.b16 %v255
  %v1562 = vunpack.c.l.b16 %v256
  %v1563 = vunpack.c.h.b16 %v256
  %v1564 = vunpack.c.l.b16 %v257
  %v1565 = vunpack.c.h.b16 %v257
  %v1566 = vunpack.c.l.b16 %v258
  %v1567 = vunpack.c.h.b16 %v258
  %v1568 = vunpack.c.l.b16 %v259
  %v1569 = vunpack.c.h.b16 %v259
  %v1570 = vunpack.c.l.b16 %v260
  %v1571 = vunpack.c.h.b16 %v260
  %v1572 = vunpack.c.l.b16 %v261
  %v1573 = vunpack.c.h.b16 %v261
  %v1574 = vunpack.c.l.b16 %v262
  %v1575 = vunpack.c.h.b16 %v262
  %v1576 = vunpack.c.l.b16 %v263
  %v1577 = vunpack.c.h.b16 %v263
  %v1578 = vunpack.c.l.b16 %v264
  %v1579 = vunpack.c.h.b16 %v264
  %v1580 = vunpack.c.l.b16 %v265
  %v1581 = vunpack.c.h.b16 %v265
  %v1582 = vunpack.c.l.b16 %v266
  %v1583 = vunpack.c.h.b16 %v266
  %v1584 = vunpack.c.l.b16 %v267
  %v1585 = vunpack.c.h.b16 %v267
  %v1586 = vunpack.c.l.b16 %v268
  %v1587 = vunpack.c.h.b16 %v268
  %v1588 = vunpack.c.l.b16 %v269
  %v1589 = vunpack.c.h.b16 %v269
  %v1590 = vunpack.c.l.b16 %v270
  %v1591 = vunpack.c.h.b16 %v270
  %v1592 = vunpack.c.l.b16 %v271
  %v1593 = vunpack.c.h.b16 %v271
  %v1594 = vunpack.c.l.b16 %v272
  %v1595 = vunpack.c.h.b16 %v272
  %v1596 = vunpack.c.l.b16 %v273
  %v1597 = vunpack.c.h.b16 %v273
  %v1598 = vunpack.c.l.b16 %v274
  %v1599 = vunpack.c.h.b16 %v274
  %v1600 = vunpack.c.l.b16 %v275
  %v1601 = vunpack.c.h.b16 %v275
  %v1602 = vunpack.c.l.b16 %v276
  %v1603 = vunpack.c.h.b16 %v276
  %v1604 = vunpack.c.l.b16 %v277
  %v1605 = vunpack.c.h.b16 %v277
  %v1606 = vunpack.c.l.b16 %v278
  %v1607 = vunpack.c.h.b16 %v278
  %v1608 = vunpack.c.l.b16 %v279
  %v1609 = vunpack.c.h.b16 %v279
  %v1610 = vunpack.c.l.b16 %v280
  %v1611 = vunpack.c.h.b16 %v280
  %v1612 = vunpack.c.l.b16 %v281
  %v1613 = vunpack.c.h.b16 %v281
  %v1614 = vunpack.c.l.b16 %v282
  %v1615 = vunpack.c.h.b16 %v282
  %v1616 = vunpack.c.l.b16 %v283
  %v1617 = vunpack.c.h.b16 %v283
  %v1618 = vunpack.c.l.b16 %v284
  %v1619 = vunpack.c.h.b16 %v284
  %v1620 = vunpack.c.l.b16 %v285
  %v1621 = vunpack.c.h.b16 %v285
  %v1622 = vunpack.c.l.b16 %v286
  %v1623 = vunpack.c.h.b16 %v286
  %v1624 = vunpack.c.l.b16 %v287
  %v1625 = vunpack.c.h.b16 %v287
  %v1626 = vunpack.c.l.b16 %v288
  %v1627 = vunpack.c.h.b16 %v288
  %v1628 = vunpack.c.l.b16 %v289
  %v1629 = vunpack.c.h.b16 %v289
  %v1630 = vunpack.c.l.b16 %v290
  %v1631 = vunpack.c.h.b16 %v290
  %v1632 = vunpack.c.l.b16 %v291
  %v1633 = vunpack.c.h.b16 %v291
  %v1634 = vunpack.c.l.b16 %v292
  %v1635 = vunpack.c.h.b16 %v292
  %v1636 = vunpack.c.l.b16 %v293
  %v1637 = vunpack.c.h.b16 %v293
  %v1638 = vunpack.c.l.b16 %v294
  %v1639 = vunpack.c.h.b16 %v294
  %v1640 = vunpack.c.l.b16 %v295
  %v1641 = vunpack.c.h.b16 %v295
  %v1642 = vunpack.c.l.b16 %v296
  %v1643 = vunpack.c.h.b16 %v296
  %v1644 = vunpack.c.l.b16 %v297
  %v1645 = vunpack.c.h.b16 %v297
  %v1646 = vunpack.c.l.b16 %v298
  %v1647 = vunpack.c.h.b16 %v298
  %v1648 = vunpack.c.l.b16 %v299
  %v1649 = vunpack.c.h.b16 %v299
  %v1650 = vunpack.c.l.b16 %v300
  %v1651 = vunpack.c.h.b16 %v300
  %v1652 = vunpack.c.l.b16 %v301
  %v1653 = vunpack.c.h.b16 %v301
  %v1654 = vunpack.c.l.b16 %v302
  %v1655 = vunpack.c.h.b16 %v302
  %v1656 = vunpack.c.l.b16 %v303
  %v1657 = vunpack.c.h.b16 %v303
  %v1658 = vunpack.c.l.b16 %v304
  %v1659 = vunpack.c.h.b16 %v304
  %v1660 = vunpack.c.l.b16 %v305
  %v1661 = vunpack.c.h.b16 %v305
  %v1662 = vunpack.c.l.b16 %v306
  %v1663 = vunpack.c.h.b16 %v306
  %v1664 = vunpack.c.l.b16 %v307
  %v1665 = vunpack.c.h.b16 %v307
  %v1666 = vunpack.c.l.b16 %v308
  %v1667 = vunpack.c.h.b16 %v308
  %v1668 = vunpack.c.l.b16 %v309
  %v1669 = vunpack.c.h.b16 %v309
  %v1670 = vunpack.c.l.b16 %v310
  %v1671 = vunpack.c.h.b16 %v310
  %v1672 = vunpack.c.l.b16 %v311
  %v1673 = vunpack.c.h.b16 %v311
  %v1674 = vunpack.c.l.b16 %v312
  %v1675 = vunpack.c.h.b16 %v312
  %v1676 = vunpack.c.l.b16 %v313
  %v1677 = vunpack.c.h.b16 %v313
  %v1678 = vunpack.c.l.b16 %v314
  %v1679 = vunpack.c.h.b16 %v314
  %v1680 = vunpack.c.l.b16 %v315
  %v1681 = vunpack.c.h.b16 %v315
  %v1682 = vunpack.c.l.b16 %v316
  %v1683 = vunpack.c.h.b16 %v316
  %v1684 = vunpack.c.l.b16 %v317
  %v1685 = vunpack.c.h.b16 %v317
  %v1686 = vunpack.c.l.b16 %v318
  %v1687 = vunpack.c.h.b16 %v318
  %v1688 = vunpack.c.l.b16 %v319
  %v1689 = vunpack.c.h.b16 %v319
  %v1690 = vunpack.c.l.b16 %v320
  %v1691 = vunpack.c.h.b16 %v320
  %v1692 = vunpack.c.l.b16 %v321
  %v1693 = vunpack.c.h.b16 %v321
  %v1694 = vunpack.c.l.b16 %v322
  %v1695 = vunpack.c.h.b16 %v322
  %v1696 = vunpack.c.l.b16 %v323
  %v1697 = vunpack.c.h.b16 %v323
  %v1698 = vunpack.c.l.b16 %v324
  %v1699 = vunpack.c.h.b16 %v324
  %v1700 = vunpack.c.l.b16 %v325
  %v1701 = vunpack.c.h.b16 %v325
  %v1702 = vunpack.c.l.b16 %v326
  %v1703 = vunpack.c.h.b16 %v326
  %v1704 = vunpack.c.l.b16 %v327
  %v1705 = vunpack.c.h.b16 %v327
  %v1706 = vunpack.c.l.b16 %v328
  %v1707 = vunpack.c.h.b16 %v328
  %v1708 = vunpack.c.l.b16 %v329
  %v1709 = vunpack.c.h.b16 %v329
  %v1710 = vunpack.c.l.b16 %v330
  %v1711 = vunpack.c.h.b16 %v330
  %v1712 = vunpack.c.l.b16 %v331
  %v1713 = vunpack.c.h.b16 %v331
  %v1714 = vunpack.c.l.b16 %v332
  %v1715 = vunpack.c.h.b16 %v332
  %v1716 = vunpack.c.l.b16 %v333
  %v1717 = vunpack.c.h.b16 %v333
  %v1718 = vunpack.c.l.b16 %v334
  %v1719 = vunpack.c.h.b16 %v334
  %v1720 = vunpack.c.l.b16 %v335
  %v1721 = vunpack.c.h.b16 %v335
  %v1722 = vunpack.c.l.b16 %v336
  %v1723 = vunpack.c.h.b16 %v336
  %v1724 = vunpack.c.l.b16 %v337
  %v1725 = vunpack.c.h.b16 %v337
  %v1726 = vunpack.c.l.b16 %v338
  %v1727 = vunpack.c.h.b16 %v338
  %v1728 = vunpack.c.l.b16 %v339
  %v1729 = vunpack.c.h.b16 %v339
  %v1730 = vunpack.c.l.b16 %v340
  %v1731 = vunpack.c.h.b16 %v340
  %v1732 = vunpack.c.l.b16 %v341
  %v1733 = vunpack.c.h.b16 %v341
  %v1734 = vunpack.c.l.b16 %v342
  %v1735 = vunpack.c.h.b16 %v342
  %v1736 = vunpack.c.l.b16 %v343
  %v1737 = vunpack.c.h.b16 %v343
  %v1738 = vunpack.c.l.b16 %v344
  %v1739 = vunpack.c.h.b16 %v344
  %v1740 = vunpack.c.l.b16 %v345
  %v1741 = vunpack.c.h.b16 %v345
  %v1742 = vunpack.c.l.b16 %v346
  %v1743 = vunpack.c.h.b16 %v346
  %v1744 = vunpack.c.l.b16 %v347
  %v1745 = vunpack.c.h.b16 %v347
  %v1746 = vunpack.c.l.b16 %v348
  %v1747 = vunpack.c.h.b16 %v348
  %v1748 = vunpack.c.l.b16 %v349
  %v1749 = vunpack.c.h.b16 %v349
  %v1750 = vunpack.c.l.b16 %v350
  %v1751 = vunpack.c.h.b16 %v350
  %v1752 = vunpack.c.l.b16 %v351
  %v1753 = vunpack.c.h.b16 %v351
  %v1754 = vunpack.c.l.b16 %v352
  %v1755 = vunpack.c.h.b16 %v352
  %v1756 = vunpack.c.l.b16 %v353
  %v1757 = vunpack.c.h.b16 %v353
  %v1758 = vunpack.c.l.b16 %v354
  %v1759 = vunpack.c.h.b16 %v354
  %v1760 = vunpack.c.l.b16 %v355
  %v1761 = vunpack.c.h.b16 %v355
  %v1762 = vunpack.c.l.b16 %v356
  %v1763 = vunpack.c.h.b16 %v356
  %v1764 = vunpack.c.l.b16 %v357
  %v1765 = vunpack.c.h.b16 %v357
  %v1766 = vunpack.c.l.b16 %v358
  %v1767 = vunpack.c.h.b16 %v358
  %v1768 = vunpack.c.l.b16 %v359
  %v1769 = vunpack.c.h.b16 %v359
  %v1770 = vunpack.c.l.b16 %v360
  %v1771 = vunpack.c.h.b16 %v360
  %v1772 = vunpack.c.l.b16 %v361
  %v1773 = vunpack.c.h.b16 %v361
  %v1774 = vunpack.c.l.b16 %v362
  %v1775 = vunpack.c.h.b16 %v362
  %v1776 = vunpack.c.l.b16 %v363
  %v1777 = vunpack.c.h.b16 %v363
  %v1778 = vunpack.c.l.b16 %v364
  %v1779 = vunpack.c.h.b16 %v364
  %v1780 = vunpack.c.l.b16 %v365
  %v1781 = vunpack.c.h.b16 %v365
  %v1782 = vunpack.c.l.b16 %v366
  %v1783 = vunpack.c.h.b16 %v366
  %v1784 = vunpack.c.l.b16 %v367
  %v1785 = vunpack.c.h.b16 %v367
  %v1786 = vunpack.c.l.b16 %v368
  %v1787 = vunpack.c.h.b16 %v368
  %v1788 = vunpack.c.l.b16 %v369
  %v1789 = vunpack.c.h.b16 %v369
  %v1790 = vunpack.c.l.b16 %v370
  %v1791 = vunpack.c.h.b16 %v370
  %v1792 = vunpack.c.l.b16 %v371
  %v1793 = vunpack.c.h.b16 %v371
  %v1794 = vunpack.c.l.b16 %v372
  %v1795 = vunpack.c.h.b16 %v372
  %v1796 = vunpack.c.l.b16 %v373
  %v1797 = vunpack.c.h.b16 %v373
  %v1798 = vunpack.c.l.b16 %v374
  %v1799 = vunpack.c.h.b16 %v374
  %v1800 = vunpack.c.l.b16 %v375
  %v1801 = vunpack.c.h.b16 %v375
  %v1802 = vunpack.c.l.b16 %v376
  %v1803 = vunpack.c.h.b16 %v376
  %v1804 = vunpack.c.l.b16 %v377
  %v1805 = vunpack.c.h.b16 %v377
  %v1806 = vunpack.c.l.b16 %v378
  %v1807 = vunpack.c.h.b16 %v378
  %v1808 = vunpack.c.l.b16 %v379
  %v1809 = vunpack.c.h.b16 %v379
  %v1810 = vunpack.c.l.b16 %v380
  %v1811 = vunpack.c.h.b16 %v380
  %v1812 = vunpack.c.l.b16 %v381
  %v1813 = vunpack.c.h.b16 %v381
  %v1814 = vunpack.c.l.b16 %v382
  %v1815 = vunpack.c.h.b16 %v382
  %v1816 = vunpack.c.l.b16 %v383
  %v1817 = vunpack.c.h.b16 %v383
  %v1818 = vunpack.c.l.b16 %v384
  %v1819 = vunpack.c.h.b16 %v384
  %v1820 = vunpack.c.l.b16 %v385
  %v1821 = vunpack.c.h.b16 %v385
  %v1822 = vunpack.c.l.b16 %v386
  %v1823 = vunpack.c.h.b16 %v386
  %v1824 = vunpack.c.l.b16 %v387
  %v1825 = vunpack.c.h.b16 %v387
  %v1826 = vunpack.c.l.b16 %v388
  %v1827 = vunpack.c.h.b16 %v388
  %v1828 = vunpack.c.l.b16 %v389
  %v1829 = vunpack.c.h.b16 %v389
  %v1830 = vunpack.c.l.b16 %v390
  %v1831 = vunpack.c.h.b16 %v390
  %v1832 = vunpack.c.l.b16 %v391
  %v1833 = vunpack.c.h.b16 %v391
  %v1834 = vunpack.c.l.b16 %v392
  %v1835 = vunpack.c.h.b16 %v392
  %v1836 = vunpack.c.l.b16 %v393
  %v1837 = vunpack.c.h.b16 %v393
  %v1838 = vunpack.c.l.b16 %v394
  %v1839 = vunpack.c.h.b16 %v394
  %v1840 = vunpack.c.l.b16 %v395
  %v1841 = vunpack.c.h.b16 %v395
  %v1842 = vunpack.c.l.b16 %v396
  %v1843 = vunpack.c.h.b16 %v396
  %v1844 = vunpack.c.l.b16 %v397
  %v1845 = vunpack.c.h.b16 %v397
  %v1846 = vunpack.c.l.b16 %v398
  %v1847 = vunpack.c.h.b16 %v398
  %v1848 = vunpack.c.l.b16 %v399
  %v1849 = vunpack.c.h.b16 %v399
  %v1850 = vunpack.c.l.b16 %v400
  %v1851 = vunpack.c.h.b16 %v400
  %v1852 = vunpack.c.l.b16 %v401
  %v1853 = vunpack.c.h.b16 %v401
  %v1854 = vunpack.c.l.b16 %v402
  %v1855 = vunpack.c.h.b16 %v402
  %v1856 = vunpack.c.l.b16 %v403
  %v1857 = vunpack.c.h.b16 %v403
  %v1858 = vunpack.c.l.b16 %v404
  %v1859 = vunpack.c.h.b16 %v404
  %v1860 = vunpack.c.l.b16 %v405
  %v1861 = vunpack.c.h.b16 %v405
  %v1862 = vunpack.c.l.b16 %v406
  %v1863 = vunpack.c.h.b16 %v406
  %v1864 = vunpack.c.l.b16 %v407
  %v1865 = vunpack.c.h.b16 %v407
  %v1866 = vunpack.c.l.b16 %v408
  %v1867 = vunpack.c.h.b16 %v408
  %v1868 = vunpack.c.l.b16 %v409
  %v1869 = vunpack.c.h.b16 %v409
  %v1870 = vunpack.c.l.b16 %v410
  %v1871 = vunpack.c.h.b16 %v410
  %v1872 = vunpack.c.l.b16 %v411
  %v1873 = vunpack.c.h.b16 %v411
  %v1874 = vunpack.c.l.b16 %v412
  %v1875 = vunpack.c.h.b16 %v412
  %v1876 = vunpack.c.l.b16 %v413
  %v1877 = vunpack.c.h.b16 %v413
  %v1878 = vunpack.c.l.b16 %v414
  %v1879 = vunpack.c.h.b16 %v414
  %v1880 = vunpack.c.l.b16 %v415
  %v1881 = vunpack.c.h.b16 %v415
  %v1882 = vunpack.c.l.b16 %v416
  %v1883 = vunpack.c.h.b16 %v416
  %v1884 = vunpack.c.l.b16 %v417
  %v1885 = vunpack.c.h.b16 %v417
  %v1886 = vunpack.c.l.b16 %v418
  %v1887 = vunpack.c.h.b16 %v418
  %v1888 = vunpack.c.l.b16 %v419
  %v1889 = vunpack.c.h.b16 %v419
  %v1890 = vunpack.c.l.b16 %v420
  %v1891 = vunpack.c.h.b16 %v420
  %v1892 = vunpack.c.l.b16 %v421
  %v1893 = vunpack.c.h.b16 %v421
  %v1894 = vunpack.c.l.b16 %v422
  %v1895 = vunpack.c.h.b16 %v422
  %v1896 = vunpack.c.l.b16 %v423
  %v1897 = vunpack.c.h.b16 %v423
  %v1898 = vunpack.c.l.b16 %v424
  %v1899 = vunpack.c.h.b16 %v424
  %v1900 = vunpack.c.l.b16 %v425
  %v1901 = vunpack.c.h.b16 %v425
  %v1902 = vunpack.c.l.b16 %v426
  %v1903 = vunpack.c.h.b16 %v426
  %v1904 = vunpack.c.l.b16 %v427
  %v1905 = vunpack.c.h.b16 %v427
  %v1906 = vunpack.c.l.b16 %v428
  %v1907 = vunpack.c.h.b16 %v428
  %v1908 = vunpack.c.l.b16 %v429
  %v1909 = vunpack.c.h.b16 %v429
  %v1910 = vunpack.c.l.b16 %v430
  %v1911 = vunpack.c.h.b16 %v430
  %v1912 = vunpack.c.l.b16 %v431
  %v1913 = vunpack.c.h.b16 %v431
  %v1914 = vunpack.c.l.b16 %v432
  %v1915 = vunpack.c.h.b16 %v432
  %v1916 = vunpack.c.l.b16 %v433
  %v1917 = vunpack.c.h.b16 %v433
  %v1918 = vunpack.c.l.b16 %v434
  %v1919 = vunpack.c.h.b16 %v434
  %v1920 = vunpack.c.l.b16 %v435
  %v1921 = vunpack.c.h.b16 %v435
  %v1922 = vunpack.c.l.b16 %v436
  %v1923 = vunpack.c.h.b16 %v436
  %v1924 = vunpack.c.l.b16 %v437
  %v1925 = vunpack.c.h.b16 %v437
  %v1926 = vunpack.c.l.b16 %v438
  %v1927 = vunpack.c.h.b16 %v438
  %v1928 = vunpack.c.l.b16 %v439
  %v1929 = vunpack.c.h.b16 %v439
  %v1930 = vunpack.c.l.b16 %v440
  %v1931 = vunpack.c.h.b16 %v440
  %v1932 = vunpack.c.l.b16 %v441
  %v1933 = vunpack.c.h.b16 %v441
  %v1934 = vunpack.c.l.b16 %v442
  %v1935 = vunpack.c.h.b16 %v442
  %v1936 = vunpack.c.l.b16 %v443
  %v1937 = vunpack.c.h.b16 %v443
  %v1938 = vunpack.c.l.b16 %v444
  %v1939 = vunpack.c.h.b16 %v444
  %v1940 = vunpack.c.l.b16 %v445
  %v1941 = vunpack.c.h.b16 %v445
  %v1942 = vunpack.c.l.b16 %v446
  %v1943 = vunpack.c.h.b16 %v446
  %v1944 = vunpack.c.l.b16 %v447
  %v1945 = vunpack.c.h.b16 %v447
  %v1946 = vunpack.c.l.b16 %v448
  %v1947 = vunpack.c.h.b16 %v448
  %v1948 = vunpack.c.l.b16 %v449
  %v1949 = vunpack.c.h.b16 %v449
  %v1950 = vunpack.c.l.b16 %v450
  %v1951 = vunpack.c.h.b16 %v450
  %v1952 = vunpack.c.l.b16 %v451
  %v1953 = vunpack.c.h.b16 %v451
  %v1954 = vunpack.c.l.b16 %v452
  %v1955 = vunpack.c.h.b16 %v452
  %v1956 = vunpack.c.l.b16 %v453
  %v1957 = vunpack.c.h.b16 %v453
  %v1958 = vunpack.c.l.b16 %v454
  %v1959 = vunpack.c.h.b16 %v454
  %v1960 = vunpack.c.l.b16 %v455
  %v1961 = vunpack.c.h.b16 %v455
  %v1962 = vunpack.c.l.b16 %v456
  %v1963 = vunpack.c.h.b16 %v456
  %v1964 = vunpack.c.l.b16 %v457
  %v1965 = vunpack.c.h.b16 %v457
  %v1966 = vunpack.c.l.b16 %v458
  %v1967 = vunpack.c.h.b16 %v458
  %v1968 = vunpack.c.l.b16 %v459
  %v1969 = vunpack.c.h.b16 %v459
  %v1970 = vunpack.c.l.b16 %v460
  %v1971 = vunpack.c.h.b16 %v460
  %v1972 = vunpack.c.l.b16 %v461
  %v1973 = vunpack.c.h.b16 %v461
  %v1974 = vunpack.c.l.b16 %v462
  %v1975 = vunpack.c.h.b16 %v462
  %v1976 = vunpack.c.l.b16 %v463
  %v1977 = vunpack.c.h.b16 %v463
  %v1978 = vunpack.c.l.b16 %v464
  %v1979 = vunpack.c.h.b16 %v464
  %v1980 = vunpack.c.l.b16 %v465
  %v1981 = vunpack.c.h.b16 %v465
  %v1982 = vunpack.c.l.b16 %v466
  %v1983 = vunpack.c.h.b16 %v466
  %v1984 = vunpack.c.l.b16 %v467
  %v1985 = vunpack.c.h.b16 %v467
  %v1986 = vunpack.c.l.b16 %v468
  %v1987 = vunpack.c.h.b16 %v468
  %v1988 = vunpack.c.l.b16 %v469
  %v1989 = vunpack.c.h.b16 %v469
  %v1990 = vunpack.c.l.b16 %v470
  %v1991 = vunpack.c.h.b16 %v470
  %v1992 = vunpack.c.l.b16 %v471
  %v1993 = vunpack.c.h.b16 %v471
  %v1994 = vunpack.c.l.b16 %v472
  %v1995 = vunpack.c.h.b16 %v472
  %v1996 = vunpack.c.l.b16 %v473
  %v1997 = vunpack.c.h.b16 %v473
  %v1998 = vunpack.c.l.b16 %v474
  %v1999 = vunpack.c.h.b16 %v474
  %v2000 = vunpack.c.l.b16 %v475
  %v2001 = vunpack.c.h.b16 %v475
  %v2002 = vunpack.c.l.b16 %v476
  %v2003 = vunpack.c.h.b16 %v476
  %v2004 = vunpack.c.l.b16 %v477
  %v2005 = vunpack.c.h.b16 %v477
  %v2006 = vunpack.c.l.b16 %v478
  %v2007 = vunpack.c.h.b16 %v478
  %v2008 = vunpack.c.l.b16 %v479
  %v2009 = vunpack.c.h.b16 %v479
  %v2010 = vunpack.c.l.b16 %v480
  %v2011 = vunpack.c.h.b16 %v480
  %v2012 = vunpack.c.l.b16 %v481
  %v2013 = vunpack.c.h.b16 %v481
  %v2014 = vunpack.c.l.b16 %v482
  %v2015 = vunpack.c.h.b16 %v482
  %v2016 = vunpack.c.l.b16 %v483
  %v2017 = vunpack.c.h.b16 %v483
  %v2018 = vunpack.c.l.b16 %v484
  %v2019 = vunpack.c.h.b16 %v484
  %v2020 = vunpack.c.l.b16 %v485
  %v2021 = vunpack.c.h.b16 %v485
  %v2022 = vunpack.c.l.b16 %v486
  %v2023 = vunpack.c.h.b16 %v486
  %v2024 = vunpack.c.l.b16 %v487
  %v2025 = vunpack.c.h.b16 %v487
  %v2026 = vunpack.c.l.b16 %v488
  %v2027 = vunpack.c.h.b16 %v488
  %v2028 = vpack.c.b16 %v1166, %v1164
  %v2029 = vpack.c.b16 %v1167, %v1165
  %v2030 = vpack.c.b16 %v1170, %v1168
  %v2031 = vpack.c.b16 %v1171, %v1169
  %v2032 = vpack.c.b16 %v1174, %v1172
  %v2033 = vpack.c.b16 %v1175, %v1173
  %v2034 = vpack.c.b16 %v1178, %v1176
  %v2035 = vpack.c.b16 %v1179, %v1177
  %v2036 = vpack.c.b16 %v1182, %v1180
  %v2037 = vpack.c.b16 %v1183, %v1181
  %v2038 = vpack.c.b16 %v1186, %v1184
  %v2039 = vpack.c.b16 %v1187, %v1185
  %v2040 = vpack.c.b16 %v1190, %v1188
  %v2041 = vpack.c.b16 %v1191, %v1189
  %v2042 = vpack.c.b16 %v1194, %v1192
  %v2043 = vpack.c.b16 %v1195, %v1193
  %v2044 = vpack.c.b16 %v1198, %v1196
  %v2045 = vpack.c.b16 %v1199, %v1197
  %v2046 = vpack.c.b16 %v1202, %v1200
  %v2047 = vpack.c.b16 %v1203, %v1201
  %v2048 = vpack.c.b16 %v1206, %v1204
  %v2049 = vpack.c.b16 %v1207, %v1205
  %v2050 = vpack.c.b16 %v1210, %v1208
  %v2051 = vpack.c.b16 %v1211, %v1209
  %v2052 = vpack.c.b16 %v1214, %v1212
  %v2053 = vpack.c.b16 %v1215, %v1213
  %v2054 = vpack.c.b16 %v1218, %v1216
  %v2055 = vpack.c.b16 %v1219, %v1217
  %v2056 = vpack.c.b16 %v1222, %v1220
  %v2057 = vpack.c.b16 %v1223, %v1221
  %v2058 = vpack.c.b16 %v1226, %v1224
  %v2059 = vpack.c.b16 %v1227, %v1225
  %v2060 = vpack.c.b16 %v1230, %v1228
  %v2061 = vpack.c.b16 %v1231, %v1229
  %v2062 = vpack.c.b16 %v1234, %v1232
  %v2063 = vpack.c.b16 %v1235, %v1233
  %v2064 = vpack.c.b16 %v1238, %v1236
  %v2065 = vpack.c.b16 %v1239, %v1237
  %v2066 = vpack.c.b16 %v1242, %v1240
  %v2067 = vpack.c.b16 %v1243, %v1241
  %v2068 = vpack.c.b16 %v1246, %v1244
  %v2069 = vpack.c.b16 %v1247, %v1245
  %v2070 = vpack.c.b16 %v1250, %v1248
  %v2071 = vpack.c.b16 %v1251, %v1249
  %v2072 = vpack.c.b16 %v1254, %v1252
  %v2073 = vpack.c.b16 %v1255, %v1253
  %v2074 = vpack.c.b16 %v1258, %v1256
  %v2075 = vpack.c.b16 %v1259, %v1257
  %v2076 = vpack.c.b16 %v1262, %v1260
  %v2077 = vpack.c.b16 %v1263, %v1261
  %v2078 = vpack.c.b16 %v1266, %v1264
  %v2079 = vpack.c.b16 %v1267, %v1265
  %v2080 = vpack.c.b16 %v1270, %v1268
  %v2081 = vpack.c.b16 %v1271, %v1269
  %v2082 = vpack.c.b16 %v1274, %v1272
  %v2083 = vpack.c.b16 %v1275, %v1273
  %v2084 = vpack.c.b16 %v1278, %v1276
  %v2085 = vpack.c.b16 %v1279, %v1277
  %v2086 = vpack.c.b16 %v1282, %v1280
  %v2087 = vpack.c.b16 %v1283, %v1281
  %v2088 = vpack.c.b16 %v1286, %v1284
  %v2089 = vpack.c.b16 %v1287, %v1285
  %v2090 = vpack.c.b16 %v1290, %v1288
  %v2091 = vpack.c.b16 %v1291, %v1289
  %v2092 = vpack.c.b16 %v1294, %v1292
  %v2093 = vpack.c.b16 %v1295, %v1293
  %v2094 = vpack.c.b16 %v1298, %v1296
  %v2095 = vpack.c.b16 %v1299, %v1297
  %v2096 = vpack.c.b16 %v1302, %v1300
  %v2097 = vpack.c.b16 %v1303, %v1301
  %v2098 = vpack.c.b16 %v1306, %v1304
  %v2099 = vpack.c.b16 %v1307, %v1305
  %v2100 = vpack.c.b16 %v1310, %v1308
  %v2101 = vpack.c.b16 %v1311, %v1309
  %v2102 = vpack.c.b16 %v1314, %v1312
  %v2103 = vpack.c.b16 %v1315, %v1313
  %v2104 = vpack.c.b16 %v1318, %v1316
  %v2105 = vpack.c.b16 %v1319, %v1317
  %v2106 = vpack.c.b16 %v1322, %v1320
  %v2107 = vpack.c.b16 %v1323, %v1321
  %v2108 = vpack.c.b16 %v1326, %v1324
  %v2109 = vpack.c.b16 %v1327, %v1325
  %v2110 = vpack.c.b16 %v1330, %v1328
  %v2111 = vpack.c.b16 %v1331, %v1329
  %v2112 = vpack.c.b16 %v1334, %v1332
  %v2113 = vpack.c.b16 %v1335, %v1333
  %v2114 = vpack.c.b16 %v1338, %v1336
  %v2115 = vpack.c.b16 %v1339, %v1337
  %v2116 = vpack.c.b16 %v1342, %v1340
  %v2117 = vpack.c.b16 %v1343, %v1341
  %v2118 = vpack.c.b16 %v1346, %v1344
  %v2119 = vpack.c.b16 %v1347, %v1345
  %v2120 = vpack.c.b16 %v1350, %v1348
  %v2121 = vpack.c.b16 %v1351, %v1349
  %v2122 = vpack.c.b16 %v1354, %v1352
  %v2123 = vpack.c.b16 %v1355, %v1353
  %v2124 = vpack.c.b16 %v1358, %v1356
  %v2125 = vpack.c.b16 %v1359, %v1357
  %v2126 = vpack.c.b16 %v1362, %v1360
  %v2127 = vpack.c.b16 %v1363, %v1361
  %v2128 = vpack.c.b16 %v1366, %v1364
  %v2129 = vpack.c.b16 %v1367, %v1365
  %v2130 = vpack.c.b16 %v1370, %v1368
  %v2131 = vpack.c.b16 %v1371, %v1369
  %v2132 = vpack.c.b16 %v1374, %v1372
  %v2133 = vpack.c.b16 %v1375, %v1373
  %v2134 = vpack.c.b16 %v1378, %v1376
  %v2135 = vpack.c.b16 %v1379, %v1377
  %v2136 = vpack.c.b16 %v1382, %v1380
  %v2137 = vpack.c.b16 %v1383, %v1381
  %v2138 = vpack.c.b16 %v1386, %v1384
  %v2139 = vpack.c.b16 %v1387, %v1385
  %v2140 = vpack.c.b16 %v1390, %v1388
  %v2141 = vpack.c.b16 %v1391, %v1389
  %v2142 = vpack.c.b16 %v1394, %v1392
  %v2143 = vpack.c.b16 %v1395, %v1393
  %v2144 = vpack.c.b16 %v1398, %v1396
  %v2145 = vpack.c.b16 %v1399, %v1397
  %v2146 = vpack.c.b16 %v1402, %v1400
  %v2147 = vpack.c.b16 %v1403, %v1401
  %v2148 = vpack.c.b16 %v1406, %v1404
  %v2149 = vpack.c.b16 %v1407, %v1405
  %v2150 = vpack.c.b16 %v1410, %v1408
  %v2151 = vpack.c.b16 %v1411, %v1409
  %v2152 = vpack.c.b16 %v1414, %v1412
  %v2153 = vpack.c.b16 %v1415, %v1413
  %v2154 = vpack.c.b16 %v1418, %v1416
  %v2155 = vpack.c.b16 %v1419, %v1417
  %v2156 = vpack.c.b16 %v1422, %v1420
  %v2157 = vpack.c.b16 %v1423, %v1421
  %v2158 = vpack.c.b16 %v1426, %v1424
  %v2159 = vpack.c.b16 %v1427, %v1425
  %v2160 = vpack.c.b16 %v1430, %v1428
  %v2161 = vpack.c.b16 %v1431, %v1429
  %v2162 = vpack.c.b16 %v1434, %v1432
  %v2163 = vpack.c.b16 %v1435, %v1433
  %v2164 = vpack.c.b16 %v1438, %v1436
  %v2165 = vpack.c.b16 %v1439, %v1437
  %v2166 = vpack.c.b16 %v1442, %v1440
  %v2167 = vpack.c.b16 %v1443, %v1441
  %v2168 = vpack.c.b16 %v1446, %v1444
  %v2169 = vpack.c.b16 %v1447, %v1445
  %v2170 = vpack.c.b16 %v1450, %v1448
  %v2171 = vpack.c.b16 %v1451, %v1449
  %v2172 = vpack.c.b16 %v1454, %v1452
  %v2173 = vpack.c.b16 %v1455, %v1453
  %v2174 = vpack.c.b16 %v1458, %v1456
  %v2175 = vpack.c.b16 %v1459, %v1457
  %v2176 = vpack.c.b16 %v1462, %v1460
  %v2177 = vpack.c.b16 %v1463, %v1461
  %v2178 = vpack.c.b16 %v1466, %v1464
  %v2179 = vpack.c.b16 %v1467, %v1465
  %v2180 = vpack.c.b16 %v1470, %v1468
  %v2181 = vpack.c.b16 %v1471, %v1469
  %v2182 = vpack.c.b16 %v1474, %v1472
  %v2183 = vpack.c.b16 %v1475, %v1473
  %v2184 = vpack.c.b16 %v1478, %v1476
  %v2185 = vpack.c.b16 %v1479, %v1477
  %v2186 = vpack.c.b16 %v1482, %v1480
  %v2187 = vpack.c.b16 %v1483, %v1481
  %v2188 = vpack.c.b16 %v1486, %v1484
  %v2189 = vpack.c.b16 %v1487, %v1485
  %v2190 = vpack.c.b16 %v1490, %v1488
  %v2191 = vpack.c.b16 %v1491, %v1489
  %v2192 = vpack.c.b16 %v1494, %v1492
  %v2193 = vpack.c.b16 %v1495, %v1493
  %v2194 = vpack.c.b16 %v1498, %v1496
  %v2195 = vpack.c.b16 %v1499, %v1497
  %v2196 = vpack.c.b16 %v1502, %v1500
  %v2197 = vpack.c.b16 %v1503, %v1501
  %v2198 = vpack.c.b16 %v1506, %v1504
  %v2199 = vpack.c.b16 %v1507, %v1505
  %v2200 = vpack.c.b16 %v1510, %v1508
  %v2201 = vpack.c.b16 %v1511, %v1509
  %v2202 = vpack.c.b16 %v1514, %v1512
  %v2203 = vpack.c.b16 %v1515, %v1513
  %v2204 = vpack.c.b16 %v1518, %v1516
  %v2205 = vpack.c.b16 %v1519, %v1517
  %v2206 = vpack.c.b16 %v1522, %v1520
  %v2207 = vpack.c.b16 %v1523, %v1521
  %v2208 = vpack.c.b16 %v1526, %v1524
  %v2209 = vpack.c.b16 %v1527, %v1525
  %v2210 = vpack.c.b16 %v1530, %v1528
  %v2211 = vpack.c.b16 %v1531, %v1529
  %v2212 = vpack.c.b16 %v1534, %v1532
  %v2213 = vpack.c.b16 %v1535, %v1533
  %v2214 = vpack.c.b16 %v1538, %v1536
  %v2215 = vpack.c.b16 %v1539, %v1537
  %v2216 = vpack.c.b16 %v1542, %v1540
  %v2217 = vpack.c.b16 %v1543, %v1541
  %v2218 = vpack.c.b16 %v1546, %v1544
  %v2219 = vpack.c.b16 %v1547, %v1545
  %v2220 = vpack.c.b16 %v1550, %v1548
  %v2221 = vpack.c.b16 %v1551, %v1549
  %v2222 = vpack.c.b16 %v1554, %v1552
  %v2223 = vpack.c.b16 %v1555, %v1553
  %v2224 = vpack.c.b16 %v1558, %v1556
  %v2225 = vpack.c.b16 %v1559, %v1557
  %v2226 = vpack.c.b16 %v1562, %v1560
  %v2227 = vpack.c.b16 %v1563, %v1561
  %v2228 = vpack.c.b16 %v1566, %v1564
  %v2229 = vpack.c.b16 %v1567, %v1565
  %v2230 = vpack.c.b16 %v1570, %v1568
  %v2231 = vpack.c.b16 %v1571, %v1569
  %v2232 = vpack.c.b16 %v1574, %v1572
  %v2233 = vpack.c.b16 %v1575, %v1573
  %v2234 = vpack.c.b16 %v1578, %v1576
  %v2235 = vpack.c.b16 %v1579, %v1577
  %v2236 = vpack.c.b16 %v1582, %v1580
  %v2237 = vpack.c.b16 %v1583, %v1581
  %v2238 = vpack.c.b16 %v1586, %v1584
  %v2239 = vpack.c.b16 %v1587, %v1585
  %v2240 = vpack.c.b16 %v1590, %v1588
  %v2241 = vpack.c.b16 %v1591, %v1589
  %v2242 = vpack.c.b16 %v1594, %v1592
  %v2243 = vpack.c.b16 %v1595, %v1593
  %v2244 = vpack.c.b16 %v1598, %v1596
  %v2245 = vpack.c.b16 %v1599, %v1597
  %v2246 = vpack.c.b16 %v1602, %v1600
  %v2247 = vpack.c.b16 %v1603, %v1601
  %v2248 = vpack.c.b16 %v1606, %v1604
  %v2249 = vpack.c.b16 %v1607, %v1605
  %v2250 = vpack.c.b16 %v1610, %v1608
  %v2251 = vpack.c.b16 %v1611, %v1609
  %v2252 = vpack.c.b16 %v1614, %v1612
  %v2253 = vpack.c.b16 %v1615, %v1613
  %v2254 = vpack.c.b16 %v1618, %v1616
  %v2255 = vpack.c.b16 %v1619, %v1617
  %v2256 = vpack.c.b16 %v1622, %v1620
  %v2257 = vpack.c.b16 %v1623, %v1621
  %v2258 = vpack.c.b16 %v1626, %v1624
  %v2259 = vpack.c.b16 %v1627, %v1625
  %v2260 = vpack.c.b16 %v1630, %v1628
  %v2261 = vpack.c.b16 %v1631, %v1629
  %v2262 = vpack.c.b16 %v1634, %v1632
  %v2263 = vpack.c.b16 %v1635, %v1633
  %v2264 = vpack.c.b16 %v1638, %v1636
  %v2265 = vpack.c.b16 %v1639, %v1637
  %v2266 = vpack.c.b16 %v1642, %v1640
  %v2267 = vpack.c.b16 %v1643, %v1641
  %v2268 = vpack.c.b16 %v1646, %v1644
  %v2269 = vpack.c.b16 %v1647, %v1645
  %v2270 = vpack.c.b16 %v1650, %v1648
  %v2271 = vpack.c.b16 %v1651, %v1649
  %v2272 = vpack.c.b16 %v1654, %v1652
  %v2273 = vpack.c.b16 %v1655, %v1653
  %v2274 = vpack.c.b16 %v1658, %v1656
  %v2275 = vpack.c.b16 %v1659, %v1657
  %v2276 = vpack.c.b16 %v1662, %v1660
  %v2277 = vpack.c.b16 %v1663, %v1661
  %v2278 = vpack.c.b16 %v1666, %v1664
  %v2279 = vpack.c.b16 %v1667, %v1665
  %v2280 = vpack.c.b16 %v1670, %v1668
  %v2281 = vpack.c.b16 %v1671, %v1669
  %v2282 = vpack.c.b16 %v1674, %v1672
  %v2283 = vpack.c.b16 %v1675, %v1673
  %v2284 = vpack.c.b16 %v1678, %v1676
  %v2285 = vpack.c.b16 %v1679, %v1677
  %v2286 = vpack.c.b16 %v1682, %v1680
  %v2287 = vpack.c.b16 %v1683, %v1681
  %v2288 = vpack.c.b16 %v1686, %v1684
  %v2289 = vpack.c.b16 %v1687, %v1685
  %v2290 = vpack.c.b16 %v1690, %v1688
  %v2291 = vpack.c.b16 %v1691, %v1689
  %v2292 = vpack.c.b16 %v1694, %v1692
  %v2293 = vpack.c.b16 %v1695, %v1693
  %v2294 = vpack.c.b16 %v1698, %v1696
  %v2295 = vpack.c.b16 %v1699, %v1697
  %v2296 = vpack.c.b16 %v1702, %v1700
  %v2297 = vpack.c.b16 %v1703, %v1701
  %v2298 = vpack.c.b16 %v1706, %v1704
  %v2299 = vpack.c.b16 %v1707, %v1705
  %v2300 = vpack.c.b16 %v1710, %v1708
  %v2301 = vpack.c.b16 %v1711, %v1709
  %v2302 = vpack.c.b16 %v1714, %v1712
  %v2303 = vpack.c.b16 %v1715, %v1713
  %v2304 = vpack.c.b16 %v1718, %v1716
  %v2305 = vpack.c.b16 %v1719, %v1717
  %v2306 = vpack.c.b16 %v1722, %v1720
  %v2307 = vpack.c.b16 %v1723, %v1721
  %v2308 = vpack.c.b16 %v1726, %v1724
  %v2309 = vpack.c.b16 %v1727, %v1725
  %v2310 = vpack.c.b16 %v1730, %v1728
  %v2311 = vpack.c.b16 %v1731, %v1729
  %v2312 = vpack.c.b16 %v1734, %v1732
  %v2313 = vpack.c.b16 %v1735, %v1733
  %v2314 = vpack.c.b16 %v1738, %v1736
  %v2315 = vpack.c.b16 %v1739, %v1737
  %v2316 = vpack.c.b16 %v1742, %v1740
  %v2317 = vpack.c.b16 %v1743, %v1741
  %v2318 = vpack.c.b16 %v1746, %v1744
  %v2319 = vpack.c.b16 %v1747, %v1745
  %v2320 = vpack.c.b16 %v1750, %v1748
  %v2321 = vpack.c.b16 %v1751, %v1749
  %v2322 = vpack.c.b16 %v1754, %v1752
  %v2323 = vpack.c.b16 %v1755, %v1753
  %v2324 = vpack.c.b16 %v1758, %v1756
  %v2325 = vpack.c.b16 %v1759, %v1757
  %v2326 = vpack.c.b16 %v1762, %v1760
  %v2327 = vpack.c.b16 %v1763, %v1761
  %v2328 = vpack.c.b16 %v1766, %v1764
  %v2329 = vpack.c.b16 %v1767, %v1765
  %v2330 = vpack.c.b16 %v1770, %v1768
  %v2331 = vpack.c.b16 %v1771, %v1769
  %v2332 = vpack.c.b16 %v1774, %v1772
  %v2333 = vpack.c.b16 %v1775, %v1773
  %v2334 = vpack.c.b16 %v1778, %v1776
  %v2335 = vpack.c.b16 %v1779, %v1777
  %v2336 = vpack.c.b16 %v1782, %v1780
  %v2337 = vpack.c.b16 %v1783, %v1781
  %v2338 = vpack.c.b16 %v1786, %v1784
  %v2339 = vpack.c.b16 %v1787, %v1785
  %v2340 = vpack.c.b16 %v1790, %v1788
  %v2341 = vpack.c.b16 %v1791, %v1789
  %v2342 = vpack.c.b16 %v1794, %v1792
  %v2343 = vpack.c.b16 %v1795, %v1793
  %v2344 = vpack.c.b16 %v1798, %v1796
  %v2345 = vpack.c.b16 %v1799, %v1797
  %v2346 = vpack.c.b16 %v1802, %v1800
  %v2347 = vpack.c.b16 %v1803, %v1801
  %v2348 = vpack.c.b16 %v1806, %v1804
  %v2349 = vpack.c.b16 %v1807, %v1805
  %v2350 = vpack.c.b16 %v1810, %v1808
  %v2351 = vpack.c.b16 %v1811, %v1809
  %v2352 = vpack.c.b16 %v1814, %v1812
  %v2353 = vpack.c.b16 %v1815, %v1813
  %v2354 = vpack.c.b16 %v1818, %v1816
  %v2355 = vpack.c.b16 %v1819, %v1817
  %v2356 = vpack.c.b16 %v1822, %v1820
  %v2357 = vpack.c.b16 %v1823, %v1821
  %v2358 = vpack.c.b16 %v1826, %v1824
  %v2359 = vpack.c.b16 %v1827, %v1825
  %v2360 = vpack.c.b16 %v1830, %v1828
  %v2361 = vpack.c.b16 %v1831, %v1829
  %v2362 = vpack.c.b16 %v1834, %v1832
  %v2363 = vpack.c.b16 %v1835, %v1833
  %v2364 = vpack.c.b16 %v1838, %v1836
  %v2365 = vpack.c.b16 %v1839, %v1837
  %v2366 = vpack.c.b16 %v1842, %v1840
  %v2367 = vpack.c.b16 %v1843, %v1841
  %v2368 = vpack.c.b16 %v1846, %v1844
  %v2369 = vpack.c.b16 %v1847, %v1845
  %v2370 = vpack.c.b16 %v1850, %v1848
  %v2371 = vpack.c.b16 %v1851, %v1849
  %v2372 = vpack.c.b16 %v1854, %v1852
  %v2373 = vpack.c.b16 %v1855, %v1853
  %v2374 = vpack.c.b16 %v1858, %v1856
  %v2375 = vpack.c.b16 %v1859, %v1857
  %v2376 = vpack.c.b16 %v1862, %v1860
  %v2377 = vpack.c.b16 %v1863, %v1861
  %v2378 = vpack.c.b16 %v1866, %v1864
  %v2379 = vpack.c.b16 %v1867, %v1865
  %v2380 = vpack.c.b16 %v1870, %v1868
  %v2381 = vpack.c.b16 %v1871, %v1869
  %v2382 = vpack.c.b16 %v1874, %v1872
  %v2383 = vpack.c.b16 %v1875, %v1873
  %v2384 = vpack.c.b16 %v1878, %v1876
  %v2385 = vpack.c.b16 %v1879, %v1877
  %v2386 = vpack.c.b16 %v1882, %v1880
  %v2387 = vpack.c.b16 %v1883, %v1881
  %v2388 = vpack.c.b16 %v1886, %v1884
  %v2389 = vpack.c.b16 %v1887, %v1885
  %v2390 = vpack.c.b16 %v1890, %v1888
  %v2391 = vpack.c.b16 %v1891, %v1889
  %v2392 = vpack.c.b16 %v1894, %v1892
  %v2393 = vpack.c.b16 %v1895, %v1893
  %v2394 = vpack.c.b16 %v1898, %v1896
  %v2395 = vpack.c.b16 %v1899, %v1897
  %v2396 = vpack.c.b16 %v1902, %v1900
  %v2397 = vpack.c.b16 %v1903, %v1901
  %v2398 = vpack.c.b16 %v1906, %v1904
  %v2399 = vpack.c.b16 %v1907, %v1905
  %v2400 = vpack.c.b16 %v1910, %v1908
  %v2401 = vpack.c.b16 %v1911, %v1909
  %v2402 = vpack.c.b16 %v1914, %v1912
  %v2403 = vpack.c.b16 %v1915, %v1913
  %v2404 = vpack.c.b16 %v1918, %v1916
  %v2405 = vpack.c.b16 %v1919, %v1917
  %v2406 = vpack.c.b16 %v1922, %v1920
  %v2407 = vpack.c.b16 %v1923, %v1921
  %v2408 = vpack.c.b16 %v1926, %v1924
  %v2409 = vpack.c.b16 %v1927, %v1925
  %v2410 = vpack.c.b16 %v1930, %v1928
  %v2411 = vpack.c.b16 %v1931, %v1929
  %v2412 = vpack.c.b16 %v1934, %v1932
  %v2413 = vpack.c.b16 %v1935, %v1933
  %v2414 = vpack.c.b16 %v1938, %v1936
  %v2415 = vpack.c.b16 %v1939, %v1937
  %v2416 = vpack.c.b16 %v1942, %v1940
  %v2417 = vpack.c.b16 %v1943, %v1941
  %v2418 = vpack.c.b16 %v1946, %v1944
  %v2419 = vpack.c.b16 %v1947, %v1945
  %v2420 = vpack.c.b16 %v1950, %v1948
  %v2421 = vpack.c.b16 %v1951, %v1949
  %v2422 = vpack.c.b16 %v1954, %v1952
  %v2423 = vpack.c.b16 %v1955, %v1953
  %v2424 = vpack.c.b16 %v1958, %v1956
  %v2425 = vpack.c.b16 %v1959, %v1957
  %v2426 = vpack.c.b16 %v1962, %v1960
  %v2427 = vpack.c.b16 %v1963, %v1961
  %v2428 = vpack.c.b16 %v1966, %v1964
  %v2429 = vpack.c.b16 %v1967, %v1965
  %v2430 = vpack.c.b16 %v1970, %v1968
  %v2431 = vpack.c.b16 %v1971, %v1969
  %v2432 = vpack.c.b16 %v1974, %v1972
  %v2433 = vpack.c.b16 %v1975, %v1973
  %v2434 = vpack.c.b16 %v1978, %v1976
  %v2435 = vpack.c.b16 %v1979, %v1977
  %v2436 = vpack.c.b16 %v1982, %v1980
  %v2437 = vpack.c.b16 %v1983, %v1981
  %v2438 = vpack.c.b16 %v1986, %v1984
  %v2439 = vpack.c.b16 %v1987, %v1985
  %v2440 = vpack.c.b16 %v1990, %v1988
  %v2441 = vpack.c.b16 %v1991, %v1989
  %v2442 = vpack.c.b16 %v1994, %v1992
  %v2443 = vpack.c.b16 %v1995, %v1993
  %v2444 = vpack.c.b16 %v1998, %v1996
  %v2445 = vpack.c.b16 %v1999, %v1997
  %v2446 = vpack.c.b16 %v2002, %v2000
  %v2447 = vpack.c.b16 %v2003, %v2001
  %v2448 = vpack.c.b16 %v2006, %v2004
  %v2449 = vpack.c.b16 %v2007, %v2005
  %v2450 = vpack.c.b16 %v2010, %v2008
  %v2451 = vpack.c.b16 %v2011, %v2009
  %v2452 = vpack.c.b16 %v2014, %v2012
  %v2453 = vpack.c.b16 %v2015, %v2013
  %v2454 = vpack.c.b16 %v2018, %v2016
  %v2455 = vpack.c.b16 %v2019, %v2017
  %v2456 = vpack.c.b16 %v2022, %v2020
  %v2457 = vpack.c.b16 %v2023, %v2021
  %v2458 = vpack.c.b16 %v2026, %v2024
  %v2459 = vpack.c.b16 %v2027, %v2025
  %2892 = vmatprep.subr.bf16.mxu0 %v2043
  %2893 = vmatpush1.bf16.msra.mxu0 %v2042
  %2894 = vmatprep.subr.bf16.mxu0 %v2041
  %2895 = vmatpush1.bf16.msra.mxu0 %v2040
  %2896 = vmatprep.subr.bf16.mxu0 %v2039
  %2897 = vmatpush1.bf16.msra.mxu0 %v2038
  %2898 = vmatprep.subr.bf16.mxu0 %v2037
  %2899 = vmatpush1.bf16.msra.mxu0 %v2036
  %2900 = vmatprep.subr.bf16.mxu0 %v2035
  %2901 = vmatpush1.bf16.msra.mxu0 %v2034
  %2902 = vmatprep.subr.bf16.mxu0 %v2033
  %2903 = vmatpush1.bf16.msra.mxu0 %v2032
  %2904 = vmatprep.subr.bf16.mxu0 %v2031
  %2905 = vmatpush1.bf16.msra.mxu0 %v2030
  %2906 = vmatprep.subr.bf16.mxu0 %v2029
  %2907 = vmatpush1.bf16.msra.mxu0 %v2028
  %2908 = vmatprep.subr.bf16.mxu0 %v2059
  %2909 = vmatpush2.bf16.msra.mxu0 %v2058
  %2910 = vmatprep.subr.bf16.mxu0 %v2057
  %2911 = vmatpush2.bf16.msra.mxu0 %v2056
  %2912 = vmatprep.subr.bf16.mxu0 %v2055
  %2913 = vmatpush2.bf16.msra.mxu0 %v2054
  %2914 = vmatprep.subr.bf16.mxu0 %v2053
  %2915 = vmatpush2.bf16.msra.mxu0 %v2052
  %2916 = vmatprep.subr.bf16.mxu0 %v2051
  %2917 = vmatpush2.bf16.msra.mxu0 %v2050
  %2918 = vmatprep.subr.bf16.mxu0 %v2049
  %2919 = vmatpush2.bf16.msra.mxu0 %v2048
  %2920 = vmatprep.subr.bf16.mxu0 %v2047
  %2921 = vmatpush2.bf16.msra.mxu0 %v2046
  %2922 = vmatprep.subr.bf16.mxu0 %v2045
  %2923 = vmatpush2.bf16.msra.mxu0 %v2044
  %2924 = vmatprep.mubr.bf16.mxu0 %v625
  %2925 = vmatmul.mubr.bf16.gmra.mxu0 %v624
  %v2926 = vpop.f32.mrf.mxu0
  %v2927 = vadd.f32 %v494, %v2926
  %v2928 = vpop.f32.mrf.mxu0
  %v2929 = vadd.f32 %v498, %v2928
  %v2930 = vpop.f32.mrf.mxu0
  %v2931 = vadd.f32 %v494, %v2930
  %v2932 = vpop.f32.mrf.mxu0
  %v2933 = vadd.f32 %v498, %v2932
  %2934 = vmatprep.mubr.bf16.mxu0 %v652
  %2935 = vmatmul.mubr.bf16.gmra.mxu0 %v651
  %v2936 = vpop.f32.mrf.mxu0
  %v2937 = vadd.f32 %v494, %v2936
  %v2938 = vpop.f32.mrf.mxu0
  %v2939 = vadd.f32 %v498, %v2938
  %v2940 = vpop.f32.mrf.mxu0
  %v2941 = vpop.f32.mrf.mxu0
  %2942 = vdwg.mxu0
  %2943 = vmatprep.subr.bf16.mxu0 %v2075
  %2944 = vmatpush1.bf16.msra.mxu0 %v2074
  %2945 = vmatprep.subr.bf16.mxu0 %v2073
  %2946 = vmatpush1.bf16.msra.mxu0 %v2072
  %2947 = vmatprep.subr.bf16.mxu0 %v2071
  %2948 = vmatpush1.bf16.msra.mxu0 %v2070
  %2949 = vmatprep.subr.bf16.mxu0 %v2069
  %2950 = vmatpush1.bf16.msra.mxu0 %v2068
  %2951 = vmatprep.subr.bf16.mxu0 %v2067
  %2952 = vmatpush1.bf16.msra.mxu0 %v2066
  %2953 = vmatprep.subr.bf16.mxu0 %v2065
  %2954 = vmatpush1.bf16.msra.mxu0 %v2064
  %2955 = vmatprep.subr.bf16.mxu0 %v2063
  %2956 = vmatpush1.bf16.msra.mxu0 %v2062
  %2957 = vmatprep.subr.bf16.mxu0 %v2061
  %2958 = vmatpush1.bf16.msra.mxu0 %v2060
  %2959 = vmatprep.subr.bf16.mxu0 %v2091
  %2960 = vmatpush2.bf16.msra.mxu0 %v2090
  %2961 = vmatprep.subr.bf16.mxu0 %v2089
  %2962 = vmatpush2.bf16.msra.mxu0 %v2088
  %2963 = vmatprep.subr.bf16.mxu0 %v2087
  %2964 = vmatpush2.bf16.msra.mxu0 %v2086
  %2965 = vmatprep.subr.bf16.mxu0 %v2085
  %2966 = vmatpush2.bf16.msra.mxu0 %v2084
  %2967 = vmatprep.subr.bf16.mxu0 %v2083
  %2968 = vmatpush2.bf16.msra.mxu0 %v2082
  %2969 = vmatprep.subr.bf16.mxu0 %v2081
  %2970 = vmatpush2.bf16.msra.mxu0 %v2080
  %2971 = vmatprep.subr.bf16.mxu0 %v2079
  %2972 = vmatpush2.bf16.msra.mxu0 %v2078
  %2973 = vmatprep.subr.bf16.mxu0 %v2077
  %2974 = vmatpush2.bf16.msra.mxu0 %v2076
  %2975 = vmatprep.mubr.bf16.mxu0 %v627
  %2976 = vmatmul.mubr.bf16.gmra.mxu0 %v626
  %v2977 = vpop.f32.mrf.mxu0
  %v2978 = vadd.f32 %v2927, %v2977
  %v2979 = vpop.f32.mrf.mxu0
  %v2980 = vadd.f32 %v2929, %v2979
  %v2981 = vpop.f32.mrf.mxu0
  %v2982 = vadd.f32 %v2931, %v2981
  %v2983 = vpop.f32.mrf.mxu0
  %v2984 = vadd.f32 %v2933, %v2983
  %2985 = vmatprep.mubr.bf16.mxu0 %v654
  %2986 = vmatmul.mubr.bf16.gmra.mxu0 %v653
  %v2987 = vpop.f32.mrf.mxu0
  %v2988 = vadd.f32 %v2937, %v2987
  %v2989 = vpop.f32.mrf.mxu0
  %v2990 = vadd.f32 %v2939, %v2989
  %v2991 = vpop.f32.mrf.mxu0
  %v2992 = vpop.f32.mrf.mxu0
  %2993 = vdwg.mxu0
  %2994 = vmatprep.subr.bf16.mxu0 %v2107
  %2995 = vmatpush1.bf16.msra.mxu0 %v2106
  %2996 = vmatprep.subr.bf16.mxu0 %v2105
  %2997 = vmatpush1.bf16.msra.mxu0 %v2104
  %2998 = vmatprep.subr.bf16.mxu0 %v2103
  %2999 = vmatpush1.bf16.msra.mxu0 %v2102
  %3000 = vmatprep.subr.bf16.mxu0 %v2101
  %3001 = vmatpush1.bf16.msra.mxu0 %v2100
  %3002 = vmatprep.subr.bf16.mxu0 %v2099
  %3003 = vmatpush1.bf16.msra.mxu0 %v2098
  %3004 = vmatprep.subr.bf16.mxu0 %v2097
  %3005 = vmatpush1.bf16.msra.mxu0 %v2096
  %3006 = vmatprep.subr.bf16.mxu0 %v2095
  %3007 = vmatpush1.bf16.msra.mxu0 %v2094
  %3008 = vmatprep.subr.bf16.mxu0 %v2093
  %3009 = vmatpush1.bf16.msra.mxu0 %v2092
  %3010 = vmatprep.subr.bf16.mxu0 %v2123
  %3011 = vmatpush2.bf16.msra.mxu0 %v2122
  %3012 = vmatprep.subr.bf16.mxu0 %v2121
  %3013 = vmatpush2.bf16.msra.mxu0 %v2120
  %3014 = vmatprep.subr.bf16.mxu0 %v2119
  %3015 = vmatpush2.bf16.msra.mxu0 %v2118
  %3016 = vmatprep.subr.bf16.mxu0 %v2117
  %3017 = vmatpush2.bf16.msra.mxu0 %v2116
  %3018 = vmatprep.subr.bf16.mxu0 %v2115
  %3019 = vmatpush2.bf16.msra.mxu0 %v2114
  %3020 = vmatprep.subr.bf16.mxu0 %v2113
  %3021 = vmatpush2.bf16.msra.mxu0 %v2112
  %3022 = vmatprep.subr.bf16.mxu0 %v2111
  %3023 = vmatpush2.bf16.msra.mxu0 %v2110
  %3024 = vmatprep.subr.bf16.mxu0 %v2109
  %3025 = vmatpush2.bf16.msra.mxu0 %v2108
  %3026 = vmatprep.mubr.bf16.mxu0 %v629
  %3027 = vmatmul.mubr.bf16.gmra.mxu0 %v628
  %v3028 = vpop.f32.mrf.mxu0
  %v3029 = vadd.f32 %v2978, %v3028
  %v3030 = vpop.f32.mrf.mxu0
  %v3031 = vadd.f32 %v2980, %v3030
  %v3032 = vpop.f32.mrf.mxu0
  %v3033 = vadd.f32 %v2982, %v3032
  %v3034 = vpop.f32.mrf.mxu0
  %v3035 = vadd.f32 %v2984, %v3034
  %3036 = vmatprep.mubr.bf16.mxu0 %v656
  %3037 = vmatmul.mubr.bf16.gmra.mxu0 %v655
  %v3038 = vpop.f32.mrf.mxu0
  %v3039 = vadd.f32 %v2988, %v3038
  %v3040 = vpop.f32.mrf.mxu0
  %v3041 = vadd.f32 %v2990, %v3040
  %v3042 = vpop.f32.mrf.mxu0
  %v3043 = vpop.f32.mrf.mxu0
  %3044 = vdwg.mxu0
  %3045 = vmatprep.subr.bf16.mxu0 %v2139
  %3046 = vmatpush1.bf16.msra.mxu0 %v2138
  %3047 = vmatprep.subr.bf16.mxu0 %v2137
  %3048 = vmatpush1.bf16.msra.mxu0 %v2136
  %3049 = vmatprep.subr.bf16.mxu0 %v2135
  %3050 = vmatpush1.bf16.msra.mxu0 %v2134
  %3051 = vmatprep.subr.bf16.mxu0 %v2133
  %3052 = vmatpush1.bf16.msra.mxu0 %v2132
  %3053 = vmatprep.subr.bf16.mxu0 %v2131
  %3054 = vmatpush1.bf16.msra.mxu0 %v2130
  %3055 = vmatprep.subr.bf16.mxu0 %v2129
  %3056 = vmatpush1.bf16.msra.mxu0 %v2128
  %3057 = vmatprep.subr.bf16.mxu0 %v2127
  %3058 = vmatpush1.bf16.msra.mxu0 %v2126
  %3059 = vmatprep.subr.bf16.mxu0 %v2125
  %3060 = vmatpush1.bf16.msra.mxu0 %v2124
  %3061 = vmatprep.subr.bf16.mxu0 %v2155
  %3062 = vmatpush2.bf16.msra.mxu0 %v2154
  %3063 = vmatprep.subr.bf16.mxu0 %v2153
  %3064 = vmatpush2.bf16.msra.mxu0 %v2152
  %3065 = vmatprep.subr.bf16.mxu0 %v2151
  %3066 = vmatpush2.bf16.msra.mxu0 %v2150
  %3067 = vmatprep.subr.bf16.mxu0 %v2149
  %3068 = vmatpush2.bf16.msra.mxu0 %v2148
  %3069 = vmatprep.subr.bf16.mxu0 %v2147
  %3070 = vmatpush2.bf16.msra.mxu0 %v2146
  %3071 = vmatprep.subr.bf16.mxu0 %v2145
  %3072 = vmatpush2.bf16.msra.mxu0 %v2144
  %3073 = vmatprep.subr.bf16.mxu0 %v2143
  %3074 = vmatpush2.bf16.msra.mxu0 %v2142
  %3075 = vmatprep.subr.bf16.mxu0 %v2141
  %3076 = vmatpush2.bf16.msra.mxu0 %v2140
  %3077 = vmatprep.mubr.bf16.mxu0 %v631
  %3078 = vmatmul.mubr.bf16.gmra.mxu0 %v630
  %v3079 = vpop.f32.mrf.mxu0
  %v3080 = vadd.f32 %v3029, %v3079
  %v3081 = vpop.f32.mrf.mxu0
  %v3082 = vadd.f32 %v3031, %v3081
  %v3083 = vpop.f32.mrf.mxu0
  %v3084 = vadd.f32 %v3033, %v3083
  %v3085 = vpop.f32.mrf.mxu0
  %v3086 = vadd.f32 %v3035, %v3085
  %3087 = vmatprep.mubr.bf16.mxu0 %v658
  %3088 = vmatmul.mubr.bf16.gmra.mxu0 %v657
  %v3089 = vpop.f32.mrf.mxu0
  %v3090 = vadd.f32 %v3039, %v3089
  %v3091 = vpop.f32.mrf.mxu0
  %v3092 = vadd.f32 %v3041, %v3091
  %v3093 = vpop.f32.mrf.mxu0
  %v3094 = vpop.f32.mrf.mxu0
  %3095 = vdwg.mxu0
  %3096 = vmatprep.subr.bf16.mxu0 %v2171
  %3097 = vmatpush1.bf16.msra.mxu0 %v2170
  %3098 = vmatprep.subr.bf16.mxu0 %v2169
  %3099 = vmatpush1.bf16.msra.mxu0 %v2168
  %3100 = vmatprep.subr.bf16.mxu0 %v2167
  %3101 = vmatpush1.bf16.msra.mxu0 %v2166
  %3102 = vmatprep.subr.bf16.mxu0 %v2165
  %3103 = vmatpush1.bf16.msra.mxu0 %v2164
  %3104 = vmatprep.subr.bf16.mxu0 %v2163
  %3105 = vmatpush1.bf16.msra.mxu0 %v2162
  %3106 = vmatprep.subr.bf16.mxu0 %v2161
  %3107 = vmatpush1.bf16.msra.mxu0 %v2160
  %3108 = vmatprep.subr.bf16.mxu0 %v2159
  %3109 = vmatpush1.bf16.msra.mxu0 %v2158
  %3110 = vmatprep.subr.bf16.mxu0 %v2157
  %3111 = vmatpush1.bf16.msra.mxu0 %v2156
  %3112 = vmatprep.subr.bf16.mxu0 %v2187
  %3113 = vmatpush2.bf16.msra.mxu0 %v2186
  %3114 = vmatprep.subr.bf16.mxu0 %v2185
  %3115 = vmatpush2.bf16.msra.mxu0 %v2184
  %3116 = vmatprep.subr.bf16.mxu0 %v2183
  %3117 = vmatpush2.bf16.msra.mxu0 %v2182
  %3118 = vmatprep.subr.bf16.mxu0 %v2181
  %3119 = vmatpush2.bf16.msra.mxu0 %v2180
  %3120 = vmatprep.subr.bf16.mxu0 %v2179
  %3121 = vmatpush2.bf16.msra.mxu0 %v2178
  %3122 = vmatprep.subr.bf16.mxu0 %v2177
  %3123 = vmatpush2.bf16.msra.mxu0 %v2176
  %3124 = vmatprep.subr.bf16.mxu0 %v2175
  %3125 = vmatpush2.bf16.msra.mxu0 %v2174
  %3126 = vmatprep.subr.bf16.mxu0 %v2173
  %3127 = vmatpush2.bf16.msra.mxu0 %v2172
  %3128 = vmatprep.mubr.bf16.mxu0 %v633
  %3129 = vmatmul.mubr.bf16.gmra.mxu0 %v632
  %v3130 = vpop.f32.mrf.mxu0
  %v3131 = vadd.f32 %v3080, %v3130
  %v3132 = vpop.f32.mrf.mxu0
  %v3133 = vadd.f32 %v3082, %v3132
  %v3134 = vpop.f32.mrf.mxu0
  %v3135 = vadd.f32 %v3084, %v3134
  %v3136 = vpop.f32.mrf.mxu0
  %v3137 = vadd.f32 %v3086, %v3136
  %3138 = vmatprep.mubr.bf16.mxu0 %v660
  %3139 = vmatmul.mubr.bf16.gmra.mxu0 %v659
  %v3140 = vpop.f32.mrf.mxu0
  %v3141 = vadd.f32 %v3090, %v3140
  %v3142 = vpop.f32.mrf.mxu0
  %v3143 = vadd.f32 %v3092, %v3142
  %v3144 = vpop.f32.mrf.mxu0
  %v3145 = vpop.f32.mrf.mxu0
  %3146 = vdwg.mxu0
  %3147 = vmatprep.subr.bf16.mxu0 %v2203
  %3148 = vmatpush1.bf16.msra.mxu0 %v2202
  %3149 = vmatprep.subr.bf16.mxu0 %v2201
  %3150 = vmatpush1.bf16.msra.mxu0 %v2200
  %3151 = vmatprep.subr.bf16.mxu0 %v2199
  %3152 = vmatpush1.bf16.msra.mxu0 %v2198
  %3153 = vmatprep.subr.bf16.mxu0 %v2197
  %3154 = vmatpush1.bf16.msra.mxu0 %v2196
  %3155 = vmatprep.subr.bf16.mxu0 %v2195
  %3156 = vmatpush1.bf16.msra.mxu0 %v2194
  %3157 = vmatprep.subr.bf16.mxu0 %v2193
  %3158 = vmatpush1.bf16.msra.mxu0 %v2192
  %3159 = vmatprep.subr.bf16.mxu0 %v2191
  %3160 = vmatpush1.bf16.msra.mxu0 %v2190
  %3161 = vmatprep.subr.bf16.mxu0 %v2189
  %3162 = vmatpush1.bf16.msra.mxu0 %v2188
  %3163 = vmatprep.subr.bf16.mxu0 %v2219
  %3164 = vmatpush2.bf16.msra.mxu0 %v2218
  %3165 = vmatprep.subr.bf16.mxu0 %v2217
  %3166 = vmatpush2.bf16.msra.mxu0 %v2216
  %3167 = vmatprep.subr.bf16.mxu0 %v2215
  %3168 = vmatpush2.bf16.msra.mxu0 %v2214
  %3169 = vmatprep.subr.bf16.mxu0 %v2213
  %3170 = vmatpush2.bf16.msra.mxu0 %v2212
  %3171 = vmatprep.subr.bf16.mxu0 %v2211
  %3172 = vmatpush2.bf16.msra.mxu0 %v2210
  %3173 = vmatprep.subr.bf16.mxu0 %v2209
  %3174 = vmatpush2.bf16.msra.mxu0 %v2208
  %3175 = vmatprep.subr.bf16.mxu0 %v2207
  %3176 = vmatpush2.bf16.msra.mxu0 %v2206
  %3177 = vmatprep.subr.bf16.mxu0 %v2205
  %3178 = vmatpush2.bf16.msra.mxu0 %v2204
  %3179 = vmatprep.mubr.bf16.mxu0 %v635
  %3180 = vmatmul.mubr.bf16.gmra.mxu0 %v634
  %v3181 = vpop.f32.mrf.mxu0
  %v3182 = vadd.f32 %v3131, %v3181
  %v3183 = vpop.f32.mrf.mxu0
  %v3184 = vadd.f32 %v3133, %v3183
  %v3185 = vpop.f32.mrf.mxu0
  %v3186 = vadd.f32 %v3135, %v3185
  %v3187 = vpop.f32.mrf.mxu0
  %v3188 = vadd.f32 %v3137, %v3187
  %3189 = vmatprep.mubr.bf16.mxu0 %v662
  %3190 = vmatmul.mubr.bf16.gmra.mxu0 %v661
  %v3191 = vpop.f32.mrf.mxu0
  %v3192 = vadd.f32 %v3141, %v3191
  %v3193 = vpop.f32.mrf.mxu0
  %v3194 = vadd.f32 %v3143, %v3193
  %v3195 = vpop.f32.mrf.mxu0
  %v3196 = vpop.f32.mrf.mxu0
  %3197 = vdwg.mxu0
  %3198 = vmatprep.subr.bf16.mxu0 %v2235
  %3199 = vmatpush1.bf16.msra.mxu0 %v2234
  %3200 = vmatprep.subr.bf16.mxu0 %v2233
  %3201 = vmatpush1.bf16.msra.mxu0 %v2232
  %3202 = vmatprep.subr.bf16.mxu0 %v2231
  %3203 = vmatpush1.bf16.msra.mxu0 %v2230
  %3204 = vmatprep.subr.bf16.mxu0 %v2229
  %3205 = vmatpush1.bf16.msra.mxu0 %v2228
  %3206 = vmatprep.subr.bf16.mxu0 %v2227
  %3207 = vmatpush1.bf16.msra.mxu0 %v2226
  %3208 = vmatprep.subr.bf16.mxu0 %v2225
  %3209 = vmatpush1.bf16.msra.mxu0 %v2224
  %3210 = vmatprep.subr.bf16.mxu0 %v2223
  %3211 = vmatpush1.bf16.msra.mxu0 %v2222
  %3212 = vmatprep.subr.bf16.mxu0 %v2221
  %3213 = vmatpush1.bf16.msra.mxu0 %v2220
  %3214 = vmatprep.subr.bf16.mxu0 %v2251
  %3215 = vmatpush2.bf16.msra.mxu0 %v2250
  %3216 = vmatprep.subr.bf16.mxu0 %v2249
  %3217 = vmatpush2.bf16.msra.mxu0 %v2248
  %3218 = vmatprep.subr.bf16.mxu0 %v2247
  %3219 = vmatpush2.bf16.msra.mxu0 %v2246
  %3220 = vmatprep.subr.bf16.mxu0 %v2245
  %3221 = vmatpush2.bf16.msra.mxu0 %v2244
  %3222 = vmatprep.subr.bf16.mxu0 %v2243
  %3223 = vmatpush2.bf16.msra.mxu0 %v2242
  %3224 = vmatprep.subr.bf16.mxu0 %v2241
  %3225 = vmatpush2.bf16.msra.mxu0 %v2240
  %3226 = vmatprep.subr.bf16.mxu0 %v2239
  %3227 = vmatpush2.bf16.msra.mxu0 %v2238
  %3228 = vmatprep.subr.bf16.mxu0 %v2237
  %3229 = vmatpush2.bf16.msra.mxu0 %v2236
  %3230 = vmatprep.mubr.bf16.mxu0 %v637
  %3231 = vmatmul.mubr.bf16.gmra.mxu0 %v636
  %v3232 = vpop.f32.mrf.mxu0
  %v3233 = vadd.f32 %v3182, %v3232
  %v3234 = vpop.f32.mrf.mxu0
  %v3235 = vadd.f32 %v3184, %v3234
  %v3236 = vpop.f32.mrf.mxu0
  %v3237 = vadd.f32 %v3186, %v3236
  %v3238 = vpop.f32.mrf.mxu0
  %v3239 = vadd.f32 %v3188, %v3238
  %3240 = vmatprep.mubr.bf16.mxu0 %v664
  %3241 = vmatmul.mubr.bf16.gmra.mxu0 %v663
  %v3242 = vpop.f32.mrf.mxu0
  %v3243 = vadd.f32 %v3192, %v3242
  %v3244 = vpop.f32.mrf.mxu0
  %v3245 = vadd.f32 %v3194, %v3244
  %v3246 = vpop.f32.mrf.mxu0
  %v3247 = vpop.f32.mrf.mxu0
  %3248 = vdwg.mxu0
  %3249 = vmatprep.subr.bf16.mxu0 %v2267
  %3250 = vmatpush1.bf16.msra.mxu0 %v2266
  %3251 = vmatprep.subr.bf16.mxu0 %v2265
  %3252 = vmatpush1.bf16.msra.mxu0 %v2264
  %3253 = vmatprep.subr.bf16.mxu0 %v2263
  %3254 = vmatpush1.bf16.msra.mxu0 %v2262
  %3255 = vmatprep.subr.bf16.mxu0 %v2261
  %3256 = vmatpush1.bf16.msra.mxu0 %v2260
  %3257 = vmatprep.subr.bf16.mxu0 %v2259
  %3258 = vmatpush1.bf16.msra.mxu0 %v2258
  %3259 = vmatprep.subr.bf16.mxu0 %v2257
  %3260 = vmatpush1.bf16.msra.mxu0 %v2256
  %3261 = vmatprep.subr.bf16.mxu0 %v2255
  %3262 = vmatpush1.bf16.msra.mxu0 %v2254
  %3263 = vmatprep.subr.bf16.mxu0 %v2253
  %3264 = vmatpush1.bf16.msra.mxu0 %v2252
  %3265 = vmatprep.subr.bf16.mxu0 %v2283
  %3266 = vmatpush2.bf16.msra.mxu0 %v2282
  %3267 = vmatprep.subr.bf16.mxu0 %v2281
  %3268 = vmatpush2.bf16.msra.mxu0 %v2280
  %3269 = vmatprep.subr.bf16.mxu0 %v2279
  %3270 = vmatpush2.bf16.msra.mxu0 %v2278
  %3271 = vmatprep.subr.bf16.mxu0 %v2277
  %3272 = vmatpush2.bf16.msra.mxu0 %v2276
  %3273 = vmatprep.subr.bf16.mxu0 %v2275
  %3274 = vmatpush2.bf16.msra.mxu0 %v2274
  %3275 = vmatprep.subr.bf16.mxu0 %v2273
  %3276 = vmatpush2.bf16.msra.mxu0 %v2272
  %3277 = vmatprep.subr.bf16.mxu0 %v2271
  %3278 = vmatpush2.bf16.msra.mxu0 %v2270
  %3279 = vmatprep.subr.bf16.mxu0 %v2269
  %3280 = vmatpush2.bf16.msra.mxu0 %v2268
  %3281 = vmatprep.mubr.bf16.mxu0 %v639
  %3282 = vmatmul.mubr.bf16.gmra.mxu0 %v638
  %v3283 = vpop.f32.mrf.mxu0
  %v3284 = vadd.f32 %v3233, %v3283
  %v3285 = vpop.f32.mrf.mxu0
  %v3286 = vadd.f32 %v3235, %v3285
  %v3287 = vpop.f32.mrf.mxu0
  %v3288 = vadd.f32 %v3237, %v3287
  %v3289 = vpop.f32.mrf.mxu0
  %v3290 = vadd.f32 %v3239, %v3289
  %3291 = vmatprep.mubr.bf16.mxu0 %v666
  %3292 = vmatmul.mubr.bf16.gmra.mxu0 %v665
  %v3293 = vpop.f32.mrf.mxu0
  %v3294 = vadd.f32 %v3243, %v3293
  %v3295 = vpop.f32.mrf.mxu0
  %v3296 = vadd.f32 %v3245, %v3295
  %v3297 = vpop.f32.mrf.mxu0
  %v3298 = vpop.f32.mrf.mxu0
  %3299 = vdwg.mxu0
  %3300 = vmatprep.subr.bf16.mxu0 %v2299
  %3301 = vmatpush1.bf16.msra.mxu0 %v2298
  %3302 = vmatprep.subr.bf16.mxu0 %v2297
  %3303 = vmatpush1.bf16.msra.mxu0 %v2296
  %3304 = vmatprep.subr.bf16.mxu0 %v2295
  %3305 = vmatpush1.bf16.msra.mxu0 %v2294
  %3306 = vmatprep.subr.bf16.mxu0 %v2293
  %3307 = vmatpush1.bf16.msra.mxu0 %v2292
  %3308 = vmatprep.subr.bf16.mxu0 %v2291
  %3309 = vmatpush1.bf16.msra.mxu0 %v2290
  %3310 = vmatprep.subr.bf16.mxu0 %v2289
  %3311 = vmatpush1.bf16.msra.mxu0 %v2288
  %3312 = vmatprep.subr.bf16.mxu0 %v2287
  %3313 = vmatpush1.bf16.msra.mxu0 %v2286
  %3314 = vmatprep.subr.bf16.mxu0 %v2285
  %3315 = vmatpush1.bf16.msra.mxu0 %v2284
  %3316 = vmatprep.subr.bf16.mxu0 %v2315
  %3317 = vmatpush2.bf16.msra.mxu0 %v2314
  %3318 = vmatprep.subr.bf16.mxu0 %v2313
  %3319 = vmatpush2.bf16.msra.mxu0 %v2312
  %3320 = vmatprep.subr.bf16.mxu0 %v2311
  %3321 = vmatpush2.bf16.msra.mxu0 %v2310
  %3322 = vmatprep.subr.bf16.mxu0 %v2309
  %3323 = vmatpush2.bf16.msra.mxu0 %v2308
  %3324 = vmatprep.subr.bf16.mxu0 %v2307
  %3325 = vmatpush2.bf16.msra.mxu0 %v2306
  %3326 = vmatprep.subr.bf16.mxu0 %v2305
  %3327 = vmatpush2.bf16.msra.mxu0 %v2304
  %3328 = vmatprep.subr.bf16.mxu0 %v2303
  %3329 = vmatpush2.bf16.msra.mxu0 %v2302
  %3330 = vmatprep.subr.bf16.mxu0 %v2301
  %3331 = vmatpush2.bf16.msra.mxu0 %v2300
  %3332 = vmatprep.mubr.bf16.mxu0 %v641
  %3333 = vmatmul.mubr.bf16.gmra.mxu0 %v640
  %v3334 = vpop.f32.mrf.mxu0
  %v3335 = vadd.f32 %v3284, %v3334
  %v3336 = vpop.f32.mrf.mxu0
  %v3337 = vadd.f32 %v3286, %v3336
  %v3338 = vpop.f32.mrf.mxu0
  %v3339 = vadd.f32 %v3288, %v3338
  %v3340 = vpop.f32.mrf.mxu0
  %v3341 = vadd.f32 %v3290, %v3340
  %3342 = vmatprep.mubr.bf16.mxu0 %v668
  %3343 = vmatmul.mubr.bf16.gmra.mxu0 %v667
  %v3344 = vpop.f32.mrf.mxu0
  %v3345 = vadd.f32 %v3294, %v3344
  %v3346 = vpop.f32.mrf.mxu0
  %v3347 = vadd.f32 %v3296, %v3346
  %v3348 = vpop.f32.mrf.mxu0
  %v3349 = vpop.f32.mrf.mxu0
  %3350 = vdwg.mxu0
  %3351 = vmatprep.subr.bf16.mxu0 %v2331
  %3352 = vmatpush1.bf16.msra.mxu0 %v2330
  %3353 = vmatprep.subr.bf16.mxu0 %v2329
  %3354 = vmatpush1.bf16.msra.mxu0 %v2328
  %3355 = vmatprep.subr.bf16.mxu0 %v2327
  %3356 = vmatpush1.bf16.msra.mxu0 %v2326
  %3357 = vmatprep.subr.bf16.mxu0 %v2325
  %3358 = vmatpush1.bf16.msra.mxu0 %v2324
  %3359 = vmatprep.subr.bf16.mxu0 %v2323
  %3360 = vmatpush1.bf16.msra.mxu0 %v2322
  %3361 = vmatprep.subr.bf16.mxu0 %v2321
  %3362 = vmatpush1.bf16.msra.mxu0 %v2320
  %3363 = vmatprep.subr.bf16.mxu0 %v2319
  %3364 = vmatpush1.bf16.msra.mxu0 %v2318
  %3365 = vmatprep.subr.bf16.mxu0 %v2317
  %3366 = vmatpush1.bf16.msra.mxu0 %v2316
  %3367 = vmatprep.subr.bf16.mxu0 %v2347
  %3368 = vmatpush2.bf16.msra.mxu0 %v2346
  %3369 = vmatprep.subr.bf16.mxu0 %v2345
  %3370 = vmatpush2.bf16.msra.mxu0 %v2344
  %3371 = vmatprep.subr.bf16.mxu0 %v2343
  %3372 = vmatpush2.bf16.msra.mxu0 %v2342
  %3373 = vmatprep.subr.bf16.mxu0 %v2341
  %3374 = vmatpush2.bf16.msra.mxu0 %v2340
  %3375 = vmatprep.subr.bf16.mxu0 %v2339
  %3376 = vmatpush2.bf16.msra.mxu0 %v2338
  %3377 = vmatprep.subr.bf16.mxu0 %v2337
  %3378 = vmatpush2.bf16.msra.mxu0 %v2336
  %3379 = vmatprep.subr.bf16.mxu0 %v2335
  %3380 = vmatpush2.bf16.msra.mxu0 %v2334
  %3381 = vmatprep.subr.bf16.mxu0 %v2333
  %3382 = vmatpush2.bf16.msra.mxu0 %v2332
  %3383 = vmatprep.mubr.bf16.mxu0 %v643
  %3384 = vmatmul.mubr.bf16.gmra.mxu0 %v642
  %v3385 = vpop.f32.mrf.mxu0
  %v3386 = vadd.f32 %v3335, %v3385
  %v3387 = vpop.f32.mrf.mxu0
  %v3388 = vadd.f32 %v3337, %v3387
  %v3389 = vpop.f32.mrf.mxu0
  %v3390 = vadd.f32 %v3339, %v3389
  %v3391 = vpop.f32.mrf.mxu0
  %v3392 = vadd.f32 %v3341, %v3391
  %3393 = vmatprep.mubr.bf16.mxu0 %v670
  %3394 = vmatmul.mubr.bf16.gmra.mxu0 %v669
  %v3395 = vpop.f32.mrf.mxu0
  %v3396 = vadd.f32 %v3345, %v3395
  %v3397 = vpop.f32.mrf.mxu0
  %v3398 = vadd.f32 %v3347, %v3397
  %v3399 = vpop.f32.mrf.mxu0
  %v3400 = vpop.f32.mrf.mxu0
  %3401 = vdwg.mxu0
  %3402 = vmatprep.subr.bf16.mxu0 %v2363
  %3403 = vmatpush1.bf16.msra.mxu0 %v2362
  %3404 = vmatprep.subr.bf16.mxu0 %v2361
  %3405 = vmatpush1.bf16.msra.mxu0 %v2360
  %3406 = vmatprep.subr.bf16.mxu0 %v2359
  %3407 = vmatpush1.bf16.msra.mxu0 %v2358
  %3408 = vmatprep.subr.bf16.mxu0 %v2357
  %3409 = vmatpush1.bf16.msra.mxu0 %v2356
  %3410 = vmatprep.subr.bf16.mxu0 %v2355
  %3411 = vmatpush1.bf16.msra.mxu0 %v2354
  %3412 = vmatprep.subr.bf16.mxu0 %v2353
  %3413 = vmatpush1.bf16.msra.mxu0 %v2352
  %3414 = vmatprep.subr.bf16.mxu0 %v2351
  %3415 = vmatpush1.bf16.msra.mxu0 %v2350
  %3416 = vmatprep.subr.bf16.mxu0 %v2349
  %3417 = vmatpush1.bf16.msra.mxu0 %v2348
  %3418 = vmatprep.subr.bf16.mxu0 %v2379
  %3419 = vmatpush2.bf16.msra.mxu0 %v2378
  %3420 = vmatprep.subr.bf16.mxu0 %v2377
  %3421 = vmatpush2.bf16.msra.mxu0 %v2376
  %3422 = vmatprep.subr.bf16.mxu0 %v2375
  %3423 = vmatpush2.bf16.msra.mxu0 %v2374
  %3424 = vmatprep.subr.bf16.mxu0 %v2373
  %3425 = vmatpush2.bf16.msra.mxu0 %v2372
  %3426 = vmatprep.subr.bf16.mxu0 %v2371
  %3427 = vmatpush2.bf16.msra.mxu0 %v2370
  %3428 = vmatprep.subr.bf16.mxu0 %v2369
  %3429 = vmatpush2.bf16.msra.mxu0 %v2368
  %3430 = vmatprep.subr.bf16.mxu0 %v2367
  %3431 = vmatpush2.bf16.msra.mxu0 %v2366
  %3432 = vmatprep.subr.bf16.mxu0 %v2365
  %3433 = vmatpush2.bf16.msra.mxu0 %v2364
  %3434 = vmatprep.mubr.bf16.mxu0 %v645
  %3435 = vmatmul.mubr.bf16.gmra.mxu0 %v644
  %v3436 = vpop.f32.mrf.mxu0
  %v3437 = vadd.f32 %v3386, %v3436
  %v3438 = vpop.f32.mrf.mxu0
  %v3439 = vadd.f32 %v3388, %v3438
  %v3440 = vpop.f32.mrf.mxu0
  %v3441 = vadd.f32 %v3390, %v3440
  %v3442 = vpop.f32.mrf.mxu0
  %v3443 = vadd.f32 %v3392, %v3442
  %3444 = vmatprep.mubr.bf16.mxu0 %v672
  %3445 = vmatmul.mubr.bf16.gmra.mxu0 %v671
  %v3446 = vpop.f32.mrf.mxu0
  %v3447 = vadd.f32 %v3396, %v3446
  %v3448 = vpop.f32.mrf.mxu0
  %v3449 = vadd.f32 %v3398, %v3448
  %v3450 = vpop.f32.mrf.mxu0
  %v3451 = vpop.f32.mrf.mxu0
  %3452 = vdwg.mxu0
  %3453 = vmatprep.subr.bf16.mxu0 %v2395
  %3454 = vmatpush1.bf16.msra.mxu0 %v2394
  %3455 = vmatprep.subr.bf16.mxu0 %v2393
  %3456 = vmatpush1.bf16.msra.mxu0 %v2392
  %3457 = vmatprep.subr.bf16.mxu0 %v2391
  %3458 = vmatpush1.bf16.msra.mxu0 %v2390
  %3459 = vmatprep.subr.bf16.mxu0 %v2389
  %3460 = vmatpush1.bf16.msra.mxu0 %v2388
  %3461 = vmatprep.subr.bf16.mxu0 %v2387
  %3462 = vmatpush1.bf16.msra.mxu0 %v2386
  %3463 = vmatprep.subr.bf16.mxu0 %v2385
  %3464 = vmatpush1.bf16.msra.mxu0 %v2384
  %3465 = vmatprep.subr.bf16.mxu0 %v2383
  %3466 = vmatpush1.bf16.msra.mxu0 %v2382
  %3467 = vmatprep.subr.bf16.mxu0 %v2381
  %3468 = vmatpush1.bf16.msra.mxu0 %v2380
  %3469 = vmatprep.subr.bf16.mxu0 %v2411
  %3470 = vmatpush2.bf16.msra.mxu0 %v2410
  %3471 = vmatprep.subr.bf16.mxu0 %v2409
  %3472 = vmatpush2.bf16.msra.mxu0 %v2408
  %3473 = vmatprep.subr.bf16.mxu0 %v2407
  %3474 = vmatpush2.bf16.msra.mxu0 %v2406
  %3475 = vmatprep.subr.bf16.mxu0 %v2405
  %3476 = vmatpush2.bf16.msra.mxu0 %v2404
  %3477 = vmatprep.subr.bf16.mxu0 %v2403
  %3478 = vmatpush2.bf16.msra.mxu0 %v2402
  %3479 = vmatprep.subr.bf16.mxu0 %v2401
  %3480 = vmatpush2.bf16.msra.mxu0 %v2400
  %3481 = vmatprep.subr.bf16.mxu0 %v2399
  %3482 = vmatpush2.bf16.msra.mxu0 %v2398
  %3483 = vmatprep.subr.bf16.mxu0 %v2397
  %3484 = vmatpush2.bf16.msra.mxu0 %v2396
  %3485 = vmatprep.mubr.bf16.mxu0 %v647
  %3486 = vmatmul.mubr.bf16.gmra.mxu0 %v646
  %v3487 = vpop.f32.mrf.mxu0
  %v3488 = vadd.f32 %v3437, %v3487
  %v3489 = vpop.f32.mrf.mxu0
  %v3490 = vadd.f32 %v3439, %v3489
  %v3491 = vpop.f32.mrf.mxu0
  %v3492 = vadd.f32 %v3441, %v3491
  %v3493 = vpop.f32.mrf.mxu0
  %v3494 = vadd.f32 %v3443, %v3493
  %3495 = vmatprep.mubr.bf16.mxu0 %v674
  %3496 = vmatmul.mubr.bf16.gmra.mxu0 %v673
  %v3497 = vpop.f32.mrf.mxu0
  %v3498 = vadd.f32 %v3447, %v3497
  %v3499 = vpop.f32.mrf.mxu0
  %v3500 = vadd.f32 %v3449, %v3499
  %v3501 = vpop.f32.mrf.mxu0
  %v3502 = vpop.f32.mrf.mxu0
  %3503 = vdwg.mxu0
  %3504 = vmatprep.subr.bf16.mxu0 %v2427
  %3505 = vmatpush1.bf16.msra.mxu0 %v2426
  %3506 = vmatprep.subr.bf16.mxu0 %v2425
  %3507 = vmatpush1.bf16.msra.mxu0 %v2424
  %3508 = vmatprep.subr.bf16.mxu0 %v2423
  %3509 = vmatpush1.bf16.msra.mxu0 %v2422
  %3510 = vmatprep.subr.bf16.mxu0 %v2421
  %3511 = vmatpush1.bf16.msra.mxu0 %v2420
  %3512 = vmatprep.subr.bf16.mxu0 %v2419
  %3513 = vmatpush1.bf16.msra.mxu0 %v2418
  %3514 = vmatprep.subr.bf16.mxu0 %v2417
  %3515 = vmatpush1.bf16.msra.mxu0 %v2416
  %3516 = vmatprep.subr.bf16.mxu0 %v2415
  %3517 = vmatpush1.bf16.msra.mxu0 %v2414
  %3518 = vmatprep.subr.bf16.mxu0 %v2413
  %3519 = vmatpush1.bf16.msra.mxu0 %v2412
  %3520 = vmatprep.subr.bf16.mxu0 %v2443
  %3521 = vmatpush2.bf16.msra.mxu0 %v2442
  %3522 = vmatprep.subr.bf16.mxu0 %v2441
  %3523 = vmatpush2.bf16.msra.mxu0 %v2440
  %3524 = vmatprep.subr.bf16.mxu0 %v2439
  %3525 = vmatpush2.bf16.msra.mxu0 %v2438
  %3526 = vmatprep.subr.bf16.mxu0 %v2437
  %3527 = vmatpush2.bf16.msra.mxu0 %v2436
  %3528 = vmatprep.subr.bf16.mxu0 %v2435
  %3529 = vmatpush2.bf16.msra.mxu0 %v2434
  %3530 = vmatprep.subr.bf16.mxu0 %v2433
  %3531 = vmatpush2.bf16.msra.mxu0 %v2432
  %3532 = vmatprep.subr.bf16.mxu0 %v2431
  %3533 = vmatpush2.bf16.msra.mxu0 %v2430
  %3534 = vmatprep.subr.bf16.mxu0 %v2429
  %3535 = vmatpush2.bf16.msra.mxu0 %v2428
  %3536 = vmatprep.mubr.bf16.mxu0 %v649
  %3537 = vmatmul.mubr.bf16.gmra.mxu0 %v648
  %v3538 = vpop.f32.mrf.mxu0
  %v3539 = vadd.f32 %v3488, %v3538
  %v3540 = vpop.f32.mrf.mxu0
  %v3541 = vadd.f32 %v3490, %v3540
  %v3542 = vpop.f32.mrf.mxu0
  %v3543 = vadd.f32 %v3492, %v3542
  %v3544 = vpop.f32.mrf.mxu0
  %v3545 = vadd.f32 %v3494, %v3544
  %3546 = vmatprep.mubr.bf16.mxu0 %v676
  %3547 = vmatmul.mubr.bf16.gmra.mxu0 %v675
  %v3548 = vpop.f32.mrf.mxu0
  %v3549 = vadd.f32 %v3498, %v3548
  %v3550 = vpop.f32.mrf.mxu0
  %v3551 = vadd.f32 %v3500, %v3550
  %v3552 = vpop.f32.mrf.mxu0
  %v3553 = vpop.f32.mrf.mxu0
  %3554 = vdwg.mxu0
  %3555 = vmatprep.subr.bf16.mxu0 %v2459
  %3556 = vmatpush1.bf16.msra.mxu0 %v2458
  %3557 = vmatprep.subr.bf16.mxu0 %v2457
  %3558 = vmatpush1.bf16.msra.mxu0 %v2456
  %3559 = vmatprep.subr.bf16.mxu0 %v2455
  %3560 = vmatpush1.bf16.msra.mxu0 %v2454
  %3561 = vmatprep.subr.bf16.mxu0 %v2453
  %3562 = vmatpush1.bf16.msra.mxu0 %v2452
  %3563 = vmatprep.subr.bf16.mxu0 %v2451
  %3564 = vmatpush1.bf16.msra.mxu0 %v2450
  %3565 = vmatprep.subr.bf16.mxu0 %v2449
  %3566 = vmatpush1.bf16.msra.mxu0 %v2448
  %3567 = vmatprep.subr.bf16.mxu0 %v2447
  %3568 = vmatpush1.bf16.msra.mxu0 %v2446
  %3569 = vmatprep.subr.bf16.mxu0 %v2445
  %3570 = vmatpush1.bf16.msra.mxu0 %v2444
  %3571 = vmatprep.subr.bf16.mxu0 0
  %3572 = vmatpush2.bf16.msra.mxu0 0
  %3573 = vmatprep.subr.bf16.mxu0 0
  %3574 = vmatpush2.bf16.msra.mxu0 0
  %3575 = vmatprep.subr.bf16.mxu0 0
  %3576 = vmatpush2.bf16.msra.mxu0 0
  %3577 = vmatprep.subr.bf16.mxu0 0
  %3578 = vmatpush2.bf16.msra.mxu0 0
  %3579 = vmatprep.subr.bf16.mxu0 0
  %3580 = vmatpush2.bf16.msra.mxu0 0
  %3581 = vmatprep.subr.bf16.mxu0 0
  %3582 = vmatpush2.bf16.msra.mxu0 0
  %3583 = vmatprep.subr.bf16.mxu0 0
  %3584 = vmatpush2.bf16.msra.mxu0 0
  %3585 = vmatprep.subr.bf16.mxu0 0
  %3586 = vmatpush2.bf16.msra.mxu0 0
  %3587 = vmatprep.mubr.bf16.mxu0 0
  %3588 = vmatmul.mubr.bf16.gmra.mxu0 %v650
  %v3589 = vpop.f32.mrf.mxu0
  %v3590 = vadd.f32 %v3539, %v3589
  %v3591 = vpop.f32.mrf.mxu0
  %v3592 = vadd.f32 %v3541, %v3591
  %v3593 = vpop.f32.mrf.mxu0
  %v3594 = vadd.f32 %v3543, %v3593
  %v3595 = vpop.f32.mrf.mxu0
  %v3596 = vadd.f32 %v3545, %v3595
  %3597 = vmatprep.mubr.bf16.mxu0 0
  %3598 = vmatmul.mubr.bf16.gmra.mxu0 %v677
  %v3599 = vpop.f32.mrf.mxu0
  %v3600 = vadd.f32 %v3549, %v3599
  %v3601 = vpop.f32.mrf.mxu0
  %v3602 = vadd.f32 %v3551, %v3601
  %v3603 = vpop.f32.mrf.mxu0
  %v3604 = vpop.f32.mrf.mxu0
  %3605 = vdwg.mxu0
  %v3606 = vmax.f32 %v3590, 0.0
  %v3607 = vmax.f32 %v3592, 0.0
  %v3608 = vmax.f32 %v3594, 0.0
  %v3609 = vmax.f32 %v3596, 0.0
  %v3610 = vmax.f32 %v3600, 0.0
  %v3611 = vmax.f32 %v3602, 0.0
  %v3612 = vpack.c.bf16 %v3608, %v3606
  %v3613 = vpack.c.bf16 %v3609, %v3607
  %v3614 = vpack.c.bf16 %v3610, %v3610
  %v3615 = vpack.c.bf16 %v3611, %v3611
  %v3620 = vunpack.c.l.b16 %v3612
  %v3621 = vunpack.c.l.b16 %v3613
  %v3622 = vunpack.c.h.b16 %v3612
  %v3623 = vunpack.c.h.b16 %v3613
  %v3624 = vunpack.c.l.b16 %v3614
  %v3625 = vunpack.c.l.b16 %v3615
  %v3626 = vpack.c.b16 %v3621, %v3620
  %v3627 = vpack.c.b16 %v3623, %v3622
  %v3628 = vpack.c.b16 %v3625, %v3624
  %3632 = vst [vmem:[%s3] sm:$0xff] %v3626
  %3633 = vst [vmem:[%s3 + $0x8] sm:$0xff] %v3627
  %3634 = vst [vmem:[%s3 + $0x10] sm:$0x11] %v3628
  // Predicated region
  $region14: #{alexnet_forward.13} parent=0 // pred_check
    _
  $region15: #{alexnet_forward.13} parent=0 // pred_check_branch
    %3636 = sbr.rel (0) target = $region17
  $region16: #{alexnet_forward.13} parent=0 // pred_region
    _
  $region17: #{alexnet_forward.13} parent=0 // pred_fallthru
    _
  // Predicated region
  $region18: #{alexnet_forward.13} parent=0 // pred_check
    _
  $region19: #{alexnet_forward.13} parent=0 // pred_check_branch
    %3638 = sbr.rel (0) target = $region21
  $region20: #{alexnet_forward.13} parent=0 // pred_region
    _
  $region21: #{alexnet_forward.13} parent=0 // pred_fallthru
    _

// kernel: alexnet_forward.15
$region0: #{alexnet_forward.15}
  #allocation0 [shape = 'u32[]', space=smem, size = 0x4, offset = 0x4, fixed_abs, tag = 'smem constant byte address 0x4 - core index']
  #allocation1 [shape = 'u32[144,128]{1,0:T(1,128)}', space=vmem, size = 0x12000, scoped, tag = 'internal scratch']
  %s0 = inlined_call_operand.vmem [shape: bf16[2,256], index: 0, kind: input, shape index: {}]
  %s1 = inlined_call_operand.vmem [shape: bf16[2,256], index: 1, kind: input, shape index: {}]
  %s2 = inlined_call_operand.vmem [shape: bf16[2,256], index: 2, kind: input, shape index: {}]
  %s3 = inlined_call_operand.vmem [shape: bf16[2,256], index: 3, kind: output, shape index: {}]
  %s4 = sld [smem:[#allocation0]]
  $region22: #{alexnet_forward.15} parent=0
    _
  %s6 = ssub.s32 1, %s4
  %s7 = scalar_select 0, %s6, %s4
  // Predicated region
  $region2: #{alexnet_forward.15} parent=0 // pred_check
    _
  $region3: #{alexnet_forward.15} parent=0 // pred_check_branch
    %9 = sbr.rel (0) target = $region5
  $region4: #{alexnet_forward.15} parent=0 // pred_region
    _
  $region5: #{alexnet_forward.15} parent=0 // pred_fallthru
    _
  // Predicated region
  $region6: #{alexnet_forward.15} parent=0 // pred_check
    _
  $region7: #{alexnet_forward.15} parent=0 // pred_check_branch
    %11 = sbr.rel (0) target = $region9
  $region8: #{alexnet_forward.15} parent=0 // pred_region
    _
  $region9: #{alexnet_forward.15} parent=0 // pred_fallthru
    _
  // Predicated region
  $region10: #{alexnet_forward.15} parent=0 // pred_check
    _
  $region11: #{alexnet_forward.15} parent=0 // pred_check_branch
    %13 = sbr.rel (0) target = $region13
  $region12: #{alexnet_forward.15} parent=0 // pred_region
    _
  $region13: #{alexnet_forward.15} parent=0 // pred_fallthru
    _
  %v14 = vld [vmem:[%s0] sm:$0x3]
  %v15 = vld [vmem:[%s1] sm:$0x3]
  %v16 = vmax.bf16 %v14, %v15
  %v17 = vld [vmem:[%s2] sm:$0x3]
  %v18 = vmax.bf16 %v16, %v17
  %19 = vst [vmem:[%s3] sm:$0x3] %v18
  // Predicated region
  $region14: #{alexnet_forward.15} parent=0 // pred_check
    _
  $region15: #{alexnet_forward.15} parent=0 // pred_check_branch
    %21 = sbr.rel (0) target = $region17
  $region16: #{alexnet_forward.15} parent=0 // pred_region
    _
  $region17: #{alexnet_forward.15} parent=0 // pred_fallthru
    _
  // Predicated region
  $region18: #{alexnet_forward.15} parent=0 // pred_check
    _
  $region19: #{alexnet_forward.15} parent=0 // pred_check_branch
    %23 = sbr.rel (0) target = $region21
  $region20: #{alexnet_forward.15} parent=0 // pred_region
    _
  $region21: #{alexnet_forward.15} parent=0 // pred_fallthru
    _

// kernel: alexnet_forward.14
$region0: #{alexnet_forward.14}
  #allocation0 [shape = 'u32[]', space=smem, size = 0x4, offset = 0x4, fixed_abs, tag = 'smem constant byte address 0x4 - core index']
  #allocation1 [shape = 'u32[144,128]{1,0:T(1,128)}', space=vmem, size = 0x12000, scoped, tag = 'internal scratch']
  %s0 = inlined_call_operand.vmem [shape: bf16[18,2304], index: 0, kind: input, shape index: {}]
  %s1 = inlined_call_operand.vmem [shape: bf16[2304,256], index: 1, kind: input, shape index: {}]
  %s2 = inlined_call_operand.vmem [shape: f32[1,256], index: 2, kind: input, shape index: {}]
  %s3 = inlined_call_operand.vmem [shape: bf16[18,256], index: 3, kind: output, shape index: {}]
  %s4 = sld [smem:[#allocation0]]
  $region22: #{alexnet_forward.14} parent=0
    _
  %s6 = ssub.s32 1, %s4
  %s7 = scalar_select 0, %s6, %s4
  // Predicated region
  $region2: #{alexnet_forward.14} parent=0 // pred_check
    _
  $region3: #{alexnet_forward.14} parent=0 // pred_check_branch
    %9 = sbr.rel (0) target = $region5
  $region4: #{alexnet_forward.14} parent=0 // pred_region
    _
  $region5: #{alexnet_forward.14} parent=0 // pred_fallthru
    _
  // Predicated region
  $region6: #{alexnet_forward.14} parent=0 // pred_check
    _
  $region7: #{alexnet_forward.14} parent=0 // pred_check_branch
    %11 = sbr.rel (0) target = $region9
  $region8: #{alexnet_forward.14} parent=0 // pred_region
    _
  $region9: #{alexnet_forward.14} parent=0 // pred_fallthru
    _
  // Predicated region
  $region10: #{alexnet_forward.14} parent=0 // pred_check
    _
  $region11: #{alexnet_forward.14} parent=0 // pred_check_branch
    %13 = sbr.rel (0) target = $region13
  $region12: #{alexnet_forward.14} parent=0 // pred_region
    _
  $region13: #{alexnet_forward.14} parent=0 // pred_fallthru
    _
  %v14 = vld [vmem:[%s0] sm:$0xff]
  %v15 = vld [vmem:[%s0 + $0x8] sm:$0xff]
  %v16 = vld [vmem:[%s0 + $0x10] sm:$0xff]
  %v17 = vld [vmem:[%s0 + $0x18] sm:$0xff]
  %v18 = vld [vmem:[%s0 + $0x20] sm:$0xff]
  %v19 = vld [vmem:[%s0 + $0x28] sm:$0xff]
  %v20 = vld [vmem:[%s0 + $0x30] sm:$0xff]
  %v21 = vld [vmem:[%s0 + $0x38] sm:$0xff]
  %v22 = vld [vmem:[%s0 + $0x40] sm:$0xff]
  %v23 = vld [vmem:[%s0 + $0x48] sm:$0xff]
  %v24 = vld [vmem:[%s0 + $0x50] sm:$0xff]
  %v25 = vld [vmem:[%s0 + $0x58] sm:$0xff]
  %v26 = vld [vmem:[%s0 + $0x60] sm:$0xff]
  %v27 = vld [vmem:[%s0 + $0x68] sm:$0xff]
  %v28 = vld [vmem:[%s0 + $0x70] sm:$0xff]
  %v29 = vld [vmem:[%s0 + $0x78] sm:$0xff]
  %v30 = vld [vmem:[%s0 + $0x80] sm:$0xff]
  %v31 = vld [vmem:[%s0 + $0x88] sm:$0xff]
  %v32 = vld [vmem:[%s0 + $0x90] sm:$0x11]
  %v33 = vld [vmem:[%s0 + $0x98] sm:$0x11]
  %v34 = vld [vmem:[%s0 + $0xa0] sm:$0x11]
  %v35 = vld [vmem:[%s0 + $0xa8] sm:$0x11]
  %v36 = vld [vmem:[%s0 + $0xb0] sm:$0x11]
  %v37 = vld [vmem:[%s0 + $0xb8] sm:$0x11]
  %v38 = vld [vmem:[%s0 + $0xc0] sm:$0x11]
  %v39 = vld [vmem:[%s0 + $0xc8] sm:$0x11]
  %v40 = vld [vmem:[%s0 + $0xd0] sm:$0x11]
  %v41 = vld [vmem:[%s1] sm:$0xff]
  %v42 = vld [vmem:[%s1 + $0x8] sm:$0xff]
  %v43 = vld [vmem:[%s1 + $0x10] sm:$0xff]
  %v44 = vld [vmem:[%s1 + $0x18] sm:$0xff]
  %v45 = vld [vmem:[%s1 + $0x20] sm:$0xff]
  %v46 = vld [vmem:[%s1 + $0x28] sm:$0xff]
  %v47 = vld [vmem:[%s1 + $0x30] sm:$0xff]
  %v48 = vld [vmem:[%s1 + $0x38] sm:$0xff]
  %v49 = vld [vmem:[%s1 + $0x40] sm:$0xff]
  %v50 = vld [vmem:[%s1 + $0x48] sm:$0xff]
  %v51 = vld [vmem:[%s1 + $0x50] sm:$0xff]
  %v52 = vld [vmem:[%s1 + $0x58] sm:$0xff]
  %v53 = vld [vmem:[%s1 + $0x60] sm:$0xff]
  %v54 = vld [vmem:[%s1 + $0x68] sm:$0xff]
  %v55 = vld [vmem:[%s1 + $0x70] sm:$0xff]
  %v56 = vld [vmem:[%s1 + $0x78] sm:$0xff]
  %v57 = vld [vmem:[%s1 + $0x80] sm:$0xff]
  %v58 = vld [vmem:[%s1 + $0x88] sm:$0xff]
  %v59 = vld [vmem:[%s1 + $0x90] sm:$0xff]
  %v60 = vld [vmem:[%s1 + $0x98] sm:$0xff]
  %v61 = vld [vmem:[%s1 + $0xa0] sm:$0xff]
  %v62 = vld [vmem:[%s1 + $0xa8] sm:$0xff]
  %v63 = vld [vmem:[%s1 + $0xb0] sm:$0xff]
  %v64 = vld [vmem:[%s1 + $0xb8] sm:$0xff]
  %v65 = vld [vmem:[%s1 + $0xc0] sm:$0xff]
  %v66 = vld [vmem:[%s1 + $0xc8] sm:$0xff]
  %v67 = vld [vmem:[%s1 + $0xd0] sm:$0xff]
  %v68 = vld [vmem:[%s1 + $0xd8] sm:$0xff]
  %v69 = vld [vmem:[%s1 + $0xe0] sm:$0xff]
  %v70 = vld [vmem:[%s1 + $0xe8] sm:$0xff]
  %v71 = vld [vmem:[%s1 + $0xf0] sm:$0xff]
  %v72 = vld [vmem:[%s1 + $0xf8] sm:$0xff]
  %v73 = vld [vmem:[%s1 + $0x100] sm:$0xff]
  %v74 = vld [vmem:[%s1 + $0x108] sm:$0xff]
  %v75 = vld [vmem:[%s1 + $0x110] sm:$0xff]
  %v76 = vld [vmem:[%s1 + $0x118] sm:$0xff]
  %v77 = vld [vmem:[%s1 + $0x120] sm:$0xff]
  %v78 = vld [vmem:[%s1 + $0x128] sm:$0xff]
  %v79 = vld [vmem:[%s1 + $0x130] sm:$0xff]
  %v80 = vld [vmem:[%s1 + $0x138] sm:$0xff]
  %v81 = vld [vmem:[%s1 + $0x140] sm:$0xff]
  %v82 = vld [vmem:[%s1 + $0x148] sm:$0xff]
  %v83 = vld [vmem:[%s1 + $0x150] sm:$0xff]
  %v84 = vld [vmem:[%s1 + $0x158] sm:$0xff]
  %v85 = vld [vmem:[%s1 + $0x160] sm:$0xff]
  %v86 = vld [vmem:[%s1 + $0x168] sm:$0xff]
  %v87 = vld [vmem:[%s1 + $0x170] sm:$0xff]
  %v88 = vld [vmem:[%s1 + $0x178] sm:$0xff]
  %v89 = vld [vmem:[%s1 + $0x180] sm:$0xff]
  %v90 = vld [vmem:[%s1 + $0x188] sm:$0xff]
  %v91 = vld [vmem:[%s1 + $0x190] sm:$0xff]
  %v92 = vld [vmem:[%s1 + $0x198] sm:$0xff]
  %v93 = vld [vmem:[%s1 + $0x1a0] sm:$0xff]
  %v94 = vld [vmem:[%s1 + $0x1a8] sm:$0xff]
  %v95 = vld [vmem:[%s1 + $0x1b0] sm:$0xff]
  %v96 = vld [vmem:[%s1 + $0x1b8] sm:$0xff]
  %v97 = vld [vmem:[%s1 + $0x1c0] sm:$0xff]
  %v98 = vld [vmem:[%s1 + $0x1c8] sm:$0xff]
  %v99 = vld [vmem:[%s1 + $0x1d0] sm:$0xff]
  %v100 = vld [vmem:[%s1 + $0x1d8] sm:$0xff]
  %v101 = vld [vmem:[%s1 + $0x1e0] sm:$0xff]
  %v102 = vld [vmem:[%s1 + $0x1e8] sm:$0xff]
  %v103 = vld [vmem:[%s1 + $0x1f0] sm:$0xff]
  %v104 = vld [vmem:[%s1 + $0x1f8] sm:$0xff]
  %v105 = vld [vmem:[%s1 + $0x200] sm:$0xff]
  %v106 = vld [vmem:[%s1 + $0x208] sm:$0xff]
  %v107 = vld [vmem:[%s1 + $0x210] sm:$0xff]
  %v108 = vld [vmem:[%s1 + $0x218] sm:$0xff]
  %v109 = vld [vmem:[%s1 + $0x220] sm:$0xff]
  %v110 = vld [vmem:[%s1 + $0x228] sm:$0xff]
  %v111 = vld [vmem:[%s1 + $0x230] sm:$0xff]
  %v112 = vld [vmem:[%s1 + $0x238] sm:$0xff]
  %v113 = vld [vmem:[%s1 + $0x240] sm:$0xff]
  %v114 = vld [vmem:[%s1 + $0x248] sm:$0xff]
  %v115 = vld [vmem:[%s1 + $0x250] sm:$0xff]
  %v116 = vld [vmem:[%s1 + $0x258] sm:$0xff]
  %v117 = vld [vmem:[%s1 + $0x260] sm:$0xff]
  %v118 = vld [vmem:[%s1 + $0x268] sm:$0xff]
  %v119 = vld [vmem:[%s1 + $0x270] sm:$0xff]
  %v120 = vld [vmem:[%s1 + $0x278] sm:$0xff]
  %v121 = vld [vmem:[%s1 + $0x280] sm:$0xff]
  %v122 = vld [vmem:[%s1 + $0x288] sm:$0xff]
  %v123 = vld [vmem:[%s1 + $0x290] sm:$0xff]
  %v124 = vld [vmem:[%s1 + $0x298] sm:$0xff]
  %v125 = vld [vmem:[%s1 + $0x2a0] sm:$0xff]
  %v126 = vld [vmem:[%s1 + $0x2a8] sm:$0xff]
  %v127 = vld [vmem:[%s1 + $0x2b0] sm:$0xff]
  %v128 = vld [vmem:[%s1 + $0x2b8] sm:$0xff]
  %v129 = vld [vmem:[%s1 + $0x2c0] sm:$0xff]
  %v130 = vld [vmem:[%s1 + $0x2c8] sm:$0xff]
  %v131 = vld [vmem:[%s1 + $0x2d0] sm:$0xff]
  %v132 = vld [vmem:[%s1 + $0x2d8] sm:$0xff]
  %v133 = vld [vmem:[%s1 + $0x2e0] sm:$0xff]
  %v134 = vld [vmem:[%s1 + $0x2e8] sm:$0xff]
  %v135 = vld [vmem:[%s1 + $0x2f0] sm:$0xff]
  %v136 = vld [vmem:[%s1 + $0x2f8] sm:$0xff]
  %v137 = vld [vmem:[%s1 + $0x300] sm:$0xff]
  %v138 = vld [vmem:[%s1 + $0x308] sm:$0xff]
  %v139 = vld [vmem:[%s1 + $0x310] sm:$0xff]
  %v140 = vld [vmem:[%s1 + $0x318] sm:$0xff]
  %v141 = vld [vmem:[%s1 + $0x320] sm:$0xff]
  %v142 = vld [vmem:[%s1 + $0x328] sm:$0xff]
  %v143 = vld [vmem:[%s1 + $0x330] sm:$0xff]
  %v144 = vld [vmem:[%s1 + $0x338] sm:$0xff]
  %v145 = vld [vmem:[%s1 + $0x340] sm:$0xff]
  %v146 = vld [vmem:[%s1 + $0x348] sm:$0xff]
  %v147 = vld [vmem:[%s1 + $0x350] sm:$0xff]
  %v148 = vld [vmem:[%s1 + $0x358] sm:$0xff]
  %v149 = vld [vmem:[%s1 + $0x360] sm:$0xff]
  %v150 = vld [vmem:[%s1 + $0x368] sm:$0xff]
  %v151 = vld [vmem:[%s1 + $0x370] sm:$0xff]
  %v152 = vld [vmem:[%s1 + $0x378] sm:$0xff]
  %v153 = vld [vmem:[%s1 + $0x380] sm:$0xff]
  %v154 = vld [vmem:[%s1 + $0x388] sm:$0xff]
  %v155 = vld [vmem:[%s1 + $0x390] sm:$0xff]
  %v156 = vld [vmem:[%s1 + $0x398] sm:$0xff]
  %v157 = vld [vmem:[%s1 + $0x3a0] sm:$0xff]
  %v158 = vld [vmem:[%s1 + $0x3a8] sm:$0xff]
  %v159 = vld [vmem:[%s1 + $0x3b0] sm:$0xff]
  %v160 = vld [vmem:[%s1 + $0x3b8] sm:$0xff]
  %v161 = vld [vmem:[%s1 + $0x3c0] sm:$0xff]
  %v162 = vld [vmem:[%s1 + $0x3c8] sm:$0xff]
  %v163 = vld [vmem:[%s1 + $0x3d0] sm:$0xff]
  %v164 = vld [vmem:[%s1 + $0x3d8] sm:$0xff]
  %v165 = vld [vmem:[%s1 + $0x3e0] sm:$0xff]
  %v166 = vld [vmem:[%s1 + $0x3e8] sm:$0xff]
  %v167 = vld [vmem:[%s1 + $0x3f0] sm:$0xff]
  %v168 = vld [vmem:[%s1 + $0x3f8] sm:$0xff]
  %v169 = vld [vmem:[%s1 + $0x400] sm:$0xff]
  %v170 = vld [vmem:[%s1 + $0x408] sm:$0xff]
  %v171 = vld [vmem:[%s1 + $0x410] sm:$0xff]
  %v172 = vld [vmem:[%s1 + $0x418] sm:$0xff]
  %v173 = vld [vmem:[%s1 + $0x420] sm:$0xff]
  %v174 = vld [vmem:[%s1 + $0x428] sm:$0xff]
  %v175 = vld [vmem:[%s1 + $0x430] sm:$0xff]
  %v176 = vld [vmem:[%s1 + $0x438] sm:$0xff]
  %v177 = vld [vmem:[%s1 + $0x440] sm:$0xff]
  %v178 = vld [vmem:[%s1 + $0x448] sm:$0xff]
  %v179 = vld [vmem:[%s1 + $0x450] sm:$0xff]
  %v180 = vld [vmem:[%s1 + $0x458] sm:$0xff]
  %v181 = vld [vmem:[%s1 + $0x460] sm:$0xff]
  %v182 = vld [vmem:[%s1 + $0x468] sm:$0xff]
  %v183 = vld [vmem:[%s1 + $0x470] sm:$0xff]
  %v184 = vld [vmem:[%s1 + $0x478] sm:$0xff]
  %v185 = vld [vmem:[%s1 + $0x480] sm:$0xff]
  %v186 = vld [vmem:[%s1 + $0x488] sm:$0xff]
  %v187 = vld [vmem:[%s1 + $0x490] sm:$0xff]
  %v188 = vld [vmem:[%s1 + $0x498] sm:$0xff]
  %v189 = vld [vmem:[%s1 + $0x4a0] sm:$0xff]
  %v190 = vld [vmem:[%s1 + $0x4a8] sm:$0xff]
  %v191 = vld [vmem:[%s1 + $0x4b0] sm:$0xff]
  %v192 = vld [vmem:[%s1 + $0x4b8] sm:$0xff]
  %v193 = vld [vmem:[%s1 + $0x4c0] sm:$0xff]
  %v194 = vld [vmem:[%s1 + $0x4c8] sm:$0xff]
  %v195 = vld [vmem:[%s1 + $0x4d0] sm:$0xff]
  %v196 = vld [vmem:[%s1 + $0x4d8] sm:$0xff]
  %v197 = vld [vmem:[%s1 + $0x4e0] sm:$0xff]
  %v198 = vld [vmem:[%s1 + $0x4e8] sm:$0xff]
  %v199 = vld [vmem:[%s1 + $0x4f0] sm:$0xff]
  %v200 = vld [vmem:[%s1 + $0x4f8] sm:$0xff]
  %v201 = vld [vmem:[%s1 + $0x500] sm:$0xff]
  %v202 = vld [vmem:[%s1 + $0x508] sm:$0xff]
  %v203 = vld [vmem:[%s1 + $0x510] sm:$0xff]
  %v204 = vld [vmem:[%s1 + $0x518] sm:$0xff]
  %v205 = vld [vmem:[%s1 + $0x520] sm:$0xff]
  %v206 = vld [vmem:[%s1 + $0x528] sm:$0xff]
  %v207 = vld [vmem:[%s1 + $0x530] sm:$0xff]
  %v208 = vld [vmem:[%s1 + $0x538] sm:$0xff]
  %v209 = vld [vmem:[%s1 + $0x540] sm:$0xff]
  %v210 = vld [vmem:[%s1 + $0x548] sm:$0xff]
  %v211 = vld [vmem:[%s1 + $0x550] sm:$0xff]
  %v212 = vld [vmem:[%s1 + $0x558] sm:$0xff]
  %v213 = vld [vmem:[%s1 + $0x560] sm:$0xff]
  %v214 = vld [vmem:[%s1 + $0x568] sm:$0xff]
  %v215 = vld [vmem:[%s1 + $0x570] sm:$0xff]
  %v216 = vld [vmem:[%s1 + $0x578] sm:$0xff]
  %v217 = vld [vmem:[%s1 + $0x580] sm:$0xff]
  %v218 = vld [vmem:[%s1 + $0x588] sm:$0xff]
  %v219 = vld [vmem:[%s1 + $0x590] sm:$0xff]
  %v220 = vld [vmem:[%s1 + $0x598] sm:$0xff]
  %v221 = vld [vmem:[%s1 + $0x5a0] sm:$0xff]
  %v222 = vld [vmem:[%s1 + $0x5a8] sm:$0xff]
  %v223 = vld [vmem:[%s1 + $0x5b0] sm:$0xff]
  %v224 = vld [vmem:[%s1 + $0x5b8] sm:$0xff]
  %v225 = vld [vmem:[%s1 + $0x5c0] sm:$0xff]
  %v226 = vld [vmem:[%s1 + $0x5c8] sm:$0xff]
  %v227 = vld [vmem:[%s1 + $0x5d0] sm:$0xff]
  %v228 = vld [vmem:[%s1 + $0x5d8] sm:$0xff]
  %v229 = vld [vmem:[%s1 + $0x5e0] sm:$0xff]
  %v230 = vld [vmem:[%s1 + $0x5e8] sm:$0xff]
  %v231 = vld [vmem:[%s1 + $0x5f0] sm:$0xff]
  %v232 = vld [vmem:[%s1 + $0x5f8] sm:$0xff]
  %v233 = vld [vmem:[%s1 + $0x600] sm:$0xff]
  %v234 = vld [vmem:[%s1 + $0x608] sm:$0xff]
  %v235 = vld [vmem:[%s1 + $0x610] sm:$0xff]
  %v236 = vld [vmem:[%s1 + $0x618] sm:$0xff]
  %v237 = vld [vmem:[%s1 + $0x620] sm:$0xff]
  %v238 = vld [vmem:[%s1 + $0x628] sm:$0xff]
  %v239 = vld [vmem:[%s1 + $0x630] sm:$0xff]
  %v240 = vld [vmem:[%s1 + $0x638] sm:$0xff]
  %v241 = vld [vmem:[%s1 + $0x640] sm:$0xff]
  %v242 = vld [vmem:[%s1 + $0x648] sm:$0xff]
  %v243 = vld [vmem:[%s1 + $0x650] sm:$0xff]
  %v244 = vld [vmem:[%s1 + $0x658] sm:$0xff]
  %v245 = vld [vmem:[%s1 + $0x660] sm:$0xff]
  %v246 = vld [vmem:[%s1 + $0x668] sm:$0xff]
  %v247 = vld [vmem:[%s1 + $0x670] sm:$0xff]
  %v248 = vld [vmem:[%s1 + $0x678] sm:$0xff]
  %v249 = vld [vmem:[%s1 + $0x680] sm:$0xff]
  %v250 = vld [vmem:[%s1 + $0x688] sm:$0xff]
  %v251 = vld [vmem:[%s1 + $0x690] sm:$0xff]
  %v252 = vld [vmem:[%s1 + $0x698] sm:$0xff]
  %v253 = vld [vmem:[%s1 + $0x6a0] sm:$0xff]
  %v254 = vld [vmem:[%s1 + $0x6a8] sm:$0xff]
  %v255 = vld [vmem:[%s1 + $0x6b0] sm:$0xff]
  %v256 = vld [vmem:[%s1 + $0x6b8] sm:$0xff]
  %v257 = vld [vmem:[%s1 + $0x6c0] sm:$0xff]
  %v258 = vld [vmem:[%s1 + $0x6c8] sm:$0xff]
  %v259 = vld [vmem:[%s1 + $0x6d0] sm:$0xff]
  %v260 = vld [vmem:[%s1 + $0x6d8] sm:$0xff]
  %v261 = vld [vmem:[%s1 + $0x6e0] sm:$0xff]
  %v262 = vld [vmem:[%s1 + $0x6e8] sm:$0xff]
  %v263 = vld [vmem:[%s1 + $0x6f0] sm:$0xff]
  %v264 = vld [vmem:[%s1 + $0x6f8] sm:$0xff]
  %v265 = vld [vmem:[%s1 + $0x700] sm:$0xff]
  %v266 = vld [vmem:[%s1 + $0x708] sm:$0xff]
  %v267 = vld [vmem:[%s1 + $0x710] sm:$0xff]
  %v268 = vld [vmem:[%s1 + $0x718] sm:$0xff]
  %v269 = vld [vmem:[%s1 + $0x720] sm:$0xff]
  %v270 = vld [vmem:[%s1 + $0x728] sm:$0xff]
  %v271 = vld [vmem:[%s1 + $0x730] sm:$0xff]
  %v272 = vld [vmem:[%s1 + $0x738] sm:$0xff]
  %v273 = vld [vmem:[%s1 + $0x740] sm:$0xff]
  %v274 = vld [vmem:[%s1 + $0x748] sm:$0xff]
  %v275 = vld [vmem:[%s1 + $0x750] sm:$0xff]
  %v276 = vld [vmem:[%s1 + $0x758] sm:$0xff]
  %v277 = vld [vmem:[%s1 + $0x760] sm:$0xff]
  %v278 = vld [vmem:[%s1 + $0x768] sm:$0xff]
  %v279 = vld [vmem:[%s1 + $0x770] sm:$0xff]
  %v280 = vld [vmem:[%s1 + $0x778] sm:$0xff]
  %v281 = vld [vmem:[%s1 + $0x780] sm:$0xff]
  %v282 = vld [vmem:[%s1 + $0x788] sm:$0xff]
  %v283 = vld [vmem:[%s1 + $0x790] sm:$0xff]
  %v284 = vld [vmem:[%s1 + $0x798] sm:$0xff]
  %v285 = vld [vmem:[%s1 + $0x7a0] sm:$0xff]
  %v286 = vld [vmem:[%s1 + $0x7a8] sm:$0xff]
  %v287 = vld [vmem:[%s1 + $0x7b0] sm:$0xff]
  %v288 = vld [vmem:[%s1 + $0x7b8] sm:$0xff]
  %v289 = vld [vmem:[%s1 + $0x7c0] sm:$0xff]
  %v290 = vld [vmem:[%s1 + $0x7c8] sm:$0xff]
  %v291 = vld [vmem:[%s1 + $0x7d0] sm:$0xff]
  %v292 = vld [vmem:[%s1 + $0x7d8] sm:$0xff]
  %v293 = vld [vmem:[%s1 + $0x7e0] sm:$0xff]
  %v294 = vld [vmem:[%s1 + $0x7e8] sm:$0xff]
  %v295 = vld [vmem:[%s1 + $0x7f0] sm:$0xff]
  %v296 = vld [vmem:[%s1 + $0x7f8] sm:$0xff]
  %v297 = vld [vmem:[%s1 + $0x800] sm:$0xff]
  %v298 = vld [vmem:[%s1 + $0x808] sm:$0xff]
  %v299 = vld [vmem:[%s1 + $0x810] sm:$0xff]
  %v300 = vld [vmem:[%s1 + $0x818] sm:$0xff]
  %v301 = vld [vmem:[%s1 + $0x820] sm:$0xff]
  %v302 = vld [vmem:[%s1 + $0x828] sm:$0xff]
  %v303 = vld [vmem:[%s1 + $0x830] sm:$0xff]
  %v304 = vld [vmem:[%s1 + $0x838] sm:$0xff]
  %v305 = vld [vmem:[%s1 + $0x840] sm:$0xff]
  %v306 = vld [vmem:[%s1 + $0x848] sm:$0xff]
  %v307 = vld [vmem:[%s1 + $0x850] sm:$0xff]
  %v308 = vld [vmem:[%s1 + $0x858] sm:$0xff]
  %v309 = vld [vmem:[%s1 + $0x860] sm:$0xff]
  %v310 = vld [vmem:[%s1 + $0x868] sm:$0xff]
  %v311 = vld [vmem:[%s1 + $0x870] sm:$0xff]
  %v312 = vld [vmem:[%s1 + $0x878] sm:$0xff]
  %v313 = vld [vmem:[%s1 + $0x880] sm:$0xff]
  %v314 = vld [vmem:[%s1 + $0x888] sm:$0xff]
  %v315 = vld [vmem:[%s1 + $0x890] sm:$0xff]
  %v316 = vld [vmem:[%s1 + $0x898] sm:$0xff]
  %v317 = vld [vmem:[%s1 + $0x8a0] sm:$0xff]
  %v318 = vld [vmem:[%s1 + $0x8a8] sm:$0xff]
  %v319 = vld [vmem:[%s1 + $0x8b0] sm:$0xff]
  %v320 = vld [vmem:[%s1 + $0x8b8] sm:$0xff]
  %v321 = vld [vmem:[%s1 + $0x8c0] sm:$0xff]
  %v322 = vld [vmem:[%s1 + $0x8c8] sm:$0xff]
  %v323 = vld [vmem:[%s1 + $0x8d0] sm:$0xff]
  %v324 = vld [vmem:[%s1 + $0x8d8] sm:$0xff]
  %v325 = vld [vmem:[%s1 + $0x8e0] sm:$0xff]
  %v326 = vld [vmem:[%s1 + $0x8e8] sm:$0xff]
  %v327 = vld [vmem:[%s1 + $0x8f0] sm:$0xff]
  %v328 = vld [vmem:[%s1 + $0x8f8] sm:$0xff]
  %v329 = vld [vmem:[%s2] sm:$0x3]
  %v331 = vlaneseq
  %v332 = vshrl.u32 %v331, 7
  %v333 = vsub.s32 0, %v332
  %v334 = vrot.slane %v329, %v333
  %v335 = vlaneseq
  %v336 = vshrl.u32 %v335, 7
  %v337 = vsub.s32 1, %v336
  %v338 = vrot.slane %v329, %v337
  %v368 = vunpack.c.l.b16 %v14
  %v369 = vunpack.c.h.b16 %v14
  %v370 = vunpack.c.l.b16 %v15
  %v371 = vunpack.c.h.b16 %v15
  %v372 = vunpack.c.l.b16 %v16
  %v373 = vunpack.c.h.b16 %v16
  %v374 = vunpack.c.l.b16 %v17
  %v375 = vunpack.c.h.b16 %v17
  %v376 = vunpack.c.l.b16 %v18
  %v377 = vunpack.c.h.b16 %v18
  %v378 = vunpack.c.l.b16 %v19
  %v379 = vunpack.c.h.b16 %v19
  %v380 = vunpack.c.l.b16 %v20
  %v381 = vunpack.c.h.b16 %v20
  %v382 = vunpack.c.l.b16 %v21
  %v383 = vunpack.c.h.b16 %v21
  %v384 = vunpack.c.l.b16 %v22
  %v385 = vunpack.c.h.b16 %v22
  %v386 = vunpack.c.l.b16 %v23
  %v387 = vunpack.c.h.b16 %v23
  %v388 = vunpack.c.l.b16 %v24
  %v389 = vunpack.c.h.b16 %v24
  %v390 = vunpack.c.l.b16 %v25
  %v391 = vunpack.c.h.b16 %v25
  %v392 = vunpack.c.l.b16 %v26
  %v393 = vunpack.c.h.b16 %v26
  %v394 = vunpack.c.l.b16 %v27
  %v395 = vunpack.c.h.b16 %v27
  %v396 = vunpack.c.l.b16 %v28
  %v397 = vunpack.c.h.b16 %v28
  %v398 = vunpack.c.l.b16 %v29
  %v399 = vunpack.c.h.b16 %v29
  %v400 = vunpack.c.l.b16 %v30
  %v401 = vunpack.c.h.b16 %v30
  %v402 = vunpack.c.l.b16 %v31
  %v403 = vunpack.c.h.b16 %v31
  %v404 = vunpack.c.l.b16 %v32
  %v405 = vunpack.c.h.b16 %v32
  %v406 = vunpack.c.l.b16 %v33
  %v407 = vunpack.c.h.b16 %v33
  %v408 = vunpack.c.l.b16 %v34
  %v409 = vunpack.c.h.b16 %v34
  %v410 = vunpack.c.l.b16 %v35
  %v411 = vunpack.c.h.b16 %v35
  %v412 = vunpack.c.l.b16 %v36
  %v413 = vunpack.c.h.b16 %v36
  %v414 = vunpack.c.l.b16 %v37
  %v415 = vunpack.c.h.b16 %v37
  %v416 = vunpack.c.l.b16 %v38
  %v417 = vunpack.c.h.b16 %v38
  %v418 = vunpack.c.l.b16 %v39
  %v419 = vunpack.c.h.b16 %v39
  %v420 = vunpack.c.l.b16 %v40
  %v421 = vunpack.c.h.b16 %v40
  %v422 = vpack.c.b16 %v386, %v368
  %v423 = vpack.c.b16 %v387, %v369
  %v424 = vpack.c.b16 %v388, %v370
  %v425 = vpack.c.b16 %v389, %v371
  %v426 = vpack.c.b16 %v390, %v372
  %v427 = vpack.c.b16 %v391, %v373
  %v428 = vpack.c.b16 %v392, %v374
  %v429 = vpack.c.b16 %v393, %v375
  %v430 = vpack.c.b16 %v394, %v376
  %v431 = vpack.c.b16 %v395, %v377
  %v432 = vpack.c.b16 %v396, %v378
  %v433 = vpack.c.b16 %v397, %v379
  %v434 = vpack.c.b16 %v398, %v380
  %v435 = vpack.c.b16 %v399, %v381
  %v436 = vpack.c.b16 %v400, %v382
  %v437 = vpack.c.b16 %v401, %v383
  %v438 = vpack.c.b16 %v402, %v384
  %v439 = vpack.c.b16 %v403, %v385
  %v440 = vpack.c.b16 %v404, %v404
  %v441 = vpack.c.b16 %v405, %v405
  %v442 = vpack.c.b16 %v406, %v406
  %v443 = vpack.c.b16 %v407, %v407
  %v444 = vpack.c.b16 %v408, %v408
  %v445 = vpack.c.b16 %v409, %v409
  %v446 = vpack.c.b16 %v410, %v410
  %v447 = vpack.c.b16 %v411, %v411
  %v448 = vpack.c.b16 %v412, %v412
  %v449 = vpack.c.b16 %v413, %v413
  %v450 = vpack.c.b16 %v414, %v414
  %v451 = vpack.c.b16 %v415, %v415
  %v452 = vpack.c.b16 %v416, %v416
  %v453 = vpack.c.b16 %v417, %v417
  %v454 = vpack.c.b16 %v418, %v418
  %v455 = vpack.c.b16 %v419, %v419
  %v456 = vpack.c.b16 %v420, %v420
  %v457 = vpack.c.b16 %v421, %v421
  %v782 = vunpack.c.l.b16 %v41
  %v783 = vunpack.c.h.b16 %v41
  %v784 = vunpack.c.l.b16 %v42
  %v785 = vunpack.c.h.b16 %v42
  %v786 = vunpack.c.l.b16 %v43
  %v787 = vunpack.c.h.b16 %v43
  %v788 = vunpack.c.l.b16 %v44
  %v789 = vunpack.c.h.b16 %v44
  %v790 = vunpack.c.l.b16 %v45
  %v791 = vunpack.c.h.b16 %v45
  %v792 = vunpack.c.l.b16 %v46
  %v793 = vunpack.c.h.b16 %v46
  %v794 = vunpack.c.l.b16 %v47
  %v795 = vunpack.c.h.b16 %v47
  %v796 = vunpack.c.l.b16 %v48
  %v797 = vunpack.c.h.b16 %v48
  %v798 = vunpack.c.l.b16 %v49
  %v799 = vunpack.c.h.b16 %v49
  %v800 = vunpack.c.l.b16 %v50
  %v801 = vunpack.c.h.b16 %v50
  %v802 = vunpack.c.l.b16 %v51
  %v803 = vunpack.c.h.b16 %v51
  %v804 = vunpack.c.l.b16 %v52
  %v805 = vunpack.c.h.b16 %v52
  %v806 = vunpack.c.l.b16 %v53
  %v807 = vunpack.c.h.b16 %v53
  %v808 = vunpack.c.l.b16 %v54
  %v809 = vunpack.c.h.b16 %v54
  %v810 = vunpack.c.l.b16 %v55
  %v811 = vunpack.c.h.b16 %v55
  %v812 = vunpack.c.l.b16 %v56
  %v813 = vunpack.c.h.b16 %v56
  %v814 = vunpack.c.l.b16 %v57
  %v815 = vunpack.c.h.b16 %v57
  %v816 = vunpack.c.l.b16 %v58
  %v817 = vunpack.c.h.b16 %v58
  %v818 = vunpack.c.l.b16 %v59
  %v819 = vunpack.c.h.b16 %v59
  %v820 = vunpack.c.l.b16 %v60
  %v821 = vunpack.c.h.b16 %v60
  %v822 = vunpack.c.l.b16 %v61
  %v823 = vunpack.c.h.b16 %v61
  %v824 = vunpack.c.l.b16 %v62
  %v825 = vunpack.c.h.b16 %v62
  %v826 = vunpack.c.l.b16 %v63
  %v827 = vunpack.c.h.b16 %v63
  %v828 = vunpack.c.l.b16 %v64
  %v829 = vunpack.c.h.b16 %v64
  %v830 = vunpack.c.l.b16 %v65
  %v831 = vunpack.c.h.b16 %v65
  %v832 = vunpack.c.l.b16 %v66
  %v833 = vunpack.c.h.b16 %v66
  %v834 = vunpack.c.l.b16 %v67
  %v835 = vunpack.c.h.b16 %v67
  %v836 = vunpack.c.l.b16 %v68
  %v837 = vunpack.c.h.b16 %v68
  %v838 = vunpack.c.l.b16 %v69
  %v839 = vunpack.c.h.b16 %v69
  %v840 = vunpack.c.l.b16 %v70
  %v841 = vunpack.c.h.b16 %v70
  %v842 = vunpack.c.l.b16 %v71
  %v843 = vunpack.c.h.b16 %v71
  %v844 = vunpack.c.l.b16 %v72
  %v845 = vunpack.c.h.b16 %v72
  %v846 = vunpack.c.l.b16 %v73
  %v847 = vunpack.c.h.b16 %v73
  %v848 = vunpack.c.l.b16 %v74
  %v849 = vunpack.c.h.b16 %v74
  %v850 = vunpack.c.l.b16 %v75
  %v851 = vunpack.c.h.b16 %v75
  %v852 = vunpack.c.l.b16 %v76
  %v853 = vunpack.c.h.b16 %v76
  %v854 = vunpack.c.l.b16 %v77
  %v855 = vunpack.c.h.b16 %v77
  %v856 = vunpack.c.l.b16 %v78
  %v857 = vunpack.c.h.b16 %v78
  %v858 = vunpack.c.l.b16 %v79
  %v859 = vunpack.c.h.b16 %v79
  %v860 = vunpack.c.l.b16 %v80
  %v861 = vunpack.c.h.b16 %v80
  %v862 = vunpack.c.l.b16 %v81
  %v863 = vunpack.c.h.b16 %v81
  %v864 = vunpack.c.l.b16 %v82
  %v865 = vunpack.c.h.b16 %v82
  %v866 = vunpack.c.l.b16 %v83
  %v867 = vunpack.c.h.b16 %v83
  %v868 = vunpack.c.l.b16 %v84
  %v869 = vunpack.c.h.b16 %v84
  %v870 = vunpack.c.l.b16 %v85
  %v871 = vunpack.c.h.b16 %v85
  %v872 = vunpack.c.l.b16 %v86
  %v873 = vunpack.c.h.b16 %v86
  %v874 = vunpack.c.l.b16 %v87
  %v875 = vunpack.c.h.b16 %v87
  %v876 = vunpack.c.l.b16 %v88
  %v877 = vunpack.c.h.b16 %v88
  %v878 = vunpack.c.l.b16 %v89
  %v879 = vunpack.c.h.b16 %v89
  %v880 = vunpack.c.l.b16 %v90
  %v881 = vunpack.c.h.b16 %v90
  %v882 = vunpack.c.l.b16 %v91
  %v883 = vunpack.c.h.b16 %v91
  %v884 = vunpack.c.l.b16 %v92
  %v885 = vunpack.c.h.b16 %v92
  %v886 = vunpack.c.l.b16 %v93
  %v887 = vunpack.c.h.b16 %v93
  %v888 = vunpack.c.l.b16 %v94
  %v889 = vunpack.c.h.b16 %v94
  %v890 = vunpack.c.l.b16 %v95
  %v891 = vunpack.c.h.b16 %v95
  %v892 = vunpack.c.l.b16 %v96
  %v893 = vunpack.c.h.b16 %v96
  %v894 = vunpack.c.l.b16 %v97
  %v895 = vunpack.c.h.b16 %v97
  %v896 = vunpack.c.l.b16 %v98
  %v897 = vunpack.c.h.b16 %v98
  %v898 = vunpack.c.l.b16 %v99
  %v899 = vunpack.c.h.b16 %v99
  %v900 = vunpack.c.l.b16 %v100
  %v901 = vunpack.c.h.b16 %v100
  %v902 = vunpack.c.l.b16 %v101
  %v903 = vunpack.c.h.b16 %v101
  %v904 = vunpack.c.l.b16 %v102
  %v905 = vunpack.c.h.b16 %v102
  %v906 = vunpack.c.l.b16 %v103
  %v907 = vunpack.c.h.b16 %v103
  %v908 = vunpack.c.l.b16 %v104
  %v909 = vunpack.c.h.b16 %v104
  %v910 = vunpack.c.l.b16 %v105
  %v911 = vunpack.c.h.b16 %v105
  %v912 = vunpack.c.l.b16 %v106
  %v913 = vunpack.c.h.b16 %v106
  %v914 = vunpack.c.l.b16 %v107
  %v915 = vunpack.c.h.b16 %v107
  %v916 = vunpack.c.l.b16 %v108
  %v917 = vunpack.c.h.b16 %v108
  %v918 = vunpack.c.l.b16 %v109
  %v919 = vunpack.c.h.b16 %v109
  %v920 = vunpack.c.l.b16 %v110
  %v921 = vunpack.c.h.b16 %v110
  %v922 = vunpack.c.l.b16 %v111
  %v923 = vunpack.c.h.b16 %v111
  %v924 = vunpack.c.l.b16 %v112
  %v925 = vunpack.c.h.b16 %v112
  %v926 = vunpack.c.l.b16 %v113
  %v927 = vunpack.c.h.b16 %v113
  %v928 = vunpack.c.l.b16 %v114
  %v929 = vunpack.c.h.b16 %v114
  %v930 = vunpack.c.l.b16 %v115
  %v931 = vunpack.c.h.b16 %v115
  %v932 = vunpack.c.l.b16 %v116
  %v933 = vunpack.c.h.b16 %v116
  %v934 = vunpack.c.l.b16 %v117
  %v935 = vunpack.c.h.b16 %v117
  %v936 = vunpack.c.l.b16 %v118
  %v937 = vunpack.c.h.b16 %v118
  %v938 = vunpack.c.l.b16 %v119
  %v939 = vunpack.c.h.b16 %v119
  %v940 = vunpack.c.l.b16 %v120
  %v941 = vunpack.c.h.b16 %v120
  %v942 = vunpack.c.l.b16 %v121
  %v943 = vunpack.c.h.b16 %v121
  %v944 = vunpack.c.l.b16 %v122
  %v945 = vunpack.c.h.b16 %v122
  %v946 = vunpack.c.l.b16 %v123
  %v947 = vunpack.c.h.b16 %v123
  %v948 = vunpack.c.l.b16 %v124
  %v949 = vunpack.c.h.b16 %v124
  %v950 = vunpack.c.l.b16 %v125
  %v951 = vunpack.c.h.b16 %v125
  %v952 = vunpack.c.l.b16 %v126
  %v953 = vunpack.c.h.b16 %v126
  %v954 = vunpack.c.l.b16 %v127
  %v955 = vunpack.c.h.b16 %v127
  %v956 = vunpack.c.l.b16 %v128
  %v957 = vunpack.c.h.b16 %v128
  %v958 = vunpack.c.l.b16 %v129
  %v959 = vunpack.c.h.b16 %v129
  %v960 = vunpack.c.l.b16 %v130
  %v961 = vunpack.c.h.b16 %v130
  %v962 = vunpack.c.l.b16 %v131
  %v963 = vunpack.c.h.b16 %v131
  %v964 = vunpack.c.l.b16 %v132
  %v965 = vunpack.c.h.b16 %v132
  %v966 = vunpack.c.l.b16 %v133
  %v967 = vunpack.c.h.b16 %v133
  %v968 = vunpack.c.l.b16 %v134
  %v969 = vunpack.c.h.b16 %v134
  %v970 = vunpack.c.l.b16 %v135
  %v971 = vunpack.c.h.b16 %v135
  %v972 = vunpack.c.l.b16 %v136
  %v973 = vunpack.c.h.b16 %v136
  %v974 = vunpack.c.l.b16 %v137
  %v975 = vunpack.c.h.b16 %v137
  %v976 = vunpack.c.l.b16 %v138
  %v977 = vunpack.c.h.b16 %v138
  %v978 = vunpack.c.l.b16 %v139
  %v979 = vunpack.c.h.b16 %v139
  %v980 = vunpack.c.l.b16 %v140
  %v981 = vunpack.c.h.b16 %v140
  %v982 = vunpack.c.l.b16 %v141
  %v983 = vunpack.c.h.b16 %v141
  %v984 = vunpack.c.l.b16 %v142
  %v985 = vunpack.c.h.b16 %v142
  %v986 = vunpack.c.l.b16 %v143
  %v987 = vunpack.c.h.b16 %v143
  %v988 = vunpack.c.l.b16 %v144
  %v989 = vunpack.c.h.b16 %v144
  %v990 = vunpack.c.l.b16 %v145
  %v991 = vunpack.c.h.b16 %v145
  %v992 = vunpack.c.l.b16 %v146
  %v993 = vunpack.c.h.b16 %v146
  %v994 = vunpack.c.l.b16 %v147
  %v995 = vunpack.c.h.b16 %v147
  %v996 = vunpack.c.l.b16 %v148
  %v997 = vunpack.c.h.b16 %v148
  %v998 = vunpack.c.l.b16 %v149
  %v999 = vunpack.c.h.b16 %v149
  %v1000 = vunpack.c.l.b16 %v150
  %v1001 = vunpack.c.h.b16 %v150
  %v1002 = vunpack.c.l.b16 %v151
  %v1003 = vunpack.c.h.b16 %v151
  %v1004 = vunpack.c.l.b16 %v152
  %v1005 = vunpack.c.h.b16 %v152
  %v1006 = vunpack.c.l.b16 %v153
  %v1007 = vunpack.c.h.b16 %v153
  %v1008 = vunpack.c.l.b16 %v154
  %v1009 = vunpack.c.h.b16 %v154
  %v1010 = vunpack.c.l.b16 %v155
  %v1011 = vunpack.c.h.b16 %v155
  %v1012 = vunpack.c.l.b16 %v156
  %v1013 = vunpack.c.h.b16 %v156
  %v1014 = vunpack.c.l.b16 %v157
  %v1015 = vunpack.c.h.b16 %v157
  %v1016 = vunpack.c.l.b16 %v158
  %v1017 = vunpack.c.h.b16 %v158
  %v1018 = vunpack.c.l.b16 %v159
  %v1019 = vunpack.c.h.b16 %v159
  %v1020 = vunpack.c.l.b16 %v160
  %v1021 = vunpack.c.h.b16 %v160
  %v1022 = vunpack.c.l.b16 %v161
  %v1023 = vunpack.c.h.b16 %v161
  %v1024 = vunpack.c.l.b16 %v162
  %v1025 = vunpack.c.h.b16 %v162
  %v1026 = vunpack.c.l.b16 %v163
  %v1027 = vunpack.c.h.b16 %v163
  %v1028 = vunpack.c.l.b16 %v164
  %v1029 = vunpack.c.h.b16 %v164
  %v1030 = vunpack.c.l.b16 %v165
  %v1031 = vunpack.c.h.b16 %v165
  %v1032 = vunpack.c.l.b16 %v166
  %v1033 = vunpack.c.h.b16 %v166
  %v1034 = vunpack.c.l.b16 %v167
  %v1035 = vunpack.c.h.b16 %v167
  %v1036 = vunpack.c.l.b16 %v168
  %v1037 = vunpack.c.h.b16 %v168
  %v1038 = vunpack.c.l.b16 %v169
  %v1039 = vunpack.c.h.b16 %v169
  %v1040 = vunpack.c.l.b16 %v170
  %v1041 = vunpack.c.h.b16 %v170
  %v1042 = vunpack.c.l.b16 %v171
  %v1043 = vunpack.c.h.b16 %v171
  %v1044 = vunpack.c.l.b16 %v172
  %v1045 = vunpack.c.h.b16 %v172
  %v1046 = vunpack.c.l.b16 %v173
  %v1047 = vunpack.c.h.b16 %v173
  %v1048 = vunpack.c.l.b16 %v174
  %v1049 = vunpack.c.h.b16 %v174
  %v1050 = vunpack.c.l.b16 %v175
  %v1051 = vunpack.c.h.b16 %v175
  %v1052 = vunpack.c.l.b16 %v176
  %v1053 = vunpack.c.h.b16 %v176
  %v1054 = vunpack.c.l.b16 %v177
  %v1055 = vunpack.c.h.b16 %v177
  %v1056 = vunpack.c.l.b16 %v178
  %v1057 = vunpack.c.h.b16 %v178
  %v1058 = vunpack.c.l.b16 %v179
  %v1059 = vunpack.c.h.b16 %v179
  %v1060 = vunpack.c.l.b16 %v180
  %v1061 = vunpack.c.h.b16 %v180
  %v1062 = vunpack.c.l.b16 %v181
  %v1063 = vunpack.c.h.b16 %v181
  %v1064 = vunpack.c.l.b16 %v182
  %v1065 = vunpack.c.h.b16 %v182
  %v1066 = vunpack.c.l.b16 %v183
  %v1067 = vunpack.c.h.b16 %v183
  %v1068 = vunpack.c.l.b16 %v184
  %v1069 = vunpack.c.h.b16 %v184
  %v1070 = vunpack.c.l.b16 %v185
  %v1071 = vunpack.c.h.b16 %v185
  %v1072 = vunpack.c.l.b16 %v186
  %v1073 = vunpack.c.h.b16 %v186
  %v1074 = vunpack.c.l.b16 %v187
  %v1075 = vunpack.c.h.b16 %v187
  %v1076 = vunpack.c.l.b16 %v188
  %v1077 = vunpack.c.h.b16 %v188
  %v1078 = vunpack.c.l.b16 %v189
  %v1079 = vunpack.c.h.b16 %v189
  %v1080 = vunpack.c.l.b16 %v190
  %v1081 = vunpack.c.h.b16 %v190
  %v1082 = vunpack.c.l.b16 %v191
  %v1083 = vunpack.c.h.b16 %v191
  %v1084 = vunpack.c.l.b16 %v192
  %v1085 = vunpack.c.h.b16 %v192
  %v1086 = vunpack.c.l.b16 %v193
  %v1087 = vunpack.c.h.b16 %v193
  %v1088 = vunpack.c.l.b16 %v194
  %v1089 = vunpack.c.h.b16 %v194
  %v1090 = vunpack.c.l.b16 %v195
  %v1091 = vunpack.c.h.b16 %v195
  %v1092 = vunpack.c.l.b16 %v196
  %v1093 = vunpack.c.h.b16 %v196
  %v1094 = vunpack.c.l.b16 %v197
  %v1095 = vunpack.c.h.b16 %v197
  %v1096 = vunpack.c.l.b16 %v198
  %v1097 = vunpack.c.h.b16 %v198
  %v1098 = vunpack.c.l.b16 %v199
  %v1099 = vunpack.c.h.b16 %v199
  %v1100 = vunpack.c.l.b16 %v200
  %v1101 = vunpack.c.h.b16 %v200
  %v1102 = vunpack.c.l.b16 %v201
  %v1103 = vunpack.c.h.b16 %v201
  %v1104 = vunpack.c.l.b16 %v202
  %v1105 = vunpack.c.h.b16 %v202
  %v1106 = vunpack.c.l.b16 %v203
  %v1107 = vunpack.c.h.b16 %v203
  %v1108 = vunpack.c.l.b16 %v204
  %v1109 = vunpack.c.h.b16 %v204
  %v1110 = vunpack.c.l.b16 %v205
  %v1111 = vunpack.c.h.b16 %v205
  %v1112 = vunpack.c.l.b16 %v206
  %v1113 = vunpack.c.h.b16 %v206
  %v1114 = vunpack.c.l.b16 %v207
  %v1115 = vunpack.c.h.b16 %v207
  %v1116 = vunpack.c.l.b16 %v208
  %v1117 = vunpack.c.h.b16 %v208
  %v1118 = vunpack.c.l.b16 %v209
  %v1119 = vunpack.c.h.b16 %v209
  %v1120 = vunpack.c.l.b16 %v210
  %v1121 = vunpack.c.h.b16 %v210
  %v1122 = vunpack.c.l.b16 %v211
  %v1123 = vunpack.c.h.b16 %v211
  %v1124 = vunpack.c.l.b16 %v212
  %v1125 = vunpack.c.h.b16 %v212
  %v1126 = vunpack.c.l.b16 %v213
  %v1127 = vunpack.c.h.b16 %v213
  %v1128 = vunpack.c.l.b16 %v214
  %v1129 = vunpack.c.h.b16 %v214
  %v1130 = vunpack.c.l.b16 %v215
  %v1131 = vunpack.c.h.b16 %v215
  %v1132 = vunpack.c.l.b16 %v216
  %v1133 = vunpack.c.h.b16 %v216
  %v1134 = vunpack.c.l.b16 %v217
  %v1135 = vunpack.c.h.b16 %v217
  %v1136 = vunpack.c.l.b16 %v218
  %v1137 = vunpack.c.h.b16 %v218
  %v1138 = vunpack.c.l.b16 %v219
  %v1139 = vunpack.c.h.b16 %v219
  %v1140 = vunpack.c.l.b16 %v220
  %v1141 = vunpack.c.h.b16 %v220
  %v1142 = vunpack.c.l.b16 %v221
  %v1143 = vunpack.c.h.b16 %v221
  %v1144 = vunpack.c.l.b16 %v222
  %v1145 = vunpack.c.h.b16 %v222
  %v1146 = vunpack.c.l.b16 %v223
  %v1147 = vunpack.c.h.b16 %v223
  %v1148 = vunpack.c.l.b16 %v224
  %v1149 = vunpack.c.h.b16 %v224
  %v1150 = vunpack.c.l.b16 %v225
  %v1151 = vunpack.c.h.b16 %v225
  %v1152 = vunpack.c.l.b16 %v226
  %v1153 = vunpack.c.h.b16 %v226
  %v1154 = vunpack.c.l.b16 %v227
  %v1155 = vunpack.c.h.b16 %v227
  %v1156 = vunpack.c.l.b16 %v228
  %v1157 = vunpack.c.h.b16 %v228
  %v1158 = vunpack.c.l.b16 %v229
  %v1159 = vunpack.c.h.b16 %v229
  %v1160 = vunpack.c.l.b16 %v230
  %v1161 = vunpack.c.h.b16 %v230
  %v1162 = vunpack.c.l.b16 %v231
  %v1163 = vunpack.c.h.b16 %v231
  %v1164 = vunpack.c.l.b16 %v232
  %v1165 = vunpack.c.h.b16 %v232
  %v1166 = vunpack.c.l.b16 %v233
  %v1167 = vunpack.c.h.b16 %v233
  %v1168 = vunpack.c.l.b16 %v234
  %v1169 = vunpack.c.h.b16 %v234
  %v1170 = vunpack.c.l.b16 %v235
  %v1171 = vunpack.c.h.b16 %v235
  %v1172 = vunpack.c.l.b16 %v236
  %v1173 = vunpack.c.h.b16 %v236
  %v1174 = vunpack.c.l.b16 %v237
  %v1175 = vunpack.c.h.b16 %v237
  %v1176 = vunpack.c.l.b16 %v238
  %v1177 = vunpack.c.h.b16 %v238
  %v1178 = vunpack.c.l.b16 %v239
  %v1179 = vunpack.c.h.b16 %v239
  %v1180 = vunpack.c.l.b16 %v240
  %v1181 = vunpack.c.h.b16 %v240
  %v1182 = vunpack.c.l.b16 %v241
  %v1183 = vunpack.c.h.b16 %v241
  %v1184 = vunpack.c.l.b16 %v242
  %v1185 = vunpack.c.h.b16 %v242
  %v1186 = vunpack.c.l.b16 %v243
  %v1187 = vunpack.c.h.b16 %v243
  %v1188 = vunpack.c.l.b16 %v244
  %v1189 = vunpack.c.h.b16 %v244
  %v1190 = vunpack.c.l.b16 %v245
  %v1191 = vunpack.c.h.b16 %v245
  %v1192 = vunpack.c.l.b16 %v246
  %v1193 = vunpack.c.h.b16 %v246
  %v1194 = vunpack.c.l.b16 %v247
  %v1195 = vunpack.c.h.b16 %v247
  %v1196 = vunpack.c.l.b16 %v248
  %v1197 = vunpack.c.h.b16 %v248
  %v1198 = vunpack.c.l.b16 %v249
  %v1199 = vunpack.c.h.b16 %v249
  %v1200 = vunpack.c.l.b16 %v250
  %v1201 = vunpack.c.h.b16 %v250
  %v1202 = vunpack.c.l.b16 %v251
  %v1203 = vunpack.c.h.b16 %v251
  %v1204 = vunpack.c.l.b16 %v252
  %v1205 = vunpack.c.h.b16 %v252
  %v1206 = vunpack.c.l.b16 %v253
  %v1207 = vunpack.c.h.b16 %v253
  %v1208 = vunpack.c.l.b16 %v254
  %v1209 = vunpack.c.h.b16 %v254
  %v1210 = vunpack.c.l.b16 %v255
  %v1211 = vunpack.c.h.b16 %v255
  %v1212 = vunpack.c.l.b16 %v256
  %v1213 = vunpack.c.h.b16 %v256
  %v1214 = vunpack.c.l.b16 %v257
  %v1215 = vunpack.c.h.b16 %v257
  %v1216 = vunpack.c.l.b16 %v258
  %v1217 = vunpack.c.h.b16 %v258
  %v1218 = vunpack.c.l.b16 %v259
  %v1219 = vunpack.c.h.b16 %v259
  %v1220 = vunpack.c.l.b16 %v260
  %v1221 = vunpack.c.h.b16 %v260
  %v1222 = vunpack.c.l.b16 %v261
  %v1223 = vunpack.c.h.b16 %v261
  %v1224 = vunpack.c.l.b16 %v262
  %v1225 = vunpack.c.h.b16 %v262
  %v1226 = vunpack.c.l.b16 %v263
  %v1227 = vunpack.c.h.b16 %v263
  %v1228 = vunpack.c.l.b16 %v264
  %v1229 = vunpack.c.h.b16 %v264
  %v1230 = vunpack.c.l.b16 %v265
  %v1231 = vunpack.c.h.b16 %v265
  %v1232 = vunpack.c.l.b16 %v266
  %v1233 = vunpack.c.h.b16 %v266
  %v1234 = vunpack.c.l.b16 %v267
  %v1235 = vunpack.c.h.b16 %v267
  %v1236 = vunpack.c.l.b16 %v268
  %v1237 = vunpack.c.h.b16 %v268
  %v1238 = vunpack.c.l.b16 %v269
  %v1239 = vunpack.c.h.b16 %v269
  %v1240 = vunpack.c.l.b16 %v270
  %v1241 = vunpack.c.h.b16 %v270
  %v1242 = vunpack.c.l.b16 %v271
  %v1243 = vunpack.c.h.b16 %v271
  %v1244 = vunpack.c.l.b16 %v272
  %v1245 = vunpack.c.h.b16 %v272
  %v1246 = vunpack.c.l.b16 %v273
  %v1247 = vunpack.c.h.b16 %v273
  %v1248 = vunpack.c.l.b16 %v274
  %v1249 = vunpack.c.h.b16 %v274
  %v1250 = vunpack.c.l.b16 %v275
  %v1251 = vunpack.c.h.b16 %v275
  %v1252 = vunpack.c.l.b16 %v276
  %v1253 = vunpack.c.h.b16 %v276
  %v1254 = vunpack.c.l.b16 %v277
  %v1255 = vunpack.c.h.b16 %v277
  %v1256 = vunpack.c.l.b16 %v278
  %v1257 = vunpack.c.h.b16 %v278
  %v1258 = vunpack.c.l.b16 %v279
  %v1259 = vunpack.c.h.b16 %v279
  %v1260 = vunpack.c.l.b16 %v280
  %v1261 = vunpack.c.h.b16 %v280
  %v1262 = vunpack.c.l.b16 %v281
  %v1263 = vunpack.c.h.b16 %v281
  %v1264 = vunpack.c.l.b16 %v282
  %v1265 = vunpack.c.h.b16 %v282
  %v1266 = vunpack.c.l.b16 %v283
  %v1267 = vunpack.c.h.b16 %v283
  %v1268 = vunpack.c.l.b16 %v284
  %v1269 = vunpack.c.h.b16 %v284
  %v1270 = vunpack.c.l.b16 %v285
  %v1271 = vunpack.c.h.b16 %v285
  %v1272 = vunpack.c.l.b16 %v286
  %v1273 = vunpack.c.h.b16 %v286
  %v1274 = vunpack.c.l.b16 %v287
  %v1275 = vunpack.c.h.b16 %v287
  %v1276 = vunpack.c.l.b16 %v288
  %v1277 = vunpack.c.h.b16 %v288
  %v1278 = vunpack.c.l.b16 %v289
  %v1279 = vunpack.c.h.b16 %v289
  %v1280 = vunpack.c.l.b16 %v290
  %v1281 = vunpack.c.h.b16 %v290
  %v1282 = vunpack.c.l.b16 %v291
  %v1283 = vunpack.c.h.b16 %v291
  %v1284 = vunpack.c.l.b16 %v292
  %v1285 = vunpack.c.h.b16 %v292
  %v1286 = vunpack.c.l.b16 %v293
  %v1287 = vunpack.c.h.b16 %v293
  %v1288 = vunpack.c.l.b16 %v294
  %v1289 = vunpack.c.h.b16 %v294
  %v1290 = vunpack.c.l.b16 %v295
  %v1291 = vunpack.c.h.b16 %v295
  %v1292 = vunpack.c.l.b16 %v296
  %v1293 = vunpack.c.h.b16 %v296
  %v1294 = vunpack.c.l.b16 %v297
  %v1295 = vunpack.c.h.b16 %v297
  %v1296 = vunpack.c.l.b16 %v298
  %v1297 = vunpack.c.h.b16 %v298
  %v1298 = vunpack.c.l.b16 %v299
  %v1299 = vunpack.c.h.b16 %v299
  %v1300 = vunpack.c.l.b16 %v300
  %v1301 = vunpack.c.h.b16 %v300
  %v1302 = vunpack.c.l.b16 %v301
  %v1303 = vunpack.c.h.b16 %v301
  %v1304 = vunpack.c.l.b16 %v302
  %v1305 = vunpack.c.h.b16 %v302
  %v1306 = vunpack.c.l.b16 %v303
  %v1307 = vunpack.c.h.b16 %v303
  %v1308 = vunpack.c.l.b16 %v304
  %v1309 = vunpack.c.h.b16 %v304
  %v1310 = vunpack.c.l.b16 %v305
  %v1311 = vunpack.c.h.b16 %v305
  %v1312 = vunpack.c.l.b16 %v306
  %v1313 = vunpack.c.h.b16 %v306
  %v1314 = vunpack.c.l.b16 %v307
  %v1315 = vunpack.c.h.b16 %v307
  %v1316 = vunpack.c.l.b16 %v308
  %v1317 = vunpack.c.h.b16 %v308
  %v1318 = vunpack.c.l.b16 %v309
  %v1319 = vunpack.c.h.b16 %v309
  %v1320 = vunpack.c.l.b16 %v310
  %v1321 = vunpack.c.h.b16 %v310
  %v1322 = vunpack.c.l.b16 %v311
  %v1323 = vunpack.c.h.b16 %v311
  %v1324 = vunpack.c.l.b16 %v312
  %v1325 = vunpack.c.h.b16 %v312
  %v1326 = vunpack.c.l.b16 %v313
  %v1327 = vunpack.c.h.b16 %v313
  %v1328 = vunpack.c.l.b16 %v314
  %v1329 = vunpack.c.h.b16 %v314
  %v1330 = vunpack.c.l.b16 %v315
  %v1331 = vunpack.c.h.b16 %v315
  %v1332 = vunpack.c.l.b16 %v316
  %v1333 = vunpack.c.h.b16 %v316
  %v1334 = vunpack.c.l.b16 %v317
  %v1335 = vunpack.c.h.b16 %v317
  %v1336 = vunpack.c.l.b16 %v318
  %v1337 = vunpack.c.h.b16 %v318
  %v1338 = vunpack.c.l.b16 %v319
  %v1339 = vunpack.c.h.b16 %v319
  %v1340 = vunpack.c.l.b16 %v320
  %v1341 = vunpack.c.h.b16 %v320
  %v1342 = vunpack.c.l.b16 %v321
  %v1343 = vunpack.c.h.b16 %v321
  %v1344 = vunpack.c.l.b16 %v322
  %v1345 = vunpack.c.h.b16 %v322
  %v1346 = vunpack.c.l.b16 %v323
  %v1347 = vunpack.c.h.b16 %v323
  %v1348 = vunpack.c.l.b16 %v324
  %v1349 = vunpack.c.h.b16 %v324
  %v1350 = vunpack.c.l.b16 %v325
  %v1351 = vunpack.c.h.b16 %v325
  %v1352 = vunpack.c.l.b16 %v326
  %v1353 = vunpack.c.h.b16 %v326
  %v1354 = vunpack.c.l.b16 %v327
  %v1355 = vunpack.c.h.b16 %v327
  %v1356 = vunpack.c.l.b16 %v328
  %v1357 = vunpack.c.h.b16 %v328
  %v1358 = vpack.c.b16 %v784, %v782
  %v1359 = vpack.c.b16 %v785, %v783
  %v1360 = vpack.c.b16 %v788, %v786
  %v1361 = vpack.c.b16 %v789, %v787
  %v1362 = vpack.c.b16 %v792, %v790
  %v1363 = vpack.c.b16 %v793, %v791
  %v1364 = vpack.c.b16 %v796, %v794
  %v1365 = vpack.c.b16 %v797, %v795
  %v1366 = vpack.c.b16 %v800, %v798
  %v1367 = vpack.c.b16 %v801, %v799
  %v1368 = vpack.c.b16 %v804, %v802
  %v1369 = vpack.c.b16 %v805, %v803
  %v1370 = vpack.c.b16 %v808, %v806
  %v1371 = vpack.c.b16 %v809, %v807
  %v1372 = vpack.c.b16 %v812, %v810
  %v1373 = vpack.c.b16 %v813, %v811
  %v1374 = vpack.c.b16 %v816, %v814
  %v1375 = vpack.c.b16 %v817, %v815
  %v1376 = vpack.c.b16 %v820, %v818
  %v1377 = vpack.c.b16 %v821, %v819
  %v1378 = vpack.c.b16 %v824, %v822
  %v1379 = vpack.c.b16 %v825, %v823
  %v1380 = vpack.c.b16 %v828, %v826
  %v1381 = vpack.c.b16 %v829, %v827
  %v1382 = vpack.c.b16 %v832, %v830
  %v1383 = vpack.c.b16 %v833, %v831
  %v1384 = vpack.c.b16 %v836, %v834
  %v1385 = vpack.c.b16 %v837, %v835
  %v1386 = vpack.c.b16 %v840, %v838
  %v1387 = vpack.c.b16 %v841, %v839
  %v1388 = vpack.c.b16 %v844, %v842
  %v1389 = vpack.c.b16 %v845, %v843
  %v1390 = vpack.c.b16 %v848, %v846
  %v1391 = vpack.c.b16 %v849, %v847
  %v1392 = vpack.c.b16 %v852, %v850
  %v1393 = vpack.c.b16 %v853, %v851
  %v1394 = vpack.c.b16 %v856, %v854
  %v1395 = vpack.c.b16 %v857, %v855
  %v1396 = vpack.c.b16 %v860, %v858
  %v1397 = vpack.c.b16 %v861, %v859
  %v1398 = vpack.c.b16 %v864, %v862
  %v1399 = vpack.c.b16 %v865, %v863
  %v1400 = vpack.c.b16 %v868, %v866
  %v1401 = vpack.c.b16 %v869, %v867
  %v1402 = vpack.c.b16 %v872, %v870
  %v1403 = vpack.c.b16 %v873, %v871
  %v1404 = vpack.c.b16 %v876, %v874
  %v1405 = vpack.c.b16 %v877, %v875
  %v1406 = vpack.c.b16 %v880, %v878
  %v1407 = vpack.c.b16 %v881, %v879
  %v1408 = vpack.c.b16 %v884, %v882
  %v1409 = vpack.c.b16 %v885, %v883
  %v1410 = vpack.c.b16 %v888, %v886
  %v1411 = vpack.c.b16 %v889, %v887
  %v1412 = vpack.c.b16 %v892, %v890
  %v1413 = vpack.c.b16 %v893, %v891
  %v1414 = vpack.c.b16 %v896, %v894
  %v1415 = vpack.c.b16 %v897, %v895
  %v1416 = vpack.c.b16 %v900, %v898
  %v1417 = vpack.c.b16 %v901, %v899
  %v1418 = vpack.c.b16 %v904, %v902
  %v1419 = vpack.c.b16 %v905, %v903
  %v1420 = vpack.c.b16 %v908, %v906
  %v1421 = vpack.c.b16 %v909, %v907
  %v1422 = vpack.c.b16 %v912, %v910
  %v1423 = vpack.c.b16 %v913, %v911
  %v1424 = vpack.c.b16 %v916, %v914
  %v1425 = vpack.c.b16 %v917, %v915
  %v1426 = vpack.c.b16 %v920, %v918
  %v1427 = vpack.c.b16 %v921, %v919
  %v1428 = vpack.c.b16 %v924, %v922
  %v1429 = vpack.c.b16 %v925, %v923
  %v1430 = vpack.c.b16 %v928, %v926
  %v1431 = vpack.c.b16 %v929, %v927
  %v1432 = vpack.c.b16 %v932, %v930
  %v1433 = vpack.c.b16 %v933, %v931
  %v1434 = vpack.c.b16 %v936, %v934
  %v1435 = vpack.c.b16 %v937, %v935
  %v1436 = vpack.c.b16 %v940, %v938
  %v1437 = vpack.c.b16 %v941, %v939
  %v1438 = vpack.c.b16 %v944, %v942
  %v1439 = vpack.c.b16 %v945, %v943
  %v1440 = vpack.c.b16 %v948, %v946
  %v1441 = vpack.c.b16 %v949, %v947
  %v1442 = vpack.c.b16 %v952, %v950
  %v1443 = vpack.c.b16 %v953, %v951
  %v1444 = vpack.c.b16 %v956, %v954
  %v1445 = vpack.c.b16 %v957, %v955
  %v1446 = vpack.c.b16 %v960, %v958
  %v1447 = vpack.c.b16 %v961, %v959
  %v1448 = vpack.c.b16 %v964, %v962
  %v1449 = vpack.c.b16 %v965, %v963
  %v1450 = vpack.c.b16 %v968, %v966
  %v1451 = vpack.c.b16 %v969, %v967
  %v1452 = vpack.c.b16 %v972, %v970
  %v1453 = vpack.c.b16 %v973, %v971
  %v1454 = vpack.c.b16 %v976, %v974
  %v1455 = vpack.c.b16 %v977, %v975
  %v1456 = vpack.c.b16 %v980, %v978
  %v1457 = vpack.c.b16 %v981, %v979
  %v1458 = vpack.c.b16 %v984, %v982
  %v1459 = vpack.c.b16 %v985, %v983
  %v1460 = vpack.c.b16 %v988, %v986
  %v1461 = vpack.c.b16 %v989, %v987
  %v1462 = vpack.c.b16 %v992, %v990
  %v1463 = vpack.c.b16 %v993, %v991
  %v1464 = vpack.c.b16 %v996, %v994
  %v1465 = vpack.c.b16 %v997, %v995
  %v1466 = vpack.c.b16 %v1000, %v998
  %v1467 = vpack.c.b16 %v1001, %v999
  %v1468 = vpack.c.b16 %v1004, %v1002
  %v1469 = vpack.c.b16 %v1005, %v1003
  %v1470 = vpack.c.b16 %v1008, %v1006
  %v1471 = vpack.c.b16 %v1009, %v1007
  %v1472 = vpack.c.b16 %v1012, %v1010
  %v1473 = vpack.c.b16 %v1013, %v1011
  %v1474 = vpack.c.b16 %v1016, %v1014
  %v1475 = vpack.c.b16 %v1017, %v1015
  %v1476 = vpack.c.b16 %v1020, %v1018
  %v1477 = vpack.c.b16 %v1021, %v1019
  %v1478 = vpack.c.b16 %v1024, %v1022
  %v1479 = vpack.c.b16 %v1025, %v1023
  %v1480 = vpack.c.b16 %v1028, %v1026
  %v1481 = vpack.c.b16 %v1029, %v1027
  %v1482 = vpack.c.b16 %v1032, %v1030
  %v1483 = vpack.c.b16 %v1033, %v1031
  %v1484 = vpack.c.b16 %v1036, %v1034
  %v1485 = vpack.c.b16 %v1037, %v1035
  %v1486 = vpack.c.b16 %v1040, %v1038
  %v1487 = vpack.c.b16 %v1041, %v1039
  %v1488 = vpack.c.b16 %v1044, %v1042
  %v1489 = vpack.c.b16 %v1045, %v1043
  %v1490 = vpack.c.b16 %v1048, %v1046
  %v1491 = vpack.c.b16 %v1049, %v1047
  %v1492 = vpack.c.b16 %v1052, %v1050
  %v1493 = vpack.c.b16 %v1053, %v1051
  %v1494 = vpack.c.b16 %v1056, %v1054
  %v1495 = vpack.c.b16 %v1057, %v1055
  %v1496 = vpack.c.b16 %v1060, %v1058
  %v1497 = vpack.c.b16 %v1061, %v1059
  %v1498 = vpack.c.b16 %v1064, %v1062
  %v1499 = vpack.c.b16 %v1065, %v1063
  %v1500 = vpack.c.b16 %v1068, %v1066
  %v1501 = vpack.c.b16 %v1069, %v1067
  %v1502 = vpack.c.b16 %v1072, %v1070
  %v1503 = vpack.c.b16 %v1073, %v1071
  %v1504 = vpack.c.b16 %v1076, %v1074
  %v1505 = vpack.c.b16 %v1077, %v1075
  %v1506 = vpack.c.b16 %v1080, %v1078
  %v1507 = vpack.c.b16 %v1081, %v1079
  %v1508 = vpack.c.b16 %v1084, %v1082
  %v1509 = vpack.c.b16 %v1085, %v1083
  %v1510 = vpack.c.b16 %v1088, %v1086
  %v1511 = vpack.c.b16 %v1089, %v1087
  %v1512 = vpack.c.b16 %v1092, %v1090
  %v1513 = vpack.c.b16 %v1093, %v1091
  %v1514 = vpack.c.b16 %v1096, %v1094
  %v1515 = vpack.c.b16 %v1097, %v1095
  %v1516 = vpack.c.b16 %v1100, %v1098
  %v1517 = vpack.c.b16 %v1101, %v1099
  %v1518 = vpack.c.b16 %v1104, %v1102
  %v1519 = vpack.c.b16 %v1105, %v1103
  %v1520 = vpack.c.b16 %v1108, %v1106
  %v1521 = vpack.c.b16 %v1109, %v1107
  %v1522 = vpack.c.b16 %v1112, %v1110
  %v1523 = vpack.c.b16 %v1113, %v1111
  %v1524 = vpack.c.b16 %v1116, %v1114
  %v1525 = vpack.c.b16 %v1117, %v1115
  %v1526 = vpack.c.b16 %v1120, %v1118
  %v1527 = vpack.c.b16 %v1121, %v1119
  %v1528 = vpack.c.b16 %v1124, %v1122
  %v1529 = vpack.c.b16 %v1125, %v1123
  %v1530 = vpack.c.b16 %v1128, %v1126
  %v1531 = vpack.c.b16 %v1129, %v1127
  %v1532 = vpack.c.b16 %v1132, %v1130
  %v1533 = vpack.c.b16 %v1133, %v1131
  %v1534 = vpack.c.b16 %v1136, %v1134
  %v1535 = vpack.c.b16 %v1137, %v1135
  %v1536 = vpack.c.b16 %v1140, %v1138
  %v1537 = vpack.c.b16 %v1141, %v1139
  %v1538 = vpack.c.b16 %v1144, %v1142
  %v1539 = vpack.c.b16 %v1145, %v1143
  %v1540 = vpack.c.b16 %v1148, %v1146
  %v1541 = vpack.c.b16 %v1149, %v1147
  %v1542 = vpack.c.b16 %v1152, %v1150
  %v1543 = vpack.c.b16 %v1153, %v1151
  %v1544 = vpack.c.b16 %v1156, %v1154
  %v1545 = vpack.c.b16 %v1157, %v1155
  %v1546 = vpack.c.b16 %v1160, %v1158
  %v1547 = vpack.c.b16 %v1161, %v1159
  %v1548 = vpack.c.b16 %v1164, %v1162
  %v1549 = vpack.c.b16 %v1165, %v1163
  %v1550 = vpack.c.b16 %v1168, %v1166
  %v1551 = vpack.c.b16 %v1169, %v1167
  %v1552 = vpack.c.b16 %v1172, %v1170
  %v1553 = vpack.c.b16 %v1173, %v1171
  %v1554 = vpack.c.b16 %v1176, %v1174
  %v1555 = vpack.c.b16 %v1177, %v1175
  %v1556 = vpack.c.b16 %v1180, %v1178
  %v1557 = vpack.c.b16 %v1181, %v1179
  %v1558 = vpack.c.b16 %v1184, %v1182
  %v1559 = vpack.c.b16 %v1185, %v1183
  %v1560 = vpack.c.b16 %v1188, %v1186
  %v1561 = vpack.c.b16 %v1189, %v1187
  %v1562 = vpack.c.b16 %v1192, %v1190
  %v1563 = vpack.c.b16 %v1193, %v1191
  %v1564 = vpack.c.b16 %v1196, %v1194
  %v1565 = vpack.c.b16 %v1197, %v1195
  %v1566 = vpack.c.b16 %v1200, %v1198
  %v1567 = vpack.c.b16 %v1201, %v1199
  %v1568 = vpack.c.b16 %v1204, %v1202
  %v1569 = vpack.c.b16 %v1205, %v1203
  %v1570 = vpack.c.b16 %v1208, %v1206
  %v1571 = vpack.c.b16 %v1209, %v1207
  %v1572 = vpack.c.b16 %v1212, %v1210
  %v1573 = vpack.c.b16 %v1213, %v1211
  %v1574 = vpack.c.b16 %v1216, %v1214
  %v1575 = vpack.c.b16 %v1217, %v1215
  %v1576 = vpack.c.b16 %v1220, %v1218
  %v1577 = vpack.c.b16 %v1221, %v1219
  %v1578 = vpack.c.b16 %v1224, %v1222
  %v1579 = vpack.c.b16 %v1225, %v1223
  %v1580 = vpack.c.b16 %v1228, %v1226
  %v1581 = vpack.c.b16 %v1229, %v1227
  %v1582 = vpack.c.b16 %v1232, %v1230
  %v1583 = vpack.c.b16 %v1233, %v1231
  %v1584 = vpack.c.b16 %v1236, %v1234
  %v1585 = vpack.c.b16 %v1237, %v1235
  %v1586 = vpack.c.b16 %v1240, %v1238
  %v1587 = vpack.c.b16 %v1241, %v1239
  %v1588 = vpack.c.b16 %v1244, %v1242
  %v1589 = vpack.c.b16 %v1245, %v1243
  %v1590 = vpack.c.b16 %v1248, %v1246
  %v1591 = vpack.c.b16 %v1249, %v1247
  %v1592 = vpack.c.b16 %v1252, %v1250
  %v1593 = vpack.c.b16 %v1253, %v1251
  %v1594 = vpack.c.b16 %v1256, %v1254
  %v1595 = vpack.c.b16 %v1257, %v1255
  %v1596 = vpack.c.b16 %v1260, %v1258
  %v1597 = vpack.c.b16 %v1261, %v1259
  %v1598 = vpack.c.b16 %v1264, %v1262
  %v1599 = vpack.c.b16 %v1265, %v1263
  %v1600 = vpack.c.b16 %v1268, %v1266
  %v1601 = vpack.c.b16 %v1269, %v1267
  %v1602 = vpack.c.b16 %v1272, %v1270
  %v1603 = vpack.c.b16 %v1273, %v1271
  %v1604 = vpack.c.b16 %v1276, %v1274
  %v1605 = vpack.c.b16 %v1277, %v1275
  %v1606 = vpack.c.b16 %v1280, %v1278
  %v1607 = vpack.c.b16 %v1281, %v1279
  %v1608 = vpack.c.b16 %v1284, %v1282
  %v1609 = vpack.c.b16 %v1285, %v1283
  %v1610 = vpack.c.b16 %v1288, %v1286
  %v1611 = vpack.c.b16 %v1289, %v1287
  %v1612 = vpack.c.b16 %v1292, %v1290
  %v1613 = vpack.c.b16 %v1293, %v1291
  %v1614 = vpack.c.b16 %v1296, %v1294
  %v1615 = vpack.c.b16 %v1297, %v1295
  %v1616 = vpack.c.b16 %v1300, %v1298
  %v1617 = vpack.c.b16 %v1301, %v1299
  %v1618 = vpack.c.b16 %v1304, %v1302
  %v1619 = vpack.c.b16 %v1305, %v1303
  %v1620 = vpack.c.b16 %v1308, %v1306
  %v1621 = vpack.c.b16 %v1309, %v1307
  %v1622 = vpack.c.b16 %v1312, %v1310
  %v1623 = vpack.c.b16 %v1313, %v1311
  %v1624 = vpack.c.b16 %v1316, %v1314
  %v1625 = vpack.c.b16 %v1317, %v1315
  %v1626 = vpack.c.b16 %v1320, %v1318
  %v1627 = vpack.c.b16 %v1321, %v1319
  %v1628 = vpack.c.b16 %v1324, %v1322
  %v1629 = vpack.c.b16 %v1325, %v1323
  %v1630 = vpack.c.b16 %v1328, %v1326
  %v1631 = vpack.c.b16 %v1329, %v1327
  %v1632 = vpack.c.b16 %v1332, %v1330
  %v1633 = vpack.c.b16 %v1333, %v1331
  %v1634 = vpack.c.b16 %v1336, %v1334
  %v1635 = vpack.c.b16 %v1337, %v1335
  %v1636 = vpack.c.b16 %v1340, %v1338
  %v1637 = vpack.c.b16 %v1341, %v1339
  %v1638 = vpack.c.b16 %v1344, %v1342
  %v1639 = vpack.c.b16 %v1345, %v1343
  %v1640 = vpack.c.b16 %v1348, %v1346
  %v1641 = vpack.c.b16 %v1349, %v1347
  %v1642 = vpack.c.b16 %v1352, %v1350
  %v1643 = vpack.c.b16 %v1353, %v1351
  %v1644 = vpack.c.b16 %v1356, %v1354
  %v1645 = vpack.c.b16 %v1357, %v1355
  %1934 = vmatprep.subr.bf16.mxu0 %v1373
  %1935 = vmatpush1.bf16.msra.mxu0 %v1372
  %1936 = vmatprep.subr.bf16.mxu0 %v1371
  %1937 = vmatpush1.bf16.msra.mxu0 %v1370
  %1938 = vmatprep.subr.bf16.mxu0 %v1369
  %1939 = vmatpush1.bf16.msra.mxu0 %v1368
  %1940 = vmatprep.subr.bf16.mxu0 %v1367
  %1941 = vmatpush1.bf16.msra.mxu0 %v1366
  %1942 = vmatprep.subr.bf16.mxu0 %v1365
  %1943 = vmatpush1.bf16.msra.mxu0 %v1364
  %1944 = vmatprep.subr.bf16.mxu0 %v1363
  %1945 = vmatpush1.bf16.msra.mxu0 %v1362
  %1946 = vmatprep.subr.bf16.mxu0 %v1361
  %1947 = vmatpush1.bf16.msra.mxu0 %v1360
  %1948 = vmatprep.subr.bf16.mxu0 %v1359
  %1949 = vmatpush1.bf16.msra.mxu0 %v1358
  %1950 = vmatprep.subr.bf16.mxu0 %v1389
  %1951 = vmatpush2.bf16.msra.mxu0 %v1388
  %1952 = vmatprep.subr.bf16.mxu0 %v1387
  %1953 = vmatpush2.bf16.msra.mxu0 %v1386
  %1954 = vmatprep.subr.bf16.mxu0 %v1385
  %1955 = vmatpush2.bf16.msra.mxu0 %v1384
  %1956 = vmatprep.subr.bf16.mxu0 %v1383
  %1957 = vmatpush2.bf16.msra.mxu0 %v1382
  %1958 = vmatprep.subr.bf16.mxu0 %v1381
  %1959 = vmatpush2.bf16.msra.mxu0 %v1380
  %1960 = vmatprep.subr.bf16.mxu0 %v1379
  %1961 = vmatpush2.bf16.msra.mxu0 %v1378
  %1962 = vmatprep.subr.bf16.mxu0 %v1377
  %1963 = vmatpush2.bf16.msra.mxu0 %v1376
  %1964 = vmatprep.subr.bf16.mxu0 %v1375
  %1965 = vmatpush2.bf16.msra.mxu0 %v1374
  %1966 = vmatprep.mubr.bf16.mxu0 %v423
  %1967 = vmatmul.mubr.bf16.gmra.mxu0 %v422
  %v1968 = vpop.f32.mrf.mxu0
  %v1969 = vadd.f32 %v334, %v1968
  %v1970 = vpop.f32.mrf.mxu0
  %v1971 = vadd.f32 %v338, %v1970
  %v1972 = vpop.f32.mrf.mxu0
  %v1973 = vadd.f32 %v334, %v1972
  %v1974 = vpop.f32.mrf.mxu0
  %v1975 = vadd.f32 %v338, %v1974
  %1976 = vmatprep.mubr.bf16.mxu0 %v441
  %1977 = vmatmul.mubr.bf16.gmra.mxu0 %v440
  %v1978 = vpop.f32.mrf.mxu0
  %v1979 = vadd.f32 %v334, %v1978
  %v1980 = vpop.f32.mrf.mxu0
  %v1981 = vadd.f32 %v338, %v1980
  %v1982 = vpop.f32.mrf.mxu0
  %v1983 = vpop.f32.mrf.mxu0
  %1984 = vdwg.mxu0
  %1985 = vmatprep.subr.bf16.mxu0 %v1405
  %1986 = vmatpush1.bf16.msra.mxu0 %v1404
  %1987 = vmatprep.subr.bf16.mxu0 %v1403
  %1988 = vmatpush1.bf16.msra.mxu0 %v1402
  %1989 = vmatprep.subr.bf16.mxu0 %v1401
  %1990 = vmatpush1.bf16.msra.mxu0 %v1400
  %1991 = vmatprep.subr.bf16.mxu0 %v1399
  %1992 = vmatpush1.bf16.msra.mxu0 %v1398
  %1993 = vmatprep.subr.bf16.mxu0 %v1397
  %1994 = vmatpush1.bf16.msra.mxu0 %v1396
  %1995 = vmatprep.subr.bf16.mxu0 %v1395
  %1996 = vmatpush1.bf16.msra.mxu0 %v1394
  %1997 = vmatprep.subr.bf16.mxu0 %v1393
  %1998 = vmatpush1.bf16.msra.mxu0 %v1392
  %1999 = vmatprep.subr.bf16.mxu0 %v1391
  %2000 = vmatpush1.bf16.msra.mxu0 %v1390
  %2001 = vmatprep.subr.bf16.mxu0 %v1421
  %2002 = vmatpush2.bf16.msra.mxu0 %v1420
  %2003 = vmatprep.subr.bf16.mxu0 %v1419
  %2004 = vmatpush2.bf16.msra.mxu0 %v1418
  %2005 = vmatprep.subr.bf16.mxu0 %v1417
  %2006 = vmatpush2.bf16.msra.mxu0 %v1416
  %2007 = vmatprep.subr.bf16.mxu0 %v1415
  %2008 = vmatpush2.bf16.msra.mxu0 %v1414
  %2009 = vmatprep.subr.bf16.mxu0 %v1413
  %2010 = vmatpush2.bf16.msra.mxu0 %v1412
  %2011 = vmatprep.subr.bf16.mxu0 %v1411
  %2012 = vmatpush2.bf16.msra.mxu0 %v1410
  %2013 = vmatprep.subr.bf16.mxu0 %v1409
  %2014 = vmatpush2.bf16.msra.mxu0 %v1408
  %2015 = vmatprep.subr.bf16.mxu0 %v1407
  %2016 = vmatpush2.bf16.msra.mxu0 %v1406
  %2017 = vmatprep.mubr.bf16.mxu0 %v425
  %2018 = vmatmul.mubr.bf16.gmra.mxu0 %v424
  %v2019 = vpop.f32.mrf.mxu0
  %v2020 = vadd.f32 %v1969, %v2019
  %v2021 = vpop.f32.mrf.mxu0
  %v2022 = vadd.f32 %v1971, %v2021
  %v2023 = vpop.f32.mrf.mxu0
  %v2024 = vadd.f32 %v1973, %v2023
  %v2025 = vpop.f32.mrf.mxu0
  %v2026 = vadd.f32 %v1975, %v2025
  %2027 = vmatprep.mubr.bf16.mxu0 %v443
  %2028 = vmatmul.mubr.bf16.gmra.mxu0 %v442
  %v2029 = vpop.f32.mrf.mxu0
  %v2030 = vadd.f32 %v1979, %v2029
  %v2031 = vpop.f32.mrf.mxu0
  %v2032 = vadd.f32 %v1981, %v2031
  %v2033 = vpop.f32.mrf.mxu0
  %v2034 = vpop.f32.mrf.mxu0
  %2035 = vdwg.mxu0
  %2036 = vmatprep.subr.bf16.mxu0 %v1437
  %2037 = vmatpush1.bf16.msra.mxu0 %v1436
  %2038 = vmatprep.subr.bf16.mxu0 %v1435
  %2039 = vmatpush1.bf16.msra.mxu0 %v1434
  %2040 = vmatprep.subr.bf16.mxu0 %v1433
  %2041 = vmatpush1.bf16.msra.mxu0 %v1432
  %2042 = vmatprep.subr.bf16.mxu0 %v1431
  %2043 = vmatpush1.bf16.msra.mxu0 %v1430
  %2044 = vmatprep.subr.bf16.mxu0 %v1429
  %2045 = vmatpush1.bf16.msra.mxu0 %v1428
  %2046 = vmatprep.subr.bf16.mxu0 %v1427
  %2047 = vmatpush1.bf16.msra.mxu0 %v1426
  %2048 = vmatprep.subr.bf16.mxu0 %v1425
  %2049 = vmatpush1.bf16.msra.mxu0 %v1424
  %2050 = vmatprep.subr.bf16.mxu0 %v1423
  %2051 = vmatpush1.bf16.msra.mxu0 %v1422
  %2052 = vmatprep.subr.bf16.mxu0 %v1453
  %2053 = vmatpush2.bf16.msra.mxu0 %v1452
  %2054 = vmatprep.subr.bf16.mxu0 %v1451
  %2055 = vmatpush2.bf16.msra.mxu0 %v1450
  %2056 = vmatprep.subr.bf16.mxu0 %v1449
  %2057 = vmatpush2.bf16.msra.mxu0 %v1448
  %2058 = vmatprep.subr.bf16.mxu0 %v1447
  %2059 = vmatpush2.bf16.msra.mxu0 %v1446
  %2060 = vmatprep.subr.bf16.mxu0 %v1445
  %2061 = vmatpush2.bf16.msra.mxu0 %v1444
  %2062 = vmatprep.subr.bf16.mxu0 %v1443
  %2063 = vmatpush2.bf16.msra.mxu0 %v1442
  %2064 = vmatprep.subr.bf16.mxu0 %v1441
  %2065 = vmatpush2.bf16.msra.mxu0 %v1440
  %2066 = vmatprep.subr.bf16.mxu0 %v1439
  %2067 = vmatpush2.bf16.msra.mxu0 %v1438
  %2068 = vmatprep.mubr.bf16.mxu0 %v427
  %2069 = vmatmul.mubr.bf16.gmra.mxu0 %v426
  %v2070 = vpop.f32.mrf.mxu0
  %v2071 = vadd.f32 %v2020, %v2070
  %v2072 = vpop.f32.mrf.mxu0
  %v2073 = vadd.f32 %v2022, %v2072
  %v2074 = vpop.f32.mrf.mxu0
  %v2075 = vadd.f32 %v2024, %v2074
  %v2076 = vpop.f32.mrf.mxu0
  %v2077 = vadd.f32 %v2026, %v2076
  %2078 = vmatprep.mubr.bf16.mxu0 %v445
  %2079 = vmatmul.mubr.bf16.gmra.mxu0 %v444
  %v2080 = vpop.f32.mrf.mxu0
  %v2081 = vadd.f32 %v2030, %v2080
  %v2082 = vpop.f32.mrf.mxu0
  %v2083 = vadd.f32 %v2032, %v2082
  %v2084 = vpop.f32.mrf.mxu0
  %v2085 = vpop.f32.mrf.mxu0
  %2086 = vdwg.mxu0
  %2087 = vmatprep.subr.bf16.mxu0 %v1469
  %2088 = vmatpush1.bf16.msra.mxu0 %v1468
  %2089 = vmatprep.subr.bf16.mxu0 %v1467
  %2090 = vmatpush1.bf16.msra.mxu0 %v1466
  %2091 = vmatprep.subr.bf16.mxu0 %v1465
  %2092 = vmatpush1.bf16.msra.mxu0 %v1464
  %2093 = vmatprep.subr.bf16.mxu0 %v1463
  %2094 = vmatpush1.bf16.msra.mxu0 %v1462
  %2095 = vmatprep.subr.bf16.mxu0 %v1461
  %2096 = vmatpush1.bf16.msra.mxu0 %v1460
  %2097 = vmatprep.subr.bf16.mxu0 %v1459
  %2098 = vmatpush1.bf16.msra.mxu0 %v1458
  %2099 = vmatprep.subr.bf16.mxu0 %v1457
  %2100 = vmatpush1.bf16.msra.mxu0 %v1456
  %2101 = vmatprep.subr.bf16.mxu0 %v1455
  %2102 = vmatpush1.bf16.msra.mxu0 %v1454
  %2103 = vmatprep.subr.bf16.mxu0 %v1485
  %2104 = vmatpush2.bf16.msra.mxu0 %v1484
  %2105 = vmatprep.subr.bf16.mxu0 %v1483
  %2106 = vmatpush2.bf16.msra.mxu0 %v1482
  %2107 = vmatprep.subr.bf16.mxu0 %v1481
  %2108 = vmatpush2.bf16.msra.mxu0 %v1480
  %2109 = vmatprep.subr.bf16.mxu0 %v1479
  %2110 = vmatpush2.bf16.msra.mxu0 %v1478
  %2111 = vmatprep.subr.bf16.mxu0 %v1477
  %2112 = vmatpush2.bf16.msra.mxu0 %v1476
  %2113 = vmatprep.subr.bf16.mxu0 %v1475
  %2114 = vmatpush2.bf16.msra.mxu0 %v1474
  %2115 = vmatprep.subr.bf16.mxu0 %v1473
  %2116 = vmatpush2.bf16.msra.mxu0 %v1472
  %2117 = vmatprep.subr.bf16.mxu0 %v1471
  %2118 = vmatpush2.bf16.msra.mxu0 %v1470
  %2119 = vmatprep.mubr.bf16.mxu0 %v429
  %2120 = vmatmul.mubr.bf16.gmra.mxu0 %v428
  %v2121 = vpop.f32.mrf.mxu0
  %v2122 = vadd.f32 %v2071, %v2121
  %v2123 = vpop.f32.mrf.mxu0
  %v2124 = vadd.f32 %v2073, %v2123
  %v2125 = vpop.f32.mrf.mxu0
  %v2126 = vadd.f32 %v2075, %v2125
  %v2127 = vpop.f32.mrf.mxu0
  %v2128 = vadd.f32 %v2077, %v2127
  %2129 = vmatprep.mubr.bf16.mxu0 %v447
  %2130 = vmatmul.mubr.bf16.gmra.mxu0 %v446
  %v2131 = vpop.f32.mrf.mxu0
  %v2132 = vadd.f32 %v2081, %v2131
  %v2133 = vpop.f32.mrf.mxu0
  %v2134 = vadd.f32 %v2083, %v2133
  %v2135 = vpop.f32.mrf.mxu0
  %v2136 = vpop.f32.mrf.mxu0
  %2137 = vdwg.mxu0
  %2138 = vmatprep.subr.bf16.mxu0 %v1501
  %2139 = vmatpush1.bf16.msra.mxu0 %v1500
  %2140 = vmatprep.subr.bf16.mxu0 %v1499
  %2141 = vmatpush1.bf16.msra.mxu0 %v1498
  %2142 = vmatprep.subr.bf16.mxu0 %v1497
  %2143 = vmatpush1.bf16.msra.mxu0 %v1496
  %2144 = vmatprep.subr.bf16.mxu0 %v1495
  %2145 = vmatpush1.bf16.msra.mxu0 %v1494
  %2146 = vmatprep.subr.bf16.mxu0 %v1493
  %2147 = vmatpush1.bf16.msra.mxu0 %v1492
  %2148 = vmatprep.subr.bf16.mxu0 %v1491
  %2149 = vmatpush1.bf16.msra.mxu0 %v1490
  %2150 = vmatprep.subr.bf16.mxu0 %v1489
  %2151 = vmatpush1.bf16.msra.mxu0 %v1488
  %2152 = vmatprep.subr.bf16.mxu0 %v1487
  %2153 = vmatpush1.bf16.msra.mxu0 %v1486
  %2154 = vmatprep.subr.bf16.mxu0 %v1517
  %2155 = vmatpush2.bf16.msra.mxu0 %v1516
  %2156 = vmatprep.subr.bf16.mxu0 %v1515
  %2157 = vmatpush2.bf16.msra.mxu0 %v1514
  %2158 = vmatprep.subr.bf16.mxu0 %v1513
  %2159 = vmatpush2.bf16.msra.mxu0 %v1512
  %2160 = vmatprep.subr.bf16.mxu0 %v1511
  %2161 = vmatpush2.bf16.msra.mxu0 %v1510
  %2162 = vmatprep.subr.bf16.mxu0 %v1509
  %2163 = vmatpush2.bf16.msra.mxu0 %v1508
  %2164 = vmatprep.subr.bf16.mxu0 %v1507
  %2165 = vmatpush2.bf16.msra.mxu0 %v1506
  %2166 = vmatprep.subr.bf16.mxu0 %v1505
  %2167 = vmatpush2.bf16.msra.mxu0 %v1504
  %2168 = vmatprep.subr.bf16.mxu0 %v1503
  %2169 = vmatpush2.bf16.msra.mxu0 %v1502
  %2170 = vmatprep.mubr.bf16.mxu0 %v431
  %2171 = vmatmul.mubr.bf16.gmra.mxu0 %v430
  %v2172 = vpop.f32.mrf.mxu0
  %v2173 = vadd.f32 %v2122, %v2172
  %v2174 = vpop.f32.mrf.mxu0
  %v2175 = vadd.f32 %v2124, %v2174
  %v2176 = vpop.f32.mrf.mxu0
  %v2177 = vadd.f32 %v2126, %v2176
  %v2178 = vpop.f32.mrf.mxu0
  %v2179 = vadd.f32 %v2128, %v2178
  %2180 = vmatprep.mubr.bf16.mxu0 %v449
  %2181 = vmatmul.mubr.bf16.gmra.mxu0 %v448
  %v2182 = vpop.f32.mrf.mxu0
  %v2183 = vadd.f32 %v2132, %v2182
  %v2184 = vpop.f32.mrf.mxu0
  %v2185 = vadd.f32 %v2134, %v2184
  %v2186 = vpop.f32.mrf.mxu0
  %v2187 = vpop.f32.mrf.mxu0
  %2188 = vdwg.mxu0
  %2189 = vmatprep.subr.bf16.mxu0 %v1533
  %2190 = vmatpush1.bf16.msra.mxu0 %v1532
  %2191 = vmatprep.subr.bf16.mxu0 %v1531
  %2192 = vmatpush1.bf16.msra.mxu0 %v1530
  %2193 = vmatprep.subr.bf16.mxu0 %v1529
  %2194 = vmatpush1.bf16.msra.mxu0 %v1528
  %2195 = vmatprep.subr.bf16.mxu0 %v1527
  %2196 = vmatpush1.bf16.msra.mxu0 %v1526
  %2197 = vmatprep.subr.bf16.mxu0 %v1525
  %2198 = vmatpush1.bf16.msra.mxu0 %v1524
  %2199 = vmatprep.subr.bf16.mxu0 %v1523
  %2200 = vmatpush1.bf16.msra.mxu0 %v1522
  %2201 = vmatprep.subr.bf16.mxu0 %v1521
  %2202 = vmatpush1.bf16.msra.mxu0 %v1520
  %2203 = vmatprep.subr.bf16.mxu0 %v1519
  %2204 = vmatpush1.bf16.msra.mxu0 %v1518
  %2205 = vmatprep.subr.bf16.mxu0 %v1549
  %2206 = vmatpush2.bf16.msra.mxu0 %v1548
  %2207 = vmatprep.subr.bf16.mxu0 %v1547
  %2208 = vmatpush2.bf16.msra.mxu0 %v1546
  %2209 = vmatprep.subr.bf16.mxu0 %v1545
  %2210 = vmatpush2.bf16.msra.mxu0 %v1544
  %2211 = vmatprep.subr.bf16.mxu0 %v1543
  %2212 = vmatpush2.bf16.msra.mxu0 %v1542
  %2213 = vmatprep.subr.bf16.mxu0 %v1541
  %2214 = vmatpush2.bf16.msra.mxu0 %v1540
  %2215 = vmatprep.subr.bf16.mxu0 %v1539
  %2216 = vmatpush2.bf16.msra.mxu0 %v1538
  %2217 = vmatprep.subr.bf16.mxu0 %v1537
  %2218 = vmatpush2.bf16.msra.mxu0 %v1536
  %2219 = vmatprep.subr.bf16.mxu0 %v1535
  %2220 = vmatpush2.bf16.msra.mxu0 %v1534
  %2221 = vmatprep.mubr.bf16.mxu0 %v433
  %2222 = vmatmul.mubr.bf16.gmra.mxu0 %v432
  %v2223 = vpop.f32.mrf.mxu0
  %v2224 = vadd.f32 %v2173, %v2223
  %v2225 = vpop.f32.mrf.mxu0
  %v2226 = vadd.f32 %v2175, %v2225
  %v2227 = vpop.f32.mrf.mxu0
  %v2228 = vadd.f32 %v2177, %v2227
  %v2229 = vpop.f32.mrf.mxu0
  %v2230 = vadd.f32 %v2179, %v2229
  %2231 = vmatprep.mubr.bf16.mxu0 %v451
  %2232 = vmatmul.mubr.bf16.gmra.mxu0 %v450
  %v2233 = vpop.f32.mrf.mxu0
  %v2234 = vadd.f32 %v2183, %v2233
  %v2235 = vpop.f32.mrf.mxu0
  %v2236 = vadd.f32 %v2185, %v2235
  %v2237 = vpop.f32.mrf.mxu0
  %v2238 = vpop.f32.mrf.mxu0
  %2239 = vdwg.mxu0
  %2240 = vmatprep.subr.bf16.mxu0 %v1565
  %2241 = vmatpush1.bf16.msra.mxu0 %v1564
  %2242 = vmatprep.subr.bf16.mxu0 %v1563
  %2243 = vmatpush1.bf16.msra.mxu0 %v1562
  %2244 = vmatprep.subr.bf16.mxu0 %v1561
  %2245 = vmatpush1.bf16.msra.mxu0 %v1560
  %2246 = vmatprep.subr.bf16.mxu0 %v1559
  %2247 = vmatpush1.bf16.msra.mxu0 %v1558
  %2248 = vmatprep.subr.bf16.mxu0 %v1557
  %2249 = vmatpush1.bf16.msra.mxu0 %v1556
  %2250 = vmatprep.subr.bf16.mxu0 %v1555
  %2251 = vmatpush1.bf16.msra.mxu0 %v1554
  %2252 = vmatprep.subr.bf16.mxu0 %v1553
  %2253 = vmatpush1.bf16.msra.mxu0 %v1552
  %2254 = vmatprep.subr.bf16.mxu0 %v1551
  %2255 = vmatpush1.bf16.msra.mxu0 %v1550
  %2256 = vmatprep.subr.bf16.mxu0 %v1581
  %2257 = vmatpush2.bf16.msra.mxu0 %v1580
  %2258 = vmatprep.subr.bf16.mxu0 %v1579
  %2259 = vmatpush2.bf16.msra.mxu0 %v1578
  %2260 = vmatprep.subr.bf16.mxu0 %v1577
  %2261 = vmatpush2.bf16.msra.mxu0 %v1576
  %2262 = vmatprep.subr.bf16.mxu0 %v1575
  %2263 = vmatpush2.bf16.msra.mxu0 %v1574
  %2264 = vmatprep.subr.bf16.mxu0 %v1573
  %2265 = vmatpush2.bf16.msra.mxu0 %v1572
  %2266 = vmatprep.subr.bf16.mxu0 %v1571
  %2267 = vmatpush2.bf16.msra.mxu0 %v1570
  %2268 = vmatprep.subr.bf16.mxu0 %v1569
  %2269 = vmatpush2.bf16.msra.mxu0 %v1568
  %2270 = vmatprep.subr.bf16.mxu0 %v1567
  %2271 = vmatpush2.bf16.msra.mxu0 %v1566
  %2272 = vmatprep.mubr.bf16.mxu0 %v435
  %2273 = vmatmul.mubr.bf16.gmra.mxu0 %v434
  %v2274 = vpop.f32.mrf.mxu0
  %v2275 = vadd.f32 %v2224, %v2274
  %v2276 = vpop.f32.mrf.mxu0
  %v2277 = vadd.f32 %v2226, %v2276
  %v2278 = vpop.f32.mrf.mxu0
  %v2279 = vadd.f32 %v2228, %v2278
  %v2280 = vpop.f32.mrf.mxu0
  %v2281 = vadd.f32 %v2230, %v2280
  %2282 = vmatprep.mubr.bf16.mxu0 %v453
  %2283 = vmatmul.mubr.bf16.gmra.mxu0 %v452
  %v2284 = vpop.f32.mrf.mxu0
  %v2285 = vadd.f32 %v2234, %v2284
  %v2286 = vpop.f32.mrf.mxu0
  %v2287 = vadd.f32 %v2236, %v2286
  %v2288 = vpop.f32.mrf.mxu0
  %v2289 = vpop.f32.mrf.mxu0
  %2290 = vdwg.mxu0
  %2291 = vmatprep.subr.bf16.mxu0 %v1597
  %2292 = vmatpush1.bf16.msra.mxu0 %v1596
  %2293 = vmatprep.subr.bf16.mxu0 %v1595
  %2294 = vmatpush1.bf16.msra.mxu0 %v1594
  %2295 = vmatprep.subr.bf16.mxu0 %v1593
  %2296 = vmatpush1.bf16.msra.mxu0 %v1592
  %2297 = vmatprep.subr.bf16.mxu0 %v1591
  %2298 = vmatpush1.bf16.msra.mxu0 %v1590
  %2299 = vmatprep.subr.bf16.mxu0 %v1589
  %2300 = vmatpush1.bf16.msra.mxu0 %v1588
  %2301 = vmatprep.subr.bf16.mxu0 %v1587
  %2302 = vmatpush1.bf16.msra.mxu0 %v1586
  %2303 = vmatprep.subr.bf16.mxu0 %v1585
  %2304 = vmatpush1.bf16.msra.mxu0 %v1584
  %2305 = vmatprep.subr.bf16.mxu0 %v1583
  %2306 = vmatpush1.bf16.msra.mxu0 %v1582
  %2307 = vmatprep.subr.bf16.mxu0 %v1613
  %2308 = vmatpush2.bf16.msra.mxu0 %v1612
  %2309 = vmatprep.subr.bf16.mxu0 %v1611
  %2310 = vmatpush2.bf16.msra.mxu0 %v1610
  %2311 = vmatprep.subr.bf16.mxu0 %v1609
  %2312 = vmatpush2.bf16.msra.mxu0 %v1608
  %2313 = vmatprep.subr.bf16.mxu0 %v1607
  %2314 = vmatpush2.bf16.msra.mxu0 %v1606
  %2315 = vmatprep.subr.bf16.mxu0 %v1605
  %2316 = vmatpush2.bf16.msra.mxu0 %v1604
  %2317 = vmatprep.subr.bf16.mxu0 %v1603
  %2318 = vmatpush2.bf16.msra.mxu0 %v1602
  %2319 = vmatprep.subr.bf16.mxu0 %v1601
  %2320 = vmatpush2.bf16.msra.mxu0 %v1600
  %2321 = vmatprep.subr.bf16.mxu0 %v1599
  %2322 = vmatpush2.bf16.msra.mxu0 %v1598
  %2323 = vmatprep.mubr.bf16.mxu0 %v437
  %2324 = vmatmul.mubr.bf16.gmra.mxu0 %v436
  %v2325 = vpop.f32.mrf.mxu0
  %v2326 = vadd.f32 %v2275, %v2325
  %v2327 = vpop.f32.mrf.mxu0
  %v2328 = vadd.f32 %v2277, %v2327
  %v2329 = vpop.f32.mrf.mxu0
  %v2330 = vadd.f32 %v2279, %v2329
  %v2331 = vpop.f32.mrf.mxu0
  %v2332 = vadd.f32 %v2281, %v2331
  %2333 = vmatprep.mubr.bf16.mxu0 %v455
  %2334 = vmatmul.mubr.bf16.gmra.mxu0 %v454
  %v2335 = vpop.f32.mrf.mxu0
  %v2336 = vadd.f32 %v2285, %v2335
  %v2337 = vpop.f32.mrf.mxu0
  %v2338 = vadd.f32 %v2287, %v2337
  %v2339 = vpop.f32.mrf.mxu0
  %v2340 = vpop.f32.mrf.mxu0
  %2341 = vdwg.mxu0
  %2342 = vmatprep.subr.bf16.mxu0 %v1629
  %2343 = vmatpush1.bf16.msra.mxu0 %v1628
  %2344 = vmatprep.subr.bf16.mxu0 %v1627
  %2345 = vmatpush1.bf16.msra.mxu0 %v1626
  %2346 = vmatprep.subr.bf16.mxu0 %v1625
  %2347 = vmatpush1.bf16.msra.mxu0 %v1624
  %2348 = vmatprep.subr.bf16.mxu0 %v1623
  %2349 = vmatpush1.bf16.msra.mxu0 %v1622
  %2350 = vmatprep.subr.bf16.mxu0 %v1621
  %2351 = vmatpush1.bf16.msra.mxu0 %v1620
  %2352 = vmatprep.subr.bf16.mxu0 %v1619
  %2353 = vmatpush1.bf16.msra.mxu0 %v1618
  %2354 = vmatprep.subr.bf16.mxu0 %v1617
  %2355 = vmatpush1.bf16.msra.mxu0 %v1616
  %2356 = vmatprep.subr.bf16.mxu0 %v1615
  %2357 = vmatpush1.bf16.msra.mxu0 %v1614
  %2358 = vmatprep.subr.bf16.mxu0 %v1645
  %2359 = vmatpush2.bf16.msra.mxu0 %v1644
  %2360 = vmatprep.subr.bf16.mxu0 %v1643
  %2361 = vmatpush2.bf16.msra.mxu0 %v1642
  %2362 = vmatprep.subr.bf16.mxu0 %v1641
  %2363 = vmatpush2.bf16.msra.mxu0 %v1640
  %2364 = vmatprep.subr.bf16.mxu0 %v1639
  %2365 = vmatpush2.bf16.msra.mxu0 %v1638
  %2366 = vmatprep.subr.bf16.mxu0 %v1637
  %2367 = vmatpush2.bf16.msra.mxu0 %v1636
  %2368 = vmatprep.subr.bf16.mxu0 %v1635
  %2369 = vmatpush2.bf16.msra.mxu0 %v1634
  %2370 = vmatprep.subr.bf16.mxu0 %v1633
  %2371 = vmatpush2.bf16.msra.mxu0 %v1632
  %2372 = vmatprep.subr.bf16.mxu0 %v1631
  %2373 = vmatpush2.bf16.msra.mxu0 %v1630
  %2374 = vmatprep.mubr.bf16.mxu0 %v439
  %2375 = vmatmul.mubr.bf16.gmra.mxu0 %v438
  %v2376 = vpop.f32.mrf.mxu0
  %v2377 = vadd.f32 %v2326, %v2376
  %v2378 = vpop.f32.mrf.mxu0
  %v2379 = vadd.f32 %v2328, %v2378
  %v2380 = vpop.f32.mrf.mxu0
  %v2381 = vadd.f32 %v2330, %v2380
  %v2382 = vpop.f32.mrf.mxu0
  %v2383 = vadd.f32 %v2332, %v2382
  %2384 = vmatprep.mubr.bf16.mxu0 %v457
  %2385 = vmatmul.mubr.bf16.gmra.mxu0 %v456
  %v2386 = vpop.f32.mrf.mxu0
  %v2387 = vadd.f32 %v2336, %v2386
  %v2388 = vpop.f32.mrf.mxu0
  %v2389 = vadd.f32 %v2338, %v2388
  %v2390 = vpop.f32.mrf.mxu0
  %v2391 = vpop.f32.mrf.mxu0
  %2392 = vdwg.mxu0
  %v2393 = vmax.f32 %v2377, 0.0
  %v2394 = vmax.f32 %v2379, 0.0
  %v2395 = vmax.f32 %v2381, 0.0
  %v2396 = vmax.f32 %v2383, 0.0
  %v2397 = vmax.f32 %v2387, 0.0
  %v2398 = vmax.f32 %v2389, 0.0
  %v2399 = vpack.c.bf16 %v2395, %v2393
  %v2400 = vpack.c.bf16 %v2396, %v2394
  %v2401 = vpack.c.bf16 %v2397, %v2397
  %v2402 = vpack.c.bf16 %v2398, %v2398
  %v2407 = vunpack.c.l.b16 %v2399
  %v2408 = vunpack.c.l.b16 %v2400
  %v2409 = vunpack.c.h.b16 %v2399
  %v2410 = vunpack.c.h.b16 %v2400
  %v2411 = vunpack.c.l.b16 %v2401
  %v2412 = vunpack.c.l.b16 %v2402
  %v2413 = vpack.c.b16 %v2408, %v2407
  %v2414 = vpack.c.b16 %v2410, %v2409
  %v2415 = vpack.c.b16 %v2412, %v2411
  %2419 = vst [vmem:[%s3] sm:$0xff] %v2413
  %2420 = vst [vmem:[%s3 + $0x8] sm:$0xff] %v2414
  %2421 = vst [vmem:[%s3 + $0x10] sm:$0x11] %v2415
  // Predicated region
  $region14: #{alexnet_forward.14} parent=0 // pred_check
    _
  $region15: #{alexnet_forward.14} parent=0 // pred_check_branch
    %2423 = sbr.rel (0) target = $region17
  $region16: #{alexnet_forward.14} parent=0 // pred_region
    _
  $region17: #{alexnet_forward.14} parent=0 // pred_fallthru
    _
  // Predicated region
  $region18: #{alexnet_forward.14} parent=0 // pred_check
    _
  $region19: #{alexnet_forward.14} parent=0 // pred_check_branch
    %2425 = sbr.rel (0) target = $region21
  $region20: #{alexnet_forward.14} parent=0 // pred_region
    _
  $region21: #{alexnet_forward.14} parent=0 // pred_fallthru
    _

</llo_original>
